<compile_context>
chip_gen: v5e
topology: v5e:2x2
jax: 0.10.0
libtpu: 0.0.40
codegen_flags: <defaults>
</compile_context>

<pallas_src>
import functools

import jax
import jax.numpy as jnp
from jax import lax
from jax.experimental import pallas as pl
from jax.experimental.pallas import tpu as pltpu

NUM_CLASSES = 10
COUT_PAD = 128          # lane-dense channel padding for both conv outputs


# --------------------------------------------------------------------------- #
# conv1: per-parity-class im2col matmul + bias + ReLU + 2x2 maxpool            #
# --------------------------------------------------------------------------- #
def _conv1_kernel(x_ref, w_ref, b_ref, o_ref, *, b_blk, m_chunk):
    """x_ref: (B, 4, MP, 16) bf16  per-class im2col LHS (9 taps of 1 channel -> K=16)
       w_ref: (16, 128) bf16       tap-major weights (t = kh*3+kw), Cout 32 -> 128
       b_ref: (1, 128)  f32
       o_ref: (B, MP, 128) bf16    pooled (14,14) slab row-major; rows >= 196 are junk
    """
    w = w_ref[...]
    bias = b_ref[...]
    mp = o_ref.shape[1]
    for img in range(b_blk):
        for c0 in range(0, mp, m_chunk):            # 8-aligned chunks keep vregs low
            pool = None
            for cls in range(4):                    # one dot per 2x2-pool member
                lhs = x_ref[img, cls, pl.ds(c0, m_chunk), :]
                acc = jnp.dot(lhs, w, preferred_element_type=jnp.float32)
                h = jnp.maximum(acc + bias, 0.0)
                pool = h if pool is None else jnp.maximum(pool, h)
            o_ref[img, pl.ds(c0, m_chunk), :] = pool.astype(o_ref.dtype)


def conv1_relu_pool(lhs1, w, b, *, b_blk):
    np_, _, mp, _ = lhs1.shape
    kernel = functools.partial(_conv1_kernel, b_blk=b_blk, m_chunk=mp // 4)
    return pl.pallas_call(
        kernel,
        out_shape=jax.ShapeDtypeStruct((np_, mp, COUT_PAD), jnp.bfloat16),
        grid=(np_ // b_blk,),
        in_specs=[
            pl.BlockSpec((b_blk, 4, mp, 16), lambda n: (n, 0, 0, 0)),
            pl.BlockSpec((16, COUT_PAD), lambda n: (0, 0)),
            pl.BlockSpec((1, COUT_PAD), lambda n: (0, 0)),
        ],
        out_specs=pl.BlockSpec((b_blk, mp, COUT_PAD), lambda n: (n, 0, 0)),
        compiler_params=pltpu.CompilerParams(dimension_semantics=("parallel",)),
    )(lhs1, w, b)


# --------------------------------------------------------------------------- #
# conv2: parity-decomposed 9-tap matmuls + bias + ReLU + 2x2 maxpool           #
# --------------------------------------------------------------------------- #
def _conv2_kernel(xs_ref, w_ref, b_ref, o_ref, *, b_blk, wq, m):
    """xs_ref: (B, 4, Lq, 32) bf16  4 parity sub-images of padded input, zero-extended
       w_ref : (9, 32, 128) bf16    taps (t = kh*3+kw), Cout 64 -> 128
       b_ref : (1, 128) f32
       o_ref : (B, M, 128) bf16     pooled slab on the (8,8) grid; i==7 / j==7 rows junk
    """
    w = w_ref[...]                                   # keep all taps resident (~18 vregs)
    bias = b_ref[...]
    for img in range(b_blk):
        pool = None
        for cls in range(4):
            a, b = cls // 2, cls % 2
            acc = None
            for t in range(9):                       # value accumulation, no scratch RMW
                kh, kw = t // 3, t % 3
                alpha, beta = a + kh, b + kw
                sub = (alpha % 2) * 2 + (beta % 2)
                off = (alpha // 2) * wq + (beta // 2)
                lhs = xs_ref[img, sub, pl.ds(off, m), :]
                part = jnp.dot(lhs, w[t], preferred_element_type=jnp.float32)
                acc = part if acc is None else acc + part
            h = jnp.maximum(acc + bias, 0.0)
            pool = h if pool is None else jnp.maximum(pool, h)
        o_ref[img] = pool.astype(o_ref.dtype)        # single aligned lane-dense store


def conv2_relu_pool(xs2, w, b, *, b_blk, wq, m):
    np_, _, lq, cin = xs2.shape
    kernel = functools.partial(_conv2_kernel, b_blk=b_blk, wq=wq, m=m)
    return pl.pallas_call(
        kernel,
        out_shape=jax.ShapeDtypeStruct((np_, m, COUT_PAD), jnp.bfloat16),
        grid=(np_ // b_blk,),
        in_specs=[
            pl.BlockSpec((b_blk, 4, lq, cin), lambda n: (n, 0, 0, 0)),
            pl.BlockSpec((9, cin, COUT_PAD), lambda n: (0, 0, 0)),
            pl.BlockSpec((1, COUT_PAD), lambda n: (0, 0)),
        ],
        out_specs=pl.BlockSpec((b_blk, m, COUT_PAD), lambda n: (n, 0, 0)),
        compiler_params=pltpu.CompilerParams(dimension_semantics=("parallel",)),
    )(xs2, w, b)


# --------------------------------------------------------------------------- #
# fc1 + ReLU + fc2 (fc1 activation never leaves VMEM)                          #
# --------------------------------------------------------------------------- #
def _fc_fused_kernel(x_ref, w1_ref, b1_ref, w2_ref, b2_ref, o_ref):
    h = jnp.dot(x_ref[...], w1_ref[...], preferred_element_type=jnp.float32)
    h = jnp.maximum(h + b1_ref[...], 0.0)
    out = jnp.dot(h.astype(w2_ref.dtype), w2_ref[...],
                  preferred_element_type=jnp.float32)
    o_ref[...] = (out + b2_ref[...]).astype(o_ref.dtype)


def fc1_relu_fc2(x, w1, b1, w2, b2):
    m, k = x.shape
    _, n1 = w1.shape
    _, n2 = w2.shape
    m8 = max(8, ((m + 7) // 8) * 8)
    tm = min(256, m8)                      # 256-row tiles match v6e/v7x MXU depth
    mpad = ((m8 + tm - 1) // tm) * tm
    xp = jnp.pad(x, ((0, mpad - m), (0, 0))).astype(jnp.bfloat16)

    out = pl.pallas_call(
        _fc_fused_kernel,
        out_shape=jax.ShapeDtypeStruct((mpad, n2), jnp.float32),
        grid=(mpad // tm,),
        in_specs=[
            pl.BlockSpec((tm, k), lambda i: (i, 0)),
            pl.BlockSpec((k, n1), lambda i: (0, 0)),   # weights stay VMEM-resident
            pl.BlockSpec((1, n1), lambda i: (0, 0)),
            pl.BlockSpec((n1, n2), lambda i: (0, 0)),
            pl.BlockSpec((1, n2), lambda i: (0, 0)),
        ],
        out_specs=pl.BlockSpec((tm, n2), lambda i: (i, 0)),
        compiler_params=pltpu.CompilerParams(dimension_semantics=("parallel",)),
    )(xp, w1, b1, w2, b2)
    return out[:m]


# --------------------------------------------------------------------------- #
# Parameters                                                                   #
# --------------------------------------------------------------------------- #
def init_params(key):
    """PyTorch-layout params with PyTorch-style U(-1/sqrt(fan_in), +) init."""
    ks = jax.random.split(key, 8)

    def u(k, shape, fan_in):
        bound = 1.0 / jnp.sqrt(jnp.float32(fan_in))
        return jax.random.uniform(k, shape, jnp.float32, -bound, bound)

    return {
        "conv1_w": u(ks[0], (32, 1, 3, 3), 1 * 9),
        "conv1_b": u(ks[1], (32,), 1 * 9),
        "conv2_w": u(ks[2], (64, 32, 3, 3), 32 * 9),
        "conv2_b": u(ks[3], (64,), 32 * 9),
        "fc1_w": u(ks[4], (128, 64 * 7 * 7), 64 * 7 * 7),
        "fc1_b": u(ks[5], (128,), 64 * 7 * 7),
        "fc2_w": u(ks[6], (10, 128), 128),
        "fc2_b": u(ks[7], (10,), 128),
    }


def prepare_params(params):
    """One-time conversion of PyTorch-layout weights into kernel layouts."""
    # conv1: (32,1,3,3) -> (16,128) tap-major rows (t = kh*3+kw), K 9->16, Cout 32->128.
    w1 = jnp.transpose(params["conv1_w"][:, 0], (1, 2, 0)).reshape(9, 32)
    w1 = jnp.pad(w1, ((0, 7), (0, 96))).astype(jnp.bfloat16)
    b1 = jnp.pad(params["conv1_b"], (0, 96)).reshape(1, 128).astype(jnp.float32)

    # conv2: (64,32,3,3) -> (9,32,128) tap-major, Cout 64->128.
    w2 = jnp.transpose(params["conv2_w"], (2, 3, 1, 0)).reshape(9, 32, 64)
    w2 = jnp.pad(w2, ((0, 0), (0, 0), (0, 64))).astype(jnp.bfloat16)
    b2 = jnp.pad(params["conv2_b"], (0, 64)).reshape(1, 128).astype(jnp.float32)

    # fc1: torch (128, 64*7*7) NCHW-flatten -> (8192, 128) rows matching the raw
    # (m = h*8+w, c) conv2 output slab; junk rows (h==7, w==7, c>=64) stay zero so the
    # conv2 output feeds fc1 with a plain reshape (no crop/gather between layers).
    f1 = params["fc1_w"].reshape(128, 64, 7, 7)
    f1 = jnp.transpose(f1, (2, 3, 1, 0))                     # (h, w, c, out)
    f1 = jnp.pad(f1, ((0, 1), (0, 1), (0, 64), (0, 0)))      # (8, 8, 128, 128)
    fc1_w = f1.reshape(8 * 8 * 128, 128).astype(jnp.bfloat16)
    fc1_b = params["fc1_b"].reshape(1, 128).astype(jnp.float32)

    # fc2: (10,128) -> (128,128) lane-dense padded logits.
    fc2_w = jnp.pad(params["fc2_w"].T,
                    ((0, 0), (0, 128 - NUM_CLASSES))).astype(jnp.bfloat16)
    fc2_b = jnp.pad(params["fc2_b"],
                    (0, 128 - NUM_CLASSES)).reshape(1, 128).astype(jnp.float32)

    return {"conv1_w": w1, "conv1_b": b1, "conv2_w": w2, "conv2_b": b2,
            "fc1_w": fc1_w, "fc1_b": fc1_b, "fc2_w": fc2_w, "fc2_b": fc2_b}


# --------------------------------------------------------------------------- #
# Forward                                                                      #
# --------------------------------------------------------------------------- #
def simple_cnn_forward(kp, x_nchw):
    """Exact SimpleCNN forward. x_nchw: (N, 1, 28, 28) f32 -> (N, 10) f32."""
    n = x_nchw.shape[0]
    b_blk = max(1, min(4, n // 2))          # keep >=2 grid steps for megacore
    n_pad = ((n + b_blk - 1) // b_blk) * b_blk

    # conv1 prep: per-parity-class im2col of the single input channel (K = 9 taps).
    xp = jnp.pad(x_nchw[:, 0], ((0, n_pad - n), (1, 1), (1, 1)))       # (Np, 30, 30)
    classes = []
    for a in (0, 1):
        for b in (0, 1):
            taps = [xp[:, a + kh:a + kh + 28:2, b + kw:b + kw + 28:2]
                    for kh in range(3) for kw in range(3)]
            classes.append(jnp.stack(taps, axis=-1).reshape(n_pad, 196, 9))
    lhs1 = jnp.stack(classes, axis=1)                                   # (Np, 4, 196, 9)
    lhs1 = jnp.pad(lhs1, ((0, 0), (0, 0), (0, 28), (0, 7))).astype(jnp.bfloat16)

    h1 = conv1_relu_pool(lhs1, kp["conv1_w"], kp["conv1_b"], b_blk=b_blk)  # (Np,224,128)

    # conv2 prep: parity split of the zero-padded 14x14x32 activation.
    # TODO(synk): fold this pad/stride-2 split into conv1's store (needs in-kernel scatter).
    a1 = h1[:, :196, :32].reshape(n_pad, 14, 14, 32)
    a1p = jnp.pad(a1, ((0, 0), (1, 1), (1, 1), (0, 0)))                 # (Np, 16, 16, 32)
    subs = [a1p[:, p::2, q::2, :].reshape(n_pad, 64, 32)
            for p in (0, 1) for q in (0, 1)]
    xs2 = jnp.stack(subs, axis=1)                                       # (Np, 4, 64, 32)
    xs2 = jnp.pad(xs2, ((0, 0), (0, 0), (0, 16), (0, 0)))               # (Np, 4, 80, 32)

    h2 = conv2_relu_pool(xs2, kp["conv2_w"], kp["conv2_b"],
                         b_blk=b_blk, wq=8, m=64)                       # (Np, 64, 128)

    # fc: raw pooled slab -> fc1 (weights pre-permuted / zero-rowed) -> ReLU -> fc2.
    fc_in = h2.reshape(n_pad, 64 * 128)
    logits = fc1_relu_fc2(fc_in, kp["fc1_w"], kp["fc1_b"],
                          kp["fc2_w"], kp["fc2_b"])
    return logits[:n, :NUM_CLASSES]


# --------------------------------------------------------------------------- #
# Pure-JAX f32 reference (mirrors the PyTorch module)                          #
# --------------------------------------------------------------------------- #
def reference_forward(params, x):
    def conv(z, w, b):
        y = lax.conv_general_dilated(z, w, (1, 1), ((1, 1), (1, 1)),
                                     dimension_numbers=("NCHW", "OIHW", "NCHW"))
        return jax.nn.relu(y + b[None, :, None, None])

    def pool(z):
        return lax.reduce_window(z, -jnp.inf, lax.max,
                                 (1, 1, 2, 2), (1, 1, 2, 2), "VALID")

    h = pool(conv(x, params["conv1_w"], params["conv1_b"]))
    h = pool(conv(h, params["conv2_w"], params["conv2_b"]))
    h = h.reshape(x.shape[0], -1)
    h = jax.nn.relu(h @ params["fc1_w"].T + params["fc1_b"])
    return h @ params["fc2_w"].T + params["fc2_b"]


if __name__ == "__main__":
    key = jax.random.PRNGKey(0)
    kx, kparam = jax.random.split(key)
    # Module implies MNIST-like input: (batch, 1, 28, 28) so fc1 sees 64*7*7.
    x = jax.random.normal(kx, (2, 1, 28, 28), jnp.float32)
    params = init_params(kparam)
    kernel_params = prepare_params(params)      # one-time layout conversion

    fwd = jax.jit(simple_cnn_forward)
    out = fwd(kernel_params, x)
    jax.block_until_ready(out)

    assert out.shape == (2, NUM_CLASSES) and out.dtype == jnp.float32
    assert bool(jnp.all(jnp.isfinite(out)))
    ref = reference_forward(params, x)
    err = float(jnp.max(jnp.abs(out - ref)))
    assert err < 0.15, f"mismatch vs f32 reference: {err}"   # bf16 MXU tolerance
    print("KERNEL_OK")
</pallas_src>

<mosaic_0001>
module attributes {stable_mosaic.version = 11 : i64} {
  func.func @_conv1_kernel(%arg0: i32, %arg1: memref<1x4x224x16xbf16, #tpu.memory_space<vmem>>, %arg2: memref<16x128xbf16, #tpu.memory_space<vmem>>, %arg3: memref<1x128xf32, #tpu.memory_space<vmem>>, %arg4: memref<1x224x128xbf16, #tpu.memory_space<vmem>>) attributes {dimension_semantics = [#tpu.dimension_semantics<parallel>], iteration_bounds = array<i64: 2>, scalar_prefetch = 0 : i64, scratch_operands = 0 : i64, tpu.core_type = #tpu.core_type<tc>, window_params = [{transform_indices = @transform_0, window_bounds = array<i64: 1, 4, 224, 16>}, {pipeline_mode = #tpu.pipeline_mode<synchronous>, transform_indices = @transform_1, window_bounds = array<i64: 16, 128>}, {pipeline_mode = #tpu.pipeline_mode<synchronous>, transform_indices = @transform_2, window_bounds = array<i64: 1, 128>}, {transform_indices = @transform_3, window_bounds = array<i64: 1, 224, 128>}]} {
    %c0 = arith.constant 0 : index
    %c0_0 = arith.constant 0 : index
    %0 = vector.load %arg2[%c0, %c0_0] : memref<16x128xbf16, #tpu.memory_space<vmem>>, vector<16x128xbf16>
    %c0_1 = arith.constant 0 : index
    %c0_2 = arith.constant 0 : index
    %1 = vector.load %arg3[%c0_1, %c0_2] : memref<1x128xf32, #tpu.memory_space<vmem>>, vector<1x128xf32>
    %c0_3 = arith.constant 0 : index
    %c0_4 = arith.constant 0 : index
    %c0_5 = arith.constant 0 : index
    %c0_6 = arith.constant 0 : index
    %2 = vector.load %arg1[%c0_3, %c0_4, %c0_5, %c0_6] : memref<1x4x224x16xbf16, #tpu.memory_space<vmem>>, vector<1x1x56x16xbf16>
    %3 = vector.shape_cast %2 : vector<1x1x56x16xbf16> to vector<56x16xbf16>
    %cst = arith.constant dense<0.000000e+00> : vector<56x128xf32>
    %4 = tpu.matmul %3, %0, %cst {dimension_numbers = #tpu.dot_dimension_numbers<[1], [0], [0], [1], [0, 0, 1, 1], [], []>} : vector<56x16xbf16>, vector<16x128xbf16>, vector<56x128xf32> -> vector<56x128xf32>
    %5 = vector.broadcast %1 : vector<1x128xf32> to vector<56x128xf32>
    %6 = arith.addf %4, %5 : vector<56x128xf32>
    %cst_7 = arith.constant 0.000000e+00 : f32
    %7 = vector.broadcast %cst_7 : f32 to vector<56x128xf32>
    %8 = arith.maximumf %6, %7 : vector<56x128xf32>
    %c0_8 = arith.constant 0 : index
    %c1 = arith.constant 1 : index
    %c0_9 = arith.constant 0 : index
    %c0_10 = arith.constant 0 : index
    %9 = vector.load %arg1[%c0_8, %c1, %c0_9, %c0_10] : memref<1x4x224x16xbf16, #tpu.memory_space<vmem>>, vector<1x1x56x16xbf16>
    %10 = vector.shape_cast %9 : vector<1x1x56x16xbf16> to vector<56x16xbf16>
    %cst_11 = arith.constant dense<0.000000e+00> : vector<56x128xf32>
    %11 = tpu.matmul %10, %0, %cst_11 {dimension_numbers = #tpu.dot_dimension_numbers<[1], [0], [0], [1], [0, 0, 1, 1], [], []>} : vector<56x16xbf16>, vector<16x128xbf16>, vector<56x128xf32> -> vector<56x128xf32>
    %12 = vector.broadcast %1 : vector<1x128xf32> to vector<56x128xf32>
    %13 = arith.addf %11, %12 : vector<56x128xf32>
    %cst_12 = arith.constant 0.000000e+00 : f32
    %14 = vector.broadcast %cst_12 : f32 to vector<56x128xf32>
    %15 = arith.maximumf %13, %14 : vector<56x128xf32>
    %16 = arith.maximumf %8, %15 : vector<56x128xf32>
    %c0_13 = arith.constant 0 : index
    %c2 = arith.constant 2 : index
    %c0_14 = arith.constant 0 : index
    %c0_15 = arith.constant 0 : index
    %17 = vector.load %arg1[%c0_13, %c2, %c0_14, %c0_15] : memref<1x4x224x16xbf16, #tpu.memory_space<vmem>>, vector<1x1x56x16xbf16>
    %18 = vector.shape_cast %17 : vector<1x1x56x16xbf16> to vector<56x16xbf16>
    %cst_16 = arith.constant dense<0.000000e+00> : vector<56x128xf32>
    %19 = tpu.matmul %18, %0, %cst_16 {dimension_numbers = #tpu.dot_dimension_numbers<[1], [0], [0], [1], [0, 0, 1, 1], [], []>} : vector<56x16xbf16>, vector<16x128xbf16>, vector<56x128xf32> -> vector<56x128xf32>
    %20 = vector.broadcast %1 : vector<1x128xf32> to vector<56x128xf32>
    %21 = arith.addf %19, %20 : vector<56x128xf32>
    %cst_17 = arith.constant 0.000000e+00 : f32
    %22 = vector.broadcast %cst_17 : f32 to vector<56x128xf32>
    %23 = arith.maximumf %21, %22 : vector<56x128xf32>
    %24 = arith.maximumf %16, %23 : vector<56x128xf32>
    %c0_18 = arith.constant 0 : index
    %c3 = arith.constant 3 : index
    %c0_19 = arith.constant 0 : index
    %c0_20 = arith.constant 0 : index
    %25 = vector.load %arg1[%c0_18, %c3, %c0_19, %c0_20] : memref<1x4x224x16xbf16, #tpu.memory_space<vmem>>, vector<1x1x56x16xbf16>
    %26 = vector.shape_cast %25 : vector<1x1x56x16xbf16> to vector<56x16xbf16>
    %cst_21 = arith.constant dense<0.000000e+00> : vector<56x128xf32>
    %27 = tpu.matmul %26, %0, %cst_21 {dimension_numbers = #tpu.dot_dimension_numbers<[1], [0], [0], [1], [0, 0, 1, 1], [], []>} : vector<56x16xbf16>, vector<16x128xbf16>, vector<56x128xf32> -> vector<56x128xf32>
    %28 = vector.broadcast %1 : vector<1x128xf32> to vector<56x128xf32>
    %29 = arith.addf %27, %28 : vector<56x128xf32>
    %cst_22 = arith.constant 0.000000e+00 : f32
    %30 = vector.broadcast %cst_22 : f32 to vector<56x128xf32>
    %31 = arith.maximumf %29, %30 : vector<56x128xf32>
    %32 = arith.maximumf %24, %31 : vector<56x128xf32>
    %33 = arith.truncf %32 : vector<56x128xf32> to vector<56x128xbf16>
    %c0_23 = arith.constant 0 : index
    %c0_24 = arith.constant 0 : index
    %c0_25 = arith.constant 0 : index
    %34 = vector.load %arg4[%c0_23, %c0_24, %c0_25] : memref<1x224x128xbf16, #tpu.memory_space<vmem>>, vector<1x56x128xbf16>
    %35 = vector.shape_cast %34 : vector<1x56x128xbf16> to vector<56x128xbf16>
    %36 = vector.shape_cast %33 : vector<56x128xbf16> to vector<1x56x128xbf16>
    tpu.vector_store %arg4[%c0_23, %c0_24, %c0_25], %36 {strides = array<i32>} : memref<1x224x128xbf16, #tpu.memory_space<vmem>>, vector<1x56x128xbf16>,
    %c0_26 = arith.constant 0 : index
    %c0_27 = arith.constant 0 : index
    %c56 = arith.constant 56 : index
    %c0_28 = arith.constant 0 : index
    %37 = vector.load %arg1[%c0_26, %c0_27, %c56, %c0_28] : memref<1x4x224x16xbf16, #tpu.memory_space<vmem>>, vector<1x1x56x16xbf16>
    %38 = vector.shape_cast %37 : vector<1x1x56x16xbf16> to vector<56x16xbf16>
    %cst_29 = arith.constant dense<0.000000e+00> : vector<56x128xf32>
    %39 = tpu.matmul %38, %0, %cst_29 {dimension_numbers = #tpu.dot_dimension_numbers<[1], [0], [0], [1], [0, 0, 1, 1], [], []>} : vector<56x16xbf16>, vector<16x128xbf16>, vector<56x128xf32> -> vector<56x128xf32>
    %40 = vector.broadcast %1 : vector<1x128xf32> to vector<56x128xf32>
    %41 = arith.addf %39, %40 : vector<56x128xf32>
    %cst_30 = arith.constant 0.000000e+00 : f32
    %42 = vector.broadcast %cst_30 : f32 to vector<56x128xf32>
    %43 = arith.maximumf %41, %42 : vector<56x128xf32>
    %c0_31 = arith.constant 0 : index
    %c1_32 = arith.constant 1 : index
    %c56_33 = arith.constant 56 : index
    %c0_34 = arith.constant 0 : index
    %44 = vector.load %arg1[%c0_31, %c1_32, %c56_33, %c0_34] : memref<1x4x224x16xbf16, #tpu.memory_space<vmem>>, vector<1x1x56x16xbf16>
    %45 = vector.shape_cast %44 : vector<1x1x56x16xbf16> to vector<56x16xbf16>
    %cst_35 = arith.constant dense<0.000000e+00> : vector<56x128xf32>
    %46 = tpu.matmul %45, %0, %cst_35 {dimension_numbers = #tpu.dot_dimension_numbers<[1], [0], [0], [1], [0, 0, 1, 1], [], []>} : vector<56x16xbf16>, vector<16x128xbf16>, vector<56x128xf32> -> vector<56x128xf32>
    %47 = vector.broadcast %1 : vector<1x128xf32> to vector<56x128xf32>
    %48 = arith.addf %46, %47 : vector<56x128xf32>
    %cst_36 = arith.constant 0.000000e+00 : f32
    %49 = vector.broadcast %cst_36 : f32 to vector<56x128xf32>
    %50 = arith.maximumf %48, %49 : vector<56x128xf32>
    %51 = arith.maximumf %43, %50 : vector<56x128xf32>
    %c0_37 = arith.constant 0 : index
    %c2_38 = arith.constant 2 : index
    %c56_39 = arith.constant 56 : index
    %c0_40 = arith.constant 0 : index
    %52 = vector.load %arg1[%c0_37, %c2_38, %c56_39, %c0_40] : memref<1x4x224x16xbf16, #tpu.memory_space<vmem>>, vector<1x1x56x16xbf16>
    %53 = vector.shape_cast %52 : vector<1x1x56x16xbf16> to vector<56x16xbf16>
    %cst_41 = arith.constant dense<0.000000e+00> : vector<56x128xf32>
    %54 = tpu.matmul %53, %0, %cst_41 {dimension_numbers = #tpu.dot_dimension_numbers<[1], [0], [0], [1], [0, 0, 1, 1], [], []>} : vector<56x16xbf16>, vector<16x128xbf16>, vector<56x128xf32> -> vector<56x128xf32>
    %55 = vector.broadcast %1 : vector<1x128xf32> to vector<56x128xf32>
    %56 = arith.addf %54, %55 : vector<56x128xf32>
    %cst_42 = arith.constant 0.000000e+00 : f32
    %57 = vector.broadcast %cst_42 : f32 to vector<56x128xf32>
    %58 = arith.maximumf %56, %57 : vector<56x128xf32>
    %59 = arith.maximumf %51, %58 : vector<56x128xf32>
    %c0_43 = arith.constant 0 : index
    %c3_44 = arith.constant 3 : index
    %c56_45 = arith.constant 56 : index
    %c0_46 = arith.constant 0 : index
    %60 = vector.load %arg1[%c0_43, %c3_44, %c56_45, %c0_46] : memref<1x4x224x16xbf16, #tpu.memory_space<vmem>>, vector<1x1x56x16xbf16>
    %61 = vector.shape_cast %60 : vector<1x1x56x16xbf16> to vector<56x16xbf16>
    %cst_47 = arith.constant dense<0.000000e+00> : vector<56x128xf32>
    %62 = tpu.matmul %61, %0, %cst_47 {dimension_numbers = #tpu.dot_dimension_numbers<[1], [0], [0], [1], [0, 0, 1, 1], [], []>} : vector<56x16xbf16>, vector<16x128xbf16>, vector<56x128xf32> -> vector<56x128xf32>
    %63 = vector.broadcast %1 : vector<1x128xf32> to vector<56x128xf32>
    %64 = arith.addf %62, %63 : vector<56x128xf32>
    %cst_48 = arith.constant 0.000000e+00 : f32
    %65 = vector.broadcast %cst_48 : f32 to vector<56x128xf32>
    %66 = arith.maximumf %64, %65 : vector<56x128xf32>
    %67 = arith.maximumf %59, %66 : vector<56x128xf32>
    %68 = arith.truncf %67 : vector<56x128xf32> to vector<56x128xbf16>
    %c0_49 = arith.constant 0 : index
    %c56_50 = arith.constant 56 : index
    %c0_51 = arith.constant 0 : index
    %69 = vector.load %arg4[%c0_49, %c56_50, %c0_51] : memref<1x224x128xbf16, #tpu.memory_space<vmem>>, vector<1x56x128xbf16>
    %70 = vector.shape_cast %69 : vector<1x56x128xbf16> to vector<56x128xbf16>
    %71 = vector.shape_cast %68 : vector<56x128xbf16> to vector<1x56x128xbf16>
    tpu.vector_store %arg4[%c0_49, %c56_50, %c0_51], %71 {strides = array<i32>} : memref<1x224x128xbf16, #tpu.memory_space<vmem>>, vector<1x56x128xbf16>,
    %c0_52 = arith.constant 0 : index
    %c0_53 = arith.constant 0 : index
    %c112 = arith.constant 112 : index
    %c0_54 = arith.constant 0 : index
    %72 = vector.load %arg1[%c0_52, %c0_53, %c112, %c0_54] : memref<1x4x224x16xbf16, #tpu.memory_space<vmem>>, vector<1x1x56x16xbf16>
    %73 = vector.shape_cast %72 : vector<1x1x56x16xbf16> to vector<56x16xbf16>
    %cst_55 = arith.constant dense<0.000000e+00> : vector<56x128xf32>
    %74 = tpu.matmul %73, %0, %cst_55 {dimension_numbers = #tpu.dot_dimension_numbers<[1], [0], [0], [1], [0, 0, 1, 1], [], []>} : vector<56x16xbf16>, vector<16x128xbf16>, vector<56x128xf32> -> vector<56x128xf32>
    %75 = vector.broadcast %1 : vector<1x128xf32> to vector<56x128xf32>
    %76 = arith.addf %74, %75 : vector<56x128xf32>
    %cst_56 = arith.constant 0.000000e+00 : f32
    %77 = vector.broadcast %cst_56 : f32 to vector<56x128xf32>
    %78 = arith.maximumf %76, %77 : vector<56x128xf32>
    %c0_57 = arith.constant 0 : index
    %c1_58 = arith.constant 1 : index
    %c112_59 = arith.constant 112 : index
    %c0_60 = arith.constant 0 : index
    %79 = vector.load %arg1[%c0_57, %c1_58, %c112_59, %c0_60] : memref<1x4x224x16xbf16, #tpu.memory_space<vmem>>, vector<1x1x56x16xbf16>
    %80 = vector.shape_cast %79 : vector<1x1x56x16xbf16> to vector<56x16xbf16>
    %cst_61 = arith.constant dense<0.000000e+00> : vector<56x128xf32>
    %81 = tpu.matmul %80, %0, %cst_61 {dimension_numbers = #tpu.dot_dimension_numbers<[1], [0], [0], [1], [0, 0, 1, 1], [], []>} : vector<56x16xbf16>, vector<16x128xbf16>, vector<56x128xf32> -> vector<56x128xf32>
    %82 = vector.broadcast %1 : vector<1x128xf32> to vector<56x128xf32>
    %83 = arith.addf %81, %82 : vector<56x128xf32>
    %cst_62 = arith.constant 0.000000e+00 : f32
    %84 = vector.broadcast %cst_62 : f32 to vector<56x128xf32>
    %85 = arith.maximumf %83, %84 : vector<56x128xf32>
    %86 = arith.maximumf %78, %85 : vector<56x128xf32>
    %c0_63 = arith.constant 0 : index
    %c2_64 = arith.constant 2 : index
    %c112_65 = arith.constant 112 : index
    %c0_66 = arith.constant 0 : index
    %87 = vector.load %arg1[%c0_63, %c2_64, %c112_65, %c0_66] : memref<1x4x224x16xbf16, #tpu.memory_space<vmem>>, vector<1x1x56x16xbf16>
    %88 = vector.shape_cast %87 : vector<1x1x56x16xbf16> to vector<56x16xbf16>
    %cst_67 = arith.constant dense<0.000000e+00> : vector<56x128xf32>
    %89 = tpu.matmul %88, %0, %cst_67 {dimension_numbers = #tpu.dot_dimension_numbers<[1], [0], [0], [1], [0, 0, 1, 1], [], []>} : vector<56x16xbf16>, vector<16x128xbf16>, vector<56x128xf32> -> vector<56x128xf32>
    %90 = vector.broadcast %1 : vector<1x128xf32> to vector<56x128xf32>
    %91 = arith.addf %89, %90 : vector<56x128xf32>
    %cst_68 = arith.constant 0.000000e+00 : f32
    %92 = vector.broadcast %cst_68 : f32 to vector<56x128xf32>
    %93 = arith.maximumf %91, %92 : vector<56x128xf32>
    %94 = arith.maximumf %86, %93 : vector<56x128xf32>
    %c0_69 = arith.constant 0 : index
    %c3_70 = arith.constant 3 : index
    %c112_71 = arith.constant 112 : index
    %c0_72 = arith.constant 0 : index
    %95 = vector.load %arg1[%c0_69, %c3_70, %c112_71, %c0_72] : memref<1x4x224x16xbf16, #tpu.memory_space<vmem>>, vector<1x1x56x16xbf16>
    %96 = vector.shape_cast %95 : vector<1x1x56x16xbf16> to vector<56x16xbf16>
    %cst_73 = arith.constant dense<0.000000e+00> : vector<56x128xf32>
    %97 = tpu.matmul %96, %0, %cst_73 {dimension_numbers = #tpu.dot_dimension_numbers<[1], [0], [0], [1], [0, 0, 1, 1], [], []>} : vector<56x16xbf16>, vector<16x128xbf16>, vector<56x128xf32> -> vector<56x128xf32>
    %98 = vector.broadcast %1 : vector<1x128xf32> to vector<56x128xf32>
    %99 = arith.addf %97, %98 : vector<56x128xf32>
    %cst_74 = arith.constant 0.000000e+00 : f32
    %100 = vector.broadcast %cst_74 : f32 to vector<56x128xf32>
    %101 = arith.maximumf %99, %100 : vector<56x128xf32>
    %102 = arith.maximumf %94, %101 : vector<56x128xf32>
    %103 = arith.truncf %102 : vector<56x128xf32> to vector<56x128xbf16>
    %c0_75 = arith.constant 0 : index
    %c112_76 = arith.constant 112 : index
    %c0_77 = arith.constant 0 : index
    %104 = vector.load %arg4[%c0_75, %c112_76, %c0_77] : memref<1x224x128xbf16, #tpu.memory_space<vmem>>, vector<1x56x128xbf16>
    %105 = vector.shape_cast %104 : vector<1x56x128xbf16> to vector<56x128xbf16>
    %106 = vector.shape_cast %103 : vector<56x128xbf16> to vector<1x56x128xbf16>
    tpu.vector_store %arg4[%c0_75, %c112_76, %c0_77], %106 {strides = array<i32>} : memref<1x224x128xbf16, #tpu.memory_space<vmem>>, vector<1x56x128xbf16>,
    %c0_78 = arith.constant 0 : index
    %c0_79 = arith.constant 0 : index
    %c168 = arith.constant 168 : index
    %c0_80 = arith.constant 0 : index
    %107 = vector.load %arg1[%c0_78, %c0_79, %c168, %c0_80] : memref<1x4x224x16xbf16, #tpu.memory_space<vmem>>, vector<1x1x56x16xbf16>
    %108 = vector.shape_cast %107 : vector<1x1x56x16xbf16> to vector<56x16xbf16>
    %cst_81 = arith.constant dense<0.000000e+00> : vector<56x128xf32>
    %109 = tpu.matmul %108, %0, %cst_81 {dimension_numbers = #tpu.dot_dimension_numbers<[1], [0], [0], [1], [0, 0, 1, 1], [], []>} : vector<56x16xbf16>, vector<16x128xbf16>, vector<56x128xf32> -> vector<56x128xf32>
    %110 = vector.broadcast %1 : vector<1x128xf32> to vector<56x128xf32>
    %111 = arith.addf %109, %110 : vector<56x128xf32>
    %cst_82 = arith.constant 0.000000e+00 : f32
    %112 = vector.broadcast %cst_82 : f32 to vector<56x128xf32>
    %113 = arith.maximumf %111, %112 : vector<56x128xf32>
    %c0_83 = arith.constant 0 : index
    %c1_84 = arith.constant 1 : index
    %c168_85 = arith.constant 168 : index
    %c0_86 = arith.constant 0 : index
    %114 = vector.load %arg1[%c0_83, %c1_84, %c168_85, %c0_86] : memref<1x4x224x16xbf16, #tpu.memory_space<vmem>>, vector<1x1x56x16xbf16>
    %115 = vector.shape_cast %114 : vector<1x1x56x16xbf16> to vector<56x16xbf16>
    %cst_87 = arith.constant dense<0.000000e+00> : vector<56x128xf32>
    %116 = tpu.matmul %115, %0, %cst_87 {dimension_numbers = #tpu.dot_dimension_numbers<[1], [0], [0], [1], [0, 0, 1, 1], [], []>} : vector<56x16xbf16>, vector<16x128xbf16>, vector<56x128xf32> -> vector<56x128xf32>
    %117 = vector.broadcast %1 : vector<1x128xf32> to vector<56x128xf32>
    %118 = arith.addf %116, %117 : vector<56x128xf32>
    %cst_88 = arith.constant 0.000000e+00 : f32
    %119 = vector.broadcast %cst_88 : f32 to vector<56x128xf32>
    %120 = arith.maximumf %118, %119 : vector<56x128xf32>
    %121 = arith.maximumf %113, %120 : vector<56x128xf32>
    %c0_89 = arith.constant 0 : index
    %c2_90 = arith.constant 2 : index
    %c168_91 = arith.constant 168 : index
    %c0_92 = arith.constant 0 : index
    %122 = vector.load %arg1[%c0_89, %c2_90, %c168_91, %c0_92] : memref<1x4x224x16xbf16, #tpu.memory_space<vmem>>, vector<1x1x56x16xbf16>
    %123 = vector.shape_cast %122 : vector<1x1x56x16xbf16> to vector<56x16xbf16>
    %cst_93 = arith.constant dense<0.000000e+00> : vector<56x128xf32>
    %124 = tpu.matmul %123, %0, %cst_93 {dimension_numbers = #tpu.dot_dimension_numbers<[1], [0], [0], [1], [0, 0, 1, 1], [], []>} : vector<56x16xbf16>, vector<16x128xbf16>, vector<56x128xf32> -> vector<56x128xf32>
    %125 = vector.broadcast %1 : vector<1x128xf32> to vector<56x128xf32>
    %126 = arith.addf %124, %125 : vector<56x128xf32>
    %cst_94 = arith.constant 0.000000e+00 : f32
    %127 = vector.broadcast %cst_94 : f32 to vector<56x128xf32>
    %128 = arith.maximumf %126, %127 : vector<56x128xf32>
    %129 = arith.maximumf %121, %128 : vector<56x128xf32>
    %c0_95 = arith.constant 0 : index
    %c3_96 = arith.constant 3 : index
    %c168_97 = arith.constant 168 : index
    %c0_98 = arith.constant 0 : index
    %130 = vector.load %arg1[%c0_95, %c3_96, %c168_97, %c0_98] : memref<1x4x224x16xbf16, #tpu.memory_space<vmem>>, vector<1x1x56x16xbf16>
    %131 = vector.shape_cast %130 : vector<1x1x56x16xbf16> to vector<56x16xbf16>
    %cst_99 = arith.constant dense<0.000000e+00> : vector<56x128xf32>
    %132 = tpu.matmul %131, %0, %cst_99 {dimension_numbers = #tpu.dot_dimension_numbers<[1], [0], [0], [1], [0, 0, 1, 1], [], []>} : vector<56x16xbf16>, vector<16x128xbf16>, vector<56x128xf32> -> vector<56x128xf32>
    %133 = vector.broadcast %1 : vector<1x128xf32> to vector<56x128xf32>
    %134 = arith.addf %132, %133 : vector<56x128xf32>
    %cst_100 = arith.constant 0.000000e+00 : f32
    %135 = vector.broadcast %cst_100 : f32 to vector<56x128xf32>
    %136 = arith.maximumf %134, %135 : vector<56x128xf32>
    %137 = arith.maximumf %129, %136 : vector<56x128xf32>
    %138 = arith.truncf %137 : vector<56x128xf32> to vector<56x128xbf16>
    %c0_101 = arith.constant 0 : index
    %c168_102 = arith.constant 168 : index
    %c0_103 = arith.constant 0 : index
    %139 = vector.load %arg4[%c0_101, %c168_102, %c0_103] : memref<1x224x128xbf16, #tpu.memory_space<vmem>>, vector<1x56x128xbf16>
    %140 = vector.shape_cast %139 : vector<1x56x128xbf16> to vector<56x128xbf16>
    %141 = vector.shape_cast %138 : vector<56x128xbf16> to vector<1x56x128xbf16>
    tpu.vector_store %arg4[%c0_101, %c168_102, %c0_103], %141 {strides = array<i32>} : memref<1x224x128xbf16, #tpu.memory_space<vmem>>, vector<1x56x128xbf16>,
    return
  }
  func.func @transform_0(%arg0: i32) -> (i32, i32, i32, i32) {
    %c0_i32 = arith.constant 0 : i32
    %c0_i32_0 = arith.constant 0 : i32
    %c0_i32_1 = arith.constant 0 : i32
    %c0_i32_2 = arith.constant 0 : i32
    return %arg0, %c0_i32, %c0_i32_0, %c0_i32_1 : i32, i32, i32, i32
  }
  func.func @transform_1(%arg0: i32) -> (i32, i32) {
    %c0_i32 = arith.constant 0 : i32
    %c0_i32_0 = arith.constant 0 : i32
    %c0_i32_1 = arith.constant 0 : i32
    return %c0_i32, %c0_i32_0 : i32, i32
  }
  func.func @transform_2(%arg0: i32) -> (i32, i32) {
    %c0_i32 = arith.constant 0 : i32
    %c0_i32_0 = arith.constant 0 : i32
    %c0_i32_1 = arith.constant 0 : i32
    return %c0_i32, %c0_i32_0 : i32, i32
  }
  func.func @transform_3(%arg0: i32) -> (i32, i32, i32) {
    %c0_i32 = arith.constant 0 : i32
    %c0_i32_0 = arith.constant 0 : i32
    %c0_i32_1 = arith.constant 0 : i32
    return %arg0, %c0_i32, %c0_i32_0 : i32, i32, i32
  }
}

module attributes {stable_mosaic.version = 11 : i64} {
  func.func @_conv2_kernel(%arg0: i32, %arg1: memref<1x4x80x32xbf16, #tpu.memory_space<vmem>>, %arg2: memref<9x32x128xbf16, #tpu.memory_space<vmem>>, %arg3: memref<1x128xf32, #tpu.memory_space<vmem>>, %arg4: memref<1x64x128xbf16, #tpu.memory_space<vmem>>) attributes {dimension_semantics = [#tpu.dimension_semantics<parallel>], iteration_bounds = array<i64: 2>, scalar_prefetch = 0 : i64, scratch_operands = 0 : i64, tpu.core_type = #tpu.core_type<tc>, window_params = [{transform_indices = @transform_0, window_bounds = array<i64: 1, 4, 80, 32>}, {pipeline_mode = #tpu.pipeline_mode<synchronous>, transform_indices = @transform_1, window_bounds = array<i64: 9, 32, 128>}, {pipeline_mode = #tpu.pipeline_mode<synchronous>, transform_indices = @transform_2, window_bounds = array<i64: 1, 128>}, {transform_indices = @transform_3, window_bounds = array<i64: 1, 64, 128>}]} {
    %c0 = arith.constant 0 : index
    %c0_0 = arith.constant 0 : index
    %c0_1 = arith.constant 0 : index
    %0 = vector.load %arg2[%c0, %c0_0, %c0_1] : memref<9x32x128xbf16, #tpu.memory_space<vmem>>, vector<9x32x128xbf16>
    %c0_2 = arith.constant 0 : index
    %c0_3 = arith.constant 0 : index
    %1 = vector.load %arg3[%c0_2, %c0_3] : memref<1x128xf32, #tpu.memory_space<vmem>>, vector<1x128xf32>
    %c0_4 = arith.constant 0 : index
    %c0_5 = arith.constant 0 : index
    %c0_6 = arith.constant 0 : index
    %c0_7 = arith.constant 0 : index
    %2 = vector.load %arg1[%c0_4, %c0_5, %c0_6, %c0_7] : memref<1x4x80x32xbf16, #tpu.memory_space<vmem>>, vector<1x1x64x32xbf16>
    %3 = vector.shape_cast %2 : vector<1x1x64x32xbf16> to vector<64x32xbf16>
    %4 = vector.extract_strided_slice %0 {offsets = [0, 0, 0], sizes = [1, 32, 128], strides = [1, 1, 1]} : vector<9x32x128xbf16> to vector<1x32x128xbf16>
    %5 = vector.shape_cast %4 : vector<1x32x128xbf16> to vector<32x128xbf16>
    %cst = arith.constant dense<0.000000e+00> : vector<64x128xf32>
    %6 = tpu.matmul %3, %5, %cst {dimension_numbers = #tpu.dot_dimension_numbers<[1], [0], [0], [1], [0, 0, 1, 1], [], []>} : vector<64x32xbf16>, vector<32x128xbf16>, vector<64x128xf32> -> vector<64x128xf32>
    %c0_8 = arith.constant 0 : index
    %c1 = arith.constant 1 : index
    %c0_9 = arith.constant 0 : index
    %c0_10 = arith.constant 0 : index
    %7 = vector.load %arg1[%c0_8, %c1, %c0_9, %c0_10] : memref<1x4x80x32xbf16, #tpu.memory_space<vmem>>, vector<1x1x64x32xbf16>
    %8 = vector.shape_cast %7 : vector<1x1x64x32xbf16> to vector<64x32xbf16>
    %9 = vector.extract_strided_slice %0 {offsets = [1, 0, 0], sizes = [1, 32, 128], strides = [1, 1, 1]} : vector<9x32x128xbf16> to vector<1x32x128xbf16>
    %10 = vector.shape_cast %9 : vector<1x32x128xbf16> to vector<32x128xbf16>
    %cst_11 = arith.constant dense<0.000000e+00> : vector<64x128xf32>
    %11 = tpu.matmul %8, %10, %cst_11 {dimension_numbers = #tpu.dot_dimension_numbers<[1], [0], [0], [1], [0, 0, 1, 1], [], []>} : vector<64x32xbf16>, vector<32x128xbf16>, vector<64x128xf32> -> vector<64x128xf32>
    %12 = arith.addf %6, %11 : vector<64x128xf32>
    %c0_12 = arith.constant 0 : index
    %c0_13 = arith.constant 0 : index
    %c1_14 = arith.constant 1 : index
    %c0_15 = arith.constant 0 : index
    %13 = vector.load %arg1[%c0_12, %c0_13, %c1_14, %c0_15] : memref<1x4x80x32xbf16, #tpu.memory_space<vmem>>, vector<1x1x64x32xbf16>
    %14 = vector.shape_cast %13 : vector<1x1x64x32xbf16> to vector<64x32xbf16>
    %15 = vector.extract_strided_slice %0 {offsets = [2, 0, 0], sizes = [1, 32, 128], strides = [1, 1, 1]} : vector<9x32x128xbf16> to vector<1x32x128xbf16>
    %16 = vector.shape_cast %15 : vector<1x32x128xbf16> to vector<32x128xbf16>
    %cst_16 = arith.constant dense<0.000000e+00> : vector<64x128xf32>
    %17 = tpu.matmul %14, %16, %cst_16 {dimension_numbers = #tpu.dot_dimension_numbers<[1], [0], [0], [1], [0, 0, 1, 1], [], []>} : vector<64x32xbf16>, vector<32x128xbf16>, vector<64x128xf32> -> vector<64x128xf32>
    %18 = arith.addf %12, %17 : vector<64x128xf32>
    %c0_17 = arith.constant 0 : index
    %c2 = arith.constant 2 : index
    %c0_18 = arith.constant 0 : index
    %c0_19 = arith.constant 0 : index
    %19 = vector.load %arg1[%c0_17, %c2, %c0_18, %c0_19] : memref<1x4x80x32xbf16, #tpu.memory_space<vmem>>, vector<1x1x64x32xbf16>
    %20 = vector.shape_cast %19 : vector<1x1x64x32xbf16> to vector<64x32xbf16>
    %21 = vector.extract_strided_slice %0 {offsets = [3, 0, 0], sizes = [1, 32, 128], strides = [1, 1, 1]} : vector<9x32x128xbf16> to vector<1x32x128xbf16>
    %22 = vector.shape_cast %21 : vector<1x32x128xbf16> to vector<32x128xbf16>
    %cst_20 = arith.constant dense<0.000000e+00> : vector<64x128xf32>
    %23 = tpu.matmul %20, %22, %cst_20 {dimension_numbers = #tpu.dot_dimension_numbers<[1], [0], [0], [1], [0, 0, 1, 1], [], []>} : vector<64x32xbf16>, vector<32x128xbf16>, vector<64x128xf32> -> vector<64x128xf32>
    %24 = arith.addf %18, %23 : vector<64x128xf32>
    %c0_21 = arith.constant 0 : index
    %c3 = arith.constant 3 : index
    %c0_22 = arith.constant 0 : index
    %c0_23 = arith.constant 0 : index
    %25 = vector.load %arg1[%c0_21, %c3, %c0_22, %c0_23] : memref<1x4x80x32xbf16, #tpu.memory_space<vmem>>, vector<1x1x64x32xbf16>
    %26 = vector.shape_cast %25 : vector<1x1x64x32xbf16> to vector<64x32xbf16>
    %27 = vector.extract_strided_slice %0 {offsets = [4, 0, 0], sizes = [1, 32, 128], strides = [1, 1, 1]} : vector<9x32x128xbf16> to vector<1x32x128xbf16>
    %28 = vector.shape_cast %27 : vector<1x32x128xbf16> to vector<32x128xbf16>
    %cst_24 = arith.constant dense<0.000000e+00> : vector<64x128xf32>
    %29 = tpu.matmul %26, %28, %cst_24 {dimension_numbers = #tpu.dot_dimension_numbers<[1], [0], [0], [1], [0, 0, 1, 1], [], []>} : vector<64x32xbf16>, vector<32x128xbf16>, vector<64x128xf32> -> vector<64x128xf32>
    %30 = arith.addf %24, %29 : vector<64x128xf32>
    %c0_25 = arith.constant 0 : index
    %c2_26 = arith.constant 2 : index
    %c1_27 = arith.constant 1 : index
    %c0_28 = arith.constant 0 : index
    %31 = vector.load %arg1[%c0_25, %c2_26, %c1_27, %c0_28] : memref<1x4x80x32xbf16, #tpu.memory_space<vmem>>, vector<1x1x64x32xbf16>
    %32 = vector.shape_cast %31 : vector<1x1x64x32xbf16> to vector<64x32xbf16>
    %33 = vector.extract_strided_slice %0 {offsets = [5, 0, 0], sizes = [1, 32, 128], strides = [1, 1, 1]} : vector<9x32x128xbf16> to vector<1x32x128xbf16>
    %34 = vector.shape_cast %33 : vector<1x32x128xbf16> to vector<32x128xbf16>
    %cst_29 = arith.constant dense<0.000000e+00> : vector<64x128xf32>
    %35 = tpu.matmul %32, %34, %cst_29 {dimension_numbers = #tpu.dot_dimension_numbers<[1], [0], [0], [1], [0, 0, 1, 1], [], []>} : vector<64x32xbf16>, vector<32x128xbf16>, vector<64x128xf32> -> vector<64x128xf32>
    %36 = arith.addf %30, %35 : vector<64x128xf32>
    %c0_30 = arith.constant 0 : index
    %c0_31 = arith.constant 0 : index
    %c8 = arith.constant 8 : index
    %c0_32 = arith.constant 0 : index
    %37 = vector.load %arg1[%c0_30, %c0_31, %c8, %c0_32] : memref<1x4x80x32xbf16, #tpu.memory_space<vmem>>, vector<1x1x64x32xbf16>
    %38 = vector.shape_cast %37 : vector<1x1x64x32xbf16> to vector<64x32xbf16>
    %39 = vector.extract_strided_slice %0 {offsets = [6, 0, 0], sizes = [1, 32, 128], strides = [1, 1, 1]} : vector<9x32x128xbf16> to vector<1x32x128xbf16>
    %40 = vector.shape_cast %39 : vector<1x32x128xbf16> to vector<32x128xbf16>
    %cst_33 = arith.constant dense<0.000000e+00> : vector<64x128xf32>
    %41 = tpu.matmul %38, %40, %cst_33 {dimension_numbers = #tpu.dot_dimension_numbers<[1], [0], [0], [1], [0, 0, 1, 1], [], []>} : vector<64x32xbf16>, vector<32x128xbf16>, vector<64x128xf32> -> vector<64x128xf32>
    %42 = arith.addf %36, %41 : vector<64x128xf32>
    %c0_34 = arith.constant 0 : index
    %c1_35 = arith.constant 1 : index
    %c8_36 = arith.constant 8 : index
    %c0_37 = arith.constant 0 : index
    %43 = vector.load %arg1[%c0_34, %c1_35, %c8_36, %c0_37] : memref<1x4x80x32xbf16, #tpu.memory_space<vmem>>, vector<1x1x64x32xbf16>
    %44 = vector.shape_cast %43 : vector<1x1x64x32xbf16> to vector<64x32xbf16>
    %45 = vector.extract_strided_slice %0 {offsets = [7, 0, 0], sizes = [1, 32, 128], strides = [1, 1, 1]} : vector<9x32x128xbf16> to vector<1x32x128xbf16>
    %46 = vector.shape_cast %45 : vector<1x32x128xbf16> to vector<32x128xbf16>
    %cst_38 = arith.constant dense<0.000000e+00> : vector<64x128xf32>
    %47 = tpu.matmul %44, %46, %cst_38 {dimension_numbers = #tpu.dot_dimension_numbers<[1], [0], [0], [1], [0, 0, 1, 1], [], []>} : vector<64x32xbf16>, vector<32x128xbf16>, vector<64x128xf32> -> vector<64x128xf32>
    %48 = arith.addf %42, %47 : vector<64x128xf32>
    %c0_39 = arith.constant 0 : index
    %c0_40 = arith.constant 0 : index
    %c9 = arith.constant 9 : index
    %c0_41 = arith.constant 0 : index
    %49 = vector.load %arg1[%c0_39, %c0_40, %c9, %c0_41] : memref<1x4x80x32xbf16, #tpu.memory_space<vmem>>, vector<1x1x64x32xbf16>
    %50 = vector.shape_cast %49 : vector<1x1x64x32xbf16> to vector<64x32xbf16>
    %51 = vector.extract_strided_slice %0 {offsets = [8, 0, 0], sizes = [1, 32, 128], strides = [1, 1, 1]} : vector<9x32x128xbf16> to vector<1x32x128xbf16>
    %52 = vector.shape_cast %51 : vector<1x32x128xbf16> to vector<32x128xbf16>
    %cst_42 = arith.constant dense<0.000000e+00> : vector<64x128xf32>
    %53 = tpu.matmul %50, %52, %cst_42 {dimension_numbers = #tpu.dot_dimension_numbers<[1], [0], [0], [1], [0, 0, 1, 1], [], []>} : vector<64x32xbf16>, vector<32x128xbf16>, vector<64x128xf32> -> vector<64x128xf32>
    %54 = arith.addf %48, %53 : vector<64x128xf32>
    %55 = vector.broadcast %1 : vector<1x128xf32> to vector<64x128xf32>
    %56 = arith.addf %54, %55 : vector<64x128xf32>
    %cst_43 = arith.constant 0.000000e+00 : f32
    %57 = vector.broadcast %cst_43 : f32 to vector<64x128xf32>
    %58 = arith.maximumf %56, %57 : vector<64x128xf32>
    %c0_44 = arith.constant 0 : index
    %c1_45 = arith.constant 1 : index
    %c0_46 = arith.constant 0 : index
    %c0_47 = arith.constant 0 : index
    %59 = vector.load %arg1[%c0_44, %c1_45, %c0_46, %c0_47] : memref<1x4x80x32xbf16, #tpu.memory_space<vmem>>, vector<1x1x64x32xbf16>
    %60 = vector.shape_cast %59 : vector<1x1x64x32xbf16> to vector<64x32xbf16>
    %61 = vector.extract_strided_slice %0 {offsets = [0, 0, 0], sizes = [1, 32, 128], strides = [1, 1, 1]} : vector<9x32x128xbf16> to vector<1x32x128xbf16>
    %62 = vector.shape_cast %61 : vector<1x32x128xbf16> to vector<32x128xbf16>
    %cst_48 = arith.constant dense<0.000000e+00> : vector<64x128xf32>
    %63 = tpu.matmul %60, %62, %cst_48 {dimension_numbers = #tpu.dot_dimension_numbers<[1], [0], [0], [1], [0, 0, 1, 1], [], []>} : vector<64x32xbf16>, vector<32x128xbf16>, vector<64x128xf32> -> vector<64x128xf32>
    %c0_49 = arith.constant 0 : index
    %c0_50 = arith.constant 0 : index
    %c1_51 = arith.constant 1 : index
    %c0_52 = arith.constant 0 : index
    %64 = vector.load %arg1[%c0_49, %c0_50, %c1_51, %c0_52] : memref<1x4x80x32xbf16, #tpu.memory_space<vmem>>, vector<1x1x64x32xbf16>
    %65 = vector.shape_cast %64 : vector<1x1x64x32xbf16> to vector<64x32xbf16>
    %66 = vector.extract_strided_slice %0 {offsets = [1, 0, 0], sizes = [1, 32, 128], strides = [1, 1, 1]} : vector<9x32x128xbf16> to vector<1x32x128xbf16>
    %67 = vector.shape_cast %66 : vector<1x32x128xbf16> to vector<32x128xbf16>
    %cst_53 = arith.constant dense<0.000000e+00> : vector<64x128xf32>
    %68 = tpu.matmul %65, %67, %cst_53 {dimension_numbers = #tpu.dot_dimension_numbers<[1], [0], [0], [1], [0, 0, 1, 1], [], []>} : vector<64x32xbf16>, vector<32x128xbf16>, vector<64x128xf32> -> vector<64x128xf32>
    %69 = arith.addf %63, %68 : vector<64x128xf32>
    %c0_54 = arith.constant 0 : index
    %c1_55 = arith.constant 1 : index
    %c1_56 = arith.constant 1 : index
    %c0_57 = arith.constant 0 : index
    %70 = vector.load %arg1[%c0_54, %c1_55, %c1_56, %c0_57] : memref<1x4x80x32xbf16, #tpu.memory_space<vmem>>, vector<1x1x64x32xbf16>
    %71 = vector.shape_cast %70 : vector<1x1x64x32xbf16> to vector<64x32xbf16>
    %72 = vector.extract_strided_slice %0 {offsets = [2, 0, 0], sizes = [1, 32, 128], strides = [1, 1, 1]} : vector<9x32x128xbf16> to vector<1x32x128xbf16>
    %73 = vector.shape_cast %72 : vector<1x32x128xbf16> to vector<32x128xbf16>
    %cst_58 = arith.constant dense<0.000000e+00> : vector<64x128xf32>
    %74 = tpu.matmul %71, %73, %cst_58 {dimension_numbers = #tpu.dot_dimension_numbers<[1], [0], [0], [1], [0, 0, 1, 1], [], []>} : vector<64x32xbf16>, vector<32x128xbf16>, vector<64x128xf32> -> vector<64x128xf32>
    %75 = arith.addf %69, %74 : vector<64x128xf32>
    %c0_59 = arith.constant 0 : index
    %c3_60 = arith.constant 3 : index
    %c0_61 = arith.constant 0 : index
    %c0_62 = arith.constant 0 : index
    %76 = vector.load %arg1[%c0_59, %c3_60, %c0_61, %c0_62] : memref<1x4x80x32xbf16, #tpu.memory_space<vmem>>, vector<1x1x64x32xbf16>
    %77 = vector.shape_cast %76 : vector<1x1x64x32xbf16> to vector<64x32xbf16>
    %78 = vector.extract_strided_slice %0 {offsets = [3, 0, 0], sizes = [1, 32, 128], strides = [1, 1, 1]} : vector<9x32x128xbf16> to vector<1x32x128xbf16>
    %79 = vector.shape_cast %78 : vector<1x32x128xbf16> to vector<32x128xbf16>
    %cst_63 = arith.constant dense<0.000000e+00> : vector<64x128xf32>
    %80 = tpu.matmul %77, %79, %cst_63 {dimension_numbers = #tpu.dot_dimension_numbers<[1], [0], [0], [1], [0, 0, 1, 1], [], []>} : vector<64x32xbf16>, vector<32x128xbf16>, vector<64x128xf32> -> vector<64x128xf32>
    %81 = arith.addf %75, %80 : vector<64x128xf32>
    %c0_64 = arith.constant 0 : index
    %c2_65 = arith.constant 2 : index
    %c1_66 = arith.constant 1 : index
    %c0_67 = arith.constant 0 : index
    %82 = vector.load %arg1[%c0_64, %c2_65, %c1_66, %c0_67] : memref<1x4x80x32xbf16, #tpu.memory_space<vmem>>, vector<1x1x64x32xbf16>
    %83 = vector.shape_cast %82 : vector<1x1x64x32xbf16> to vector<64x32xbf16>
    %84 = vector.extract_strided_slice %0 {offsets = [4, 0, 0], sizes = [1, 32, 128], strides = [1, 1, 1]} : vector<9x32x128xbf16> to vector<1x32x128xbf16>
    %85 = vector.shape_cast %84 : vector<1x32x128xbf16> to vector<32x128xbf16>
    %cst_68 = arith.constant dense<0.000000e+00> : vector<64x128xf32>
    %86 = tpu.matmul %83, %85, %cst_68 {dimension_numbers = #tpu.dot_dimension_numbers<[1], [0], [0], [1], [0, 0, 1, 1], [], []>} : vector<64x32xbf16>, vector<32x128xbf16>, vector<64x128xf32> -> vector<64x128xf32>
    %87 = arith.addf %81, %86 : vector<64x128xf32>
    %c0_69 = arith.constant 0 : index
    %c3_70 = arith.constant 3 : index
    %c1_71 = arith.constant 1 : index
    %c0_72 = arith.constant 0 : index
    %88 = vector.load %arg1[%c0_69, %c3_70, %c1_71, %c0_72] : memref<1x4x80x32xbf16, #tpu.memory_space<vmem>>, vector<1x1x64x32xbf16>
    %89 = vector.shape_cast %88 : vector<1x1x64x32xbf16> to vector<64x32xbf16>
    %90 = vector.extract_strided_slice %0 {offsets = [5, 0, 0], sizes = [1, 32, 128], strides = [1, 1, 1]} : vector<9x32x128xbf16> to vector<1x32x128xbf16>
    %91 = vector.shape_cast %90 : vector<1x32x128xbf16> to vector<32x128xbf16>
    %cst_73 = arith.constant dense<0.000000e+00> : vector<64x128xf32>
    %92 = tpu.matmul %89, %91, %cst_73 {dimension_numbers = #tpu.dot_dimension_numbers<[1], [0], [0], [1], [0, 0, 1, 1], [], []>} : vector<64x32xbf16>, vector<32x128xbf16>, vector<64x128xf32> -> vector<64x128xf32>
    %93 = arith.addf %87, %92 : vector<64x128xf32>
    %c0_74 = arith.constant 0 : index
    %c1_75 = arith.constant 1 : index
    %c8_76 = arith.constant 8 : index
    %c0_77 = arith.constant 0 : index
    %94 = vector.load %arg1[%c0_74, %c1_75, %c8_76, %c0_77] : memref<1x4x80x32xbf16, #tpu.memory_space<vmem>>, vector<1x1x64x32xbf16>
    %95 = vector.shape_cast %94 : vector<1x1x64x32xbf16> to vector<64x32xbf16>
    %96 = vector.extract_strided_slice %0 {offsets = [6, 0, 0], sizes = [1, 32, 128], strides = [1, 1, 1]} : vector<9x32x128xbf16> to vector<1x32x128xbf16>
    %97 = vector.shape_cast %96 : vector<1x32x128xbf16> to vector<32x128xbf16>
    %cst_78 = arith.constant dense<0.000000e+00> : vector<64x128xf32>
    %98 = tpu.matmul %95, %97, %cst_78 {dimension_numbers = #tpu.dot_dimension_numbers<[1], [0], [0], [1], [0, 0, 1, 1], [], []>} : vector<64x32xbf16>, vector<32x128xbf16>, vector<64x128xf32> -> vector<64x128xf32>
    %99 = arith.addf %93, %98 : vector<64x128xf32>
    %c0_79 = arith.constant 0 : index
    %c0_80 = arith.constant 0 : index
    %c9_81 = arith.constant 9 : index
    %c0_82 = arith.constant 0 : index
    %100 = vector.load %arg1[%c0_79, %c0_80, %c9_81, %c0_82] : memref<1x4x80x32xbf16, #tpu.memory_space<vmem>>, vector<1x1x64x32xbf16>
    %101 = vector.shape_cast %100 : vector<1x1x64x32xbf16> to vector<64x32xbf16>
    %102 = vector.extract_strided_slice %0 {offsets = [7, 0, 0], sizes = [1, 32, 128], strides = [1, 1, 1]} : vector<9x32x128xbf16> to vector<1x32x128xbf16>
    %103 = vector.shape_cast %102 : vector<1x32x128xbf16> to vector<32x128xbf16>
    %cst_83 = arith.constant dense<0.000000e+00> : vector<64x128xf32>
    %104 = tpu.matmul %101, %103, %cst_83 {dimension_numbers = #tpu.dot_dimension_numbers<[1], [0], [0], [1], [0, 0, 1, 1], [], []>} : vector<64x32xbf16>, vector<32x128xbf16>, vector<64x128xf32> -> vector<64x128xf32>
    %105 = arith.addf %99, %104 : vector<64x128xf32>
    %c0_84 = arith.constant 0 : index
    %c1_85 = arith.constant 1 : index
    %c9_86 = arith.constant 9 : index
    %c0_87 = arith.constant 0 : index
    %106 = vector.load %arg1[%c0_84, %c1_85, %c9_86, %c0_87] : memref<1x4x80x32xbf16, #tpu.memory_space<vmem>>, vector<1x1x64x32xbf16>
    %107 = vector.shape_cast %106 : vector<1x1x64x32xbf16> to vector<64x32xbf16>
    %108 = vector.extract_strided_slice %0 {offsets = [8, 0, 0], sizes = [1, 32, 128], strides = [1, 1, 1]} : vector<9x32x128xbf16> to vector<1x32x128xbf16>
    %109 = vector.shape_cast %108 : vector<1x32x128xbf16> to vector<32x128xbf16>
    %cst_88 = arith.constant dense<0.000000e+00> : vector<64x128xf32>
    %110 = tpu.matmul %107, %109, %cst_88 {dimension_numbers = #tpu.dot_dimension_numbers<[1], [0], [0], [1], [0, 0, 1, 1], [], []>} : vector<64x32xbf16>, vector<32x128xbf16>, vector<64x128xf32> -> vector<64x128xf32>
    %111 = arith.addf %105, %110 : vector<64x128xf32>
    %112 = vector.broadcast %1 : vector<1x128xf32> to vector<64x128xf32>
    %113 = arith.addf %111, %112 : vector<64x128xf32>
    %cst_89 = arith.constant 0.000000e+00 : f32
    %114 = vector.broadcast %cst_89 : f32 to vector<64x128xf32>
    %115 = arith.maximumf %113, %114 : vector<64x128xf32>
    %116 = arith.maximumf %58, %115 : vector<64x128xf32>
    %c0_90 = arith.constant 0 : index
    %c2_91 = arith.constant 2 : index
    %c0_92 = arith.constant 0 : index
    %c0_93 = arith.constant 0 : index
    %117 = vector.load %arg1[%c0_90, %c2_91, %c0_92, %c0_93] : memref<1x4x80x32xbf16, #tpu.memory_space<vmem>>, vector<1x1x64x32xbf16>
    %118 = vector.shape_cast %117 : vector<1x1x64x32xbf16> to vector<64x32xbf16>
    %119 = vector.extract_strided_slice %0 {offsets = [0, 0, 0], sizes = [1, 32, 128], strides = [1, 1, 1]} : vector<9x32x128xbf16> to vector<1x32x128xbf16>
    %120 = vector.shape_cast %119 : vector<1x32x128xbf16> to vector<32x128xbf16>
    %cst_94 = arith.constant dense<0.000000e+00> : vector<64x128xf32>
    %121 = tpu.matmul %118, %120, %cst_94 {dimension_numbers = #tpu.dot_dimension_numbers<[1], [0], [0], [1], [0, 0, 1, 1], [], []>} : vector<64x32xbf16>, vector<32x128xbf16>, vector<64x128xf32> -> vector<64x128xf32>
    %c0_95 = arith.constant 0 : index
    %c3_96 = arith.constant 3 : index
    %c0_97 = arith.constant 0 : index
    %c0_98 = arith.constant 0 : index
    %122 = vector.load %arg1[%c0_95, %c3_96, %c0_97, %c0_98] : memref<1x4x80x32xbf16, #tpu.memory_space<vmem>>, vector<1x1x64x32xbf16>
    %123 = vector.shape_cast %122 : vector<1x1x64x32xbf16> to vector<64x32xbf16>
    %124 = vector.extract_strided_slice %0 {offsets = [1, 0, 0], sizes = [1, 32, 128], strides = [1, 1, 1]} : vector<9x32x128xbf16> to vector<1x32x128xbf16>
    %125 = vector.shape_cast %124 : vector<1x32x128xbf16> to vector<32x128xbf16>
    %cst_99 = arith.constant dense<0.000000e+00> : vector<64x128xf32>
    %126 = tpu.matmul %123, %125, %cst_99 {dimension_numbers = #tpu.dot_dimension_numbers<[1], [0], [0], [1], [0, 0, 1, 1], [], []>} : vector<64x32xbf16>, vector<32x128xbf16>, vector<64x128xf32> -> vector<64x128xf32>
    %127 = arith.addf %121, %126 : vector<64x128xf32>
    %c0_100 = arith.constant 0 : index
    %c2_101 = arith.constant 2 : index
    %c1_102 = arith.constant 1 : index
    %c0_103 = arith.constant 0 : index
    %128 = vector.load %arg1[%c0_100, %c2_101, %c1_102, %c0_103] : memref<1x4x80x32xbf16, #tpu.memory_space<vmem>>, vector<1x1x64x32xbf16>
    %129 = vector.shape_cast %128 : vector<1x1x64x32xbf16> to vector<64x32xbf16>
    %130 = vector.extract_strided_slice %0 {offsets = [2, 0, 0], sizes = [1, 32, 128], strides = [1, 1, 1]} : vector<9x32x128xbf16> to vector<1x32x128xbf16>
    %131 = vector.shape_cast %130 : vector<1x32x128xbf16> to vector<32x128xbf16>
    %cst_104 = arith.constant dense<0.000000e+00> : vector<64x128xf32>
    %132 = tpu.matmul %129, %131, %cst_104 {dimension_numbers = #tpu.dot_dimension_numbers<[1], [0], [0], [1], [0, 0, 1, 1], [], []>} : vector<64x32xbf16>, vector<32x128xbf16>, vector<64x128xf32> -> vector<64x128xf32>
    %133 = arith.addf %127, %132 : vector<64x128xf32>
    %c0_105 = arith.constant 0 : index
    %c0_106 = arith.constant 0 : index
    %c8_107 = arith.constant 8 : index
    %c0_108 = arith.constant 0 : index
    %134 = vector.load %arg1[%c0_105, %c0_106, %c8_107, %c0_108] : memref<1x4x80x32xbf16, #tpu.memory_space<vmem>>, vector<1x1x64x32xbf16>
    %135 = vector.shape_cast %134 : vector<1x1x64x32xbf16> to vector<64x32xbf16>
    %136 = vector.extract_strided_slice %0 {offsets = [3, 0, 0], sizes = [1, 32, 128], strides = [1, 1, 1]} : vector<9x32x128xbf16> to vector<1x32x128xbf16>
    %137 = vector.shape_cast %136 : vector<1x32x128xbf16> to vector<32x128xbf16>
    %cst_109 = arith.constant dense<0.000000e+00> : vector<64x128xf32>
    %138 = tpu.matmul %135, %137, %cst_109 {dimension_numbers = #tpu.dot_dimension_numbers<[1], [0], [0], [1], [0, 0, 1, 1], [], []>} : vector<64x32xbf16>, vector<32x128xbf16>, vector<64x128xf32> -> vector<64x128xf32>
    %139 = arith.addf %133, %138 : vector<64x128xf32>
    %c0_110 = arith.constant 0 : index
    %c1_111 = arith.constant 1 : index
    %c8_112 = arith.constant 8 : index
    %c0_113 = arith.constant 0 : index
    %140 = vector.load %arg1[%c0_110, %c1_111, %c8_112, %c0_113] : memref<1x4x80x32xbf16, #tpu.memory_space<vmem>>, vector<1x1x64x32xbf16>
    %141 = vector.shape_cast %140 : vector<1x1x64x32xbf16> to vector<64x32xbf16>
    %142 = vector.extract_strided_slice %0 {offsets = [4, 0, 0], sizes = [1, 32, 128], strides = [1, 1, 1]} : vector<9x32x128xbf16> to vector<1x32x128xbf16>
    %143 = vector.shape_cast %142 : vector<1x32x128xbf16> to vector<32x128xbf16>
    %cst_114 = arith.constant dense<0.000000e+00> : vector<64x128xf32>
    %144 = tpu.matmul %141, %143, %cst_114 {dimension_numbers = #tpu.dot_dimension_numbers<[1], [0], [0], [1], [0, 0, 1, 1], [], []>} : vector<64x32xbf16>, vector<32x128xbf16>, vector<64x128xf32> -> vector<64x128xf32>
    %145 = arith.addf %139, %144 : vector<64x128xf32>
    %c0_115 = arith.constant 0 : index
    %c0_116 = arith.constant 0 : index
    %c9_117 = arith.constant 9 : index
    %c0_118 = arith.constant 0 : index
    %146 = vector.load %arg1[%c0_115, %c0_116, %c9_117, %c0_118] : memref<1x4x80x32xbf16, #tpu.memory_space<vmem>>, vector<1x1x64x32xbf16>
    %147 = vector.shape_cast %146 : vector<1x1x64x32xbf16> to vector<64x32xbf16>
    %148 = vector.extract_strided_slice %0 {offsets = [5, 0, 0], sizes = [1, 32, 128], strides = [1, 1, 1]} : vector<9x32x128xbf16> to vector<1x32x128xbf16>
    %149 = vector.shape_cast %148 : vector<1x32x128xbf16> to vector<32x128xbf16>
    %cst_119 = arith.constant dense<0.000000e+00> : vector<64x128xf32>
    %150 = tpu.matmul %147, %149, %cst_119 {dimension_numbers = #tpu.dot_dimension_numbers<[1], [0], [0], [1], [0, 0, 1, 1], [], []>} : vector<64x32xbf16>, vector<32x128xbf16>, vector<64x128xf32> -> vector<64x128xf32>
    %151 = arith.addf %145, %150 : vector<64x128xf32>
    %c0_120 = arith.constant 0 : index
    %c2_121 = arith.constant 2 : index
    %c8_122 = arith.constant 8 : index
    %c0_123 = arith.constant 0 : index
    %152 = vector.load %arg1[%c0_120, %c2_121, %c8_122, %c0_123] : memref<1x4x80x32xbf16, #tpu.memory_space<vmem>>, vector<1x1x64x32xbf16>
    %153 = vector.shape_cast %152 : vector<1x1x64x32xbf16> to vector<64x32xbf16>
    %154 = vector.extract_strided_slice %0 {offsets = [6, 0, 0], sizes = [1, 32, 128], strides = [1, 1, 1]} : vector<9x32x128xbf16> to vector<1x32x128xbf16>
    %155 = vector.shape_cast %154 : vector<1x32x128xbf16> to vector<32x128xbf16>
    %cst_124 = arith.constant dense<0.000000e+00> : vector<64x128xf32>
    %156 = tpu.matmul %153, %155, %cst_124 {dimension_numbers = #tpu.dot_dimension_numbers<[1], [0], [0], [1], [0, 0, 1, 1], [], []>} : vector<64x32xbf16>, vector<32x128xbf16>, vector<64x128xf32> -> vector<64x128xf32>
    %157 = arith.addf %151, %156 : vector<64x128xf32>
    %c0_125 = arith.constant 0 : index
    %c3_126 = arith.constant 3 : index
    %c8_127 = arith.constant 8 : index
    %c0_128 = arith.constant 0 : index
    %158 = vector.load %arg1[%c0_125, %c3_126, %c8_127, %c0_128] : memref<1x4x80x32xbf16, #tpu.memory_space<vmem>>, vector<1x1x64x32xbf16>
    %159 = vector.shape_cast %158 : vector<1x1x64x32xbf16> to vector<64x32xbf16>
    %160 = vector.extract_strided_slice %0 {offsets = [7, 0, 0], sizes = [1, 32, 128], strides = [1, 1, 1]} : vector<9x32x128xbf16> to vector<1x32x128xbf16>
    %161 = vector.shape_cast %160 : vector<1x32x128xbf16> to vector<32x128xbf16>
    %cst_129 = arith.constant dense<0.000000e+00> : vector<64x128xf32>
    %162 = tpu.matmul %159, %161, %cst_129 {dimension_numbers = #tpu.dot_dimension_numbers<[1], [0], [0], [1], [0, 0, 1, 1], [], []>} : vector<64x32xbf16>, vector<32x128xbf16>, vector<64x128xf32> -> vector<64x128xf32>
    %163 = arith.addf %157, %162 : vector<64x128xf32>
    %c0_130 = arith.constant 0 : index
    %c2_131 = arith.constant 2 : index
    %c9_132 = arith.constant 9 : index
    %c0_133 = arith.constant 0 : index
    %164 = vector.load %arg1[%c0_130, %c2_131, %c9_132, %c0_133] : memref<1x4x80x32xbf16, #tpu.memory_space<vmem>>, vector<1x1x64x32xbf16>
    %165 = vector.shape_cast %164 : vector<1x1x64x32xbf16> to vector<64x32xbf16>
    %166 = vector.extract_strided_slice %0 {offsets = [8, 0, 0], sizes = [1, 32, 128], strides = [1, 1, 1]} : vector<9x32x128xbf16> to vector<1x32x128xbf16>
    %167 = vector.shape_cast %166 : vector<1x32x128xbf16> to vector<32x128xbf16>
    %cst_134 = arith.constant dense<0.000000e+00> : vector<64x128xf32>
    %168 = tpu.matmul %165, %167, %cst_134 {dimension_numbers = #tpu.dot_dimension_numbers<[1], [0], [0], [1], [0, 0, 1, 1], [], []>} : vector<64x32xbf16>, vector<32x128xbf16>, vector<64x128xf32> -> vector<64x128xf32>
    %169 = arith.addf %163, %168 : vector<64x128xf32>
    %170 = vector.broadcast %1 : vector<1x128xf32> to vector<64x128xf32>
    %171 = arith.addf %169, %170 : vector<64x128xf32>
    %cst_135 = arith.constant 0.000000e+00 : f32
    %172 = vector.broadcast %cst_135 : f32 to vector<64x128xf32>
    %173 = arith.maximumf %171, %172 : vector<64x128xf32>
    %174 = arith.maximumf %116, %173 : vector<64x128xf32>
    %c0_136 = arith.constant 0 : index
    %c3_137 = arith.constant 3 : index
    %c0_138 = arith.constant 0 : index
    %c0_139 = arith.constant 0 : index
    %175 = vector.load %arg1[%c0_136, %c3_137, %c0_138, %c0_139] : memref<1x4x80x32xbf16, #tpu.memory_space<vmem>>, vector<1x1x64x32xbf16>
    %176 = vector.shape_cast %175 : vector<1x1x64x32xbf16> to vector<64x32xbf16>
    %177 = vector.extract_strided_slice %0 {offsets = [0, 0, 0], sizes = [1, 32, 128], strides = [1, 1, 1]} : vector<9x32x128xbf16> to vector<1x32x128xbf16>
    %178 = vector.shape_cast %177 : vector<1x32x128xbf16> to vector<32x128xbf16>
    %cst_140 = arith.constant dense<0.000000e+00> : vector<64x128xf32>
    %179 = tpu.matmul %176, %178, %cst_140 {dimension_numbers = #tpu.dot_dimension_numbers<[1], [0], [0], [1], [0, 0, 1, 1], [], []>} : vector<64x32xbf16>, vector<32x128xbf16>, vector<64x128xf32> -> vector<64x128xf32>
    %c0_141 = arith.constant 0 : index
    %c2_142 = arith.constant 2 : index
    %c1_143 = arith.constant 1 : index
    %c0_144 = arith.constant 0 : index
    %180 = vector.load %arg1[%c0_141, %c2_142, %c1_143, %c0_144] : memref<1x4x80x32xbf16, #tpu.memory_space<vmem>>, vector<1x1x64x32xbf16>
    %181 = vector.shape_cast %180 : vector<1x1x64x32xbf16> to vector<64x32xbf16>
    %182 = vector.extract_strided_slice %0 {offsets = [1, 0, 0], sizes = [1, 32, 128], strides = [1, 1, 1]} : vector<9x32x128xbf16> to vector<1x32x128xbf16>
    %183 = vector.shape_cast %182 : vector<1x32x128xbf16> to vector<32x128xbf16>
    %cst_145 = arith.constant dense<0.000000e+00> : vector<64x128xf32>
    %184 = tpu.matmul %181, %183, %cst_145 {dimension_numbers = #tpu.dot_dimension_numbers<[1], [0], [0], [1], [0, 0, 1, 1], [], []>} : vector<64x32xbf16>, vector<32x128xbf16>, vector<64x128xf32> -> vector<64x128xf32>
    %185 = arith.addf %179, %184 : vector<64x128xf32>
    %c0_146 = arith.constant 0 : index
    %c3_147 = arith.constant 3 : index
    %c1_148 = arith.constant 1 : index
    %c0_149 = arith.constant 0 : index
    %186 = vector.load %arg1[%c0_146, %c3_147, %c1_148, %c0_149] : memref<1x4x80x32xbf16, #tpu.memory_space<vmem>>, vector<1x1x64x32xbf16>
    %187 = vector.shape_cast %186 : vector<1x1x64x32xbf16> to vector<64x32xbf16>
    %188 = vector.extract_strided_slice %0 {offsets = [2, 0, 0], sizes = [1, 32, 128], strides = [1, 1, 1]} : vector<9x32x128xbf16> to vector<1x32x128xbf16>
    %189 = vector.shape_cast %188 : vector<1x32x128xbf16> to vector<32x128xbf16>
    %cst_150 = arith.constant dense<0.000000e+00> : vector<64x128xf32>
    %190 = tpu.matmul %187, %189, %cst_150 {dimension_numbers = #tpu.dot_dimension_numbers<[1], [0], [0], [1], [0, 0, 1, 1], [], []>} : vector<64x32xbf16>, vector<32x128xbf16>, vector<64x128xf32> -> vector<64x128xf32>
    %191 = arith.addf %185, %190 : vector<64x128xf32>
    %c0_151 = arith.constant 0 : index
    %c1_152 = arith.constant 1 : index
    %c8_153 = arith.constant 8 : index
    %c0_154 = arith.constant 0 : index
    %192 = vector.load %arg1[%c0_151, %c1_152, %c8_153, %c0_154] : memref<1x4x80x32xbf16, #tpu.memory_space<vmem>>, vector<1x1x64x32xbf16>
    %193 = vector.shape_cast %192 : vector<1x1x64x32xbf16> to vector<64x32xbf16>
    %194 = vector.extract_strided_slice %0 {offsets = [3, 0, 0], sizes = [1, 32, 128], strides = [1, 1, 1]} : vector<9x32x128xbf16> to vector<1x32x128xbf16>
    %195 = vector.shape_cast %194 : vector<1x32x128xbf16> to vector<32x128xbf16>
    %cst_155 = arith.constant dense<0.000000e+00> : vector<64x128xf32>
    %196 = tpu.matmul %193, %195, %cst_155 {dimension_numbers = #tpu.dot_dimension_numbers<[1], [0], [0], [1], [0, 0, 1, 1], [], []>} : vector<64x32xbf16>, vector<32x128xbf16>, vector<64x128xf32> -> vector<64x128xf32>
    %197 = arith.addf %191, %196 : vector<64x128xf32>
    %c0_156 = arith.constant 0 : index
    %c0_157 = arith.constant 0 : index
    %c9_158 = arith.constant 9 : index
    %c0_159 = arith.constant 0 : index
    %198 = vector.load %arg1[%c0_156, %c0_157, %c9_158, %c0_159] : memref<1x4x80x32xbf16, #tpu.memory_space<vmem>>, vector<1x1x64x32xbf16>
    %199 = vector.shape_cast %198 : vector<1x1x64x32xbf16> to vector<64x32xbf16>
    %200 = vector.extract_strided_slice %0 {offsets = [4, 0, 0], sizes = [1, 32, 128], strides = [1, 1, 1]} : vector<9x32x128xbf16> to vector<1x32x128xbf16>
    %201 = vector.shape_cast %200 : vector<1x32x128xbf16> to vector<32x128xbf16>
    %cst_160 = arith.constant dense<0.000000e+00> : vector<64x128xf32>
    %202 = tpu.matmul %199, %201, %cst_160 {dimension_numbers = #tpu.dot_dimension_numbers<[1], [0], [0], [1], [0, 0, 1, 1], [], []>} : vector<64x32xbf16>, vector<32x128xbf16>, vector<64x128xf32> -> vector<64x128xf32>
    %203 = arith.addf %197, %202 : vector<64x128xf32>
    %c0_161 = arith.constant 0 : index
    %c1_162 = arith.constant 1 : index
    %c9_163 = arith.constant 9 : index
    %c0_164 = arith.constant 0 : index
    %204 = vector.load %arg1[%c0_161, %c1_162, %c9_163, %c0_164] : memref<1x4x80x32xbf16, #tpu.memory_space<vmem>>, vector<1x1x64x32xbf16>
    %205 = vector.shape_cast %204 : vector<1x1x64x32xbf16> to vector<64x32xbf16>
    %206 = vector.extract_strided_slice %0 {offsets = [5, 0, 0], sizes = [1, 32, 128], strides = [1, 1, 1]} : vector<9x32x128xbf16> to vector<1x32x128xbf16>
    %207 = vector.shape_cast %206 : vector<1x32x128xbf16> to vector<32x128xbf16>
    %cst_165 = arith.constant dense<0.000000e+00> : vector<64x128xf32>
    %208 = tpu.matmul %205, %207, %cst_165 {dimension_numbers = #tpu.dot_dimension_numbers<[1], [0], [0], [1], [0, 0, 1, 1], [], []>} : vector<64x32xbf16>, vector<32x128xbf16>, vector<64x128xf32> -> vector<64x128xf32>
    %209 = arith.addf %203, %208 : vector<64x128xf32>
    %c0_166 = arith.constant 0 : index
    %c3_167 = arith.constant 3 : index
    %c8_168 = arith.constant 8 : index
    %c0_169 = arith.constant 0 : index
    %210 = vector.load %arg1[%c0_166, %c3_167, %c8_168, %c0_169] : memref<1x4x80x32xbf16, #tpu.memory_space<vmem>>, vector<1x1x64x32xbf16>
    %211 = vector.shape_cast %210 : vector<1x1x64x32xbf16> to vector<64x32xbf16>
    %212 = vector.extract_strided_slice %0 {offsets = [6, 0, 0], sizes = [1, 32, 128], strides = [1, 1, 1]} : vector<9x32x128xbf16> to vector<1x32x128xbf16>
    %213 = vector.shape_cast %212 : vector<1x32x128xbf16> to vector<32x128xbf16>
    %cst_170 = arith.constant dense<0.000000e+00> : vector<64x128xf32>
    %214 = tpu.matmul %211, %213, %cst_170 {dimension_numbers = #tpu.dot_dimension_numbers<[1], [0], [0], [1], [0, 0, 1, 1], [], []>} : vector<64x32xbf16>, vector<32x128xbf16>, vector<64x128xf32> -> vector<64x128xf32>
    %215 = arith.addf %209, %214 : vector<64x128xf32>
    %c0_171 = arith.constant 0 : index
    %c2_172 = arith.constant 2 : index
    %c9_173 = arith.constant 9 : index
    %c0_174 = arith.constant 0 : index
    %216 = vector.load %arg1[%c0_171, %c2_172, %c9_173, %c0_174] : memref<1x4x80x32xbf16, #tpu.memory_space<vmem>>, vector<1x1x64x32xbf16>
    %217 = vector.shape_cast %216 : vector<1x1x64x32xbf16> to vector<64x32xbf16>
    %218 = vector.extract_strided_slice %0 {offsets = [7, 0, 0], sizes = [1, 32, 128], strides = [1, 1, 1]} : vector<9x32x128xbf16> to vector<1x32x128xbf16>
    %219 = vector.shape_cast %218 : vector<1x32x128xbf16> to vector<32x128xbf16>
    %cst_175 = arith.constant dense<0.000000e+00> : vector<64x128xf32>
    %220 = tpu.matmul %217, %219, %cst_175 {dimension_numbers = #tpu.dot_dimension_numbers<[1], [0], [0], [1], [0, 0, 1, 1], [], []>} : vector<64x32xbf16>, vector<32x128xbf16>, vector<64x128xf32> -> vector<64x128xf32>
    %221 = arith.addf %215, %220 : vector<64x128xf32>
    %c0_176 = arith.constant 0 : index
    %c3_177 = arith.constant 3 : index
    %c9_178 = arith.constant 9 : index
    %c0_179 = arith.constant 0 : index
    %222 = vector.load %arg1[%c0_176, %c3_177, %c9_178, %c0_179] : memref<1x4x80x32xbf16, #tpu.memory_space<vmem>>, vector<1x1x64x32xbf16>
    %223 = vector.shape_cast %222 : vector<1x1x64x32xbf16> to vector<64x32xbf16>
    %224 = vector.extract_strided_slice %0 {offsets = [8, 0, 0], sizes = [1, 32, 128], strides = [1, 1, 1]} : vector<9x32x128xbf16> to vector<1x32x128xbf16>
    %225 = vector.shape_cast %224 : vector<1x32x128xbf16> to vector<32x128xbf16>
    %cst_180 = arith.constant dense<0.000000e+00> : vector<64x128xf32>
    %226 = tpu.matmul %223, %225, %cst_180 {dimension_numbers = #tpu.dot_dimension_numbers<[1], [0], [0], [1], [0, 0, 1, 1], [], []>} : vector<64x32xbf16>, vector<32x128xbf16>, vector<64x128xf32> -> vector<64x128xf32>
    %227 = arith.addf %221, %226 : vector<64x128xf32>
    %228 = vector.broadcast %1 : vector<1x128xf32> to vector<64x128xf32>
    %229 = arith.addf %227, %228 : vector<64x128xf32>
    %cst_181 = arith.constant 0.000000e+00 : f32
    %230 = vector.broadcast %cst_181 : f32 to vector<64x128xf32>
    %231 = arith.maximumf %229, %230 : vector<64x128xf32>
    %232 = arith.maximumf %174, %231 : vector<64x128xf32>
    %233 = arith.truncf %232 : vector<64x128xf32> to vector<64x128xbf16>
    %c0_182 = arith.constant 0 : index
    %c0_183 = arith.constant 0 : index
    %c0_184 = arith.constant 0 : index
    %234 = vector.load %arg4[%c0_182, %c0_183, %c0_184] : memref<1x64x128xbf16, #tpu.memory_space<vmem>>, vector<1x64x128xbf16>
    %235 = vector.shape_cast %234 : vector<1x64x128xbf16> to vector<64x128xbf16>
    %236 = vector.shape_cast %233 : vector<64x128xbf16> to vector<1x64x128xbf16>
    tpu.vector_store %arg4[%c0_182, %c0_183, %c0_184], %236 {strides = array<i32>} : memref<1x64x128xbf16, #tpu.memory_space<vmem>>, vector<1x64x128xbf16>,
    return
  }
  func.func @transform_0(%arg0: i32) -> (i32, i32, i32, i32) {
    %c0_i32 = arith.constant 0 : i32
    %c0_i32_0 = arith.constant 0 : i32
    %c0_i32_1 = arith.constant 0 : i32
    %c0_i32_2 = arith.constant 0 : i32
    return %arg0, %c0_i32, %c0_i32_0, %c0_i32_1 : i32, i32, i32, i32
  }
  func.func @transform_1(%arg0: i32) -> (i32, i32, i32) {
    %c0_i32 = arith.constant 0 : i32
    %c0_i32_0 = arith.constant 0 : i32
    %c0_i32_1 = arith.constant 0 : i32
    %c0_i32_2 = arith.constant 0 : i32
    return %c0_i32, %c0_i32_0, %c0_i32_1 : i32, i32, i32
  }
  func.func @transform_2(%arg0: i32) -> (i32, i32) {
    %c0_i32 = arith.constant 0 : i32
    %c0_i32_0 = arith.constant 0 : i32
    %c0_i32_1 = arith.constant 0 : i32
    return %c0_i32, %c0_i32_0 : i32, i32
  }
  func.func @transform_3(%arg0: i32) -> (i32, i32, i32) {
    %c0_i32 = arith.constant 0 : i32
    %c0_i32_0 = arith.constant 0 : i32
    %c0_i32_1 = arith.constant 0 : i32
    return %arg0, %c0_i32, %c0_i32_0 : i32, i32, i32
  }
}

module attributes {stable_mosaic.version = 11 : i64} {
  func.func @_fc_fused_kernel(%arg0: i32, %arg1: memref<8x8192xbf16, #tpu.memory_space<vmem>>, %arg2: memref<8192x128xbf16, #tpu.memory_space<vmem>>, %arg3: memref<1x128xf32, #tpu.memory_space<vmem>>, %arg4: memref<128x128xbf16, #tpu.memory_space<vmem>>, %arg5: memref<1x128xf32, #tpu.memory_space<vmem>>, %arg6: memref<8x128xf32, #tpu.memory_space<vmem>>) attributes {dimension_semantics = [#tpu.dimension_semantics<parallel>], iteration_bounds = array<i64: 1>, scalar_prefetch = 0 : i64, scratch_operands = 0 : i64, tpu.core_type = #tpu.core_type<tc>, window_params = [{transform_indices = @transform_0, window_bounds = array<i64: 8, 8192>}, {pipeline_mode = #tpu.pipeline_mode<synchronous>, transform_indices = @transform_1, window_bounds = array<i64: 8192, 128>}, {pipeline_mode = #tpu.pipeline_mode<synchronous>, transform_indices = @transform_2, window_bounds = array<i64: 1, 128>}, {pipeline_mode = #tpu.pipeline_mode<synchronous>, transform_indices = @transform_3, window_bounds = array<i64: 128, 128>}, {pipeline_mode = #tpu.pipeline_mode<synchronous>, transform_indices = @transform_4, window_bounds = array<i64: 1, 128>}, {transform_indices = @transform_5, window_bounds = array<i64: 8, 128>}]} {
    %c0 = arith.constant 0 : index
    %c0_0 = arith.constant 0 : index
    %0 = vector.load %arg1[%c0, %c0_0] : memref<8x8192xbf16, #tpu.memory_space<vmem>>, vector<8x8192xbf16>
    %c0_1 = arith.constant 0 : index
    %c0_2 = arith.constant 0 : index
    %1 = vector.load %arg2[%c0_1, %c0_2] : memref<8192x128xbf16, #tpu.memory_space<vmem>>, vector<8192x128xbf16>
    %cst = arith.constant dense<0.000000e+00> : vector<8x128xf32>
    %2 = tpu.matmul %0, %1, %cst {dimension_numbers = #tpu.dot_dimension_numbers<[1], [0], [0], [1], [0, 0, 1, 1], [], []>} : vector<8x8192xbf16>, vector<8192x128xbf16>, vector<8x128xf32> -> vector<8x128xf32>
    %c0_3 = arith.constant 0 : index
    %c0_4 = arith.constant 0 : index
    %3 = vector.load %arg3[%c0_3, %c0_4] : memref<1x128xf32, #tpu.memory_space<vmem>>, vector<1x128xf32>
    %4 = vector.broadcast %3 : vector<1x128xf32> to vector<8x128xf32>
    %5 = arith.addf %2, %4 : vector<8x128xf32>
    %cst_5 = arith.constant 0.000000e+00 : f32
    %6 = vector.broadcast %cst_5 : f32 to vector<8x128xf32>
    %7 = arith.maximumf %5, %6 : vector<8x128xf32>
    %8 = arith.truncf %7 : vector<8x128xf32> to vector<8x128xbf16>
    %c0_6 = arith.constant 0 : index
    %c0_7 = arith.constant 0 : index
    %9 = vector.load %arg4[%c0_6, %c0_7] : memref<128x128xbf16, #tpu.memory_space<vmem>>, vector<128x128xbf16>
    %cst_8 = arith.constant dense<0.000000e+00> : vector<8x128xf32>
    %10 = tpu.matmul %8, %9, %cst_8 {dimension_numbers = #tpu.dot_dimension_numbers<[1], [0], [0], [1], [0, 0, 1, 1], [], []>} : vector<8x128xbf16>, vector<128x128xbf16>, vector<8x128xf32> -> vector<8x128xf32>
    %c0_9 = arith.constant 0 : index
    %c0_10 = arith.constant 0 : index
    %11 = vector.load %arg5[%c0_9, %c0_10] : memref<1x128xf32, #tpu.memory_space<vmem>>, vector<1x128xf32>
    %12 = vector.broadcast %11 : vector<1x128xf32> to vector<8x128xf32>
    %13 = arith.addf %10, %12 : vector<8x128xf32>
    %c0_11 = arith.constant 0 : index
    %c0_12 = arith.constant 0 : index
    %14 = vector.load %arg6[%c0_11, %c0_12] : memref<8x128xf32, #tpu.memory_space<vmem>>, vector<8x128xf32>
    tpu.vector_store %arg6[%c0_11, %c0_12], %13 {strides = array<i32>} : memref<8x128xf32, #tpu.memory_space<vmem>>, vector<8x128xf32>,
    return
  }
  func.func @transform_0(%arg0: i32) -> (i32, i32) {
    %c0_i32 = arith.constant 0 : i32
    %c0_i32_0 = arith.constant 0 : i32
    return %arg0, %c0_i32 : i32, i32
  }
  func.func @transform_1(%arg0: i32) -> (i32, i32) {
    %c0_i32 = arith.constant 0 : i32
    %c0_i32_0 = arith.constant 0 : i32
    %c0_i32_1 = arith.constant 0 : i32
    return %c0_i32, %c0_i32_0 : i32, i32
  }
  func.func @transform_2(%arg0: i32) -> (i32, i32) {
    %c0_i32 = arith.constant 0 : i32
    %c0_i32_0 = arith.constant 0 : i32
    %c0_i32_1 = arith.constant 0 : i32
    return %c0_i32, %c0_i32_0 : i32, i32
  }
  func.func @transform_3(%arg0: i32) -> (i32, i32) {
    %c0_i32 = arith.constant 0 : i32
    %c0_i32_0 = arith.constant 0 : i32
    %c0_i32_1 = arith.constant 0 : i32
    return %c0_i32, %c0_i32_0 : i32, i32
  }
  func.func @transform_4(%arg0: i32) -> (i32, i32) {
    %c0_i32 = arith.constant 0 : i32
    %c0_i32_0 = arith.constant 0 : i32
    %c0_i32_1 = arith.constant 0 : i32
    return %c0_i32, %c0_i32_0 : i32, i32
  }
  func.func @transform_5(%arg0: i32) -> (i32, i32) {
    %c0_i32 = arith.constant 0 : i32
    %c0_i32_0 = arith.constant 0 : i32
    return %arg0, %c0_i32 : i32, i32
  }
}

</mosaic_0001>

<llo_original>
// kernel: simple_cnn_forward.3
$region0: #{simple_cnn_forward.3}
  #allocation0 [shape = 'u32[]', space=smem, size = 0x4, offset = 0x4, fixed_abs, tag = 'smem constant byte address 0x4 - core index']
  #allocation1 [shape = 'u32[72,128]{1,0:T(1,128)}', space=vmem, size = 0x9000, scoped, tag = 'internal scratch']
  %s0 = inlined_call_operand.vmem [shape: bf16[2,4,224,16], index: 0, kind: input, shape index: {}]
  %s1 = inlined_call_operand.hbm [shape: bf16[16,128], index: 1, kind: input, shape index: {}]
  %s2 = inlined_call_operand.hbm [shape: f32[1,128], index: 2, kind: input, shape index: {}]
  %s3 = inlined_call_operand.vmem [shape: bf16[2,224,128], index: 3, kind: output, shape index: {}]
  %s4 = sld [smem:[#allocation0]]
  $region53: #{simple_cnn_forward.3} parent=0
    _
  %s6 = ssub.s32 1, %s4
  %s7 = scalar_select 0, %s6, %s4
  $region1: #{simple_cnn_forward.3} parent=0
    #allocation2 [shape = 'u8[4096]{0}', space=vmem, size = 0x1000, scoped, tag = 'input window, operand 1, single buffered']
    #allocation3 [shape = 's32[2]{0}', space=sflag, size = 0x8, scoped, tag = 'scoped memory for simple_cnn_forward.3']
    #allocation4 [shape = 'u8[512]{0}', space=vmem, size = 0x400, scoped, tag = 'input window, operand 2, single buffered']
    #allocation5 [shape = 's32[1]{0}', space=sflag, size = 0x4, scoped, tag = 'scoped memory for simple_cnn_forward.3']
    %8 = vsyncpa [#allocation3], 0
    %9 = vsyncpa [#allocation5], 0
    loop: start=0, step=1, limit=4
    $region2: #{simple_cnn_forward.3} parent=1 // loop_pre_header
      _
    $region3: #{simple_cnn_forward.3} parent=1 // loop_header
      %s11 = sphi 0, %s15
      %p12 = scmp.ge.s32.totalorder %s11, 4
      %s21 = sphi 0, %s23
      %s24 = sphi 0, %s21
      %s25 = sphi 0, %s24
      %s41 = sphi 0, %s25
      %s45 = sphi 0, %s45
      %s47 = sphi 0, %s45
      %s48 = sphi 0, %s47
      %s62 = sphi 0, %s48
      %s66 = sphi 0, %s66
      %s68 = sphi 0, %s66
      %s69 = sphi 0, %s68
      %s83 = sphi 0, %s69
      %s89 = sphi 0, %s91
      %s92 = sphi 0, %s89
      %s93 = sphi 0, %s92
      %s109 = sphi 0, %s93
    $region4: #{simple_cnn_forward.3} parent=1 // loop_header_branch
      %14 = sbr.rel (%p12) target = $region8
    $region5: #{simple_cnn_forward.3} parent=1 // loop_body
      %s16 = ssub.s32 %s11, 1
      %s17 = ssub.s32 %s11, 2
      %s18 = sadd.s32 %s11, 1
      %s19 = ssub.s32 %s11, %s18
      %p20 = scmp.eq.s32.totalorder %s19, 0
      %s22 = sadd.s32 %s21, 1
      %s23 = scalar_select %p20, %s21, %s22
      %p26 = pneg %p20
      %p27 = scmp.eq.s32.totalorder %s11, 1
      %p28 = por %p26, %p27
      %p29 = scmp.ne.s32.totalorder %s21, %s24
      %p30 = scmp.eq.s32.totalorder %s11, 0
      %p31 = por %p29, %p30
      %p32 = scmp.ne.s32.totalorder %s21, %s24
      %p33 = scmp.eq.s32.totalorder %s16, 1
      %p34 = por %p32, %p33
      %p35 = scmp.ne.s32.totalorder %s24, %s25
      %p36 = scmp.eq.s32.totalorder %s16, 0
      %p37 = por %p35, %p36
      %p38 = scmp.ne.s32.totalorder %s24, %s25
      %p39 = scmp.eq.s32.totalorder %s17, 1
      %p40 = por %p38, %p39
      %p42 = scmp.ne.s32.totalorder %s25, %s41
      %p43 = scmp.eq.s32.totalorder %s17, 0
      %p44 = por %p42, %p43
      %s46 = sadd.s32 %s45, 1
      %p49 = scmp.eq.s32.totalorder %s11, 1
      %p50 = scmp.ne.s32.totalorder %s45, %s47
      %p51 = scmp.eq.s32.totalorder %s11, 0
      %p52 = por %p50, %p51
      %p53 = scmp.ne.s32.totalorder %s45, %s47
      %p54 = scmp.eq.s32.totalorder %s16, 1
      %p55 = por %p53, %p54
      %p56 = scmp.ne.s32.totalorder %s47, %s48
      %p57 = scmp.eq.s32.totalorder %s16, 0
      %p58 = por %p56, %p57
      %p59 = scmp.ne.s32.totalorder %s47, %s48
      %p60 = scmp.eq.s32.totalorder %s17, 1
      %p61 = por %p59, %p60
      %p63 = scmp.ne.s32.totalorder %s48, %s62
      %p64 = scmp.eq.s32.totalorder %s17, 0
      %p65 = por %p63, %p64
      %s67 = sadd.s32 %s66, 1
      %p70 = scmp.eq.s32.totalorder %s11, 1
      %p71 = scmp.ne.s32.totalorder %s66, %s68
      %p72 = scmp.eq.s32.totalorder %s11, 0
      %p73 = por %p71, %p72
      %p74 = scmp.ne.s32.totalorder %s66, %s68
      %p75 = scmp.eq.s32.totalorder %s16, 1
      %p76 = por %p74, %p75
      %p77 = scmp.ne.s32.totalorder %s68, %s69
      %p78 = scmp.eq.s32.totalorder %s16, 0
      %p79 = por %p77, %p78
      %p80 = scmp.ne.s32.totalorder %s68, %s69
      %p81 = scmp.eq.s32.totalorder %s17, 1
      %p82 = por %p80, %p81
      %p84 = scmp.ne.s32.totalorder %s69, %s83
      %p85 = scmp.eq.s32.totalorder %s17, 0
      %p86 = por %p84, %p85
      %s87 = ssub.s32 %s11, %s18
      %p88 = scmp.eq.s32.totalorder %s87, 0
      %s90 = sadd.s32 %s89, 1
      %s91 = scalar_select %p88, %s89, %s90
      %p94 = pneg %p88
      %p95 = scmp.eq.s32.totalorder %s11, 1
      %p96 = por %p94, %p95
      %p97 = scmp.ne.s32.totalorder %s89, %s92
      %p98 = scmp.eq.s32.totalorder %s11, 0
      %p99 = por %p97, %p98
      %p100 = scmp.ne.s32.totalorder %s89, %s92
      %p101 = scmp.eq.s32.totalorder %s16, 1
      %p102 = por %p100, %p101
      %p103 = scmp.ne.s32.totalorder %s92, %s93
      %p104 = scmp.eq.s32.totalorder %s16, 0
      %p105 = por %p103, %p104
      %p106 = scmp.ne.s32.totalorder %s92, %s93
      %p107 = scmp.eq.s32.totalorder %s17, 1
      %p108 = por %p106, %p107
      %p110 = scmp.ne.s32.totalorder %s93, %s109
      %p111 = scmp.eq.s32.totalorder %s17, 0
      %p112 = por %p110, %p111
      %p113 = scmp.le.s32.totalorder 1, %s11
      %p114 = scmp.lt.s32.totalorder %s11, 3
      %p115 = pnand %p113, %p114
      %p116 = pneg %p115
      // Predicated region
      $region9: #{simple_cnn_forward.3} parent=5 // pred_check
        _
      $region10: #{simple_cnn_forward.3} parent=5 // pred_check_branch
        %118 = sbr.rel (%p115) target = $region12
      $region11: #{simple_cnn_forward.3} parent=5 // pred_region
        %s119 = ssub.s32 %s11, 1
        // Predicated region
        $region13: #{simple_cnn_forward.3} parent=11 // pred_check
          %p120 = pneg %p58
        $region14: #{simple_cnn_forward.3} parent=11 // pred_check_branch
          %122 = sbr.rel (%p120) target = $region16
        $region15: #{simple_cnn_forward.3} parent=11 // pred_region
          %124 = vsyncadd [#allocation3], 0
          %s125 = sshll.u32 %s1, 4
          %s126 = int_to_ptr.hbm [resolvable:$true] %s125
          %s127 = sshll.u32 [#allocation2], 4
          %s128 = int_to_ptr.vmem [resolvable:$true] %s127
          %133 = dma.hbm_to_vmem [thread:$0]  %s126, 128, %s128, [#allocation3], 64, 64, 4
        $region16: #{simple_cnn_forward.3} parent=11 // pred_fallthru
          _
        // Predicated region
        $region17: #{simple_cnn_forward.3} parent=11 // pred_check
          %p134 = pneg %p79
        $region18: #{simple_cnn_forward.3} parent=11 // pred_check_branch
          %136 = sbr.rel (%p134) target = $region20
        $region19: #{simple_cnn_forward.3} parent=11 // pred_region
          %138 = vsyncadd [#allocation5], 0
          %s140 = sshll.u32 %s2, 4
          %s141 = int_to_ptr.hbm [resolvable:$true] %s140
          %s142 = sshll.u32 [#allocation4], 4
          %s143 = int_to_ptr.vmem [resolvable:$true] %s142
          %145 = dma.hbm_to_vmem [thread:$0]  %s141, 16, %s143, [#allocation5]
        $region20: #{simple_cnn_forward.3} parent=11 // pred_fallthru
          _
      $region12: #{simple_cnn_forward.3} parent=5 // pred_fallthru
        _
      %p146 = scmp.lt.s32.totalorder %s11, 2
      // Predicated region
      $region21: #{simple_cnn_forward.3} parent=5 // pred_check
        %p147 = pneg %p146
      $region22: #{simple_cnn_forward.3} parent=5 // pred_check_branch
        %149 = sbr.rel (%p147) target = $region24
      $region23: #{simple_cnn_forward.3} parent=5 // pred_region
        // Predicated region
        $region25: #{simple_cnn_forward.3} parent=23 // pred_check
          %p150 = pneg %p31
        $region26: #{simple_cnn_forward.3} parent=23 // pred_check_branch
          %152 = sbr.rel (%p150) target = $region28
        $region27: #{simple_cnn_forward.3} parent=23 // pred_region
          %p153 = scmp.lt.s32.totalorder %s11, 1
          %s154 = scalar_select %p153, %s11, 1
          %s155 = smul.addr %s154, 112
          %s156 = smul.addr %s155, 4
          %s157 = scalar_lea.vmem %s0, %s156
        $region28: #{simple_cnn_forward.3} parent=23 // pred_fallthru
          _
      $region24: #{simple_cnn_forward.3} parent=5 // pred_fallthru
        _
      %p158 = scmp.le.s32.totalorder 1, %s11
      %p159 = scmp.lt.s32.totalorder %s11, 3
      %p160 = pnand %p158, %p159
      %p161 = pneg %p160
      // Predicated region
      $region29: #{simple_cnn_forward.3} parent=5 // pred_check
        _
      $region30: #{simple_cnn_forward.3} parent=5 // pred_check_branch
        %163 = sbr.rel (%p160) target = $region32
      $region31: #{simple_cnn_forward.3} parent=5 // pred_region
        %s164 = ssub.s32 %s11, 1
        // Predicated region
        $region33: #{simple_cnn_forward.3} parent=31 // pred_check
          %p165 = pneg %p58
        $region34: #{simple_cnn_forward.3} parent=31 // pred_check_branch
          %167 = sbr.rel (%p165) target = $region36
        $region35: #{simple_cnn_forward.3} parent=31 // pred_region
          %169 = dma.done [#allocation3], 128
        $region36: #{simple_cnn_forward.3} parent=31 // pred_fallthru
          _
        // Predicated region
        $region37: #{simple_cnn_forward.3} parent=31 // pred_check
          %p170 = pneg %p79
        $region38: #{simple_cnn_forward.3} parent=31 // pred_check_branch
          %172 = sbr.rel (%p170) target = $region40
        $region39: #{simple_cnn_forward.3} parent=31 // pred_region
          %174 = dma.done [#allocation5], 16
        $region40: #{simple_cnn_forward.3} parent=31 // pred_fallthru
          _
        %p175 = scmp.lt.s32.totalorder %s16, 1
        %s176 = scalar_select %p175, %s16, 1
        %s177 = smul.addr %s176, 112
        %s178 = smul.addr %s177, 4
        %s179 = scalar_lea.vmem %s0, %s178
        %p180 = pneg %p37
        %p181 = pneg %p34
        %p182 = pneg %p58
        %p183 = pneg %p55
        %p184 = pneg %p79
        %p185 = pneg %p76
        %p186 = pneg %p105
        %p187 = pneg %p102
        %p188 = scmp.lt.s32.totalorder %s16, 1
        %s189 = scalar_select %p188, %s16, 1
        %s190 = smul.addr %s189, 28
        %s191 = smul.addr %s190, 4
        %s192 = scalar_lea.vmem %s3, %s191
        %p193 = scmp.lt.s32.totalorder %s16, 1
        %s194 = scalar_select %p193, %s16, 1
        %s195 = smul.addr %s194, 112
        %s196 = smul.addr %s195, 4
        %s197 = scalar_lea.vmem %s0, %s196
        %p198 = scmp.lt.s32.totalorder %s16, 1
        %s199 = scalar_select %p198, %s16, 1
        %s200 = smul.addr %s199, 28
        %s201 = smul.addr %s200, 4
        %s202 = scalar_lea.vmem %s3, %s201
        %v204 = vld [vmem:[#allocation2] sm:$0xf]
        %v205 = vld [vmem:[#allocation2 + $0x4] sm:$0xf]
        %v206 = vld [vmem:[#allocation4] sm:$0x1]
        %v207 = vld [vmem:[%s197] sm:$0xf]
        %v208 = vld [vmem:[%s197 + $0x4] sm:$0xf]
        %v209 = vld [vmem:[%s197 + $0x8] sm:$0xf]
        %v210 = vld [vmem:[%s197 + $0xc] sm:$0xf]
        %v211 = vld [vmem:[%s197 + $0x10] sm:$0xf]
        %v212 = vld [vmem:[%s197 + $0x14] sm:$0xf]
        %v213 = vld [vmem:[%s197 + $0x18] sm:$0xf]
        %v215 = vperm.slane %v206, 0
        %v224 = vunpack.c.l.b16 %v207
        %v225 = vunpack.c.l.b16 %v208
        %v226 = vunpack.c.l.b16 %v209
        %v227 = vunpack.c.l.b16 %v210
        %v228 = vunpack.c.l.b16 %v211
        %v229 = vunpack.c.l.b16 %v212
        %v230 = vunpack.c.l.b16 %v213
        %v231 = vpack.c.b16 %v225, %v224
        %v232 = vpack.c.b16 %v227, %v226
        %v233 = vpack.c.b16 %v229, %v228
        %v234 = vpack.c.b16 %v230, %v230
        %v237 = vunpack.c.l.b16 %v204
        %v238 = vunpack.c.l.b16 %v205
        %v239 = vpack.c.b16 %v238, %v237
        %vm241 = vcmask 130048
        %v243 = vsel %vm241, %v231, 0
        %v246 = vsel %vm241, %v232, 0
        %v249 = vsel %vm241, %v233, 0
        %v252 = vsel %vm241, %v234, 0
        %254 = vmatpush.bf16.msra.mxu0 0
        %255 = vmatpush.bf16.msra.mxu0 0
        %256 = vmatpush.bf16.msra.mxu0 0
        %257 = vmatpush.bf16.msra.mxu0 0
        %258 = vmatpush.bf16.msra.mxu0 0
        %259 = vmatpush.bf16.msra.mxu0 0
        %260 = vmatpush.bf16.msra.mxu0 0
        %261 = vmatpush.bf16.msra.mxu0 %v239
        %262 = vmatmul.bf16.gmra.mxu0 %v243
        %v263 = vpop.f32.mrf.mxu0
        %v264 = vadd.f32 %v215, %v263
        %v265 = vpop.f32.mrf.mxu0
        %v266 = vadd.f32 %v215, %v265
        %267 = vmatmul.bf16.gmra.mxu0 %v246
        %v268 = vpop.f32.mrf.mxu0
        %v269 = vadd.f32 %v215, %v268
        %v270 = vpop.f32.mrf.mxu0
        %v271 = vadd.f32 %v215, %v270
        %272 = vmatmul.bf16.gmra.mxu0 %v249
        %v273 = vpop.f32.mrf.mxu0
        %v274 = vadd.f32 %v215, %v273
        %v275 = vpop.f32.mrf.mxu0
        %v276 = vadd.f32 %v215, %v275
        %277 = vmatmul.bf16.gmra.mxu0 %v252
        %v278 = vpop.f32.mrf.mxu0
        %v279 = vadd.f32 %v215, %v278
        %v280 = vpop.f32.mrf.mxu0
        %281 = vdwg.mxu0
        %v282 = vmax.f32 %v264, 0.0
        %v283 = vmax.f32 %v266, 0.0
        %v284 = vmax.f32 %v269, 0.0
        %v285 = vmax.f32 %v271, 0.0
        %v286 = vmax.f32 %v274, 0.0
        %v287 = vmax.f32 %v276, 0.0
        %v288 = vmax.f32 %v279, 0.0
        %s289 = scalar_lea.vmem %s197, 112
        %v290 = vld [vmem:[%s289] sm:$0xf]
        %v291 = vld [vmem:[%s289 + $0x4] sm:$0xf]
        %v292 = vld [vmem:[%s289 + $0x8] sm:$0xf]
        %v293 = vld [vmem:[%s289 + $0xc] sm:$0xf]
        %v294 = vld [vmem:[%s289 + $0x10] sm:$0xf]
        %v295 = vld [vmem:[%s289 + $0x14] sm:$0xf]
        %v296 = vld [vmem:[%s289 + $0x18] sm:$0xf]
        %v304 = vunpack.c.l.b16 %v290
        %v305 = vunpack.c.l.b16 %v291
        %v306 = vunpack.c.l.b16 %v292
        %v307 = vunpack.c.l.b16 %v293
        %v308 = vunpack.c.l.b16 %v294
        %v309 = vunpack.c.l.b16 %v295
        %v310 = vunpack.c.l.b16 %v296
        %v311 = vpack.c.b16 %v305, %v304
        %v312 = vpack.c.b16 %v307, %v306
        %v313 = vpack.c.b16 %v309, %v308
        %v314 = vpack.c.b16 %v310, %v310
        %v316 = vsel %vm241, %v311, 0
        %v319 = vsel %vm241, %v312, 0
        %v322 = vsel %vm241, %v313, 0
        %v325 = vsel %vm241, %v314, 0
        %327 = vmatpush.bf16.msra.mxu0 0
        %328 = vmatpush.bf16.msra.mxu0 0
        %329 = vmatpush.bf16.msra.mxu0 0
        %330 = vmatpush.bf16.msra.mxu0 0
        %331 = vmatpush.bf16.msra.mxu0 0
        %332 = vmatpush.bf16.msra.mxu0 0
        %333 = vmatpush.bf16.msra.mxu0 0
        %334 = vmatpush.bf16.msra.mxu0 %v239
        %335 = vmatmul.bf16.gmra.mxu0 %v316
        %v336 = vpop.f32.mrf.mxu0
        %v337 = vadd.f32 %v215, %v336
        %v338 = vpop.f32.mrf.mxu0
        %v339 = vadd.f32 %v215, %v338
        %340 = vmatmul.bf16.gmra.mxu0 %v319
        %v341 = vpop.f32.mrf.mxu0
        %v342 = vadd.f32 %v215, %v341
        %v343 = vpop.f32.mrf.mxu0
        %v344 = vadd.f32 %v215, %v343
        %345 = vmatmul.bf16.gmra.mxu0 %v322
        %v346 = vpop.f32.mrf.mxu0
        %v347 = vadd.f32 %v215, %v346
        %v348 = vpop.f32.mrf.mxu0
        %v349 = vadd.f32 %v215, %v348
        %350 = vmatmul.bf16.gmra.mxu0 %v325
        %v351 = vpop.f32.mrf.mxu0
        %v352 = vadd.f32 %v215, %v351
        %v353 = vpop.f32.mrf.mxu0
        %354 = vdwg.mxu0
        %v355 = vmax.f32 %v337, 0.0
        %v356 = vmax.f32 %v339, 0.0
        %v357 = vmax.f32 %v342, 0.0
        %v358 = vmax.f32 %v344, 0.0
        %v359 = vmax.f32 %v347, 0.0
        %v360 = vmax.f32 %v349, 0.0
        %v361 = vmax.f32 %v352, 0.0
        %v362 = vmax.f32 %v282, %v355
        %v363 = vmax.f32 %v283, %v356
        %v364 = vmax.f32 %v284, %v357
        %v365 = vmax.f32 %v285, %v358
        %v366 = vmax.f32 %v286, %v359
        %v367 = vmax.f32 %v287, %v360
        %v368 = vmax.f32 %v288, %v361
        %s369 = scalar_lea.vmem %s197, 224
        %v370 = vld [vmem:[%s369] sm:$0xf]
        %v371 = vld [vmem:[%s369 + $0x4] sm:$0xf]
        %v372 = vld [vmem:[%s369 + $0x8] sm:$0xf]
        %v373 = vld [vmem:[%s369 + $0xc] sm:$0xf]
        %v374 = vld [vmem:[%s369 + $0x10] sm:$0xf]
        %v375 = vld [vmem:[%s369 + $0x14] sm:$0xf]
        %v376 = vld [vmem:[%s369 + $0x18] sm:$0xf]
        %v384 = vunpack.c.l.b16 %v370
        %v385 = vunpack.c.l.b16 %v371
        %v386 = vunpack.c.l.b16 %v372
        %v387 = vunpack.c.l.b16 %v373
        %v388 = vunpack.c.l.b16 %v374
        %v389 = vunpack.c.l.b16 %v375
        %v390 = vunpack.c.l.b16 %v376
        %v391 = vpack.c.b16 %v385, %v384
        %v392 = vpack.c.b16 %v387, %v386
        %v393 = vpack.c.b16 %v389, %v388
        %v394 = vpack.c.b16 %v390, %v390
        %v396 = vsel %vm241, %v391, 0
        %v399 = vsel %vm241, %v392, 0
        %v402 = vsel %vm241, %v393, 0
        %v405 = vsel %vm241, %v394, 0
        %407 = vmatpush.bf16.msra.mxu0 0
        %408 = vmatpush.bf16.msra.mxu0 0
        %409 = vmatpush.bf16.msra.mxu0 0
        %410 = vmatpush.bf16.msra.mxu0 0
        %411 = vmatpush.bf16.msra.mxu0 0
        %412 = vmatpush.bf16.msra.mxu0 0
        %413 = vmatpush.bf16.msra.mxu0 0
        %414 = vmatpush.bf16.msra.mxu0 %v239
        %415 = vmatmul.bf16.gmra.mxu0 %v396
        %v416 = vpop.f32.mrf.mxu0
        %v417 = vadd.f32 %v215, %v416
        %v418 = vpop.f32.mrf.mxu0
        %v419 = vadd.f32 %v215, %v418
        %420 = vmatmul.bf16.gmra.mxu0 %v399
        %v421 = vpop.f32.mrf.mxu0
        %v422 = vadd.f32 %v215, %v421
        %v423 = vpop.f32.mrf.mxu0
        %v424 = vadd.f32 %v215, %v423
        %425 = vmatmul.bf16.gmra.mxu0 %v402
        %v426 = vpop.f32.mrf.mxu0
        %v427 = vadd.f32 %v215, %v426
        %v428 = vpop.f32.mrf.mxu0
        %v429 = vadd.f32 %v215, %v428
        %430 = vmatmul.bf16.gmra.mxu0 %v405
        %v431 = vpop.f32.mrf.mxu0
        %v432 = vadd.f32 %v215, %v431
        %v433 = vpop.f32.mrf.mxu0
        %434 = vdwg.mxu0
        %v435 = vmax.f32 %v417, 0.0
        %v436 = vmax.f32 %v419, 0.0
        %v437 = vmax.f32 %v422, 0.0
        %v438 = vmax.f32 %v424, 0.0
        %v439 = vmax.f32 %v427, 0.0
        %v440 = vmax.f32 %v429, 0.0
        %v441 = vmax.f32 %v432, 0.0
        %v442 = vmax.f32 %v362, %v435
        %v443 = vmax.f32 %v363, %v436
        %v444 = vmax.f32 %v364, %v437
        %v445 = vmax.f32 %v365, %v438
        %v446 = vmax.f32 %v366, %v439
        %v447 = vmax.f32 %v367, %v440
        %v448 = vmax.f32 %v368, %v441
        %s449 = scalar_lea.vmem %s197, 336
        %v450 = vld [vmem:[%s449] sm:$0xf]
        %v451 = vld [vmem:[%s449 + $0x4] sm:$0xf]
        %v452 = vld [vmem:[%s449 + $0x8] sm:$0xf]
        %v453 = vld [vmem:[%s449 + $0xc] sm:$0xf]
        %v454 = vld [vmem:[%s449 + $0x10] sm:$0xf]
        %v455 = vld [vmem:[%s449 + $0x14] sm:$0xf]
        %v456 = vld [vmem:[%s449 + $0x18] sm:$0xf]
        %v464 = vunpack.c.l.b16 %v450
        %v465 = vunpack.c.l.b16 %v451
        %v466 = vunpack.c.l.b16 %v452
        %v467 = vunpack.c.l.b16 %v453
        %v468 = vunpack.c.l.b16 %v454
        %v469 = vunpack.c.l.b16 %v455
        %v470 = vunpack.c.l.b16 %v456
        %v471 = vpack.c.b16 %v465, %v464
        %v472 = vpack.c.b16 %v467, %v466
        %v473 = vpack.c.b16 %v469, %v468
        %v474 = vpack.c.b16 %v470, %v470
        %v476 = vsel %vm241, %v471, 0
        %v479 = vsel %vm241, %v472, 0
        %v482 = vsel %vm241, %v473, 0
        %v485 = vsel %vm241, %v474, 0
        %487 = vmatpush.bf16.msra.mxu0 0
        %488 = vmatpush.bf16.msra.mxu0 0
        %489 = vmatpush.bf16.msra.mxu0 0
        %490 = vmatpush.bf16.msra.mxu0 0
        %491 = vmatpush.bf16.msra.mxu0 0
        %492 = vmatpush.bf16.msra.mxu0 0
        %493 = vmatpush.bf16.msra.mxu0 0
        %494 = vmatpush.bf16.msra.mxu0 %v239
        %495 = vmatmul.bf16.gmra.mxu0 %v476
        %v496 = vpop.f32.mrf.mxu0
        %v497 = vadd.f32 %v215, %v496
        %v498 = vpop.f32.mrf.mxu0
        %v499 = vadd.f32 %v215, %v498
        %500 = vmatmul.bf16.gmra.mxu0 %v479
        %v501 = vpop.f32.mrf.mxu0
        %v502 = vadd.f32 %v215, %v501
        %v503 = vpop.f32.mrf.mxu0
        %v504 = vadd.f32 %v215, %v503
        %505 = vmatmul.bf16.gmra.mxu0 %v482
        %v506 = vpop.f32.mrf.mxu0
        %v507 = vadd.f32 %v215, %v506
        %v508 = vpop.f32.mrf.mxu0
        %v509 = vadd.f32 %v215, %v508
        %510 = vmatmul.bf16.gmra.mxu0 %v485
        %v511 = vpop.f32.mrf.mxu0
        %v512 = vadd.f32 %v215, %v511
        %v513 = vpop.f32.mrf.mxu0
        %514 = vdwg.mxu0
        %v515 = vmax.f32 %v497, 0.0
        %v516 = vmax.f32 %v499, 0.0
        %v517 = vmax.f32 %v502, 0.0
        %v518 = vmax.f32 %v504, 0.0
        %v519 = vmax.f32 %v507, 0.0
        %v520 = vmax.f32 %v509, 0.0
        %v521 = vmax.f32 %v512, 0.0
        %v522 = vmax.f32 %v442, %v515
        %v523 = vmax.f32 %v443, %v516
        %v524 = vmax.f32 %v444, %v517
        %v525 = vmax.f32 %v445, %v518
        %v526 = vmax.f32 %v446, %v519
        %v527 = vmax.f32 %v447, %v520
        %v528 = vmax.f32 %v448, %v521
        %v529 = vpack.c.bf16 %v522, %v522
        %v530 = vpack.c.bf16 %v523, %v523
        %v531 = vpack.c.bf16 %v524, %v524
        %v532 = vpack.c.bf16 %v525, %v525
        %v533 = vpack.c.bf16 %v526, %v526
        %v534 = vpack.c.bf16 %v527, %v527
        %v535 = vpack.c.bf16 %v528, %v528
        %536 = vst [vmem:[%s202] sm:$0xf] %v529
        %537 = vst [vmem:[%s202 + $0x4] sm:$0xf] %v530
        %538 = vst [vmem:[%s202 + $0x8] sm:$0xf] %v531
        %539 = vst [vmem:[%s202 + $0xc] sm:$0xf] %v532
        %540 = vst [vmem:[%s202 + $0x10] sm:$0xf] %v533
        %541 = vst [vmem:[%s202 + $0x14] sm:$0xf] %v534
        %542 = vst [vmem:[%s202 + $0x18] sm:$0xf] %v535
        %v543 = vld [vmem:[%s197 + $0x1c] sm:$0xf]
        %v544 = vld [vmem:[%s197 + $0x20] sm:$0xf]
        %v545 = vld [vmem:[%s197 + $0x24] sm:$0xf]
        %v546 = vld [vmem:[%s197 + $0x28] sm:$0xf]
        %v547 = vld [vmem:[%s197 + $0x2c] sm:$0xf]
        %v548 = vld [vmem:[%s197 + $0x30] sm:$0xf]
        %v549 = vld [vmem:[%s197 + $0x34] sm:$0xf]
        %v557 = vunpack.c.l.b16 %v543
        %v558 = vunpack.c.l.b16 %v544
        %v559 = vunpack.c.l.b16 %v545
        %v560 = vunpack.c.l.b16 %v546
        %v561 = vunpack.c.l.b16 %v547
        %v562 = vunpack.c.l.b16 %v548
        %v563 = vunpack.c.l.b16 %v549
        %v564 = vpack.c.b16 %v558, %v557
        %v565 = vpack.c.b16 %v560, %v559
        %v566 = vpack.c.b16 %v562, %v561
        %v567 = vpack.c.b16 %v563, %v563
        %v569 = vsel %vm241, %v564, 0
        %v572 = vsel %vm241, %v565, 0
        %v575 = vsel %vm241, %v566, 0
        %v578 = vsel %vm241, %v567, 0
        %580 = vmatpush.bf16.msra.mxu0 0
        %581 = vmatpush.bf16.msra.mxu0 0
        %582 = vmatpush.bf16.msra.mxu0 0
        %583 = vmatpush.bf16.msra.mxu0 0
        %584 = vmatpush.bf16.msra.mxu0 0
        %585 = vmatpush.bf16.msra.mxu0 0
        %586 = vmatpush.bf16.msra.mxu0 0
        %587 = vmatpush.bf16.msra.mxu0 %v239
        %588 = vmatmul.bf16.gmra.mxu0 %v569
        %v589 = vpop.f32.mrf.mxu0
        %v590 = vadd.f32 %v215, %v589
        %v591 = vpop.f32.mrf.mxu0
        %v592 = vadd.f32 %v215, %v591
        %593 = vmatmul.bf16.gmra.mxu0 %v572
        %v594 = vpop.f32.mrf.mxu0
        %v595 = vadd.f32 %v215, %v594
        %v596 = vpop.f32.mrf.mxu0
        %v597 = vadd.f32 %v215, %v596
        %598 = vmatmul.bf16.gmra.mxu0 %v575
        %v599 = vpop.f32.mrf.mxu0
        %v600 = vadd.f32 %v215, %v599
        %v601 = vpop.f32.mrf.mxu0
        %v602 = vadd.f32 %v215, %v601
        %603 = vmatmul.bf16.gmra.mxu0 %v578
        %v604 = vpop.f32.mrf.mxu0
        %v605 = vadd.f32 %v215, %v604
        %v606 = vpop.f32.mrf.mxu0
        %607 = vdwg.mxu0
        %v608 = vmax.f32 %v590, 0.0
        %v609 = vmax.f32 %v592, 0.0
        %v610 = vmax.f32 %v595, 0.0
        %v611 = vmax.f32 %v597, 0.0
        %v612 = vmax.f32 %v600, 0.0
        %v613 = vmax.f32 %v602, 0.0
        %v614 = vmax.f32 %v605, 0.0
        %v615 = vld [vmem:[%s289 + $0x1c] sm:$0xf]
        %v616 = vld [vmem:[%s289 + $0x20] sm:$0xf]
        %v617 = vld [vmem:[%s289 + $0x24] sm:$0xf]
        %v618 = vld [vmem:[%s289 + $0x28] sm:$0xf]
        %v619 = vld [vmem:[%s289 + $0x2c] sm:$0xf]
        %v620 = vld [vmem:[%s289 + $0x30] sm:$0xf]
        %v621 = vld [vmem:[%s289 + $0x34] sm:$0xf]
        %v629 = vunpack.c.l.b16 %v615
        %v630 = vunpack.c.l.b16 %v616
        %v631 = vunpack.c.l.b16 %v617
        %v632 = vunpack.c.l.b16 %v618
        %v633 = vunpack.c.l.b16 %v619
        %v634 = vunpack.c.l.b16 %v620
        %v635 = vunpack.c.l.b16 %v621
        %v636 = vpack.c.b16 %v630, %v629
        %v637 = vpack.c.b16 %v632, %v631
        %v638 = vpack.c.b16 %v634, %v633
        %v639 = vpack.c.b16 %v635, %v635
        %v641 = vsel %vm241, %v636, 0
        %v644 = vsel %vm241, %v637, 0
        %v647 = vsel %vm241, %v638, 0
        %v650 = vsel %vm241, %v639, 0
        %652 = vmatpush.bf16.msra.mxu0 0
        %653 = vmatpush.bf16.msra.mxu0 0
        %654 = vmatpush.bf16.msra.mxu0 0
        %655 = vmatpush.bf16.msra.mxu0 0
        %656 = vmatpush.bf16.msra.mxu0 0
        %657 = vmatpush.bf16.msra.mxu0 0
        %658 = vmatpush.bf16.msra.mxu0 0
        %659 = vmatpush.bf16.msra.mxu0 %v239
        %660 = vmatmul.bf16.gmra.mxu0 %v641
        %v661 = vpop.f32.mrf.mxu0
        %v662 = vadd.f32 %v215, %v661
        %v663 = vpop.f32.mrf.mxu0
        %v664 = vadd.f32 %v215, %v663
        %665 = vmatmul.bf16.gmra.mxu0 %v644
        %v666 = vpop.f32.mrf.mxu0
        %v667 = vadd.f32 %v215, %v666
        %v668 = vpop.f32.mrf.mxu0
        %v669 = vadd.f32 %v215, %v668
        %670 = vmatmul.bf16.gmra.mxu0 %v647
        %v671 = vpop.f32.mrf.mxu0
        %v672 = vadd.f32 %v215, %v671
        %v673 = vpop.f32.mrf.mxu0
        %v674 = vadd.f32 %v215, %v673
        %675 = vmatmul.bf16.gmra.mxu0 %v650
        %v676 = vpop.f32.mrf.mxu0
        %v677 = vadd.f32 %v215, %v676
        %v678 = vpop.f32.mrf.mxu0
        %679 = vdwg.mxu0
        %v680 = vmax.f32 %v662, 0.0
        %v681 = vmax.f32 %v664, 0.0
        %v682 = vmax.f32 %v667, 0.0
        %v683 = vmax.f32 %v669, 0.0
        %v684 = vmax.f32 %v672, 0.0
        %v685 = vmax.f32 %v674, 0.0
        %v686 = vmax.f32 %v677, 0.0
        %v687 = vmax.f32 %v608, %v680
        %v688 = vmax.f32 %v609, %v681
        %v689 = vmax.f32 %v610, %v682
        %v690 = vmax.f32 %v611, %v683
        %v691 = vmax.f32 %v612, %v684
        %v692 = vmax.f32 %v613, %v685
        %v693 = vmax.f32 %v614, %v686
        %v694 = vld [vmem:[%s369 + $0x1c] sm:$0xf]
        %v695 = vld [vmem:[%s369 + $0x20] sm:$0xf]
        %v696 = vld [vmem:[%s369 + $0x24] sm:$0xf]
        %v697 = vld [vmem:[%s369 + $0x28] sm:$0xf]
        %v698 = vld [vmem:[%s369 + $0x2c] sm:$0xf]
        %v699 = vld [vmem:[%s369 + $0x30] sm:$0xf]
        %v700 = vld [vmem:[%s369 + $0x34] sm:$0xf]
        %v708 = vunpack.c.l.b16 %v694
        %v709 = vunpack.c.l.b16 %v695
        %v710 = vunpack.c.l.b16 %v696
        %v711 = vunpack.c.l.b16 %v697
        %v712 = vunpack.c.l.b16 %v698
        %v713 = vunpack.c.l.b16 %v699
        %v714 = vunpack.c.l.b16 %v700
        %v715 = vpack.c.b16 %v709, %v708
        %v716 = vpack.c.b16 %v711, %v710
        %v717 = vpack.c.b16 %v713, %v712
        %v718 = vpack.c.b16 %v714, %v714
        %v720 = vsel %vm241, %v715, 0
        %v723 = vsel %vm241, %v716, 0
        %v726 = vsel %vm241, %v717, 0
        %v729 = vsel %vm241, %v718, 0
        %731 = vmatpush.bf16.msra.mxu0 0
        %732 = vmatpush.bf16.msra.mxu0 0
        %733 = vmatpush.bf16.msra.mxu0 0
        %734 = vmatpush.bf16.msra.mxu0 0
        %735 = vmatpush.bf16.msra.mxu0 0
        %736 = vmatpush.bf16.msra.mxu0 0
        %737 = vmatpush.bf16.msra.mxu0 0
        %738 = vmatpush.bf16.msra.mxu0 %v239
        %739 = vmatmul.bf16.gmra.mxu0 %v720
        %v740 = vpop.f32.mrf.mxu0
        %v741 = vadd.f32 %v215, %v740
        %v742 = vpop.f32.mrf.mxu0
        %v743 = vadd.f32 %v215, %v742
        %744 = vmatmul.bf16.gmra.mxu0 %v723
        %v745 = vpop.f32.mrf.mxu0
        %v746 = vadd.f32 %v215, %v745
        %v747 = vpop.f32.mrf.mxu0
        %v748 = vadd.f32 %v215, %v747
        %749 = vmatmul.bf16.gmra.mxu0 %v726
        %v750 = vpop.f32.mrf.mxu0
        %v751 = vadd.f32 %v215, %v750
        %v752 = vpop.f32.mrf.mxu0
        %v753 = vadd.f32 %v215, %v752
        %754 = vmatmul.bf16.gmra.mxu0 %v729
        %v755 = vpop.f32.mrf.mxu0
        %v756 = vadd.f32 %v215, %v755
        %v757 = vpop.f32.mrf.mxu0
        %758 = vdwg.mxu0
        %v759 = vmax.f32 %v741, 0.0
        %v760 = vmax.f32 %v743, 0.0
        %v761 = vmax.f32 %v746, 0.0
        %v762 = vmax.f32 %v748, 0.0
        %v763 = vmax.f32 %v751, 0.0
        %v764 = vmax.f32 %v753, 0.0
        %v765 = vmax.f32 %v756, 0.0
        %v766 = vmax.f32 %v687, %v759
        %v767 = vmax.f32 %v688, %v760
        %v768 = vmax.f32 %v689, %v761
        %v769 = vmax.f32 %v690, %v762
        %v770 = vmax.f32 %v691, %v763
        %v771 = vmax.f32 %v692, %v764
        %v772 = vmax.f32 %v693, %v765
        %v773 = vld [vmem:[%s449 + $0x1c] sm:$0xf]
        %v774 = vld [vmem:[%s449 + $0x20] sm:$0xf]
        %v775 = vld [vmem:[%s449 + $0x24] sm:$0xf]
        %v776 = vld [vmem:[%s449 + $0x28] sm:$0xf]
        %v777 = vld [vmem:[%s449 + $0x2c] sm:$0xf]
        %v778 = vld [vmem:[%s449 + $0x30] sm:$0xf]
        %v779 = vld [vmem:[%s449 + $0x34] sm:$0xf]
        %v787 = vunpack.c.l.b16 %v773
        %v788 = vunpack.c.l.b16 %v774
        %v789 = vunpack.c.l.b16 %v775
        %v790 = vunpack.c.l.b16 %v776
        %v791 = vunpack.c.l.b16 %v777
        %v792 = vunpack.c.l.b16 %v778
        %v793 = vunpack.c.l.b16 %v779
        %v794 = vpack.c.b16 %v788, %v787
        %v795 = vpack.c.b16 %v790, %v789
        %v796 = vpack.c.b16 %v792, %v791
        %v797 = vpack.c.b16 %v793, %v793
        %v799 = vsel %vm241, %v794, 0
        %v802 = vsel %vm241, %v795, 0
        %v805 = vsel %vm241, %v796, 0
        %v808 = vsel %vm241, %v797, 0
        %810 = vmatpush.bf16.msra.mxu0 0
        %811 = vmatpush.bf16.msra.mxu0 0
        %812 = vmatpush.bf16.msra.mxu0 0
        %813 = vmatpush.bf16.msra.mxu0 0
        %814 = vmatpush.bf16.msra.mxu0 0
        %815 = vmatpush.bf16.msra.mxu0 0
        %816 = vmatpush.bf16.msra.mxu0 0
        %817 = vmatpush.bf16.msra.mxu0 %v239
        %818 = vmatmul.bf16.gmra.mxu0 %v799
        %v819 = vpop.f32.mrf.mxu0
        %v820 = vadd.f32 %v215, %v819
        %v821 = vpop.f32.mrf.mxu0
        %v822 = vadd.f32 %v215, %v821
        %823 = vmatmul.bf16.gmra.mxu0 %v802
        %v824 = vpop.f32.mrf.mxu0
        %v825 = vadd.f32 %v215, %v824
        %v826 = vpop.f32.mrf.mxu0
        %v827 = vadd.f32 %v215, %v826
        %828 = vmatmul.bf16.gmra.mxu0 %v805
        %v829 = vpop.f32.mrf.mxu0
        %v830 = vadd.f32 %v215, %v829
        %v831 = vpop.f32.mrf.mxu0
        %v832 = vadd.f32 %v215, %v831
        %833 = vmatmul.bf16.gmra.mxu0 %v808
        %v834 = vpop.f32.mrf.mxu0
        %v835 = vadd.f32 %v215, %v834
        %v836 = vpop.f32.mrf.mxu0
        %837 = vdwg.mxu0
        %v838 = vmax.f32 %v820, 0.0
        %v839 = vmax.f32 %v822, 0.0
        %v840 = vmax.f32 %v825, 0.0
        %v841 = vmax.f32 %v827, 0.0
        %v842 = vmax.f32 %v830, 0.0
        %v843 = vmax.f32 %v832, 0.0
        %v844 = vmax.f32 %v835, 0.0
        %v845 = vmax.f32 %v766, %v838
        %v846 = vmax.f32 %v767, %v839
        %v847 = vmax.f32 %v768, %v840
        %v848 = vmax.f32 %v769, %v841
        %v849 = vmax.f32 %v770, %v842
        %v850 = vmax.f32 %v771, %v843
        %v851 = vmax.f32 %v772, %v844
        %v852 = vpack.c.bf16 %v845, %v845
        %v853 = vpack.c.bf16 %v846, %v846
        %v854 = vpack.c.bf16 %v847, %v847
        %v855 = vpack.c.bf16 %v848, %v848
        %v856 = vpack.c.bf16 %v849, %v849
        %v857 = vpack.c.bf16 %v850, %v850
        %v858 = vpack.c.bf16 %v851, %v851
        %859 = vst [vmem:[%s202 + $0x1c] sm:$0xf] %v852
        %860 = vst [vmem:[%s202 + $0x20] sm:$0xf] %v853
        %861 = vst [vmem:[%s202 + $0x24] sm:$0xf] %v854
        %862 = vst [vmem:[%s202 + $0x28] sm:$0xf] %v855
        %863 = vst [vmem:[%s202 + $0x2c] sm:$0xf] %v856
        %864 = vst [vmem:[%s202 + $0x30] sm:$0xf] %v857
        %865 = vst [vmem:[%s202 + $0x34] sm:$0xf] %v858
        %v866 = vld [vmem:[%s197 + $0x38] sm:$0xf]
        %v867 = vld [vmem:[%s197 + $0x3c] sm:$0xf]
        %v868 = vld [vmem:[%s197 + $0x40] sm:$0xf]
        %v869 = vld [vmem:[%s197 + $0x44] sm:$0xf]
        %v870 = vld [vmem:[%s197 + $0x48] sm:$0xf]
        %v871 = vld [vmem:[%s197 + $0x4c] sm:$0xf]
        %v872 = vld [vmem:[%s197 + $0x50] sm:$0xf]
        %v880 = vunpack.c.l.b16 %v866
        %v881 = vunpack.c.l.b16 %v867
        %v882 = vunpack.c.l.b16 %v868
        %v883 = vunpack.c.l.b16 %v869
        %v884 = vunpack.c.l.b16 %v870
        %v885 = vunpack.c.l.b16 %v871
        %v886 = vunpack.c.l.b16 %v872
        %v887 = vpack.c.b16 %v881, %v880
        %v888 = vpack.c.b16 %v883, %v882
        %v889 = vpack.c.b16 %v885, %v884
        %v890 = vpack.c.b16 %v886, %v886
        %v892 = vsel %vm241, %v887, 0
        %v895 = vsel %vm241, %v888, 0
        %v898 = vsel %vm241, %v889, 0
        %v901 = vsel %vm241, %v890, 0
        %903 = vmatpush.bf16.msra.mxu0 0
        %904 = vmatpush.bf16.msra.mxu0 0
        %905 = vmatpush.bf16.msra.mxu0 0
        %906 = vmatpush.bf16.msra.mxu0 0
        %907 = vmatpush.bf16.msra.mxu0 0
        %908 = vmatpush.bf16.msra.mxu0 0
        %909 = vmatpush.bf16.msra.mxu0 0
        %910 = vmatpush.bf16.msra.mxu0 %v239
        %911 = vmatmul.bf16.gmra.mxu0 %v892
        %v912 = vpop.f32.mrf.mxu0
        %v913 = vadd.f32 %v215, %v912
        %v914 = vpop.f32.mrf.mxu0
        %v915 = vadd.f32 %v215, %v914
        %916 = vmatmul.bf16.gmra.mxu0 %v895
        %v917 = vpop.f32.mrf.mxu0
        %v918 = vadd.f32 %v215, %v917
        %v919 = vpop.f32.mrf.mxu0
        %v920 = vadd.f32 %v215, %v919
        %921 = vmatmul.bf16.gmra.mxu0 %v898
        %v922 = vpop.f32.mrf.mxu0
        %v923 = vadd.f32 %v215, %v922
        %v924 = vpop.f32.mrf.mxu0
        %v925 = vadd.f32 %v215, %v924
        %926 = vmatmul.bf16.gmra.mxu0 %v901
        %v927 = vpop.f32.mrf.mxu0
        %v928 = vadd.f32 %v215, %v927
        %v929 = vpop.f32.mrf.mxu0
        %930 = vdwg.mxu0
        %v931 = vmax.f32 %v913, 0.0
        %v932 = vmax.f32 %v915, 0.0
        %v933 = vmax.f32 %v918, 0.0
        %v934 = vmax.f32 %v920, 0.0
        %v935 = vmax.f32 %v923, 0.0
        %v936 = vmax.f32 %v925, 0.0
        %v937 = vmax.f32 %v928, 0.0
        %v938 = vld [vmem:[%s289 + $0x38] sm:$0xf]
        %v939 = vld [vmem:[%s289 + $0x3c] sm:$0xf]
        %v940 = vld [vmem:[%s289 + $0x40] sm:$0xf]
        %v941 = vld [vmem:[%s289 + $0x44] sm:$0xf]
        %v942 = vld [vmem:[%s289 + $0x48] sm:$0xf]
        %v943 = vld [vmem:[%s289 + $0x4c] sm:$0xf]
        %v944 = vld [vmem:[%s289 + $0x50] sm:$0xf]
        %v952 = vunpack.c.l.b16 %v938
        %v953 = vunpack.c.l.b16 %v939
        %v954 = vunpack.c.l.b16 %v940
        %v955 = vunpack.c.l.b16 %v941
        %v956 = vunpack.c.l.b16 %v942
        %v957 = vunpack.c.l.b16 %v943
        %v958 = vunpack.c.l.b16 %v944
        %v959 = vpack.c.b16 %v953, %v952
        %v960 = vpack.c.b16 %v955, %v954
        %v961 = vpack.c.b16 %v957, %v956
        %v962 = vpack.c.b16 %v958, %v958
        %v964 = vsel %vm241, %v959, 0
        %v967 = vsel %vm241, %v960, 0
        %v970 = vsel %vm241, %v961, 0
        %v973 = vsel %vm241, %v962, 0
        %975 = vmatpush.bf16.msra.mxu0 0
        %976 = vmatpush.bf16.msra.mxu0 0
        %977 = vmatpush.bf16.msra.mxu0 0
        %978 = vmatpush.bf16.msra.mxu0 0
        %979 = vmatpush.bf16.msra.mxu0 0
        %980 = vmatpush.bf16.msra.mxu0 0
        %981 = vmatpush.bf16.msra.mxu0 0
        %982 = vmatpush.bf16.msra.mxu0 %v239
        %983 = vmatmul.bf16.gmra.mxu0 %v964
        %v984 = vpop.f32.mrf.mxu0
        %v985 = vadd.f32 %v215, %v984
        %v986 = vpop.f32.mrf.mxu0
        %v987 = vadd.f32 %v215, %v986
        %988 = vmatmul.bf16.gmra.mxu0 %v967
        %v989 = vpop.f32.mrf.mxu0
        %v990 = vadd.f32 %v215, %v989
        %v991 = vpop.f32.mrf.mxu0
        %v992 = vadd.f32 %v215, %v991
        %993 = vmatmul.bf16.gmra.mxu0 %v970
        %v994 = vpop.f32.mrf.mxu0
        %v995 = vadd.f32 %v215, %v994
        %v996 = vpop.f32.mrf.mxu0
        %v997 = vadd.f32 %v215, %v996
        %998 = vmatmul.bf16.gmra.mxu0 %v973
        %v999 = vpop.f32.mrf.mxu0
        %v1000 = vadd.f32 %v215, %v999
        %v1001 = vpop.f32.mrf.mxu0
        %1002 = vdwg.mxu0
        %v1003 = vmax.f32 %v985, 0.0
        %v1004 = vmax.f32 %v987, 0.0
        %v1005 = vmax.f32 %v990, 0.0
        %v1006 = vmax.f32 %v992, 0.0
        %v1007 = vmax.f32 %v995, 0.0
        %v1008 = vmax.f32 %v997, 0.0
        %v1009 = vmax.f32 %v1000, 0.0
        %v1010 = vmax.f32 %v931, %v1003
        %v1011 = vmax.f32 %v932, %v1004
        %v1012 = vmax.f32 %v933, %v1005
        %v1013 = vmax.f32 %v934, %v1006
        %v1014 = vmax.f32 %v935, %v1007
        %v1015 = vmax.f32 %v936, %v1008
        %v1016 = vmax.f32 %v937, %v1009
        %v1017 = vld [vmem:[%s369 + $0x38] sm:$0xf]
        %v1018 = vld [vmem:[%s369 + $0x3c] sm:$0xf]
        %v1019 = vld [vmem:[%s369 + $0x40] sm:$0xf]
        %v1020 = vld [vmem:[%s369 + $0x44] sm:$0xf]
        %v1021 = vld [vmem:[%s369 + $0x48] sm:$0xf]
        %v1022 = vld [vmem:[%s369 + $0x4c] sm:$0xf]
        %v1023 = vld [vmem:[%s369 + $0x50] sm:$0xf]
        %v1031 = vunpack.c.l.b16 %v1017
        %v1032 = vunpack.c.l.b16 %v1018
        %v1033 = vunpack.c.l.b16 %v1019
        %v1034 = vunpack.c.l.b16 %v1020
        %v1035 = vunpack.c.l.b16 %v1021
        %v1036 = vunpack.c.l.b16 %v1022
        %v1037 = vunpack.c.l.b16 %v1023
        %v1038 = vpack.c.b16 %v1032, %v1031
        %v1039 = vpack.c.b16 %v1034, %v1033
        %v1040 = vpack.c.b16 %v1036, %v1035
        %v1041 = vpack.c.b16 %v1037, %v1037
        %v1043 = vsel %vm241, %v1038, 0
        %v1046 = vsel %vm241, %v1039, 0
        %v1049 = vsel %vm241, %v1040, 0
        %v1052 = vsel %vm241, %v1041, 0
        %1054 = vmatpush.bf16.msra.mxu0 0
        %1055 = vmatpush.bf16.msra.mxu0 0
        %1056 = vmatpush.bf16.msra.mxu0 0
        %1057 = vmatpush.bf16.msra.mxu0 0
        %1058 = vmatpush.bf16.msra.mxu0 0
        %1059 = vmatpush.bf16.msra.mxu0 0
        %1060 = vmatpush.bf16.msra.mxu0 0
        %1061 = vmatpush.bf16.msra.mxu0 %v239
        %1062 = vmatmul.bf16.gmra.mxu0 %v1043
        %v1063 = vpop.f32.mrf.mxu0
        %v1064 = vadd.f32 %v215, %v1063
        %v1065 = vpop.f32.mrf.mxu0
        %v1066 = vadd.f32 %v215, %v1065
        %1067 = vmatmul.bf16.gmra.mxu0 %v1046
        %v1068 = vpop.f32.mrf.mxu0
        %v1069 = vadd.f32 %v215, %v1068
        %v1070 = vpop.f32.mrf.mxu0
        %v1071 = vadd.f32 %v215, %v1070
        %1072 = vmatmul.bf16.gmra.mxu0 %v1049
        %v1073 = vpop.f32.mrf.mxu0
        %v1074 = vadd.f32 %v215, %v1073
        %v1075 = vpop.f32.mrf.mxu0
        %v1076 = vadd.f32 %v215, %v1075
        %1077 = vmatmul.bf16.gmra.mxu0 %v1052
        %v1078 = vpop.f32.mrf.mxu0
        %v1079 = vadd.f32 %v215, %v1078
        %v1080 = vpop.f32.mrf.mxu0
        %1081 = vdwg.mxu0
        %v1082 = vmax.f32 %v1064, 0.0
        %v1083 = vmax.f32 %v1066, 0.0
        %v1084 = vmax.f32 %v1069, 0.0
        %v1085 = vmax.f32 %v1071, 0.0
        %v1086 = vmax.f32 %v1074, 0.0
        %v1087 = vmax.f32 %v1076, 0.0
        %v1088 = vmax.f32 %v1079, 0.0
        %v1089 = vmax.f32 %v1010, %v1082
        %v1090 = vmax.f32 %v1011, %v1083
        %v1091 = vmax.f32 %v1012, %v1084
        %v1092 = vmax.f32 %v1013, %v1085
        %v1093 = vmax.f32 %v1014, %v1086
        %v1094 = vmax.f32 %v1015, %v1087
        %v1095 = vmax.f32 %v1016, %v1088
        %v1096 = vld [vmem:[%s449 + $0x38] sm:$0xf]
        %v1097 = vld [vmem:[%s449 + $0x3c] sm:$0xf]
        %v1098 = vld [vmem:[%s449 + $0x40] sm:$0xf]
        %v1099 = vld [vmem:[%s449 + $0x44] sm:$0xf]
        %v1100 = vld [vmem:[%s449 + $0x48] sm:$0xf]
        %v1101 = vld [vmem:[%s449 + $0x4c] sm:$0xf]
        %v1102 = vld [vmem:[%s449 + $0x50] sm:$0xf]
        %v1110 = vunpack.c.l.b16 %v1096
        %v1111 = vunpack.c.l.b16 %v1097
        %v1112 = vunpack.c.l.b16 %v1098
        %v1113 = vunpack.c.l.b16 %v1099
        %v1114 = vunpack.c.l.b16 %v1100
        %v1115 = vunpack.c.l.b16 %v1101
        %v1116 = vunpack.c.l.b16 %v1102
        %v1117 = vpack.c.b16 %v1111, %v1110
        %v1118 = vpack.c.b16 %v1113, %v1112
        %v1119 = vpack.c.b16 %v1115, %v1114
        %v1120 = vpack.c.b16 %v1116, %v1116
        %v1122 = vsel %vm241, %v1117, 0
        %v1125 = vsel %vm241, %v1118, 0
        %v1128 = vsel %vm241, %v1119, 0
        %v1131 = vsel %vm241, %v1120, 0
        %1133 = vmatpush.bf16.msra.mxu0 0
        %1134 = vmatpush.bf16.msra.mxu0 0
        %1135 = vmatpush.bf16.msra.mxu0 0
        %1136 = vmatpush.bf16.msra.mxu0 0
        %1137 = vmatpush.bf16.msra.mxu0 0
        %1138 = vmatpush.bf16.msra.mxu0 0
        %1139 = vmatpush.bf16.msra.mxu0 0
        %1140 = vmatpush.bf16.msra.mxu0 %v239
        %1141 = vmatmul.bf16.gmra.mxu0 %v1122
        %v1142 = vpop.f32.mrf.mxu0
        %v1143 = vadd.f32 %v215, %v1142
        %v1144 = vpop.f32.mrf.mxu0
        %v1145 = vadd.f32 %v215, %v1144
        %1146 = vmatmul.bf16.gmra.mxu0 %v1125
        %v1147 = vpop.f32.mrf.mxu0
        %v1148 = vadd.f32 %v215, %v1147
        %v1149 = vpop.f32.mrf.mxu0
        %v1150 = vadd.f32 %v215, %v1149
        %1151 = vmatmul.bf16.gmra.mxu0 %v1128
        %v1152 = vpop.f32.mrf.mxu0
        %v1153 = vadd.f32 %v215, %v1152
        %v1154 = vpop.f32.mrf.mxu0
        %v1155 = vadd.f32 %v215, %v1154
        %1156 = vmatmul.bf16.gmra.mxu0 %v1131
        %v1157 = vpop.f32.mrf.mxu0
        %v1158 = vadd.f32 %v215, %v1157
        %v1159 = vpop.f32.mrf.mxu0
        %1160 = vdwg.mxu0
        %v1161 = vmax.f32 %v1143, 0.0
        %v1162 = vmax.f32 %v1145, 0.0
        %v1163 = vmax.f32 %v1148, 0.0
        %v1164 = vmax.f32 %v1150, 0.0
        %v1165 = vmax.f32 %v1153, 0.0
        %v1166 = vmax.f32 %v1155, 0.0
        %v1167 = vmax.f32 %v1158, 0.0
        %v1168 = vmax.f32 %v1089, %v1161
        %v1169 = vmax.f32 %v1090, %v1162
        %v1170 = vmax.f32 %v1091, %v1163
        %v1171 = vmax.f32 %v1092, %v1164
        %v1172 = vmax.f32 %v1093, %v1165
        %v1173 = vmax.f32 %v1094, %v1166
        %v1174 = vmax.f32 %v1095, %v1167
        %v1175 = vpack.c.bf16 %v1168, %v1168
        %v1176 = vpack.c.bf16 %v1169, %v1169
        %v1177 = vpack.c.bf16 %v1170, %v1170
        %v1178 = vpack.c.bf16 %v1171, %v1171
        %v1179 = vpack.c.bf16 %v1172, %v1172
        %v1180 = vpack.c.bf16 %v1173, %v1173
        %v1181 = vpack.c.bf16 %v1174, %v1174
        %1182 = vst [vmem:[%s202 + $0x38] sm:$0xf] %v1175
        %1183 = vst [vmem:[%s202 + $0x3c] sm:$0xf] %v1176
        %1184 = vst [vmem:[%s202 + $0x40] sm:$0xf] %v1177
        %1185 = vst [vmem:[%s202 + $0x44] sm:$0xf] %v1178
        %1186 = vst [vmem:[%s202 + $0x48] sm:$0xf] %v1179
        %1187 = vst [vmem:[%s202 + $0x4c] sm:$0xf] %v1180
        %1188 = vst [vmem:[%s202 + $0x50] sm:$0xf] %v1181
        %v1189 = vld [vmem:[%s197 + $0x54] sm:$0xf]
        %v1190 = vld [vmem:[%s197 + $0x58] sm:$0xf]
        %v1191 = vld [vmem:[%s197 + $0x5c] sm:$0xf]
        %v1192 = vld [vmem:[%s197 + $0x60] sm:$0xf]
        %v1193 = vld [vmem:[%s197 + $0x64] sm:$0xf]
        %v1194 = vld [vmem:[%s197 + $0x68] sm:$0xf]
        %v1195 = vld [vmem:[%s197 + $0x6c] sm:$0xf]
        %v1203 = vunpack.c.l.b16 %v1189
        %v1204 = vunpack.c.l.b16 %v1190
        %v1205 = vunpack.c.l.b16 %v1191
        %v1206 = vunpack.c.l.b16 %v1192
        %v1207 = vunpack.c.l.b16 %v1193
        %v1208 = vunpack.c.l.b16 %v1194
        %v1209 = vunpack.c.l.b16 %v1195
        %v1210 = vpack.c.b16 %v1204, %v1203
        %v1211 = vpack.c.b16 %v1206, %v1205
        %v1212 = vpack.c.b16 %v1208, %v1207
        %v1213 = vpack.c.b16 %v1209, %v1209
        %v1215 = vsel %vm241, %v1210, 0
        %v1218 = vsel %vm241, %v1211, 0
        %v1221 = vsel %vm241, %v1212, 0
        %v1224 = vsel %vm241, %v1213, 0
        %1226 = vmatpush.bf16.msra.mxu0 0
        %1227 = vmatpush.bf16.msra.mxu0 0
        %1228 = vmatpush.bf16.msra.mxu0 0
        %1229 = vmatpush.bf16.msra.mxu0 0
        %1230 = vmatpush.bf16.msra.mxu0 0
        %1231 = vmatpush.bf16.msra.mxu0 0
        %1232 = vmatpush.bf16.msra.mxu0 0
        %1233 = vmatpush.bf16.msra.mxu0 %v239
        %1234 = vmatmul.bf16.gmra.mxu0 %v1215
        %v1235 = vpop.f32.mrf.mxu0
        %v1236 = vadd.f32 %v215, %v1235
        %v1237 = vpop.f32.mrf.mxu0
        %v1238 = vadd.f32 %v215, %v1237
        %1239 = vmatmul.bf16.gmra.mxu0 %v1218
        %v1240 = vpop.f32.mrf.mxu0
        %v1241 = vadd.f32 %v215, %v1240
        %v1242 = vpop.f32.mrf.mxu0
        %v1243 = vadd.f32 %v215, %v1242
        %1244 = vmatmul.bf16.gmra.mxu0 %v1221
        %v1245 = vpop.f32.mrf.mxu0
        %v1246 = vadd.f32 %v215, %v1245
        %v1247 = vpop.f32.mrf.mxu0
        %v1248 = vadd.f32 %v215, %v1247
        %1249 = vmatmul.bf16.gmra.mxu0 %v1224
        %v1250 = vpop.f32.mrf.mxu0
        %v1251 = vadd.f32 %v215, %v1250
        %v1252 = vpop.f32.mrf.mxu0
        %1253 = vdwg.mxu0
        %v1254 = vmax.f32 %v1236, 0.0
        %v1255 = vmax.f32 %v1238, 0.0
        %v1256 = vmax.f32 %v1241, 0.0
        %v1257 = vmax.f32 %v1243, 0.0
        %v1258 = vmax.f32 %v1246, 0.0
        %v1259 = vmax.f32 %v1248, 0.0
        %v1260 = vmax.f32 %v1251, 0.0
        %v1261 = vld [vmem:[%s289 + $0x54] sm:$0xf]
        %v1262 = vld [vmem:[%s289 + $0x58] sm:$0xf]
        %v1263 = vld [vmem:[%s289 + $0x5c] sm:$0xf]
        %v1264 = vld [vmem:[%s289 + $0x60] sm:$0xf]
        %v1265 = vld [vmem:[%s289 + $0x64] sm:$0xf]
        %v1266 = vld [vmem:[%s289 + $0x68] sm:$0xf]
        %v1267 = vld [vmem:[%s289 + $0x6c] sm:$0xf]
        %v1275 = vunpack.c.l.b16 %v1261
        %v1276 = vunpack.c.l.b16 %v1262
        %v1277 = vunpack.c.l.b16 %v1263
        %v1278 = vunpack.c.l.b16 %v1264
        %v1279 = vunpack.c.l.b16 %v1265
        %v1280 = vunpack.c.l.b16 %v1266
        %v1281 = vunpack.c.l.b16 %v1267
        %v1282 = vpack.c.b16 %v1276, %v1275
        %v1283 = vpack.c.b16 %v1278, %v1277
        %v1284 = vpack.c.b16 %v1280, %v1279
        %v1285 = vpack.c.b16 %v1281, %v1281
        %v1287 = vsel %vm241, %v1282, 0
        %v1290 = vsel %vm241, %v1283, 0
        %v1293 = vsel %vm241, %v1284, 0
        %v1296 = vsel %vm241, %v1285, 0
        %1298 = vmatpush.bf16.msra.mxu0 0
        %1299 = vmatpush.bf16.msra.mxu0 0
        %1300 = vmatpush.bf16.msra.mxu0 0
        %1301 = vmatpush.bf16.msra.mxu0 0
        %1302 = vmatpush.bf16.msra.mxu0 0
        %1303 = vmatpush.bf16.msra.mxu0 0
        %1304 = vmatpush.bf16.msra.mxu0 0
        %1305 = vmatpush.bf16.msra.mxu0 %v239
        %1306 = vmatmul.bf16.gmra.mxu0 %v1287
        %v1307 = vpop.f32.mrf.mxu0
        %v1308 = vadd.f32 %v215, %v1307
        %v1309 = vpop.f32.mrf.mxu0
        %v1310 = vadd.f32 %v215, %v1309
        %1311 = vmatmul.bf16.gmra.mxu0 %v1290
        %v1312 = vpop.f32.mrf.mxu0
        %v1313 = vadd.f32 %v215, %v1312
        %v1314 = vpop.f32.mrf.mxu0
        %v1315 = vadd.f32 %v215, %v1314
        %1316 = vmatmul.bf16.gmra.mxu0 %v1293
        %v1317 = vpop.f32.mrf.mxu0
        %v1318 = vadd.f32 %v215, %v1317
        %v1319 = vpop.f32.mrf.mxu0
        %v1320 = vadd.f32 %v215, %v1319
        %1321 = vmatmul.bf16.gmra.mxu0 %v1296
        %v1322 = vpop.f32.mrf.mxu0
        %v1323 = vadd.f32 %v215, %v1322
        %v1324 = vpop.f32.mrf.mxu0
        %1325 = vdwg.mxu0
        %v1326 = vmax.f32 %v1308, 0.0
        %v1327 = vmax.f32 %v1310, 0.0
        %v1328 = vmax.f32 %v1313, 0.0
        %v1329 = vmax.f32 %v1315, 0.0
        %v1330 = vmax.f32 %v1318, 0.0
        %v1331 = vmax.f32 %v1320, 0.0
        %v1332 = vmax.f32 %v1323, 0.0
        %v1333 = vmax.f32 %v1254, %v1326
        %v1334 = vmax.f32 %v1255, %v1327
        %v1335 = vmax.f32 %v1256, %v1328
        %v1336 = vmax.f32 %v1257, %v1329
        %v1337 = vmax.f32 %v1258, %v1330
        %v1338 = vmax.f32 %v1259, %v1331
        %v1339 = vmax.f32 %v1260, %v1332
        %v1340 = vld [vmem:[%s369 + $0x54] sm:$0xf]
        %v1341 = vld [vmem:[%s369 + $0x58] sm:$0xf]
        %v1342 = vld [vmem:[%s369 + $0x5c] sm:$0xf]
        %v1343 = vld [vmem:[%s369 + $0x60] sm:$0xf]
        %v1344 = vld [vmem:[%s369 + $0x64] sm:$0xf]
        %v1345 = vld [vmem:[%s369 + $0x68] sm:$0xf]
        %v1346 = vld [vmem:[%s369 + $0x6c] sm:$0xf]
        %v1354 = vunpack.c.l.b16 %v1340
        %v1355 = vunpack.c.l.b16 %v1341
        %v1356 = vunpack.c.l.b16 %v1342
        %v1357 = vunpack.c.l.b16 %v1343
        %v1358 = vunpack.c.l.b16 %v1344
        %v1359 = vunpack.c.l.b16 %v1345
        %v1360 = vunpack.c.l.b16 %v1346
        %v1361 = vpack.c.b16 %v1355, %v1354
        %v1362 = vpack.c.b16 %v1357, %v1356
        %v1363 = vpack.c.b16 %v1359, %v1358
        %v1364 = vpack.c.b16 %v1360, %v1360
        %v1366 = vsel %vm241, %v1361, 0
        %v1369 = vsel %vm241, %v1362, 0
        %v1372 = vsel %vm241, %v1363, 0
        %v1375 = vsel %vm241, %v1364, 0
        %1377 = vmatpush.bf16.msra.mxu0 0
        %1378 = vmatpush.bf16.msra.mxu0 0
        %1379 = vmatpush.bf16.msra.mxu0 0
        %1380 = vmatpush.bf16.msra.mxu0 0
        %1381 = vmatpush.bf16.msra.mxu0 0
        %1382 = vmatpush.bf16.msra.mxu0 0
        %1383 = vmatpush.bf16.msra.mxu0 0
        %1384 = vmatpush.bf16.msra.mxu0 %v239
        %1385 = vmatmul.bf16.gmra.mxu0 %v1366
        %v1386 = vpop.f32.mrf.mxu0
        %v1387 = vadd.f32 %v215, %v1386
        %v1388 = vpop.f32.mrf.mxu0
        %v1389 = vadd.f32 %v215, %v1388
        %1390 = vmatmul.bf16.gmra.mxu0 %v1369
        %v1391 = vpop.f32.mrf.mxu0
        %v1392 = vadd.f32 %v215, %v1391
        %v1393 = vpop.f32.mrf.mxu0
        %v1394 = vadd.f32 %v215, %v1393
        %1395 = vmatmul.bf16.gmra.mxu0 %v1372
        %v1396 = vpop.f32.mrf.mxu0
        %v1397 = vadd.f32 %v215, %v1396
        %v1398 = vpop.f32.mrf.mxu0
        %v1399 = vadd.f32 %v215, %v1398
        %1400 = vmatmul.bf16.gmra.mxu0 %v1375
        %v1401 = vpop.f32.mrf.mxu0
        %v1402 = vadd.f32 %v215, %v1401
        %v1403 = vpop.f32.mrf.mxu0
        %1404 = vdwg.mxu0
        %v1405 = vmax.f32 %v1387, 0.0
        %v1406 = vmax.f32 %v1389, 0.0
        %v1407 = vmax.f32 %v1392, 0.0
        %v1408 = vmax.f32 %v1394, 0.0
        %v1409 = vmax.f32 %v1397, 0.0
        %v1410 = vmax.f32 %v1399, 0.0
        %v1411 = vmax.f32 %v1402, 0.0
        %v1412 = vmax.f32 %v1333, %v1405
        %v1413 = vmax.f32 %v1334, %v1406
        %v1414 = vmax.f32 %v1335, %v1407
        %v1415 = vmax.f32 %v1336, %v1408
        %v1416 = vmax.f32 %v1337, %v1409
        %v1417 = vmax.f32 %v1338, %v1410
        %v1418 = vmax.f32 %v1339, %v1411
        %v1419 = vld [vmem:[%s449 + $0x54] sm:$0xf]
        %v1420 = vld [vmem:[%s449 + $0x58] sm:$0xf]
        %v1421 = vld [vmem:[%s449 + $0x5c] sm:$0xf]
        %v1422 = vld [vmem:[%s449 + $0x60] sm:$0xf]
        %v1423 = vld [vmem:[%s449 + $0x64] sm:$0xf]
        %v1424 = vld [vmem:[%s449 + $0x68] sm:$0xf]
        %v1425 = vld [vmem:[%s449 + $0x6c] sm:$0xf]
        %v1433 = vunpack.c.l.b16 %v1419
        %v1434 = vunpack.c.l.b16 %v1420
        %v1435 = vunpack.c.l.b16 %v1421
        %v1436 = vunpack.c.l.b16 %v1422
        %v1437 = vunpack.c.l.b16 %v1423
        %v1438 = vunpack.c.l.b16 %v1424
        %v1439 = vunpack.c.l.b16 %v1425
        %v1440 = vpack.c.b16 %v1434, %v1433
        %v1441 = vpack.c.b16 %v1436, %v1435
        %v1442 = vpack.c.b16 %v1438, %v1437
        %v1443 = vpack.c.b16 %v1439, %v1439
        %v1445 = vsel %vm241, %v1440, 0
        %v1448 = vsel %vm241, %v1441, 0
        %v1451 = vsel %vm241, %v1442, 0
        %v1454 = vsel %vm241, %v1443, 0
        %1456 = vmatpush.bf16.msra.mxu0 0
        %1457 = vmatpush.bf16.msra.mxu0 0
        %1458 = vmatpush.bf16.msra.mxu0 0
        %1459 = vmatpush.bf16.msra.mxu0 0
        %1460 = vmatpush.bf16.msra.mxu0 0
        %1461 = vmatpush.bf16.msra.mxu0 0
        %1462 = vmatpush.bf16.msra.mxu0 0
        %1463 = vmatpush.bf16.msra.mxu0 %v239
        %1464 = vmatmul.bf16.gmra.mxu0 %v1445
        %v1465 = vpop.f32.mrf.mxu0
        %v1466 = vadd.f32 %v215, %v1465
        %v1467 = vpop.f32.mrf.mxu0
        %v1468 = vadd.f32 %v215, %v1467
        %1469 = vmatmul.bf16.gmra.mxu0 %v1448
        %v1470 = vpop.f32.mrf.mxu0
        %v1471 = vadd.f32 %v215, %v1470
        %v1472 = vpop.f32.mrf.mxu0
        %v1473 = vadd.f32 %v215, %v1472
        %1474 = vmatmul.bf16.gmra.mxu0 %v1451
        %v1475 = vpop.f32.mrf.mxu0
        %v1476 = vadd.f32 %v215, %v1475
        %v1477 = vpop.f32.mrf.mxu0
        %v1478 = vadd.f32 %v215, %v1477
        %1479 = vmatmul.bf16.gmra.mxu0 %v1454
        %v1480 = vpop.f32.mrf.mxu0
        %v1481 = vadd.f32 %v215, %v1480
        %v1482 = vpop.f32.mrf.mxu0
        %1483 = vdwg.mxu0
        %v1484 = vmax.f32 %v1466, 0.0
        %v1485 = vmax.f32 %v1468, 0.0
        %v1486 = vmax.f32 %v1471, 0.0
        %v1487 = vmax.f32 %v1473, 0.0
        %v1488 = vmax.f32 %v1476, 0.0
        %v1489 = vmax.f32 %v1478, 0.0
        %v1490 = vmax.f32 %v1481, 0.0
        %v1491 = vmax.f32 %v1412, %v1484
        %v1492 = vmax.f32 %v1413, %v1485
        %v1493 = vmax.f32 %v1414, %v1486
        %v1494 = vmax.f32 %v1415, %v1487
        %v1495 = vmax.f32 %v1416, %v1488
        %v1496 = vmax.f32 %v1417, %v1489
        %v1497 = vmax.f32 %v1418, %v1490
        %v1498 = vpack.c.bf16 %v1491, %v1491
        %v1499 = vpack.c.bf16 %v1492, %v1492
        %v1500 = vpack.c.bf16 %v1493, %v1493
        %v1501 = vpack.c.bf16 %v1494, %v1494
        %v1502 = vpack.c.bf16 %v1495, %v1495
        %v1503 = vpack.c.bf16 %v1496, %v1496
        %v1504 = vpack.c.bf16 %v1497, %v1497
        %1505 = vst [vmem:[%s202 + $0x54] sm:$0xf] %v1498
        %1506 = vst [vmem:[%s202 + $0x58] sm:$0xf] %v1499
        %1507 = vst [vmem:[%s202 + $0x5c] sm:$0xf] %v1500
        %1508 = vst [vmem:[%s202 + $0x60] sm:$0xf] %v1501
        %1509 = vst [vmem:[%s202 + $0x64] sm:$0xf] %v1502
        %1510 = vst [vmem:[%s202 + $0x68] sm:$0xf] %v1503
        %1511 = vst [vmem:[%s202 + $0x6c] sm:$0xf] %v1504
        %p1512 = scmp.lt.s32.totalorder %s16, 1
        %s1513 = scalar_select %p1512, %s16, 1
        %s1514 = smul.addr %s1513, 28
        %s1515 = smul.addr %s1514, 4
        %s1516 = scalar_lea.vmem %s3, %s1515
        // Predicated region
        $region41: #{simple_cnn_forward.3} parent=31 // pred_check
          %p1517 = pneg %p102
        $region42: #{simple_cnn_forward.3} parent=31 // pred_check_branch
          %1519 = sbr.rel (%p1517) target = $region44
        $region43: #{simple_cnn_forward.3} parent=31 // pred_region
          _
        $region44: #{simple_cnn_forward.3} parent=31 // pred_fallthru
          _
      $region32: #{simple_cnn_forward.3} parent=5 // pred_fallthru
        _
      %p1520 = scmp.le.s32.totalorder 2, %s11
      // Predicated region
      $region45: #{simple_cnn_forward.3} parent=5 // pred_check
        %p1521 = pneg %p1520
      $region46: #{simple_cnn_forward.3} parent=5 // pred_check_branch
        %1523 = sbr.rel (%p1521) target = $region48
      $region47: #{simple_cnn_forward.3} parent=5 // pred_region
        %s1524 = ssub.s32 %s11, 2
        // Predicated region
        $region49: #{simple_cnn_forward.3} parent=47 // pred_check
          %p1525 = pneg %p108
        $region50: #{simple_cnn_forward.3} parent=47 // pred_check_branch
          %1527 = sbr.rel (%p1525) target = $region52
        $region51: #{simple_cnn_forward.3} parent=47 // pred_region
          %p1528 = scmp.lt.s32.totalorder %s17, 1
          %s1529 = scalar_select %p1528, %s17, 1
          %s1530 = smul.addr %s1529, 28
          %s1531 = smul.addr %s1530, 4
          %s1532 = scalar_lea.vmem %s3, %s1531
        $region52: #{simple_cnn_forward.3} parent=47 // pred_fallthru
          _
      $region48: #{simple_cnn_forward.3} parent=5 // pred_fallthru
        _
    $region6: #{simple_cnn_forward.3} parent=1 // loop_footer
      %s15 = sadd.s32 1, %s11
    $region7: #{simple_cnn_forward.3} parent=1 // loop_footer_branch
      %10 = sbr.rel target = $region3
    $region8: #{simple_cnn_forward.3} parent=1 // loop_exit
      _
    %1533 = vsyncpa [#allocation3], 1
    %s1534 = scalar_lea.sflag [#allocation3], 1
    %1535 = vsyncpa %s1534, 1
    %1536 = vsyncpa [#allocation5], 1

// kernel: simple_cnn_forward.4
$region0: #{simple_cnn_forward.4}
  #allocation0 [shape = 'u32[]', space=smem, size = 0x4, offset = 0x4, fixed_abs, tag = 'smem constant byte address 0x4 - core index']
  #allocation1 [shape = 'u32[72,128]{1,0:T(1,128)}', space=vmem, size = 0x9000, scoped, tag = 'internal scratch']
  %s0 = inlined_call_operand.vmem [shape: bf16[2,4,80,32], index: 0, kind: input, shape index: {}]
  %s1 = inlined_call_operand.vmem [shape: bf16[9,32,128], index: 1, kind: input, shape index: {}]
  %s2 = inlined_call_operand.vmem [shape: f32[1,128], index: 2, kind: input, shape index: {}]
  %s3 = inlined_call_operand.vmem [shape: bf16[2,64,128], index: 3, kind: output, shape index: {}]
  %s4 = sld [smem:[#allocation0]]
  $region45: #{simple_cnn_forward.4} parent=0
    _
  %s6 = ssub.s32 1, %s4
  %s7 = scalar_select 0, %s6, %s4
  loop: start=0, step=1, limit=4
  $region2: #{simple_cnn_forward.4} parent=0 // loop_pre_header
    _
  $region3: #{simple_cnn_forward.4} parent=0 // loop_header
    %s9 = sphi 0, %s13
    %p10 = scmp.ge.s32.totalorder %s9, 4
    %s19 = sphi 0, %s21
    %s22 = sphi 0, %s19
    %s23 = sphi 0, %s22
    %s39 = sphi 0, %s23
    %s43 = sphi 0, %s43
    %s45 = sphi 0, %s43
    %s46 = sphi 0, %s45
    %s60 = sphi 0, %s46
    %s64 = sphi 0, %s64
    %s66 = sphi 0, %s64
    %s67 = sphi 0, %s66
    %s81 = sphi 0, %s67
    %s87 = sphi 0, %s89
    %s90 = sphi 0, %s87
    %s91 = sphi 0, %s90
    %s107 = sphi 0, %s91
  $region4: #{simple_cnn_forward.4} parent=0 // loop_header_branch
    %12 = sbr.rel (%p10) target = $region8
  $region5: #{simple_cnn_forward.4} parent=0 // loop_body
    %s14 = ssub.s32 %s9, 1
    %s15 = ssub.s32 %s9, 2
    %s16 = sadd.s32 %s9, 1
    %s17 = ssub.s32 %s9, %s16
    %p18 = scmp.eq.s32.totalorder %s17, 0
    %s20 = sadd.s32 %s19, 1
    %s21 = scalar_select %p18, %s19, %s20
    %p24 = pneg %p18
    %p25 = scmp.eq.s32.totalorder %s9, 1
    %p26 = por %p24, %p25
    %p27 = scmp.ne.s32.totalorder %s19, %s22
    %p28 = scmp.eq.s32.totalorder %s9, 0
    %p29 = por %p27, %p28
    %p30 = scmp.ne.s32.totalorder %s19, %s22
    %p31 = scmp.eq.s32.totalorder %s14, 1
    %p32 = por %p30, %p31
    %p33 = scmp.ne.s32.totalorder %s22, %s23
    %p34 = scmp.eq.s32.totalorder %s14, 0
    %p35 = por %p33, %p34
    %p36 = scmp.ne.s32.totalorder %s22, %s23
    %p37 = scmp.eq.s32.totalorder %s15, 1
    %p38 = por %p36, %p37
    %p40 = scmp.ne.s32.totalorder %s23, %s39
    %p41 = scmp.eq.s32.totalorder %s15, 0
    %p42 = por %p40, %p41
    %s44 = sadd.s32 %s43, 1
    %p47 = scmp.eq.s32.totalorder %s9, 1
    %p48 = scmp.ne.s32.totalorder %s43, %s45
    %p49 = scmp.eq.s32.totalorder %s9, 0
    %p50 = por %p48, %p49
    %p51 = scmp.ne.s32.totalorder %s43, %s45
    %p52 = scmp.eq.s32.totalorder %s14, 1
    %p53 = por %p51, %p52
    %p54 = scmp.ne.s32.totalorder %s45, %s46
    %p55 = scmp.eq.s32.totalorder %s14, 0
    %p56 = por %p54, %p55
    %p57 = scmp.ne.s32.totalorder %s45, %s46
    %p58 = scmp.eq.s32.totalorder %s15, 1
    %p59 = por %p57, %p58
    %p61 = scmp.ne.s32.totalorder %s46, %s60
    %p62 = scmp.eq.s32.totalorder %s15, 0
    %p63 = por %p61, %p62
    %s65 = sadd.s32 %s64, 1
    %p68 = scmp.eq.s32.totalorder %s9, 1
    %p69 = scmp.ne.s32.totalorder %s64, %s66
    %p70 = scmp.eq.s32.totalorder %s9, 0
    %p71 = por %p69, %p70
    %p72 = scmp.ne.s32.totalorder %s64, %s66
    %p73 = scmp.eq.s32.totalorder %s14, 1
    %p74 = por %p72, %p73
    %p75 = scmp.ne.s32.totalorder %s66, %s67
    %p76 = scmp.eq.s32.totalorder %s14, 0
    %p77 = por %p75, %p76
    %p78 = scmp.ne.s32.totalorder %s66, %s67
    %p79 = scmp.eq.s32.totalorder %s15, 1
    %p80 = por %p78, %p79
    %p82 = scmp.ne.s32.totalorder %s67, %s81
    %p83 = scmp.eq.s32.totalorder %s15, 0
    %p84 = por %p82, %p83
    %s85 = ssub.s32 %s9, %s16
    %p86 = scmp.eq.s32.totalorder %s85, 0
    %s88 = sadd.s32 %s87, 1
    %s89 = scalar_select %p86, %s87, %s88
    %p92 = pneg %p86
    %p93 = scmp.eq.s32.totalorder %s9, 1
    %p94 = por %p92, %p93
    %p95 = scmp.ne.s32.totalorder %s87, %s90
    %p96 = scmp.eq.s32.totalorder %s9, 0
    %p97 = por %p95, %p96
    %p98 = scmp.ne.s32.totalorder %s87, %s90
    %p99 = scmp.eq.s32.totalorder %s14, 1
    %p100 = por %p98, %p99
    %p101 = scmp.ne.s32.totalorder %s90, %s91
    %p102 = scmp.eq.s32.totalorder %s14, 0
    %p103 = por %p101, %p102
    %p104 = scmp.ne.s32.totalorder %s90, %s91
    %p105 = scmp.eq.s32.totalorder %s15, 1
    %p106 = por %p104, %p105
    %p108 = scmp.ne.s32.totalorder %s91, %s107
    %p109 = scmp.eq.s32.totalorder %s15, 0
    %p110 = por %p108, %p109
    %p111 = scmp.le.s32.totalorder 1, %s9
    %p112 = scmp.lt.s32.totalorder %s9, 3
    %p113 = pnand %p111, %p112
    %p114 = pneg %p113
    // Predicated region
    $region9: #{simple_cnn_forward.4} parent=5 // pred_check
      _
    $region10: #{simple_cnn_forward.4} parent=5 // pred_check_branch
      %116 = sbr.rel (%p113) target = $region12
    $region11: #{simple_cnn_forward.4} parent=5 // pred_region
      %s117 = ssub.s32 %s9, 1
      // Predicated region
      $region13: #{simple_cnn_forward.4} parent=11 // pred_check
        %p118 = pneg %p56
      $region14: #{simple_cnn_forward.4} parent=11 // pred_check_branch
        %120 = sbr.rel (%p118) target = $region16
      $region15: #{simple_cnn_forward.4} parent=11 // pred_region
        _
      $region16: #{simple_cnn_forward.4} parent=11 // pred_fallthru
        _
      // Predicated region
      $region17: #{simple_cnn_forward.4} parent=11 // pred_check
        %p121 = pneg %p77
      $region18: #{simple_cnn_forward.4} parent=11 // pred_check_branch
        %123 = sbr.rel (%p121) target = $region20
      $region19: #{simple_cnn_forward.4} parent=11 // pred_region
        _
      $region20: #{simple_cnn_forward.4} parent=11 // pred_fallthru
        _
    $region12: #{simple_cnn_forward.4} parent=5 // pred_fallthru
      _
    %p124 = scmp.lt.s32.totalorder %s9, 2
    // Predicated region
    $region21: #{simple_cnn_forward.4} parent=5 // pred_check
      %p125 = pneg %p124
    $region22: #{simple_cnn_forward.4} parent=5 // pred_check_branch
      %127 = sbr.rel (%p125) target = $region24
    $region23: #{simple_cnn_forward.4} parent=5 // pred_region
      // Predicated region
      $region25: #{simple_cnn_forward.4} parent=23 // pred_check
        %p128 = pneg %p29
      $region26: #{simple_cnn_forward.4} parent=23 // pred_check_branch
        %130 = sbr.rel (%p128) target = $region28
      $region27: #{simple_cnn_forward.4} parent=23 // pred_region
        %p131 = scmp.lt.s32.totalorder %s9, 1
        %s132 = scalar_select %p131, %s9, 1
        %s133 = smul.addr %s132, 40
        %s134 = smul.addr %s133, 4
        %s135 = scalar_lea.vmem %s0, %s134
      $region28: #{simple_cnn_forward.4} parent=23 // pred_fallthru
        _
    $region24: #{simple_cnn_forward.4} parent=5 // pred_fallthru
      _
    %p136 = scmp.le.s32.totalorder 1, %s9
    %p137 = scmp.lt.s32.totalorder %s9, 3
    %p138 = pnand %p136, %p137
    %p139 = pneg %p138
    // Predicated region
    $region29: #{simple_cnn_forward.4} parent=5 // pred_check
      _
    $region30: #{simple_cnn_forward.4} parent=5 // pred_check_branch
      %141 = sbr.rel (%p138) target = $region32
    $region31: #{simple_cnn_forward.4} parent=5 // pred_region
      %s142 = ssub.s32 %s9, 1
      %p143 = scmp.lt.s32.totalorder %s14, 1
      %s144 = scalar_select %p143, %s14, 1
      %s145 = smul.addr %s144, 40
      %s146 = smul.addr %s145, 4
      %s147 = scalar_lea.vmem %s0, %s146
      %p148 = pneg %p35
      %p149 = pneg %p32
      %p150 = pneg %p56
      %p151 = pneg %p53
      %p152 = pneg %p77
      %p153 = pneg %p74
      %p154 = pneg %p103
      %p155 = pneg %p100
      %p156 = scmp.lt.s32.totalorder %s14, 1
      %s157 = scalar_select %p156, %s14, 1
      %s158 = smul.addr %s157, 8
      %s159 = smul.addr %s158, 4
      %s160 = scalar_lea.vmem %s3, %s159
      %p161 = scmp.lt.s32.totalorder %s14, 1
      %s162 = scalar_select %p161, %s14, 1
      %s163 = smul.addr %s162, 40
      %s164 = smul.addr %s163, 4
      %s165 = scalar_lea.vmem %s0, %s164
      %p166 = scmp.lt.s32.totalorder %s14, 1
      %s167 = scalar_select %p166, %s14, 1
      %s168 = smul.addr %s167, 8
      %s169 = smul.addr %s168, 4
      %s170 = scalar_lea.vmem %s3, %s169
      %v172 = vld [vmem:[%s1] sm:$0xf]
      %v173 = vld [vmem:[%s1 + $0x4] sm:$0xf]
      %v174 = vld [vmem:[%s1 + $0x8] sm:$0xf]
      %v175 = vld [vmem:[%s1 + $0xc] sm:$0xf]
      %v176 = vld [vmem:[%s1 + $0x10] sm:$0xf]
      %v177 = vld [vmem:[%s1 + $0x14] sm:$0xf]
      %v178 = vld [vmem:[%s1 + $0x18] sm:$0xf]
      %v179 = vld [vmem:[%s1 + $0x1c] sm:$0xf]
      %v180 = vld [vmem:[%s1 + $0x20] sm:$0xf]
      %v181 = vld [vmem:[%s1 + $0x24] sm:$0xf]
      %v182 = vld [vmem:[%s1 + $0x28] sm:$0xf]
      %v183 = vld [vmem:[%s1 + $0x2c] sm:$0xf]
      %v184 = vld [vmem:[%s1 + $0x30] sm:$0xf]
      %v185 = vld [vmem:[%s1 + $0x34] sm:$0xf]
      %v186 = vld [vmem:[%s1 + $0x38] sm:$0xf]
      %v187 = vld [vmem:[%s1 + $0x3c] sm:$0xf]
      %v188 = vld [vmem:[%s1 + $0x40] sm:$0xf]
      %v189 = vld [vmem:[%s1 + $0x44] sm:$0xf]
      %v190 = vld [vmem:[%s1 + $0x48] sm:$0xf]
      %v191 = vld [vmem:[%s1 + $0x4c] sm:$0xf]
      %v192 = vld [vmem:[%s1 + $0x50] sm:$0xf]
      %v193 = vld [vmem:[%s1 + $0x54] sm:$0xf]
      %v194 = vld [vmem:[%s1 + $0x58] sm:$0xf]
      %v195 = vld [vmem:[%s1 + $0x5c] sm:$0xf]
      %v196 = vld [vmem:[%s1 + $0x60] sm:$0xf]
      %v197 = vld [vmem:[%s1 + $0x64] sm:$0xf]
      %v198 = vld [vmem:[%s1 + $0x68] sm:$0xf]
      %v199 = vld [vmem:[%s1 + $0x6c] sm:$0xf]
      %v200 = vld [vmem:[%s1 + $0x70] sm:$0xf]
      %v201 = vld [vmem:[%s1 + $0x74] sm:$0xf]
      %v202 = vld [vmem:[%s1 + $0x78] sm:$0xf]
      %v203 = vld [vmem:[%s1 + $0x7c] sm:$0xf]
      %v204 = vld [vmem:[%s1 + $0x80] sm:$0xf]
      %v205 = vld [vmem:[%s1 + $0x84] sm:$0xf]
      %v206 = vld [vmem:[%s1 + $0x88] sm:$0xf]
      %v207 = vld [vmem:[%s1 + $0x8c] sm:$0xf]
      %v208 = vld [vmem:[%s2] sm:$0x1]
      %v209 = vld [vmem:[%s165] sm:$0xf]
      %v210 = vld [vmem:[%s165 + $0x4] sm:$0xf]
      %v211 = vld [vmem:[%s165 + $0x8] sm:$0xf]
      %v212 = vld [vmem:[%s165 + $0xc] sm:$0xf]
      %v213 = vld [vmem:[%s165 + $0x10] sm:$0xf]
      %v214 = vld [vmem:[%s165 + $0x14] sm:$0xf]
      %v215 = vld [vmem:[%s165 + $0x18] sm:$0xf]
      %v216 = vld [vmem:[%s165 + $0x1c] sm:$0xf]
      %s217 = scalar_lea.vmem %s165, 40
      %v218 = vld [vmem:[%s217] sm:$0xf]
      %v219 = vld [vmem:[%s217 + $0x4] sm:$0xf]
      %v220 = vld [vmem:[%s217 + $0x8] sm:$0xf]
      %v221 = vld [vmem:[%s217 + $0xc] sm:$0xf]
      %v222 = vld [vmem:[%s217 + $0x10] sm:$0xf]
      %v223 = vld [vmem:[%s217 + $0x14] sm:$0xf]
      %v224 = vld [vmem:[%s217 + $0x18] sm:$0xf]
      %v225 = vld [vmem:[%s217 + $0x1c] sm:$0xf]
      %v234 = vunpack.c.l.b16 %v218
      %v235 = vunpack.c.l.b16 %v219
      %v236 = vunpack.c.l.b16 %v220
      %v237 = vunpack.c.l.b16 %v221
      %v238 = vunpack.c.l.b16 %v222
      %v239 = vunpack.c.l.b16 %v223
      %v240 = vunpack.c.l.b16 %v224
      %v241 = vunpack.c.l.b16 %v225
      %v242 = vpack.c.b16 %v235, %v234
      %v243 = vpack.c.b16 %v237, %v236
      %v244 = vpack.c.b16 %v239, %v238
      %v245 = vpack.c.b16 %v241, %v240
      %v250 = vunpack.c.l.b16 %v176
      %v251 = vunpack.c.l.b16 %v177
      %v252 = vunpack.c.l.b16 %v178
      %v253 = vunpack.c.l.b16 %v179
      %v254 = vpack.c.b16 %v251, %v250
      %v255 = vpack.c.b16 %v253, %v252
      %vm258 = vcmask 261120
      %v260 = vsel %vm258, %v242, 0
      %v263 = vsel %vm258, %v243, 0
      %v266 = vsel %vm258, %v244, 0
      %v269 = vsel %vm258, %v245, 0
      %271 = vmatpush.bf16.msra.mxu0 0
      %272 = vmatpush.bf16.msra.mxu0 0
      %273 = vmatpush.bf16.msra.mxu0 0
      %274 = vmatpush.bf16.msra.mxu0 0
      %275 = vmatpush.bf16.msra.mxu0 0
      %276 = vmatpush.bf16.msra.mxu0 0
      %277 = vmatpush.bf16.msra.mxu0 %v255
      %278 = vmatpush.bf16.msra.mxu0 %v254
      %279 = vmatmul.bf16.gmra.mxu0 %v260
      %v280 = vpop.f32.mrf.mxu0
      %v281 = vadd.f32 0.0, %v280
      %v282 = vpop.f32.mrf.mxu0
      %v283 = vadd.f32 0.0, %v282
      %284 = vmatmul.bf16.gmra.mxu0 %v263
      %v285 = vpop.f32.mrf.mxu0
      %v286 = vadd.f32 0.0, %v285
      %v287 = vpop.f32.mrf.mxu0
      %v288 = vadd.f32 0.0, %v287
      %289 = vmatmul.bf16.gmra.mxu0 %v266
      %v290 = vpop.f32.mrf.mxu0
      %v291 = vadd.f32 0.0, %v290
      %v292 = vpop.f32.mrf.mxu0
      %v293 = vadd.f32 0.0, %v292
      %294 = vmatmul.bf16.gmra.mxu0 %v269
      %v295 = vpop.f32.mrf.mxu0
      %v296 = vadd.f32 0.0, %v295
      %v297 = vpop.f32.mrf.mxu0
      %v298 = vadd.f32 0.0, %v297
      %299 = vdwg.mxu0
      %v308 = vunpack.c.l.b16 %v209
      %v309 = vunpack.c.l.b16 %v210
      %v310 = vunpack.c.l.b16 %v211
      %v311 = vunpack.c.l.b16 %v212
      %v312 = vunpack.c.l.b16 %v213
      %v313 = vunpack.c.l.b16 %v214
      %v314 = vunpack.c.l.b16 %v215
      %v315 = vunpack.c.l.b16 %v216
      %v316 = vpack.c.b16 %v309, %v308
      %v317 = vpack.c.b16 %v311, %v310
      %v318 = vpack.c.b16 %v313, %v312
      %v319 = vpack.c.b16 %v315, %v314
      %v324 = vunpack.c.l.b16 %v172
      %v325 = vunpack.c.l.b16 %v173
      %v326 = vunpack.c.l.b16 %v174
      %v327 = vunpack.c.l.b16 %v175
      %v328 = vpack.c.b16 %v325, %v324
      %v329 = vpack.c.b16 %v327, %v326
      %v333 = vsel %vm258, %v316, 0
      %v336 = vsel %vm258, %v317, 0
      %v339 = vsel %vm258, %v318, 0
      %v342 = vsel %vm258, %v319, 0
      %344 = vmatpush.bf16.msra.mxu0 0
      %345 = vmatpush.bf16.msra.mxu0 0
      %346 = vmatpush.bf16.msra.mxu0 0
      %347 = vmatpush.bf16.msra.mxu0 0
      %348 = vmatpush.bf16.msra.mxu0 0
      %349 = vmatpush.bf16.msra.mxu0 0
      %350 = vmatpush.bf16.msra.mxu0 %v329
      %351 = vmatpush.bf16.msra.mxu0 %v328
      %352 = vmatmul.bf16.gmra.mxu0 %v333
      %v353 = vpop.f32.mrf.mxu0
      %v354 = vadd.f32 %v281, %v353
      %v355 = vpop.f32.mrf.mxu0
      %v356 = vadd.f32 %v283, %v355
      %357 = vmatmul.bf16.gmra.mxu0 %v336
      %v358 = vpop.f32.mrf.mxu0
      %v359 = vadd.f32 %v286, %v358
      %v360 = vpop.f32.mrf.mxu0
      %v361 = vadd.f32 %v288, %v360
      %362 = vmatmul.bf16.gmra.mxu0 %v339
      %v363 = vpop.f32.mrf.mxu0
      %v364 = vadd.f32 %v291, %v363
      %v365 = vpop.f32.mrf.mxu0
      %v366 = vadd.f32 %v293, %v365
      %367 = vmatmul.bf16.gmra.mxu0 %v342
      %v368 = vpop.f32.mrf.mxu0
      %v369 = vadd.f32 %v296, %v368
      %v370 = vpop.f32.mrf.mxu0
      %v371 = vadd.f32 %v298, %v370
      %372 = vdwg.mxu0
      %v373 = vld [vmem:[%s165] sm:$0xf]
      %v374 = vld [vmem:[%s165 + $0x4] sm:$0xf]
      %v375 = vld [vmem:[%s165 + $0x8] sm:$0xf]
      %v376 = vld [vmem:[%s165 + $0xc] sm:$0xf]
      %v377 = vld [vmem:[%s165 + $0x10] sm:$0xf]
      %v378 = vld [vmem:[%s165 + $0x14] sm:$0xf]
      %v379 = vld [vmem:[%s165 + $0x18] sm:$0xf]
      %v380 = vld [vmem:[%s165 + $0x1c] sm:$0xf]
      %v381 = vld [vmem:[%s165 + $0x20] sm:$0x1]
      %v391 = vunpack.c.l.b16 %v373
      %v392 = vunpack.c.l.b16 %v374
      %v393 = vunpack.c.l.b16 %v375
      %v394 = vunpack.c.l.b16 %v376
      %v395 = vunpack.c.l.b16 %v377
      %v396 = vunpack.c.l.b16 %v378
      %v397 = vunpack.c.l.b16 %v379
      %v398 = vunpack.c.l.b16 %v380
      %v399 = vunpack.c.l.b16 %v381
      %v400 = vpack.c.b16 %v392, %v391
      %v401 = vpack.c.b16 %v394, %v393
      %v402 = vpack.c.b16 %v396, %v395
      %v403 = vpack.c.b16 %v398, %v397
      %v404 = vpack.c.b16 %v399, %v399
      %vm405 = vsmask.f32 7424
      %v407 = vshrl.u32 %v400, 16
      %v409 = vshll.u32 %v400, 16
      %v411 = vrot.slane %v409, 1
      %v412 = vor.u32 %v407, %v411
      %v414 = vshll.u32 %v401, 16
      %v416 = vrot.slane %v414, 1
      %v417 = vsel %vm405, %v412, %v416
      %v418 = vshrl.u32 %v401, 16
      %v420 = vor.u32 %v418, %v416
      %v422 = vshll.u32 %v402, 16
      %v424 = vrot.slane %v422, 1
      %v425 = vsel %vm405, %v420, %v424
      %v426 = vshrl.u32 %v402, 16
      %v428 = vor.u32 %v426, %v424
      %v430 = vshll.u32 %v403, 16
      %v432 = vrot.slane %v430, 1
      %v433 = vsel %vm405, %v428, %v432
      %v434 = vshrl.u32 %v403, 16
      %v436 = vor.u32 %v434, %v432
      %v438 = vshll.u32 %v404, 16
      %v440 = vrot.slane %v438, 1
      %v441 = vsel %vm405, %v436, %v440
      %v446 = vunpack.c.l.b16 %v180
      %v447 = vunpack.c.l.b16 %v181
      %v448 = vunpack.c.l.b16 %v182
      %v449 = vunpack.c.l.b16 %v183
      %v450 = vpack.c.b16 %v447, %v446
      %v451 = vpack.c.b16 %v449, %v448
      %v455 = vsel %vm258, %v417, 0
      %v458 = vsel %vm258, %v425, 0
      %v461 = vsel %vm258, %v433, 0
      %v464 = vsel %vm258, %v441, 0
      %466 = vmatpush.bf16.msra.mxu0 0
      %467 = vmatpush.bf16.msra.mxu0 0
      %468 = vmatpush.bf16.msra.mxu0 0
      %469 = vmatpush.bf16.msra.mxu0 0
      %470 = vmatpush.bf16.msra.mxu0 0
      %471 = vmatpush.bf16.msra.mxu0 0
      %472 = vmatpush.bf16.msra.mxu0 %v451
      %473 = vmatpush.bf16.msra.mxu0 %v450
      %474 = vmatmul.bf16.gmra.mxu0 %v455
      %v475 = vpop.f32.mrf.mxu0
      %v476 = vadd.f32 0.0, %v475
      %v477 = vpop.f32.mrf.mxu0
      %v478 = vadd.f32 0.0, %v477
      %479 = vmatmul.bf16.gmra.mxu0 %v458
      %v480 = vpop.f32.mrf.mxu0
      %v481 = vadd.f32 0.0, %v480
      %v482 = vpop.f32.mrf.mxu0
      %v483 = vadd.f32 0.0, %v482
      %484 = vmatmul.bf16.gmra.mxu0 %v461
      %v485 = vpop.f32.mrf.mxu0
      %v486 = vadd.f32 0.0, %v485
      %v487 = vpop.f32.mrf.mxu0
      %v488 = vadd.f32 0.0, %v487
      %489 = vmatmul.bf16.gmra.mxu0 %v464
      %v490 = vpop.f32.mrf.mxu0
      %v491 = vadd.f32 0.0, %v490
      %v492 = vpop.f32.mrf.mxu0
      %v493 = vadd.f32 0.0, %v492
      %494 = vdwg.mxu0
      %v495 = vadd.f32 %v354, %v476
      %v496 = vadd.f32 %v356, %v478
      %v497 = vadd.f32 %v359, %v481
      %v498 = vadd.f32 %v361, %v483
      %v499 = vadd.f32 %v364, %v486
      %v500 = vadd.f32 %v366, %v488
      %v501 = vadd.f32 %v369, %v491
      %v502 = vadd.f32 %v371, %v493
      %s503 = scalar_lea.vmem %s165, 80
      %v504 = vld [vmem:[%s503] sm:$0xf]
      %v505 = vld [vmem:[%s503 + $0x4] sm:$0xf]
      %v506 = vld [vmem:[%s503 + $0x8] sm:$0xf]
      %v507 = vld [vmem:[%s503 + $0xc] sm:$0xf]
      %v508 = vld [vmem:[%s503 + $0x10] sm:$0xf]
      %v509 = vld [vmem:[%s503 + $0x14] sm:$0xf]
      %v510 = vld [vmem:[%s503 + $0x18] sm:$0xf]
      %v511 = vld [vmem:[%s503 + $0x1c] sm:$0xf]
      %v520 = vunpack.c.l.b16 %v504
      %v521 = vunpack.c.l.b16 %v505
      %v522 = vunpack.c.l.b16 %v506
      %v523 = vunpack.c.l.b16 %v507
      %v524 = vunpack.c.l.b16 %v508
      %v525 = vunpack.c.l.b16 %v509
      %v526 = vunpack.c.l.b16 %v510
      %v527 = vunpack.c.l.b16 %v511
      %v528 = vpack.c.b16 %v521, %v520
      %v529 = vpack.c.b16 %v523, %v522
      %v530 = vpack.c.b16 %v525, %v524
      %v531 = vpack.c.b16 %v527, %v526
      %v536 = vunpack.c.l.b16 %v184
      %v537 = vunpack.c.l.b16 %v185
      %v538 = vunpack.c.l.b16 %v186
      %v539 = vunpack.c.l.b16 %v187
      %v540 = vpack.c.b16 %v537, %v536
      %v541 = vpack.c.b16 %v539, %v538
      %v545 = vsel %vm258, %v528, 0
      %v548 = vsel %vm258, %v529, 0
      %v551 = vsel %vm258, %v530, 0
      %v554 = vsel %vm258, %v531, 0
      %556 = vmatpush.bf16.msra.mxu0 0
      %557 = vmatpush.bf16.msra.mxu0 0
      %558 = vmatpush.bf16.msra.mxu0 0
      %559 = vmatpush.bf16.msra.mxu0 0
      %560 = vmatpush.bf16.msra.mxu0 0
      %561 = vmatpush.bf16.msra.mxu0 0
      %562 = vmatpush.bf16.msra.mxu0 %v541
      %563 = vmatpush.bf16.msra.mxu0 %v540
      %564 = vmatmul.bf16.gmra.mxu0 %v545
      %v565 = vpop.f32.mrf.mxu0
      %v566 = vadd.f32 0.0, %v565
      %v567 = vpop.f32.mrf.mxu0
      %v568 = vadd.f32 0.0, %v567
      %569 = vmatmul.bf16.gmra.mxu0 %v548
      %v570 = vpop.f32.mrf.mxu0
      %v571 = vadd.f32 0.0, %v570
      %v572 = vpop.f32.mrf.mxu0
      %v573 = vadd.f32 0.0, %v572
      %574 = vmatmul.bf16.gmra.mxu0 %v551
      %v575 = vpop.f32.mrf.mxu0
      %v576 = vadd.f32 0.0, %v575
      %v577 = vpop.f32.mrf.mxu0
      %v578 = vadd.f32 0.0, %v577
      %579 = vmatmul.bf16.gmra.mxu0 %v554
      %v580 = vpop.f32.mrf.mxu0
      %v581 = vadd.f32 0.0, %v580
      %v582 = vpop.f32.mrf.mxu0
      %v583 = vadd.f32 0.0, %v582
      %584 = vdwg.mxu0
      %v585 = vadd.f32 %v495, %v566
      %v586 = vadd.f32 %v496, %v568
      %v587 = vadd.f32 %v497, %v571
      %v588 = vadd.f32 %v498, %v573
      %v589 = vadd.f32 %v499, %v576
      %v590 = vadd.f32 %v500, %v578
      %v591 = vadd.f32 %v501, %v581
      %v592 = vadd.f32 %v502, %v583
      %s593 = scalar_lea.vmem %s165, 120
      %v594 = vld [vmem:[%s593] sm:$0xf]
      %v595 = vld [vmem:[%s593 + $0x4] sm:$0xf]
      %v596 = vld [vmem:[%s593 + $0x8] sm:$0xf]
      %v597 = vld [vmem:[%s593 + $0xc] sm:$0xf]
      %v598 = vld [vmem:[%s593 + $0x10] sm:$0xf]
      %v599 = vld [vmem:[%s593 + $0x14] sm:$0xf]
      %v600 = vld [vmem:[%s593 + $0x18] sm:$0xf]
      %v601 = vld [vmem:[%s593 + $0x1c] sm:$0xf]
      %v610 = vunpack.c.l.b16 %v594
      %v611 = vunpack.c.l.b16 %v595
      %v612 = vunpack.c.l.b16 %v596
      %v613 = vunpack.c.l.b16 %v597
      %v614 = vunpack.c.l.b16 %v598
      %v615 = vunpack.c.l.b16 %v599
      %v616 = vunpack.c.l.b16 %v600
      %v617 = vunpack.c.l.b16 %v601
      %v618 = vpack.c.b16 %v611, %v610
      %v619 = vpack.c.b16 %v613, %v612
      %v620 = vpack.c.b16 %v615, %v614
      %v621 = vpack.c.b16 %v617, %v616
      %v626 = vunpack.c.l.b16 %v188
      %v627 = vunpack.c.l.b16 %v189
      %v628 = vunpack.c.l.b16 %v190
      %v629 = vunpack.c.l.b16 %v191
      %v630 = vpack.c.b16 %v627, %v626
      %v631 = vpack.c.b16 %v629, %v628
      %v635 = vsel %vm258, %v618, 0
      %v638 = vsel %vm258, %v619, 0
      %v641 = vsel %vm258, %v620, 0
      %v644 = vsel %vm258, %v621, 0
      %646 = vmatpush.bf16.msra.mxu0 0
      %647 = vmatpush.bf16.msra.mxu0 0
      %648 = vmatpush.bf16.msra.mxu0 0
      %649 = vmatpush.bf16.msra.mxu0 0
      %650 = vmatpush.bf16.msra.mxu0 0
      %651 = vmatpush.bf16.msra.mxu0 0
      %652 = vmatpush.bf16.msra.mxu0 %v631
      %653 = vmatpush.bf16.msra.mxu0 %v630
      %654 = vmatmul.bf16.gmra.mxu0 %v635
      %v655 = vpop.f32.mrf.mxu0
      %v656 = vadd.f32 0.0, %v655
      %v657 = vpop.f32.mrf.mxu0
      %v658 = vadd.f32 0.0, %v657
      %659 = vmatmul.bf16.gmra.mxu0 %v638
      %v660 = vpop.f32.mrf.mxu0
      %v661 = vadd.f32 0.0, %v660
      %v662 = vpop.f32.mrf.mxu0
      %v663 = vadd.f32 0.0, %v662
      %664 = vmatmul.bf16.gmra.mxu0 %v641
      %v665 = vpop.f32.mrf.mxu0
      %v666 = vadd.f32 0.0, %v665
      %v667 = vpop.f32.mrf.mxu0
      %v668 = vadd.f32 0.0, %v667
      %669 = vmatmul.bf16.gmra.mxu0 %v644
      %v670 = vpop.f32.mrf.mxu0
      %v671 = vadd.f32 0.0, %v670
      %v672 = vpop.f32.mrf.mxu0
      %v673 = vadd.f32 0.0, %v672
      %674 = vdwg.mxu0
      %v675 = vadd.f32 %v585, %v656
      %v676 = vadd.f32 %v586, %v658
      %v677 = vadd.f32 %v587, %v661
      %v678 = vadd.f32 %v588, %v663
      %v679 = vadd.f32 %v589, %v666
      %v680 = vadd.f32 %v590, %v668
      %v681 = vadd.f32 %v591, %v671
      %v682 = vadd.f32 %v592, %v673
      %v683 = vld [vmem:[%s503] sm:$0xf]
      %v684 = vld [vmem:[%s503 + $0x4] sm:$0xf]
      %v685 = vld [vmem:[%s503 + $0x8] sm:$0xf]
      %v686 = vld [vmem:[%s503 + $0xc] sm:$0xf]
      %v687 = vld [vmem:[%s503 + $0x10] sm:$0xf]
      %v688 = vld [vmem:[%s503 + $0x14] sm:$0xf]
      %v689 = vld [vmem:[%s503 + $0x18] sm:$0xf]
      %v690 = vld [vmem:[%s503 + $0x1c] sm:$0xf]
      %v691 = vld [vmem:[%s503 + $0x20] sm:$0x1]
      %v701 = vunpack.c.l.b16 %v683
      %v702 = vunpack.c.l.b16 %v684
      %v703 = vunpack.c.l.b16 %v685
      %v704 = vunpack.c.l.b16 %v686
      %v705 = vunpack.c.l.b16 %v687
      %v706 = vunpack.c.l.b16 %v688
      %v707 = vunpack.c.l.b16 %v689
      %v708 = vunpack.c.l.b16 %v690
      %v709 = vunpack.c.l.b16 %v691
      %v710 = vpack.c.b16 %v702, %v701
      %v711 = vpack.c.b16 %v704, %v703
      %v712 = vpack.c.b16 %v706, %v705
      %v713 = vpack.c.b16 %v708, %v707
      %v714 = vpack.c.b16 %v709, %v709
      %v716 = vshrl.u32 %v710, 16
      %v718 = vshll.u32 %v710, 16
      %v720 = vrot.slane %v718, 1
      %v721 = vor.u32 %v716, %v720
      %v723 = vshll.u32 %v711, 16
      %v725 = vrot.slane %v723, 1
      %v726 = vsel %vm405, %v721, %v725
      %v727 = vshrl.u32 %v711, 16
      %v729 = vor.u32 %v727, %v725
      %v731 = vshll.u32 %v712, 16
      %v733 = vrot.slane %v731, 1
      %v734 = vsel %vm405, %v729, %v733
      %v735 = vshrl.u32 %v712, 16
      %v737 = vor.u32 %v735, %v733
      %v739 = vshll.u32 %v713, 16
      %v741 = vrot.slane %v739, 1
      %v742 = vsel %vm405, %v737, %v741
      %v743 = vshrl.u32 %v713, 16
      %v745 = vor.u32 %v743, %v741
      %v747 = vshll.u32 %v714, 16
      %v749 = vrot.slane %v747, 1
      %v750 = vsel %vm405, %v745, %v749
      %v755 = vunpack.c.l.b16 %v192
      %v756 = vunpack.c.l.b16 %v193
      %v757 = vunpack.c.l.b16 %v194
      %v758 = vunpack.c.l.b16 %v195
      %v759 = vpack.c.b16 %v756, %v755
      %v760 = vpack.c.b16 %v758, %v757
      %v764 = vsel %vm258, %v726, 0
      %v767 = vsel %vm258, %v734, 0
      %v770 = vsel %vm258, %v742, 0
      %v773 = vsel %vm258, %v750, 0
      %775 = vmatpush.bf16.msra.mxu0 0
      %776 = vmatpush.bf16.msra.mxu0 0
      %777 = vmatpush.bf16.msra.mxu0 0
      %778 = vmatpush.bf16.msra.mxu0 0
      %779 = vmatpush.bf16.msra.mxu0 0
      %780 = vmatpush.bf16.msra.mxu0 0
      %781 = vmatpush.bf16.msra.mxu0 %v760
      %782 = vmatpush.bf16.msra.mxu0 %v759
      %783 = vmatmul.bf16.gmra.mxu0 %v764
      %v784 = vpop.f32.mrf.mxu0
      %v785 = vadd.f32 0.0, %v784
      %v786 = vpop.f32.mrf.mxu0
      %v787 = vadd.f32 0.0, %v786
      %788 = vmatmul.bf16.gmra.mxu0 %v767
      %v789 = vpop.f32.mrf.mxu0
      %v790 = vadd.f32 0.0, %v789
      %v791 = vpop.f32.mrf.mxu0
      %v792 = vadd.f32 0.0, %v791
      %793 = vmatmul.bf16.gmra.mxu0 %v770
      %v794 = vpop.f32.mrf.mxu0
      %v795 = vadd.f32 0.0, %v794
      %v796 = vpop.f32.mrf.mxu0
      %v797 = vadd.f32 0.0, %v796
      %798 = vmatmul.bf16.gmra.mxu0 %v773
      %v799 = vpop.f32.mrf.mxu0
      %v800 = vadd.f32 0.0, %v799
      %v801 = vpop.f32.mrf.mxu0
      %v802 = vadd.f32 0.0, %v801
      %803 = vdwg.mxu0
      %v804 = vadd.f32 %v675, %v785
      %v805 = vadd.f32 %v676, %v787
      %v806 = vadd.f32 %v677, %v790
      %v807 = vadd.f32 %v678, %v792
      %v808 = vadd.f32 %v679, %v795
      %v809 = vadd.f32 %v680, %v797
      %v810 = vadd.f32 %v681, %v800
      %v811 = vadd.f32 %v682, %v802
      %v812 = vld [vmem:[%s165 + $0x20] sm:$0xf]
      %v814 = vunpack.c.l.b16 %v812
      %v815 = vpack.c.b16 %v393, %v392
      %v816 = vpack.c.b16 %v395, %v394
      %v817 = vpack.c.b16 %v397, %v396
      %v818 = vpack.c.b16 %v814, %v398
      %v823 = vunpack.c.l.b16 %v196
      %v824 = vunpack.c.l.b16 %v197
      %v825 = vunpack.c.l.b16 %v198
      %v826 = vunpack.c.l.b16 %v199
      %v827 = vpack.c.b16 %v824, %v823
      %v828 = vpack.c.b16 %v826, %v825
      %v832 = vsel %vm258, %v815, 0
      %v835 = vsel %vm258, %v816, 0
      %v838 = vsel %vm258, %v817, 0
      %v841 = vsel %vm258, %v818, 0
      %843 = vmatpush.bf16.msra.mxu0 0
      %844 = vmatpush.bf16.msra.mxu0 0
      %845 = vmatpush.bf16.msra.mxu0 0
      %846 = vmatpush.bf16.msra.mxu0 0
      %847 = vmatpush.bf16.msra.mxu0 0
      %848 = vmatpush.bf16.msra.mxu0 0
      %849 = vmatpush.bf16.msra.mxu0 %v828
      %850 = vmatpush.bf16.msra.mxu0 %v827
      %851 = vmatmul.bf16.gmra.mxu0 %v832
      %v852 = vpop.f32.mrf.mxu0
      %v853 = vadd.f32 0.0, %v852
      %v854 = vpop.f32.mrf.mxu0
      %v855 = vadd.f32 0.0, %v854
      %856 = vmatmul.bf16.gmra.mxu0 %v835
      %v857 = vpop.f32.mrf.mxu0
      %v858 = vadd.f32 0.0, %v857
      %v859 = vpop.f32.mrf.mxu0
      %v860 = vadd.f32 0.0, %v859
      %861 = vmatmul.bf16.gmra.mxu0 %v838
      %v862 = vpop.f32.mrf.mxu0
      %v863 = vadd.f32 0.0, %v862
      %v864 = vpop.f32.mrf.mxu0
      %v865 = vadd.f32 0.0, %v864
      %866 = vmatmul.bf16.gmra.mxu0 %v841
      %v867 = vpop.f32.mrf.mxu0
      %v868 = vadd.f32 0.0, %v867
      %v869 = vpop.f32.mrf.mxu0
      %v870 = vadd.f32 0.0, %v869
      %871 = vdwg.mxu0
      %v872 = vadd.f32 %v804, %v853
      %v873 = vadd.f32 %v805, %v855
      %v874 = vadd.f32 %v806, %v858
      %v875 = vadd.f32 %v807, %v860
      %v876 = vadd.f32 %v808, %v863
      %v877 = vadd.f32 %v809, %v865
      %v878 = vadd.f32 %v810, %v868
      %v879 = vadd.f32 %v811, %v870
      %v880 = vld [vmem:[%s217 + $0x4] sm:$0xf]
      %v881 = vld [vmem:[%s217 + $0x8] sm:$0xf]
      %v882 = vld [vmem:[%s217 + $0xc] sm:$0xf]
      %v883 = vld [vmem:[%s217 + $0x10] sm:$0xf]
      %v884 = vld [vmem:[%s217 + $0x14] sm:$0xf]
      %v885 = vld [vmem:[%s217 + $0x18] sm:$0xf]
      %v886 = vld [vmem:[%s217 + $0x1c] sm:$0xf]
      %v887 = vld [vmem:[%s217 + $0x20] sm:$0xf]
      %v896 = vunpack.c.l.b16 %v880
      %v897 = vunpack.c.l.b16 %v881
      %v898 = vunpack.c.l.b16 %v882
      %v899 = vunpack.c.l.b16 %v883
      %v900 = vunpack.c.l.b16 %v884
      %v901 = vunpack.c.l.b16 %v885
      %v902 = vunpack.c.l.b16 %v886
      %v903 = vunpack.c.l.b16 %v887
      %v904 = vpack.c.b16 %v897, %v896
      %v905 = vpack.c.b16 %v899, %v898
      %v906 = vpack.c.b16 %v901, %v900
      %v907 = vpack.c.b16 %v903, %v902
      %v912 = vunpack.c.l.b16 %v200
      %v913 = vunpack.c.l.b16 %v201
      %v914 = vunpack.c.l.b16 %v202
      %v915 = vunpack.c.l.b16 %v203
      %v916 = vpack.c.b16 %v913, %v912
      %v917 = vpack.c.b16 %v915, %v914
      %v921 = vsel %vm258, %v904, 0
      %v924 = vsel %vm258, %v905, 0
      %v927 = vsel %vm258, %v906, 0
      %v930 = vsel %vm258, %v907, 0
      %932 = vmatpush.bf16.msra.mxu0 0
      %933 = vmatpush.bf16.msra.mxu0 0
      %934 = vmatpush.bf16.msra.mxu0 0
      %935 = vmatpush.bf16.msra.mxu0 0
      %936 = vmatpush.bf16.msra.mxu0 0
      %937 = vmatpush.bf16.msra.mxu0 0
      %938 = vmatpush.bf16.msra.mxu0 %v917
      %939 = vmatpush.bf16.msra.mxu0 %v916
      %940 = vmatmul.bf16.gmra.mxu0 %v921
      %v941 = vpop.f32.mrf.mxu0
      %v942 = vadd.f32 0.0, %v941
      %v943 = vpop.f32.mrf.mxu0
      %v944 = vadd.f32 0.0, %v943
      %945 = vmatmul.bf16.gmra.mxu0 %v924
      %v946 = vpop.f32.mrf.mxu0
      %v947 = vadd.f32 0.0, %v946
      %v948 = vpop.f32.mrf.mxu0
      %v949 = vadd.f32 0.0, %v948
      %950 = vmatmul.bf16.gmra.mxu0 %v927
      %v951 = vpop.f32.mrf.mxu0
      %v952 = vadd.f32 0.0, %v951
      %v953 = vpop.f32.mrf.mxu0
      %v954 = vadd.f32 0.0, %v953
      %955 = vmatmul.bf16.gmra.mxu0 %v930
      %v956 = vpop.f32.mrf.mxu0
      %v957 = vadd.f32 0.0, %v956
      %v958 = vpop.f32.mrf.mxu0
      %v959 = vadd.f32 0.0, %v958
      %960 = vdwg.mxu0
      %v961 = vadd.f32 %v872, %v942
      %v962 = vadd.f32 %v873, %v944
      %v963 = vadd.f32 %v874, %v947
      %v964 = vadd.f32 %v875, %v949
      %v965 = vadd.f32 %v876, %v952
      %v966 = vadd.f32 %v877, %v954
      %v967 = vadd.f32 %v878, %v957
      %v968 = vadd.f32 %v879, %v959
      %v969 = vld [vmem:[%s165 + $0x4] sm:$0xf]
      %v970 = vld [vmem:[%s165 + $0x8] sm:$0xf]
      %v971 = vld [vmem:[%s165 + $0xc] sm:$0xf]
      %v972 = vld [vmem:[%s165 + $0x10] sm:$0xf]
      %v973 = vld [vmem:[%s165 + $0x14] sm:$0xf]
      %v974 = vld [vmem:[%s165 + $0x18] sm:$0xf]
      %v975 = vld [vmem:[%s165 + $0x1c] sm:$0xf]
      %v976 = vld [vmem:[%s165 + $0x20] sm:$0xf]
      %v977 = vld [vmem:[%s165 + $0x24] sm:$0x1]
      %v987 = vunpack.c.l.b16 %v969
      %v988 = vunpack.c.l.b16 %v970
      %v989 = vunpack.c.l.b16 %v971
      %v990 = vunpack.c.l.b16 %v972
      %v991 = vunpack.c.l.b16 %v973
      %v992 = vunpack.c.l.b16 %v974
      %v993 = vunpack.c.l.b16 %v975
      %v994 = vunpack.c.l.b16 %v976
      %v995 = vunpack.c.l.b16 %v977
      %v996 = vpack.c.b16 %v988, %v987
      %v997 = vpack.c.b16 %v990, %v989
      %v998 = vpack.c.b16 %v992, %v991
      %v999 = vpack.c.b16 %v994, %v993
      %v1000 = vpack.c.b16 %v995, %v995
      %v1002 = vshrl.u32 %v996, 16
      %v1004 = vshll.u32 %v996, 16
      %v1006 = vrot.slane %v1004, 1
      %v1007 = vor.u32 %v1002, %v1006
      %v1009 = vshll.u32 %v997, 16
      %v1011 = vrot.slane %v1009, 1
      %v1012 = vsel %vm405, %v1007, %v1011
      %v1013 = vshrl.u32 %v997, 16
      %v1015 = vor.u32 %v1013, %v1011
      %v1017 = vshll.u32 %v998, 16
      %v1019 = vrot.slane %v1017, 1
      %v1020 = vsel %vm405, %v1015, %v1019
      %v1021 = vshrl.u32 %v998, 16
      %v1023 = vor.u32 %v1021, %v1019
      %v1025 = vshll.u32 %v999, 16
      %v1027 = vrot.slane %v1025, 1
      %v1028 = vsel %vm405, %v1023, %v1027
      %v1029 = vshrl.u32 %v999, 16
      %v1031 = vor.u32 %v1029, %v1027
      %v1033 = vshll.u32 %v1000, 16
      %v1035 = vrot.slane %v1033, 1
      %v1036 = vsel %vm405, %v1031, %v1035
      %v1041 = vunpack.c.l.b16 %v204
      %v1042 = vunpack.c.l.b16 %v205
      %v1043 = vunpack.c.l.b16 %v206
      %v1044 = vunpack.c.l.b16 %v207
      %v1045 = vpack.c.b16 %v1042, %v1041
      %v1046 = vpack.c.b16 %v1044, %v1043
      %v1050 = vsel %vm258, %v1012, 0
      %v1053 = vsel %vm258, %v1020, 0
      %v1056 = vsel %vm258, %v1028, 0
      %v1059 = vsel %vm258, %v1036, 0
      %1061 = vmatpush.bf16.msra.mxu0 0
      %1062 = vmatpush.bf16.msra.mxu0 0
      %1063 = vmatpush.bf16.msra.mxu0 0
      %1064 = vmatpush.bf16.msra.mxu0 0
      %1065 = vmatpush.bf16.msra.mxu0 0
      %1066 = vmatpush.bf16.msra.mxu0 0
      %1067 = vmatpush.bf16.msra.mxu0 %v1046
      %1068 = vmatpush.bf16.msra.mxu0 %v1045
      %1069 = vmatmul.bf16.gmra.mxu0 %v1050
      %v1070 = vpop.f32.mrf.mxu0
      %v1071 = vadd.f32 0.0, %v1070
      %v1072 = vpop.f32.mrf.mxu0
      %v1073 = vadd.f32 0.0, %v1072
      %1074 = vmatmul.bf16.gmra.mxu0 %v1053
      %v1075 = vpop.f32.mrf.mxu0
      %v1076 = vadd.f32 0.0, %v1075
      %v1077 = vpop.f32.mrf.mxu0
      %v1078 = vadd.f32 0.0, %v1077
      %1079 = vmatmul.bf16.gmra.mxu0 %v1056
      %v1080 = vpop.f32.mrf.mxu0
      %v1081 = vadd.f32 0.0, %v1080
      %v1082 = vpop.f32.mrf.mxu0
      %v1083 = vadd.f32 0.0, %v1082
      %1084 = vmatmul.bf16.gmra.mxu0 %v1059
      %v1085 = vpop.f32.mrf.mxu0
      %v1086 = vadd.f32 0.0, %v1085
      %v1087 = vpop.f32.mrf.mxu0
      %v1088 = vadd.f32 0.0, %v1087
      %1089 = vdwg.mxu0
      %v1090 = vadd.f32 %v961, %v1071
      %v1091 = vadd.f32 %v962, %v1073
      %v1092 = vadd.f32 %v963, %v1076
      %v1093 = vadd.f32 %v964, %v1078
      %v1094 = vadd.f32 %v965, %v1081
      %v1095 = vadd.f32 %v966, %v1083
      %v1096 = vadd.f32 %v967, %v1086
      %v1097 = vadd.f32 %v968, %v1088
      %v1099 = vperm.slane %v208, 0
      %v1101 = vadd.f32 %v1090, %v1099
      %v1102 = vadd.f32 %v1091, %v1099
      %v1103 = vadd.f32 %v1092, %v1099
      %v1104 = vadd.f32 %v1093, %v1099
      %v1105 = vadd.f32 %v1094, %v1099
      %v1106 = vadd.f32 %v1095, %v1099
      %v1107 = vadd.f32 %v1096, %v1099
      %v1108 = vadd.f32 %v1097, %v1099
      %v1109 = vmax.f32 %v1101, 0.0
      %v1110 = vmax.f32 %v1102, 0.0
      %v1111 = vmax.f32 %v1103, 0.0
      %v1112 = vmax.f32 %v1104, 0.0
      %v1113 = vmax.f32 %v1105, 0.0
      %v1114 = vmax.f32 %v1106, 0.0
      %v1115 = vmax.f32 %v1107, 0.0
      %v1116 = vmax.f32 %v1108, 0.0
      %1117 = vmatpush.bf16.msra.mxu0 0
      %1118 = vmatpush.bf16.msra.mxu0 0
      %1119 = vmatpush.bf16.msra.mxu0 0
      %1120 = vmatpush.bf16.msra.mxu0 0
      %1121 = vmatpush.bf16.msra.mxu0 0
      %1122 = vmatpush.bf16.msra.mxu0 0
      %1123 = vmatpush.bf16.msra.mxu0 %v255
      %1124 = vmatpush.bf16.msra.mxu0 %v254
      %1125 = vmatmul.bf16.gmra.mxu0 %v455
      %v1126 = vpop.f32.mrf.mxu0
      %v1127 = vadd.f32 0.0, %v1126
      %v1128 = vpop.f32.mrf.mxu0
      %v1129 = vadd.f32 0.0, %v1128
      %1130 = vmatmul.bf16.gmra.mxu0 %v458
      %v1131 = vpop.f32.mrf.mxu0
      %v1132 = vadd.f32 0.0, %v1131
      %v1133 = vpop.f32.mrf.mxu0
      %v1134 = vadd.f32 0.0, %v1133
      %1135 = vmatmul.bf16.gmra.mxu0 %v461
      %v1136 = vpop.f32.mrf.mxu0
      %v1137 = vadd.f32 0.0, %v1136
      %v1138 = vpop.f32.mrf.mxu0
      %v1139 = vadd.f32 0.0, %v1138
      %1140 = vmatmul.bf16.gmra.mxu0 %v464
      %v1141 = vpop.f32.mrf.mxu0
      %v1142 = vadd.f32 0.0, %v1141
      %v1143 = vpop.f32.mrf.mxu0
      %v1144 = vadd.f32 0.0, %v1143
      %1145 = vdwg.mxu0
      %1146 = vmatpush.bf16.msra.mxu0 0
      %1147 = vmatpush.bf16.msra.mxu0 0
      %1148 = vmatpush.bf16.msra.mxu0 0
      %1149 = vmatpush.bf16.msra.mxu0 0
      %1150 = vmatpush.bf16.msra.mxu0 0
      %1151 = vmatpush.bf16.msra.mxu0 0
      %1152 = vmatpush.bf16.msra.mxu0 %v329
      %1153 = vmatpush.bf16.msra.mxu0 %v328
      %1154 = vmatmul.bf16.gmra.mxu0 %v260
      %v1155 = vpop.f32.mrf.mxu0
      %v1156 = vadd.f32 %v1127, %v1155
      %v1157 = vpop.f32.mrf.mxu0
      %v1158 = vadd.f32 %v1129, %v1157
      %1159 = vmatmul.bf16.gmra.mxu0 %v263
      %v1160 = vpop.f32.mrf.mxu0
      %v1161 = vadd.f32 %v1132, %v1160
      %v1162 = vpop.f32.mrf.mxu0
      %v1163 = vadd.f32 %v1134, %v1162
      %1164 = vmatmul.bf16.gmra.mxu0 %v266
      %v1165 = vpop.f32.mrf.mxu0
      %v1166 = vadd.f32 %v1137, %v1165
      %v1167 = vpop.f32.mrf.mxu0
      %v1168 = vadd.f32 %v1139, %v1167
      %1169 = vmatmul.bf16.gmra.mxu0 %v269
      %v1170 = vpop.f32.mrf.mxu0
      %v1171 = vadd.f32 %v1142, %v1170
      %v1172 = vpop.f32.mrf.mxu0
      %v1173 = vadd.f32 %v1144, %v1172
      %1174 = vdwg.mxu0
      %v1175 = vld [vmem:[%s217] sm:$0xf]
      %v1176 = vld [vmem:[%s217 + $0x20] sm:$0x1]
      %v1179 = vunpack.c.l.b16 %v1175
      %v1180 = vunpack.c.l.b16 %v1176
      %v1181 = vpack.c.b16 %v896, %v1179
      %v1182 = vpack.c.b16 %v898, %v897
      %v1183 = vpack.c.b16 %v900, %v899
      %v1184 = vpack.c.b16 %v902, %v901
      %v1185 = vpack.c.b16 %v1180, %v1180
      %v1187 = vshrl.u32 %v1181, 16
      %v1189 = vshll.u32 %v1181, 16
      %v1191 = vrot.slane %v1189, 1
      %v1192 = vor.u32 %v1187, %v1191
      %v1194 = vshll.u32 %v1182, 16
      %v1196 = vrot.slane %v1194, 1
      %v1197 = vsel %vm405, %v1192, %v1196
      %v1198 = vshrl.u32 %v1182, 16
      %v1200 = vor.u32 %v1198, %v1196
      %v1202 = vshll.u32 %v1183, 16
      %v1204 = vrot.slane %v1202, 1
      %v1205 = vsel %vm405, %v1200, %v1204
      %v1206 = vshrl.u32 %v1183, 16
      %v1208 = vor.u32 %v1206, %v1204
      %v1210 = vshll.u32 %v1184, 16
      %v1212 = vrot.slane %v1210, 1
      %v1213 = vsel %vm405, %v1208, %v1212
      %v1214 = vshrl.u32 %v1184, 16
      %v1216 = vor.u32 %v1214, %v1212
      %v1218 = vshll.u32 %v1185, 16
      %v1220 = vrot.slane %v1218, 1
      %v1221 = vsel %vm405, %v1216, %v1220
      %v1223 = vsel %vm258, %v1197, 0
      %v1226 = vsel %vm258, %v1205, 0
      %v1229 = vsel %vm258, %v1213, 0
      %v1232 = vsel %vm258, %v1221, 0
      %1234 = vmatpush.bf16.msra.mxu0 0
      %1235 = vmatpush.bf16.msra.mxu0 0
      %1236 = vmatpush.bf16.msra.mxu0 0
      %1237 = vmatpush.bf16.msra.mxu0 0
      %1238 = vmatpush.bf16.msra.mxu0 0
      %1239 = vmatpush.bf16.msra.mxu0 0
      %1240 = vmatpush.bf16.msra.mxu0 %v451
      %1241 = vmatpush.bf16.msra.mxu0 %v450
      %1242 = vmatmul.bf16.gmra.mxu0 %v1223
      %v1243 = vpop.f32.mrf.mxu0
      %v1244 = vadd.f32 0.0, %v1243
      %v1245 = vpop.f32.mrf.mxu0
      %v1246 = vadd.f32 0.0, %v1245
      %1247 = vmatmul.bf16.gmra.mxu0 %v1226
      %v1248 = vpop.f32.mrf.mxu0
      %v1249 = vadd.f32 0.0, %v1248
      %v1250 = vpop.f32.mrf.mxu0
      %v1251 = vadd.f32 0.0, %v1250
      %1252 = vmatmul.bf16.gmra.mxu0 %v1229
      %v1253 = vpop.f32.mrf.mxu0
      %v1254 = vadd.f32 0.0, %v1253
      %v1255 = vpop.f32.mrf.mxu0
      %v1256 = vadd.f32 0.0, %v1255
      %1257 = vmatmul.bf16.gmra.mxu0 %v1232
      %v1258 = vpop.f32.mrf.mxu0
      %v1259 = vadd.f32 0.0, %v1258
      %v1260 = vpop.f32.mrf.mxu0
      %v1261 = vadd.f32 0.0, %v1260
      %1262 = vdwg.mxu0
      %v1263 = vadd.f32 %v1156, %v1244
      %v1264 = vadd.f32 %v1158, %v1246
      %v1265 = vadd.f32 %v1161, %v1249
      %v1266 = vadd.f32 %v1163, %v1251
      %v1267 = vadd.f32 %v1166, %v1254
      %v1268 = vadd.f32 %v1168, %v1256
      %v1269 = vadd.f32 %v1171, %v1259
      %v1270 = vadd.f32 %v1173, %v1261
      %1271 = vmatpush.bf16.msra.mxu0 0
      %1272 = vmatpush.bf16.msra.mxu0 0
      %1273 = vmatpush.bf16.msra.mxu0 0
      %1274 = vmatpush.bf16.msra.mxu0 0
      %1275 = vmatpush.bf16.msra.mxu0 0
      %1276 = vmatpush.bf16.msra.mxu0 0
      %1277 = vmatpush.bf16.msra.mxu0 %v541
      %1278 = vmatpush.bf16.msra.mxu0 %v540
      %1279 = vmatmul.bf16.gmra.mxu0 %v635
      %v1280 = vpop.f32.mrf.mxu0
      %v1281 = vadd.f32 0.0, %v1280
      %v1282 = vpop.f32.mrf.mxu0
      %v1283 = vadd.f32 0.0, %v1282
      %1284 = vmatmul.bf16.gmra.mxu0 %v638
      %v1285 = vpop.f32.mrf.mxu0
      %v1286 = vadd.f32 0.0, %v1285
      %v1287 = vpop.f32.mrf.mxu0
      %v1288 = vadd.f32 0.0, %v1287
      %1289 = vmatmul.bf16.gmra.mxu0 %v641
      %v1290 = vpop.f32.mrf.mxu0
      %v1291 = vadd.f32 0.0, %v1290
      %v1292 = vpop.f32.mrf.mxu0
      %v1293 = vadd.f32 0.0, %v1292
      %1294 = vmatmul.bf16.gmra.mxu0 %v644
      %v1295 = vpop.f32.mrf.mxu0
      %v1296 = vadd.f32 0.0, %v1295
      %v1297 = vpop.f32.mrf.mxu0
      %v1298 = vadd.f32 0.0, %v1297
      %1299 = vdwg.mxu0
      %v1300 = vadd.f32 %v1263, %v1281
      %v1301 = vadd.f32 %v1264, %v1283
      %v1302 = vadd.f32 %v1265, %v1286
      %v1303 = vadd.f32 %v1266, %v1288
      %v1304 = vadd.f32 %v1267, %v1291
      %v1305 = vadd.f32 %v1268, %v1293
      %v1306 = vadd.f32 %v1269, %v1296
      %v1307 = vadd.f32 %v1270, %v1298
      %1308 = vmatpush.bf16.msra.mxu0 0
      %1309 = vmatpush.bf16.msra.mxu0 0
      %1310 = vmatpush.bf16.msra.mxu0 0
      %1311 = vmatpush.bf16.msra.mxu0 0
      %1312 = vmatpush.bf16.msra.mxu0 0
      %1313 = vmatpush.bf16.msra.mxu0 0
      %1314 = vmatpush.bf16.msra.mxu0 %v631
      %1315 = vmatpush.bf16.msra.mxu0 %v630
      %1316 = vmatmul.bf16.gmra.mxu0 %v764
      %v1317 = vpop.f32.mrf.mxu0
      %v1318 = vadd.f32 0.0, %v1317
      %v1319 = vpop.f32.mrf.mxu0
      %v1320 = vadd.f32 0.0, %v1319
      %1321 = vmatmul.bf16.gmra.mxu0 %v767
      %v1322 = vpop.f32.mrf.mxu0
      %v1323 = vadd.f32 0.0, %v1322
      %v1324 = vpop.f32.mrf.mxu0
      %v1325 = vadd.f32 0.0, %v1324
      %1326 = vmatmul.bf16.gmra.mxu0 %v770
      %v1327 = vpop.f32.mrf.mxu0
      %v1328 = vadd.f32 0.0, %v1327
      %v1329 = vpop.f32.mrf.mxu0
      %v1330 = vadd.f32 0.0, %v1329
      %1331 = vmatmul.bf16.gmra.mxu0 %v773
      %v1332 = vpop.f32.mrf.mxu0
      %v1333 = vadd.f32 0.0, %v1332
      %v1334 = vpop.f32.mrf.mxu0
      %v1335 = vadd.f32 0.0, %v1334
      %1336 = vdwg.mxu0
      %v1337 = vadd.f32 %v1300, %v1318
      %v1338 = vadd.f32 %v1301, %v1320
      %v1339 = vadd.f32 %v1302, %v1323
      %v1340 = vadd.f32 %v1303, %v1325
      %v1341 = vadd.f32 %v1304, %v1328
      %v1342 = vadd.f32 %v1305, %v1330
      %v1343 = vadd.f32 %v1306, %v1333
      %v1344 = vadd.f32 %v1307, %v1335
      %v1345 = vld [vmem:[%s593] sm:$0xf]
      %v1346 = vld [vmem:[%s593 + $0x4] sm:$0xf]
      %v1347 = vld [vmem:[%s593 + $0x8] sm:$0xf]
      %v1348 = vld [vmem:[%s593 + $0xc] sm:$0xf]
      %v1349 = vld [vmem:[%s593 + $0x10] sm:$0xf]
      %v1350 = vld [vmem:[%s593 + $0x14] sm:$0xf]
      %v1351 = vld [vmem:[%s593 + $0x18] sm:$0xf]
      %v1352 = vld [vmem:[%s593 + $0x1c] sm:$0xf]
      %v1353 = vld [vmem:[%s593 + $0x20] sm:$0x1]
      %v1363 = vunpack.c.l.b16 %v1345
      %v1364 = vunpack.c.l.b16 %v1346
      %v1365 = vunpack.c.l.b16 %v1347
      %v1366 = vunpack.c.l.b16 %v1348
      %v1367 = vunpack.c.l.b16 %v1349
      %v1368 = vunpack.c.l.b16 %v1350
      %v1369 = vunpack.c.l.b16 %v1351
      %v1370 = vunpack.c.l.b16 %v1352
      %v1371 = vunpack.c.l.b16 %v1353
      %v1372 = vpack.c.b16 %v1364, %v1363
      %v1373 = vpack.c.b16 %v1366, %v1365
      %v1374 = vpack.c.b16 %v1368, %v1367
      %v1375 = vpack.c.b16 %v1370, %v1369
      %v1376 = vpack.c.b16 %v1371, %v1371
      %v1378 = vshrl.u32 %v1372, 16
      %v1380 = vshll.u32 %v1372, 16
      %v1382 = vrot.slane %v1380, 1
      %v1383 = vor.u32 %v1378, %v1382
      %v1385 = vshll.u32 %v1373, 16
      %v1387 = vrot.slane %v1385, 1
      %v1388 = vsel %vm405, %v1383, %v1387
      %v1389 = vshrl.u32 %v1373, 16
      %v1391 = vor.u32 %v1389, %v1387
      %v1393 = vshll.u32 %v1374, 16
      %v1395 = vrot.slane %v1393, 1
      %v1396 = vsel %vm405, %v1391, %v1395
      %v1397 = vshrl.u32 %v1374, 16
      %v1399 = vor.u32 %v1397, %v1395
      %v1401 = vshll.u32 %v1375, 16
      %v1403 = vrot.slane %v1401, 1
      %v1404 = vsel %vm405, %v1399, %v1403
      %v1405 = vshrl.u32 %v1375, 16
      %v1407 = vor.u32 %v1405, %v1403
      %v1409 = vshll.u32 %v1376, 16
      %v1411 = vrot.slane %v1409, 1
      %v1412 = vsel %vm405, %v1407, %v1411
      %v1414 = vsel %vm258, %v1388, 0
      %v1417 = vsel %vm258, %v1396, 0
      %v1420 = vsel %vm258, %v1404, 0
      %v1423 = vsel %vm258, %v1412, 0
      %1425 = vmatpush.bf16.msra.mxu0 0
      %1426 = vmatpush.bf16.msra.mxu0 0
      %1427 = vmatpush.bf16.msra.mxu0 0
      %1428 = vmatpush.bf16.msra.mxu0 0
      %1429 = vmatpush.bf16.msra.mxu0 0
      %1430 = vmatpush.bf16.msra.mxu0 0
      %1431 = vmatpush.bf16.msra.mxu0 %v760
      %1432 = vmatpush.bf16.msra.mxu0 %v759
      %1433 = vmatmul.bf16.gmra.mxu0 %v1414
      %v1434 = vpop.f32.mrf.mxu0
      %v1435 = vadd.f32 0.0, %v1434
      %v1436 = vpop.f32.mrf.mxu0
      %v1437 = vadd.f32 0.0, %v1436
      %1438 = vmatmul.bf16.gmra.mxu0 %v1417
      %v1439 = vpop.f32.mrf.mxu0
      %v1440 = vadd.f32 0.0, %v1439
      %v1441 = vpop.f32.mrf.mxu0
      %v1442 = vadd.f32 0.0, %v1441
      %1443 = vmatmul.bf16.gmra.mxu0 %v1420
      %v1444 = vpop.f32.mrf.mxu0
      %v1445 = vadd.f32 0.0, %v1444
      %v1446 = vpop.f32.mrf.mxu0
      %v1447 = vadd.f32 0.0, %v1446
      %1448 = vmatmul.bf16.gmra.mxu0 %v1423
      %v1449 = vpop.f32.mrf.mxu0
      %v1450 = vadd.f32 0.0, %v1449
      %v1451 = vpop.f32.mrf.mxu0
      %v1452 = vadd.f32 0.0, %v1451
      %1453 = vdwg.mxu0
      %v1454 = vadd.f32 %v1337, %v1435
      %v1455 = vadd.f32 %v1338, %v1437
      %v1456 = vadd.f32 %v1339, %v1440
      %v1457 = vadd.f32 %v1340, %v1442
      %v1458 = vadd.f32 %v1341, %v1445
      %v1459 = vadd.f32 %v1342, %v1447
      %v1460 = vadd.f32 %v1343, %v1450
      %v1461 = vadd.f32 %v1344, %v1452
      %1462 = vmatpush.bf16.msra.mxu0 0
      %1463 = vmatpush.bf16.msra.mxu0 0
      %1464 = vmatpush.bf16.msra.mxu0 0
      %1465 = vmatpush.bf16.msra.mxu0 0
      %1466 = vmatpush.bf16.msra.mxu0 0
      %1467 = vmatpush.bf16.msra.mxu0 0
      %1468 = vmatpush.bf16.msra.mxu0 %v828
      %1469 = vmatpush.bf16.msra.mxu0 %v827
      %1470 = vmatmul.bf16.gmra.mxu0 %v921
      %v1471 = vpop.f32.mrf.mxu0
      %v1472 = vadd.f32 0.0, %v1471
      %v1473 = vpop.f32.mrf.mxu0
      %v1474 = vadd.f32 0.0, %v1473
      %1475 = vmatmul.bf16.gmra.mxu0 %v924
      %v1476 = vpop.f32.mrf.mxu0
      %v1477 = vadd.f32 0.0, %v1476
      %v1478 = vpop.f32.mrf.mxu0
      %v1479 = vadd.f32 0.0, %v1478
      %1480 = vmatmul.bf16.gmra.mxu0 %v927
      %v1481 = vpop.f32.mrf.mxu0
      %v1482 = vadd.f32 0.0, %v1481
      %v1483 = vpop.f32.mrf.mxu0
      %v1484 = vadd.f32 0.0, %v1483
      %1485 = vmatmul.bf16.gmra.mxu0 %v930
      %v1486 = vpop.f32.mrf.mxu0
      %v1487 = vadd.f32 0.0, %v1486
      %v1488 = vpop.f32.mrf.mxu0
      %v1489 = vadd.f32 0.0, %v1488
      %1490 = vdwg.mxu0
      %v1491 = vadd.f32 %v1454, %v1472
      %v1492 = vadd.f32 %v1455, %v1474
      %v1493 = vadd.f32 %v1456, %v1477
      %v1494 = vadd.f32 %v1457, %v1479
      %v1495 = vadd.f32 %v1458, %v1482
      %v1496 = vadd.f32 %v1459, %v1484
      %v1497 = vadd.f32 %v1460, %v1487
      %v1498 = vadd.f32 %v1461, %v1489
      %1499 = vmatpush.bf16.msra.mxu0 0
      %1500 = vmatpush.bf16.msra.mxu0 0
      %1501 = vmatpush.bf16.msra.mxu0 0
      %1502 = vmatpush.bf16.msra.mxu0 0
      %1503 = vmatpush.bf16.msra.mxu0 0
      %1504 = vmatpush.bf16.msra.mxu0 0
      %1505 = vmatpush.bf16.msra.mxu0 %v917
      %1506 = vmatpush.bf16.msra.mxu0 %v916
      %1507 = vmatmul.bf16.gmra.mxu0 %v1050
      %v1508 = vpop.f32.mrf.mxu0
      %v1509 = vadd.f32 0.0, %v1508
      %v1510 = vpop.f32.mrf.mxu0
      %v1511 = vadd.f32 0.0, %v1510
      %1512 = vmatmul.bf16.gmra.mxu0 %v1053
      %v1513 = vpop.f32.mrf.mxu0
      %v1514 = vadd.f32 0.0, %v1513
      %v1515 = vpop.f32.mrf.mxu0
      %v1516 = vadd.f32 0.0, %v1515
      %1517 = vmatmul.bf16.gmra.mxu0 %v1056
      %v1518 = vpop.f32.mrf.mxu0
      %v1519 = vadd.f32 0.0, %v1518
      %v1520 = vpop.f32.mrf.mxu0
      %v1521 = vadd.f32 0.0, %v1520
      %1522 = vmatmul.bf16.gmra.mxu0 %v1059
      %v1523 = vpop.f32.mrf.mxu0
      %v1524 = vadd.f32 0.0, %v1523
      %v1525 = vpop.f32.mrf.mxu0
      %v1526 = vadd.f32 0.0, %v1525
      %1527 = vdwg.mxu0
      %v1528 = vadd.f32 %v1491, %v1509
      %v1529 = vadd.f32 %v1492, %v1511
      %v1530 = vadd.f32 %v1493, %v1514
      %v1531 = vadd.f32 %v1494, %v1516
      %v1532 = vadd.f32 %v1495, %v1519
      %v1533 = vadd.f32 %v1496, %v1521
      %v1534 = vadd.f32 %v1497, %v1524
      %v1535 = vadd.f32 %v1498, %v1526
      %v1536 = vld [vmem:[%s217 + $0x4] sm:$0xf]
      %v1537 = vld [vmem:[%s217 + $0x8] sm:$0xf]
      %v1538 = vld [vmem:[%s217 + $0xc] sm:$0xf]
      %v1539 = vld [vmem:[%s217 + $0x10] sm:$0xf]
      %v1540 = vld [vmem:[%s217 + $0x14] sm:$0xf]
      %v1541 = vld [vmem:[%s217 + $0x18] sm:$0xf]
      %v1542 = vld [vmem:[%s217 + $0x1c] sm:$0xf]
      %v1543 = vld [vmem:[%s217 + $0x20] sm:$0xf]
      %v1544 = vld [vmem:[%s217 + $0x24] sm:$0x1]
      %v1554 = vunpack.c.l.b16 %v1536
      %v1555 = vunpack.c.l.b16 %v1537
      %v1556 = vunpack.c.l.b16 %v1538
      %v1557 = vunpack.c.l.b16 %v1539
      %v1558 = vunpack.c.l.b16 %v1540
      %v1559 = vunpack.c.l.b16 %v1541
      %v1560 = vunpack.c.l.b16 %v1542
      %v1561 = vunpack.c.l.b16 %v1543
      %v1562 = vunpack.c.l.b16 %v1544
      %v1563 = vpack.c.b16 %v1555, %v1554
      %v1564 = vpack.c.b16 %v1557, %v1556
      %v1565 = vpack.c.b16 %v1559, %v1558
      %v1566 = vpack.c.b16 %v1561, %v1560
      %v1567 = vpack.c.b16 %v1562, %v1562
      %v1569 = vshrl.u32 %v1563, 16
      %v1571 = vshll.u32 %v1563, 16
      %v1573 = vrot.slane %v1571, 1
      %v1574 = vor.u32 %v1569, %v1573
      %v1576 = vshll.u32 %v1564, 16
      %v1578 = vrot.slane %v1576, 1
      %v1579 = vsel %vm405, %v1574, %v1578
      %v1580 = vshrl.u32 %v1564, 16
      %v1582 = vor.u32 %v1580, %v1578
      %v1584 = vshll.u32 %v1565, 16
      %v1586 = vrot.slane %v1584, 1
      %v1587 = vsel %vm405, %v1582, %v1586
      %v1588 = vshrl.u32 %v1565, 16
      %v1590 = vor.u32 %v1588, %v1586
      %v1592 = vshll.u32 %v1566, 16
      %v1594 = vrot.slane %v1592, 1
      %v1595 = vsel %vm405, %v1590, %v1594
      %v1596 = vshrl.u32 %v1566, 16
      %v1598 = vor.u32 %v1596, %v1594
      %v1600 = vshll.u32 %v1567, 16
      %v1602 = vrot.slane %v1600, 1
      %v1603 = vsel %vm405, %v1598, %v1602
      %v1605 = vsel %vm258, %v1579, 0
      %v1608 = vsel %vm258, %v1587, 0
      %v1611 = vsel %vm258, %v1595, 0
      %v1614 = vsel %vm258, %v1603, 0
      %1616 = vmatpush.bf16.msra.mxu0 0
      %1617 = vmatpush.bf16.msra.mxu0 0
      %1618 = vmatpush.bf16.msra.mxu0 0
      %1619 = vmatpush.bf16.msra.mxu0 0
      %1620 = vmatpush.bf16.msra.mxu0 0
      %1621 = vmatpush.bf16.msra.mxu0 0
      %1622 = vmatpush.bf16.msra.mxu0 %v1046
      %1623 = vmatpush.bf16.msra.mxu0 %v1045
      %1624 = vmatmul.bf16.gmra.mxu0 %v1605
      %v1625 = vpop.f32.mrf.mxu0
      %v1626 = vadd.f32 0.0, %v1625
      %v1627 = vpop.f32.mrf.mxu0
      %v1628 = vadd.f32 0.0, %v1627
      %1629 = vmatmul.bf16.gmra.mxu0 %v1608
      %v1630 = vpop.f32.mrf.mxu0
      %v1631 = vadd.f32 0.0, %v1630
      %v1632 = vpop.f32.mrf.mxu0
      %v1633 = vadd.f32 0.0, %v1632
      %1634 = vmatmul.bf16.gmra.mxu0 %v1611
      %v1635 = vpop.f32.mrf.mxu0
      %v1636 = vadd.f32 0.0, %v1635
      %v1637 = vpop.f32.mrf.mxu0
      %v1638 = vadd.f32 0.0, %v1637
      %1639 = vmatmul.bf16.gmra.mxu0 %v1614
      %v1640 = vpop.f32.mrf.mxu0
      %v1641 = vadd.f32 0.0, %v1640
      %v1642 = vpop.f32.mrf.mxu0
      %v1643 = vadd.f32 0.0, %v1642
      %1644 = vdwg.mxu0
      %v1645 = vadd.f32 %v1528, %v1626
      %v1646 = vadd.f32 %v1529, %v1628
      %v1647 = vadd.f32 %v1530, %v1631
      %v1648 = vadd.f32 %v1531, %v1633
      %v1649 = vadd.f32 %v1532, %v1636
      %v1650 = vadd.f32 %v1533, %v1638
      %v1651 = vadd.f32 %v1534, %v1641
      %v1652 = vadd.f32 %v1535, %v1643
      %v1653 = vadd.f32 %v1645, %v1099
      %v1654 = vadd.f32 %v1646, %v1099
      %v1655 = vadd.f32 %v1647, %v1099
      %v1656 = vadd.f32 %v1648, %v1099
      %v1657 = vadd.f32 %v1649, %v1099
      %v1658 = vadd.f32 %v1650, %v1099
      %v1659 = vadd.f32 %v1651, %v1099
      %v1660 = vadd.f32 %v1652, %v1099
      %v1661 = vmax.f32 %v1653, 0.0
      %v1662 = vmax.f32 %v1654, 0.0
      %v1663 = vmax.f32 %v1655, 0.0
      %v1664 = vmax.f32 %v1656, 0.0
      %v1665 = vmax.f32 %v1657, 0.0
      %v1666 = vmax.f32 %v1658, 0.0
      %v1667 = vmax.f32 %v1659, 0.0
      %v1668 = vmax.f32 %v1660, 0.0
      %v1669 = vmax.f32 %v1109, %v1661
      %v1670 = vmax.f32 %v1110, %v1662
      %v1671 = vmax.f32 %v1111, %v1663
      %v1672 = vmax.f32 %v1112, %v1664
      %v1673 = vmax.f32 %v1113, %v1665
      %v1674 = vmax.f32 %v1114, %v1666
      %v1675 = vmax.f32 %v1115, %v1667
      %v1676 = vmax.f32 %v1116, %v1668
      %1677 = vmatpush.bf16.msra.mxu0 0
      %1678 = vmatpush.bf16.msra.mxu0 0
      %1679 = vmatpush.bf16.msra.mxu0 0
      %1680 = vmatpush.bf16.msra.mxu0 0
      %1681 = vmatpush.bf16.msra.mxu0 0
      %1682 = vmatpush.bf16.msra.mxu0 0
      %1683 = vmatpush.bf16.msra.mxu0 %v255
      %1684 = vmatpush.bf16.msra.mxu0 %v254
      %1685 = vmatmul.bf16.gmra.mxu0 %v635
      %v1686 = vpop.f32.mrf.mxu0
      %v1687 = vadd.f32 0.0, %v1686
      %v1688 = vpop.f32.mrf.mxu0
      %v1689 = vadd.f32 0.0, %v1688
      %1690 = vmatmul.bf16.gmra.mxu0 %v638
      %v1691 = vpop.f32.mrf.mxu0
      %v1692 = vadd.f32 0.0, %v1691
      %v1693 = vpop.f32.mrf.mxu0
      %v1694 = vadd.f32 0.0, %v1693
      %1695 = vmatmul.bf16.gmra.mxu0 %v641
      %v1696 = vpop.f32.mrf.mxu0
      %v1697 = vadd.f32 0.0, %v1696
      %v1698 = vpop.f32.mrf.mxu0
      %v1699 = vadd.f32 0.0, %v1698
      %1700 = vmatmul.bf16.gmra.mxu0 %v644
      %v1701 = vpop.f32.mrf.mxu0
      %v1702 = vadd.f32 0.0, %v1701
      %v1703 = vpop.f32.mrf.mxu0
      %v1704 = vadd.f32 0.0, %v1703
      %1705 = vdwg.mxu0
      %1706 = vmatpush.bf16.msra.mxu0 0
      %1707 = vmatpush.bf16.msra.mxu0 0
      %1708 = vmatpush.bf16.msra.mxu0 0
      %1709 = vmatpush.bf16.msra.mxu0 0
      %1710 = vmatpush.bf16.msra.mxu0 0
      %1711 = vmatpush.bf16.msra.mxu0 0
      %1712 = vmatpush.bf16.msra.mxu0 %v329
      %1713 = vmatpush.bf16.msra.mxu0 %v328
      %1714 = vmatmul.bf16.gmra.mxu0 %v545
      %v1715 = vpop.f32.mrf.mxu0
      %v1716 = vadd.f32 %v1687, %v1715
      %v1717 = vpop.f32.mrf.mxu0
      %v1718 = vadd.f32 %v1689, %v1717
      %1719 = vmatmul.bf16.gmra.mxu0 %v548
      %v1720 = vpop.f32.mrf.mxu0
      %v1721 = vadd.f32 %v1692, %v1720
      %v1722 = vpop.f32.mrf.mxu0
      %v1723 = vadd.f32 %v1694, %v1722
      %1724 = vmatmul.bf16.gmra.mxu0 %v551
      %v1725 = vpop.f32.mrf.mxu0
      %v1726 = vadd.f32 %v1697, %v1725
      %v1727 = vpop.f32.mrf.mxu0
      %v1728 = vadd.f32 %v1699, %v1727
      %1729 = vmatmul.bf16.gmra.mxu0 %v554
      %v1730 = vpop.f32.mrf.mxu0
      %v1731 = vadd.f32 %v1702, %v1730
      %v1732 = vpop.f32.mrf.mxu0
      %v1733 = vadd.f32 %v1704, %v1732
      %1734 = vdwg.mxu0
      %1735 = vmatpush.bf16.msra.mxu0 0
      %1736 = vmatpush.bf16.msra.mxu0 0
      %1737 = vmatpush.bf16.msra.mxu0 0
      %1738 = vmatpush.bf16.msra.mxu0 0
      %1739 = vmatpush.bf16.msra.mxu0 0
      %1740 = vmatpush.bf16.msra.mxu0 0
      %1741 = vmatpush.bf16.msra.mxu0 %v451
      %1742 = vmatpush.bf16.msra.mxu0 %v450
      %1743 = vmatmul.bf16.gmra.mxu0 %v764
      %v1744 = vpop.f32.mrf.mxu0
      %v1745 = vadd.f32 0.0, %v1744
      %v1746 = vpop.f32.mrf.mxu0
      %v1747 = vadd.f32 0.0, %v1746
      %1748 = vmatmul.bf16.gmra.mxu0 %v767
      %v1749 = vpop.f32.mrf.mxu0
      %v1750 = vadd.f32 0.0, %v1749
      %v1751 = vpop.f32.mrf.mxu0
      %v1752 = vadd.f32 0.0, %v1751
      %1753 = vmatmul.bf16.gmra.mxu0 %v770
      %v1754 = vpop.f32.mrf.mxu0
      %v1755 = vadd.f32 0.0, %v1754
      %v1756 = vpop.f32.mrf.mxu0
      %v1757 = vadd.f32 0.0, %v1756
      %1758 = vmatmul.bf16.gmra.mxu0 %v773
      %v1759 = vpop.f32.mrf.mxu0
      %v1760 = vadd.f32 0.0, %v1759
      %v1761 = vpop.f32.mrf.mxu0
      %v1762 = vadd.f32 0.0, %v1761
      %1763 = vdwg.mxu0
      %v1764 = vadd.f32 %v1716, %v1745
      %v1765 = vadd.f32 %v1718, %v1747
      %v1766 = vadd.f32 %v1721, %v1750
      %v1767 = vadd.f32 %v1723, %v1752
      %v1768 = vadd.f32 %v1726, %v1755
      %v1769 = vadd.f32 %v1728, %v1757
      %v1770 = vadd.f32 %v1731, %v1760
      %v1771 = vadd.f32 %v1733, %v1762
      %1772 = vmatpush.bf16.msra.mxu0 0
      %1773 = vmatpush.bf16.msra.mxu0 0
      %1774 = vmatpush.bf16.msra.mxu0 0
      %1775 = vmatpush.bf16.msra.mxu0 0
      %1776 = vmatpush.bf16.msra.mxu0 0
      %1777 = vmatpush.bf16.msra.mxu0 0
      %1778 = vmatpush.bf16.msra.mxu0 %v541
      %1779 = vmatpush.bf16.msra.mxu0 %v540
      %1780 = vmatmul.bf16.gmra.mxu0 %v832
      %v1781 = vpop.f32.mrf.mxu0
      %v1782 = vadd.f32 0.0, %v1781
      %v1783 = vpop.f32.mrf.mxu0
      %v1784 = vadd.f32 0.0, %v1783
      %1785 = vmatmul.bf16.gmra.mxu0 %v835
      %v1786 = vpop.f32.mrf.mxu0
      %v1787 = vadd.f32 0.0, %v1786
      %v1788 = vpop.f32.mrf.mxu0
      %v1789 = vadd.f32 0.0, %v1788
      %1790 = vmatmul.bf16.gmra.mxu0 %v838
      %v1791 = vpop.f32.mrf.mxu0
      %v1792 = vadd.f32 0.0, %v1791
      %v1793 = vpop.f32.mrf.mxu0
      %v1794 = vadd.f32 0.0, %v1793
      %1795 = vmatmul.bf16.gmra.mxu0 %v841
      %v1796 = vpop.f32.mrf.mxu0
      %v1797 = vadd.f32 0.0, %v1796
      %v1798 = vpop.f32.mrf.mxu0
      %v1799 = vadd.f32 0.0, %v1798
      %1800 = vdwg.mxu0
      %v1801 = vadd.f32 %v1764, %v1782
      %v1802 = vadd.f32 %v1765, %v1784
      %v1803 = vadd.f32 %v1766, %v1787
      %v1804 = vadd.f32 %v1767, %v1789
      %v1805 = vadd.f32 %v1768, %v1792
      %v1806 = vadd.f32 %v1769, %v1794
      %v1807 = vadd.f32 %v1770, %v1797
      %v1808 = vadd.f32 %v1771, %v1799
      %1809 = vmatpush.bf16.msra.mxu0 0
      %1810 = vmatpush.bf16.msra.mxu0 0
      %1811 = vmatpush.bf16.msra.mxu0 0
      %1812 = vmatpush.bf16.msra.mxu0 0
      %1813 = vmatpush.bf16.msra.mxu0 0
      %1814 = vmatpush.bf16.msra.mxu0 0
      %1815 = vmatpush.bf16.msra.mxu0 %v631
      %1816 = vmatpush.bf16.msra.mxu0 %v630
      %1817 = vmatmul.bf16.gmra.mxu0 %v921
      %v1818 = vpop.f32.mrf.mxu0
      %v1819 = vadd.f32 0.0, %v1818
      %v1820 = vpop.f32.mrf.mxu0
      %v1821 = vadd.f32 0.0, %v1820
      %1822 = vmatmul.bf16.gmra.mxu0 %v924
      %v1823 = vpop.f32.mrf.mxu0
      %v1824 = vadd.f32 0.0, %v1823
      %v1825 = vpop.f32.mrf.mxu0
      %v1826 = vadd.f32 0.0, %v1825
      %1827 = vmatmul.bf16.gmra.mxu0 %v927
      %v1828 = vpop.f32.mrf.mxu0
      %v1829 = vadd.f32 0.0, %v1828
      %v1830 = vpop.f32.mrf.mxu0
      %v1831 = vadd.f32 0.0, %v1830
      %1832 = vmatmul.bf16.gmra.mxu0 %v930
      %v1833 = vpop.f32.mrf.mxu0
      %v1834 = vadd.f32 0.0, %v1833
      %v1835 = vpop.f32.mrf.mxu0
      %v1836 = vadd.f32 0.0, %v1835
      %1837 = vdwg.mxu0
      %v1838 = vadd.f32 %v1801, %v1819
      %v1839 = vadd.f32 %v1802, %v1821
      %v1840 = vadd.f32 %v1803, %v1824
      %v1841 = vadd.f32 %v1804, %v1826
      %v1842 = vadd.f32 %v1805, %v1829
      %v1843 = vadd.f32 %v1806, %v1831
      %v1844 = vadd.f32 %v1807, %v1834
      %v1845 = vadd.f32 %v1808, %v1836
      %1846 = vmatpush.bf16.msra.mxu0 0
      %1847 = vmatpush.bf16.msra.mxu0 0
      %1848 = vmatpush.bf16.msra.mxu0 0
      %1849 = vmatpush.bf16.msra.mxu0 0
      %1850 = vmatpush.bf16.msra.mxu0 0
      %1851 = vmatpush.bf16.msra.mxu0 0
      %1852 = vmatpush.bf16.msra.mxu0 %v760
      %1853 = vmatpush.bf16.msra.mxu0 %v759
      %1854 = vmatmul.bf16.gmra.mxu0 %v1050
      %v1855 = vpop.f32.mrf.mxu0
      %v1856 = vadd.f32 0.0, %v1855
      %v1857 = vpop.f32.mrf.mxu0
      %v1858 = vadd.f32 0.0, %v1857
      %1859 = vmatmul.bf16.gmra.mxu0 %v1053
      %v1860 = vpop.f32.mrf.mxu0
      %v1861 = vadd.f32 0.0, %v1860
      %v1862 = vpop.f32.mrf.mxu0
      %v1863 = vadd.f32 0.0, %v1862
      %1864 = vmatmul.bf16.gmra.mxu0 %v1056
      %v1865 = vpop.f32.mrf.mxu0
      %v1866 = vadd.f32 0.0, %v1865
      %v1867 = vpop.f32.mrf.mxu0
      %v1868 = vadd.f32 0.0, %v1867
      %1869 = vmatmul.bf16.gmra.mxu0 %v1059
      %v1870 = vpop.f32.mrf.mxu0
      %v1871 = vadd.f32 0.0, %v1870
      %v1872 = vpop.f32.mrf.mxu0
      %v1873 = vadd.f32 0.0, %v1872
      %1874 = vdwg.mxu0
      %v1875 = vadd.f32 %v1838, %v1856
      %v1876 = vadd.f32 %v1839, %v1858
      %v1877 = vadd.f32 %v1840, %v1861
      %v1878 = vadd.f32 %v1841, %v1863
      %v1879 = vadd.f32 %v1842, %v1866
      %v1880 = vadd.f32 %v1843, %v1868
      %v1881 = vadd.f32 %v1844, %v1871
      %v1882 = vadd.f32 %v1845, %v1873
      %v1883 = vld [vmem:[%s503 + $0x20] sm:$0xf]
      %v1885 = vunpack.c.l.b16 %v1883
      %v1886 = vpack.c.b16 %v703, %v702
      %v1887 = vpack.c.b16 %v705, %v704
      %v1888 = vpack.c.b16 %v707, %v706
      %v1889 = vpack.c.b16 %v1885, %v708
      %v1891 = vsel %vm258, %v1886, 0
      %v1894 = vsel %vm258, %v1887, 0
      %v1897 = vsel %vm258, %v1888, 0
      %v1900 = vsel %vm258, %v1889, 0
      %1902 = vmatpush.bf16.msra.mxu0 0
      %1903 = vmatpush.bf16.msra.mxu0 0
      %1904 = vmatpush.bf16.msra.mxu0 0
      %1905 = vmatpush.bf16.msra.mxu0 0
      %1906 = vmatpush.bf16.msra.mxu0 0
      %1907 = vmatpush.bf16.msra.mxu0 0
      %1908 = vmatpush.bf16.msra.mxu0 %v828
      %1909 = vmatpush.bf16.msra.mxu0 %v827
      %1910 = vmatmul.bf16.gmra.mxu0 %v1891
      %v1911 = vpop.f32.mrf.mxu0
      %v1912 = vadd.f32 0.0, %v1911
      %v1913 = vpop.f32.mrf.mxu0
      %v1914 = vadd.f32 0.0, %v1913
      %1915 = vmatmul.bf16.gmra.mxu0 %v1894
      %v1916 = vpop.f32.mrf.mxu0
      %v1917 = vadd.f32 0.0, %v1916
      %v1918 = vpop.f32.mrf.mxu0
      %v1919 = vadd.f32 0.0, %v1918
      %1920 = vmatmul.bf16.gmra.mxu0 %v1897
      %v1921 = vpop.f32.mrf.mxu0
      %v1922 = vadd.f32 0.0, %v1921
      %v1923 = vpop.f32.mrf.mxu0
      %v1924 = vadd.f32 0.0, %v1923
      %1925 = vmatmul.bf16.gmra.mxu0 %v1900
      %v1926 = vpop.f32.mrf.mxu0
      %v1927 = vadd.f32 0.0, %v1926
      %v1928 = vpop.f32.mrf.mxu0
      %v1929 = vadd.f32 0.0, %v1928
      %1930 = vdwg.mxu0
      %v1931 = vadd.f32 %v1875, %v1912
      %v1932 = vadd.f32 %v1876, %v1914
      %v1933 = vadd.f32 %v1877, %v1917
      %v1934 = vadd.f32 %v1878, %v1919
      %v1935 = vadd.f32 %v1879, %v1922
      %v1936 = vadd.f32 %v1880, %v1924
      %v1937 = vadd.f32 %v1881, %v1927
      %v1938 = vadd.f32 %v1882, %v1929
      %v1939 = vld [vmem:[%s593 + $0x20] sm:$0xf]
      %v1941 = vunpack.c.l.b16 %v1939
      %v1942 = vpack.c.b16 %v1365, %v1364
      %v1943 = vpack.c.b16 %v1367, %v1366
      %v1944 = vpack.c.b16 %v1369, %v1368
      %v1945 = vpack.c.b16 %v1941, %v1370
      %v1947 = vsel %vm258, %v1942, 0
      %v1950 = vsel %vm258, %v1943, 0
      %v1953 = vsel %vm258, %v1944, 0
      %v1956 = vsel %vm258, %v1945, 0
      %1958 = vmatpush.bf16.msra.mxu0 0
      %1959 = vmatpush.bf16.msra.mxu0 0
      %1960 = vmatpush.bf16.msra.mxu0 0
      %1961 = vmatpush.bf16.msra.mxu0 0
      %1962 = vmatpush.bf16.msra.mxu0 0
      %1963 = vmatpush.bf16.msra.mxu0 0
      %1964 = vmatpush.bf16.msra.mxu0 %v917
      %1965 = vmatpush.bf16.msra.mxu0 %v916
      %1966 = vmatmul.bf16.gmra.mxu0 %v1947
      %v1967 = vpop.f32.mrf.mxu0
      %v1968 = vadd.f32 0.0, %v1967
      %v1969 = vpop.f32.mrf.mxu0
      %v1970 = vadd.f32 0.0, %v1969
      %1971 = vmatmul.bf16.gmra.mxu0 %v1950
      %v1972 = vpop.f32.mrf.mxu0
      %v1973 = vadd.f32 0.0, %v1972
      %v1974 = vpop.f32.mrf.mxu0
      %v1975 = vadd.f32 0.0, %v1974
      %1976 = vmatmul.bf16.gmra.mxu0 %v1953
      %v1977 = vpop.f32.mrf.mxu0
      %v1978 = vadd.f32 0.0, %v1977
      %v1979 = vpop.f32.mrf.mxu0
      %v1980 = vadd.f32 0.0, %v1979
      %1981 = vmatmul.bf16.gmra.mxu0 %v1956
      %v1982 = vpop.f32.mrf.mxu0
      %v1983 = vadd.f32 0.0, %v1982
      %v1984 = vpop.f32.mrf.mxu0
      %v1985 = vadd.f32 0.0, %v1984
      %1986 = vdwg.mxu0
      %v1987 = vadd.f32 %v1931, %v1968
      %v1988 = vadd.f32 %v1932, %v1970
      %v1989 = vadd.f32 %v1933, %v1973
      %v1990 = vadd.f32 %v1934, %v1975
      %v1991 = vadd.f32 %v1935, %v1978
      %v1992 = vadd.f32 %v1936, %v1980
      %v1993 = vadd.f32 %v1937, %v1983
      %v1994 = vadd.f32 %v1938, %v1985
      %v1995 = vld [vmem:[%s503 + $0x4] sm:$0xf]
      %v1996 = vld [vmem:[%s503 + $0x8] sm:$0xf]
      %v1997 = vld [vmem:[%s503 + $0xc] sm:$0xf]
      %v1998 = vld [vmem:[%s503 + $0x10] sm:$0xf]
      %v1999 = vld [vmem:[%s503 + $0x14] sm:$0xf]
      %v2000 = vld [vmem:[%s503 + $0x18] sm:$0xf]
      %v2001 = vld [vmem:[%s503 + $0x1c] sm:$0xf]
      %v2002 = vld [vmem:[%s503 + $0x20] sm:$0xf]
      %v2003 = vld [vmem:[%s503 + $0x24] sm:$0x1]
      %v2013 = vunpack.c.l.b16 %v1995
      %v2014 = vunpack.c.l.b16 %v1996
      %v2015 = vunpack.c.l.b16 %v1997
      %v2016 = vunpack.c.l.b16 %v1998
      %v2017 = vunpack.c.l.b16 %v1999
      %v2018 = vunpack.c.l.b16 %v2000
      %v2019 = vunpack.c.l.b16 %v2001
      %v2020 = vunpack.c.l.b16 %v2002
      %v2021 = vunpack.c.l.b16 %v2003
      %v2022 = vpack.c.b16 %v2014, %v2013
      %v2023 = vpack.c.b16 %v2016, %v2015
      %v2024 = vpack.c.b16 %v2018, %v2017
      %v2025 = vpack.c.b16 %v2020, %v2019
      %v2026 = vpack.c.b16 %v2021, %v2021
      %v2028 = vshrl.u32 %v2022, 16
      %v2030 = vshll.u32 %v2022, 16
      %v2032 = vrot.slane %v2030, 1
      %v2033 = vor.u32 %v2028, %v2032
      %v2035 = vshll.u32 %v2023, 16
      %v2037 = vrot.slane %v2035, 1
      %v2038 = vsel %vm405, %v2033, %v2037
      %v2039 = vshrl.u32 %v2023, 16
      %v2041 = vor.u32 %v2039, %v2037
      %v2043 = vshll.u32 %v2024, 16
      %v2045 = vrot.slane %v2043, 1
      %v2046 = vsel %vm405, %v2041, %v2045
      %v2047 = vshrl.u32 %v2024, 16
      %v2049 = vor.u32 %v2047, %v2045
      %v2051 = vshll.u32 %v2025, 16
      %v2053 = vrot.slane %v2051, 1
      %v2054 = vsel %vm405, %v2049, %v2053
      %v2055 = vshrl.u32 %v2025, 16
      %v2057 = vor.u32 %v2055, %v2053
      %v2059 = vshll.u32 %v2026, 16
      %v2061 = vrot.slane %v2059, 1
      %v2062 = vsel %vm405, %v2057, %v2061
      %v2064 = vsel %vm258, %v2038, 0
      %v2067 = vsel %vm258, %v2046, 0
      %v2070 = vsel %vm258, %v2054, 0
      %v2073 = vsel %vm258, %v2062, 0
      %2075 = vmatpush.bf16.msra.mxu0 0
      %2076 = vmatpush.bf16.msra.mxu0 0
      %2077 = vmatpush.bf16.msra.mxu0 0
      %2078 = vmatpush.bf16.msra.mxu0 0
      %2079 = vmatpush.bf16.msra.mxu0 0
      %2080 = vmatpush.bf16.msra.mxu0 0
      %2081 = vmatpush.bf16.msra.mxu0 %v1046
      %2082 = vmatpush.bf16.msra.mxu0 %v1045
      %2083 = vmatmul.bf16.gmra.mxu0 %v2064
      %v2084 = vpop.f32.mrf.mxu0
      %v2085 = vadd.f32 0.0, %v2084
      %v2086 = vpop.f32.mrf.mxu0
      %v2087 = vadd.f32 0.0, %v2086
      %2088 = vmatmul.bf16.gmra.mxu0 %v2067
      %v2089 = vpop.f32.mrf.mxu0
      %v2090 = vadd.f32 0.0, %v2089
      %v2091 = vpop.f32.mrf.mxu0
      %v2092 = vadd.f32 0.0, %v2091
      %2093 = vmatmul.bf16.gmra.mxu0 %v2070
      %v2094 = vpop.f32.mrf.mxu0
      %v2095 = vadd.f32 0.0, %v2094
      %v2096 = vpop.f32.mrf.mxu0
      %v2097 = vadd.f32 0.0, %v2096
      %2098 = vmatmul.bf16.gmra.mxu0 %v2073
      %v2099 = vpop.f32.mrf.mxu0
      %v2100 = vadd.f32 0.0, %v2099
      %v2101 = vpop.f32.mrf.mxu0
      %v2102 = vadd.f32 0.0, %v2101
      %2103 = vdwg.mxu0
      %v2104 = vadd.f32 %v1987, %v2085
      %v2105 = vadd.f32 %v1988, %v2087
      %v2106 = vadd.f32 %v1989, %v2090
      %v2107 = vadd.f32 %v1990, %v2092
      %v2108 = vadd.f32 %v1991, %v2095
      %v2109 = vadd.f32 %v1992, %v2097
      %v2110 = vadd.f32 %v1993, %v2100
      %v2111 = vadd.f32 %v1994, %v2102
      %v2112 = vadd.f32 %v2104, %v1099
      %v2113 = vadd.f32 %v2105, %v1099
      %v2114 = vadd.f32 %v2106, %v1099
      %v2115 = vadd.f32 %v2107, %v1099
      %v2116 = vadd.f32 %v2108, %v1099
      %v2117 = vadd.f32 %v2109, %v1099
      %v2118 = vadd.f32 %v2110, %v1099
      %v2119 = vadd.f32 %v2111, %v1099
      %v2120 = vmax.f32 %v2112, 0.0
      %v2121 = vmax.f32 %v2113, 0.0
      %v2122 = vmax.f32 %v2114, 0.0
      %v2123 = vmax.f32 %v2115, 0.0
      %v2124 = vmax.f32 %v2116, 0.0
      %v2125 = vmax.f32 %v2117, 0.0
      %v2126 = vmax.f32 %v2118, 0.0
      %v2127 = vmax.f32 %v2119, 0.0
      %v2128 = vmax.f32 %v1669, %v2120
      %v2129 = vmax.f32 %v1670, %v2121
      %v2130 = vmax.f32 %v1671, %v2122
      %v2131 = vmax.f32 %v1672, %v2123
      %v2132 = vmax.f32 %v1673, %v2124
      %v2133 = vmax.f32 %v1674, %v2125
      %v2134 = vmax.f32 %v1675, %v2126
      %v2135 = vmax.f32 %v1676, %v2127
      %2136 = vmatpush.bf16.msra.mxu0 0
      %2137 = vmatpush.bf16.msra.mxu0 0
      %2138 = vmatpush.bf16.msra.mxu0 0
      %2139 = vmatpush.bf16.msra.mxu0 0
      %2140 = vmatpush.bf16.msra.mxu0 0
      %2141 = vmatpush.bf16.msra.mxu0 0
      %2142 = vmatpush.bf16.msra.mxu0 %v255
      %2143 = vmatpush.bf16.msra.mxu0 %v254
      %2144 = vmatmul.bf16.gmra.mxu0 %v764
      %v2145 = vpop.f32.mrf.mxu0
      %v2146 = vadd.f32 0.0, %v2145
      %v2147 = vpop.f32.mrf.mxu0
      %v2148 = vadd.f32 0.0, %v2147
      %2149 = vmatmul.bf16.gmra.mxu0 %v767
      %v2150 = vpop.f32.mrf.mxu0
      %v2151 = vadd.f32 0.0, %v2150
      %v2152 = vpop.f32.mrf.mxu0
      %v2153 = vadd.f32 0.0, %v2152
      %2154 = vmatmul.bf16.gmra.mxu0 %v770
      %v2155 = vpop.f32.mrf.mxu0
      %v2156 = vadd.f32 0.0, %v2155
      %v2157 = vpop.f32.mrf.mxu0
      %v2158 = vadd.f32 0.0, %v2157
      %2159 = vmatmul.bf16.gmra.mxu0 %v773
      %v2160 = vpop.f32.mrf.mxu0
      %v2161 = vadd.f32 0.0, %v2160
      %v2162 = vpop.f32.mrf.mxu0
      %v2163 = vadd.f32 0.0, %v2162
      %2164 = vdwg.mxu0
      %2165 = vmatpush.bf16.msra.mxu0 0
      %2166 = vmatpush.bf16.msra.mxu0 0
      %2167 = vmatpush.bf16.msra.mxu0 0
      %2168 = vmatpush.bf16.msra.mxu0 0
      %2169 = vmatpush.bf16.msra.mxu0 0
      %2170 = vmatpush.bf16.msra.mxu0 0
      %2171 = vmatpush.bf16.msra.mxu0 %v329
      %2172 = vmatpush.bf16.msra.mxu0 %v328
      %2173 = vmatmul.bf16.gmra.mxu0 %v635
      %v2174 = vpop.f32.mrf.mxu0
      %v2175 = vadd.f32 %v2146, %v2174
      %v2176 = vpop.f32.mrf.mxu0
      %v2177 = vadd.f32 %v2148, %v2176
      %2178 = vmatmul.bf16.gmra.mxu0 %v638
      %v2179 = vpop.f32.mrf.mxu0
      %v2180 = vadd.f32 %v2151, %v2179
      %v2181 = vpop.f32.mrf.mxu0
      %v2182 = vadd.f32 %v2153, %v2181
      %2183 = vmatmul.bf16.gmra.mxu0 %v641
      %v2184 = vpop.f32.mrf.mxu0
      %v2185 = vadd.f32 %v2156, %v2184
      %v2186 = vpop.f32.mrf.mxu0
      %v2187 = vadd.f32 %v2158, %v2186
      %2188 = vmatmul.bf16.gmra.mxu0 %v644
      %v2189 = vpop.f32.mrf.mxu0
      %v2190 = vadd.f32 %v2161, %v2189
      %v2191 = vpop.f32.mrf.mxu0
      %v2192 = vadd.f32 %v2163, %v2191
      %2193 = vdwg.mxu0
      %2194 = vmatpush.bf16.msra.mxu0 0
      %2195 = vmatpush.bf16.msra.mxu0 0
      %2196 = vmatpush.bf16.msra.mxu0 0
      %2197 = vmatpush.bf16.msra.mxu0 0
      %2198 = vmatpush.bf16.msra.mxu0 0
      %2199 = vmatpush.bf16.msra.mxu0 0
      %2200 = vmatpush.bf16.msra.mxu0 %v451
      %2201 = vmatpush.bf16.msra.mxu0 %v450
      %2202 = vmatmul.bf16.gmra.mxu0 %v1414
      %v2203 = vpop.f32.mrf.mxu0
      %v2204 = vadd.f32 0.0, %v2203
      %v2205 = vpop.f32.mrf.mxu0
      %v2206 = vadd.f32 0.0, %v2205
      %2207 = vmatmul.bf16.gmra.mxu0 %v1417
      %v2208 = vpop.f32.mrf.mxu0
      %v2209 = vadd.f32 0.0, %v2208
      %v2210 = vpop.f32.mrf.mxu0
      %v2211 = vadd.f32 0.0, %v2210
      %2212 = vmatmul.bf16.gmra.mxu0 %v1420
      %v2213 = vpop.f32.mrf.mxu0
      %v2214 = vadd.f32 0.0, %v2213
      %v2215 = vpop.f32.mrf.mxu0
      %v2216 = vadd.f32 0.0, %v2215
      %2217 = vmatmul.bf16.gmra.mxu0 %v1423
      %v2218 = vpop.f32.mrf.mxu0
      %v2219 = vadd.f32 0.0, %v2218
      %v2220 = vpop.f32.mrf.mxu0
      %v2221 = vadd.f32 0.0, %v2220
      %2222 = vdwg.mxu0
      %v2223 = vadd.f32 %v2175, %v2204
      %v2224 = vadd.f32 %v2177, %v2206
      %v2225 = vadd.f32 %v2180, %v2209
      %v2226 = vadd.f32 %v2182, %v2211
      %v2227 = vadd.f32 %v2185, %v2214
      %v2228 = vadd.f32 %v2187, %v2216
      %v2229 = vadd.f32 %v2190, %v2219
      %v2230 = vadd.f32 %v2192, %v2221
      %2231 = vmatpush.bf16.msra.mxu0 0
      %2232 = vmatpush.bf16.msra.mxu0 0
      %2233 = vmatpush.bf16.msra.mxu0 0
      %2234 = vmatpush.bf16.msra.mxu0 0
      %2235 = vmatpush.bf16.msra.mxu0 0
      %2236 = vmatpush.bf16.msra.mxu0 0
      %2237 = vmatpush.bf16.msra.mxu0 %v541
      %2238 = vmatpush.bf16.msra.mxu0 %v540
      %2239 = vmatmul.bf16.gmra.mxu0 %v921
      %v2240 = vpop.f32.mrf.mxu0
      %v2241 = vadd.f32 0.0, %v2240
      %v2242 = vpop.f32.mrf.mxu0
      %v2243 = vadd.f32 0.0, %v2242
      %2244 = vmatmul.bf16.gmra.mxu0 %v924
      %v2245 = vpop.f32.mrf.mxu0
      %v2246 = vadd.f32 0.0, %v2245
      %v2247 = vpop.f32.mrf.mxu0
      %v2248 = vadd.f32 0.0, %v2247
      %2249 = vmatmul.bf16.gmra.mxu0 %v927
      %v2250 = vpop.f32.mrf.mxu0
      %v2251 = vadd.f32 0.0, %v2250
      %v2252 = vpop.f32.mrf.mxu0
      %v2253 = vadd.f32 0.0, %v2252
      %2254 = vmatmul.bf16.gmra.mxu0 %v930
      %v2255 = vpop.f32.mrf.mxu0
      %v2256 = vadd.f32 0.0, %v2255
      %v2257 = vpop.f32.mrf.mxu0
      %v2258 = vadd.f32 0.0, %v2257
      %2259 = vdwg.mxu0
      %v2260 = vadd.f32 %v2223, %v2241
      %v2261 = vadd.f32 %v2224, %v2243
      %v2262 = vadd.f32 %v2225, %v2246
      %v2263 = vadd.f32 %v2226, %v2248
      %v2264 = vadd.f32 %v2227, %v2251
      %v2265 = vadd.f32 %v2228, %v2253
      %v2266 = vadd.f32 %v2229, %v2256
      %v2267 = vadd.f32 %v2230, %v2258
      %2268 = vmatpush.bf16.msra.mxu0 0
      %2269 = vmatpush.bf16.msra.mxu0 0
      %2270 = vmatpush.bf16.msra.mxu0 0
      %2271 = vmatpush.bf16.msra.mxu0 0
      %2272 = vmatpush.bf16.msra.mxu0 0
      %2273 = vmatpush.bf16.msra.mxu0 0
      %2274 = vmatpush.bf16.msra.mxu0 %v631
      %2275 = vmatpush.bf16.msra.mxu0 %v630
      %2276 = vmatmul.bf16.gmra.mxu0 %v1050
      %v2277 = vpop.f32.mrf.mxu0
      %v2278 = vadd.f32 0.0, %v2277
      %v2279 = vpop.f32.mrf.mxu0
      %v2280 = vadd.f32 0.0, %v2279
      %2281 = vmatmul.bf16.gmra.mxu0 %v1053
      %v2282 = vpop.f32.mrf.mxu0
      %v2283 = vadd.f32 0.0, %v2282
      %v2284 = vpop.f32.mrf.mxu0
      %v2285 = vadd.f32 0.0, %v2284
      %2286 = vmatmul.bf16.gmra.mxu0 %v1056
      %v2287 = vpop.f32.mrf.mxu0
      %v2288 = vadd.f32 0.0, %v2287
      %v2289 = vpop.f32.mrf.mxu0
      %v2290 = vadd.f32 0.0, %v2289
      %2291 = vmatmul.bf16.gmra.mxu0 %v1059
      %v2292 = vpop.f32.mrf.mxu0
      %v2293 = vadd.f32 0.0, %v2292
      %v2294 = vpop.f32.mrf.mxu0
      %v2295 = vadd.f32 0.0, %v2294
      %2296 = vdwg.mxu0
      %v2297 = vadd.f32 %v2260, %v2278
      %v2298 = vadd.f32 %v2261, %v2280
      %v2299 = vadd.f32 %v2262, %v2283
      %v2300 = vadd.f32 %v2263, %v2285
      %v2301 = vadd.f32 %v2264, %v2288
      %v2302 = vadd.f32 %v2265, %v2290
      %v2303 = vadd.f32 %v2266, %v2293
      %v2304 = vadd.f32 %v2267, %v2295
      %2305 = vmatpush.bf16.msra.mxu0 0
      %2306 = vmatpush.bf16.msra.mxu0 0
      %2307 = vmatpush.bf16.msra.mxu0 0
      %2308 = vmatpush.bf16.msra.mxu0 0
      %2309 = vmatpush.bf16.msra.mxu0 0
      %2310 = vmatpush.bf16.msra.mxu0 0
      %2311 = vmatpush.bf16.msra.mxu0 %v760
      %2312 = vmatpush.bf16.msra.mxu0 %v759
      %2313 = vmatmul.bf16.gmra.mxu0 %v1605
      %v2314 = vpop.f32.mrf.mxu0
      %v2315 = vadd.f32 0.0, %v2314
      %v2316 = vpop.f32.mrf.mxu0
      %v2317 = vadd.f32 0.0, %v2316
      %2318 = vmatmul.bf16.gmra.mxu0 %v1608
      %v2319 = vpop.f32.mrf.mxu0
      %v2320 = vadd.f32 0.0, %v2319
      %v2321 = vpop.f32.mrf.mxu0
      %v2322 = vadd.f32 0.0, %v2321
      %2323 = vmatmul.bf16.gmra.mxu0 %v1611
      %v2324 = vpop.f32.mrf.mxu0
      %v2325 = vadd.f32 0.0, %v2324
      %v2326 = vpop.f32.mrf.mxu0
      %v2327 = vadd.f32 0.0, %v2326
      %2328 = vmatmul.bf16.gmra.mxu0 %v1614
      %v2329 = vpop.f32.mrf.mxu0
      %v2330 = vadd.f32 0.0, %v2329
      %v2331 = vpop.f32.mrf.mxu0
      %v2332 = vadd.f32 0.0, %v2331
      %2333 = vdwg.mxu0
      %v2334 = vadd.f32 %v2297, %v2315
      %v2335 = vadd.f32 %v2298, %v2317
      %v2336 = vadd.f32 %v2299, %v2320
      %v2337 = vadd.f32 %v2300, %v2322
      %v2338 = vadd.f32 %v2301, %v2325
      %v2339 = vadd.f32 %v2302, %v2327
      %v2340 = vadd.f32 %v2303, %v2330
      %v2341 = vadd.f32 %v2304, %v2332
      %2342 = vmatpush.bf16.msra.mxu0 0
      %2343 = vmatpush.bf16.msra.mxu0 0
      %2344 = vmatpush.bf16.msra.mxu0 0
      %2345 = vmatpush.bf16.msra.mxu0 0
      %2346 = vmatpush.bf16.msra.mxu0 0
      %2347 = vmatpush.bf16.msra.mxu0 0
      %2348 = vmatpush.bf16.msra.mxu0 %v828
      %2349 = vmatpush.bf16.msra.mxu0 %v827
      %2350 = vmatmul.bf16.gmra.mxu0 %v1947
      %v2351 = vpop.f32.mrf.mxu0
      %v2352 = vadd.f32 0.0, %v2351
      %v2353 = vpop.f32.mrf.mxu0
      %v2354 = vadd.f32 0.0, %v2353
      %2355 = vmatmul.bf16.gmra.mxu0 %v1950
      %v2356 = vpop.f32.mrf.mxu0
      %v2357 = vadd.f32 0.0, %v2356
      %v2358 = vpop.f32.mrf.mxu0
      %v2359 = vadd.f32 0.0, %v2358
      %2360 = vmatmul.bf16.gmra.mxu0 %v1953
      %v2361 = vpop.f32.mrf.mxu0
      %v2362 = vadd.f32 0.0, %v2361
      %v2363 = vpop.f32.mrf.mxu0
      %v2364 = vadd.f32 0.0, %v2363
      %2365 = vmatmul.bf16.gmra.mxu0 %v1956
      %v2366 = vpop.f32.mrf.mxu0
      %v2367 = vadd.f32 0.0, %v2366
      %v2368 = vpop.f32.mrf.mxu0
      %v2369 = vadd.f32 0.0, %v2368
      %2370 = vdwg.mxu0
      %v2371 = vadd.f32 %v2334, %v2352
      %v2372 = vadd.f32 %v2335, %v2354
      %v2373 = vadd.f32 %v2336, %v2357
      %v2374 = vadd.f32 %v2337, %v2359
      %v2375 = vadd.f32 %v2338, %v2362
      %v2376 = vadd.f32 %v2339, %v2364
      %v2377 = vadd.f32 %v2340, %v2367
      %v2378 = vadd.f32 %v2341, %v2369
      %2379 = vmatpush.bf16.msra.mxu0 0
      %2380 = vmatpush.bf16.msra.mxu0 0
      %2381 = vmatpush.bf16.msra.mxu0 0
      %2382 = vmatpush.bf16.msra.mxu0 0
      %2383 = vmatpush.bf16.msra.mxu0 0
      %2384 = vmatpush.bf16.msra.mxu0 0
      %2385 = vmatpush.bf16.msra.mxu0 %v917
      %2386 = vmatpush.bf16.msra.mxu0 %v916
      %2387 = vmatmul.bf16.gmra.mxu0 %v2064
      %v2388 = vpop.f32.mrf.mxu0
      %v2389 = vadd.f32 0.0, %v2388
      %v2390 = vpop.f32.mrf.mxu0
      %v2391 = vadd.f32 0.0, %v2390
      %2392 = vmatmul.bf16.gmra.mxu0 %v2067
      %v2393 = vpop.f32.mrf.mxu0
      %v2394 = vadd.f32 0.0, %v2393
      %v2395 = vpop.f32.mrf.mxu0
      %v2396 = vadd.f32 0.0, %v2395
      %2397 = vmatmul.bf16.gmra.mxu0 %v2070
      %v2398 = vpop.f32.mrf.mxu0
      %v2399 = vadd.f32 0.0, %v2398
      %v2400 = vpop.f32.mrf.mxu0
      %v2401 = vadd.f32 0.0, %v2400
      %2402 = vmatmul.bf16.gmra.mxu0 %v2073
      %v2403 = vpop.f32.mrf.mxu0
      %v2404 = vadd.f32 0.0, %v2403
      %v2405 = vpop.f32.mrf.mxu0
      %v2406 = vadd.f32 0.0, %v2405
      %2407 = vdwg.mxu0
      %v2408 = vadd.f32 %v2371, %v2389
      %v2409 = vadd.f32 %v2372, %v2391
      %v2410 = vadd.f32 %v2373, %v2394
      %v2411 = vadd.f32 %v2374, %v2396
      %v2412 = vadd.f32 %v2375, %v2399
      %v2413 = vadd.f32 %v2376, %v2401
      %v2414 = vadd.f32 %v2377, %v2404
      %v2415 = vadd.f32 %v2378, %v2406
      %v2416 = vld [vmem:[%s593 + $0x4] sm:$0xf]
      %v2417 = vld [vmem:[%s593 + $0x8] sm:$0xf]
      %v2418 = vld [vmem:[%s593 + $0xc] sm:$0xf]
      %v2419 = vld [vmem:[%s593 + $0x10] sm:$0xf]
      %v2420 = vld [vmem:[%s593 + $0x14] sm:$0xf]
      %v2421 = vld [vmem:[%s593 + $0x18] sm:$0xf]
      %v2422 = vld [vmem:[%s593 + $0x1c] sm:$0xf]
      %v2423 = vld [vmem:[%s593 + $0x20] sm:$0xf]
      %v2424 = vld [vmem:[%s593 + $0x24] sm:$0x1]
      %v2434 = vunpack.c.l.b16 %v2416
      %v2435 = vunpack.c.l.b16 %v2417
      %v2436 = vunpack.c.l.b16 %v2418
      %v2437 = vunpack.c.l.b16 %v2419
      %v2438 = vunpack.c.l.b16 %v2420
      %v2439 = vunpack.c.l.b16 %v2421
      %v2440 = vunpack.c.l.b16 %v2422
      %v2441 = vunpack.c.l.b16 %v2423
      %v2442 = vunpack.c.l.b16 %v2424
      %v2443 = vpack.c.b16 %v2435, %v2434
      %v2444 = vpack.c.b16 %v2437, %v2436
      %v2445 = vpack.c.b16 %v2439, %v2438
      %v2446 = vpack.c.b16 %v2441, %v2440
      %v2447 = vpack.c.b16 %v2442, %v2442
      %v2449 = vshrl.u32 %v2443, 16
      %v2451 = vshll.u32 %v2443, 16
      %v2453 = vrot.slane %v2451, 1
      %v2454 = vor.u32 %v2449, %v2453
      %v2456 = vshll.u32 %v2444, 16
      %v2458 = vrot.slane %v2456, 1
      %v2459 = vsel %vm405, %v2454, %v2458
      %v2460 = vshrl.u32 %v2444, 16
      %v2462 = vor.u32 %v2460, %v2458
      %v2464 = vshll.u32 %v2445, 16
      %v2466 = vrot.slane %v2464, 1
      %v2467 = vsel %vm405, %v2462, %v2466
      %v2468 = vshrl.u32 %v2445, 16
      %v2470 = vor.u32 %v2468, %v2466
      %v2472 = vshll.u32 %v2446, 16
      %v2474 = vrot.slane %v2472, 1
      %v2475 = vsel %vm405, %v2470, %v2474
      %v2476 = vshrl.u32 %v2446, 16
      %v2478 = vor.u32 %v2476, %v2474
      %v2480 = vshll.u32 %v2447, 16
      %v2482 = vrot.slane %v2480, 1
      %v2483 = vsel %vm405, %v2478, %v2482
      %v2485 = vsel %vm258, %v2459, 0
      %v2488 = vsel %vm258, %v2467, 0
      %v2491 = vsel %vm258, %v2475, 0
      %v2494 = vsel %vm258, %v2483, 0
      %2496 = vmatpush.bf16.msra.mxu0 0
      %2497 = vmatpush.bf16.msra.mxu0 0
      %2498 = vmatpush.bf16.msra.mxu0 0
      %2499 = vmatpush.bf16.msra.mxu0 0
      %2500 = vmatpush.bf16.msra.mxu0 0
      %2501 = vmatpush.bf16.msra.mxu0 0
      %2502 = vmatpush.bf16.msra.mxu0 %v1046
      %2503 = vmatpush.bf16.msra.mxu0 %v1045
      %2504 = vmatmul.bf16.gmra.mxu0 %v2485
      %v2505 = vpop.f32.mrf.mxu0
      %v2506 = vadd.f32 0.0, %v2505
      %v2507 = vpop.f32.mrf.mxu0
      %v2508 = vadd.f32 0.0, %v2507
      %2509 = vmatmul.bf16.gmra.mxu0 %v2488
      %v2510 = vpop.f32.mrf.mxu0
      %v2511 = vadd.f32 0.0, %v2510
      %v2512 = vpop.f32.mrf.mxu0
      %v2513 = vadd.f32 0.0, %v2512
      %2514 = vmatmul.bf16.gmra.mxu0 %v2491
      %v2515 = vpop.f32.mrf.mxu0
      %v2516 = vadd.f32 0.0, %v2515
      %v2517 = vpop.f32.mrf.mxu0
      %v2518 = vadd.f32 0.0, %v2517
      %2519 = vmatmul.bf16.gmra.mxu0 %v2494
      %v2520 = vpop.f32.mrf.mxu0
      %v2521 = vadd.f32 0.0, %v2520
      %v2522 = vpop.f32.mrf.mxu0
      %v2523 = vadd.f32 0.0, %v2522
      %2524 = vdwg.mxu0
      %v2525 = vadd.f32 %v2408, %v2506
      %v2526 = vadd.f32 %v2409, %v2508
      %v2527 = vadd.f32 %v2410, %v2511
      %v2528 = vadd.f32 %v2411, %v2513
      %v2529 = vadd.f32 %v2412, %v2516
      %v2530 = vadd.f32 %v2413, %v2518
      %v2531 = vadd.f32 %v2414, %v2521
      %v2532 = vadd.f32 %v2415, %v2523
      %v2533 = vadd.f32 %v2525, %v1099
      %v2534 = vadd.f32 %v2526, %v1099
      %v2535 = vadd.f32 %v2527, %v1099
      %v2536 = vadd.f32 %v2528, %v1099
      %v2537 = vadd.f32 %v2529, %v1099
      %v2538 = vadd.f32 %v2530, %v1099
      %v2539 = vadd.f32 %v2531, %v1099
      %v2540 = vadd.f32 %v2532, %v1099
      %v2541 = vmax.f32 %v2533, 0.0
      %v2542 = vmax.f32 %v2534, 0.0
      %v2543 = vmax.f32 %v2535, 0.0
      %v2544 = vmax.f32 %v2536, 0.0
      %v2545 = vmax.f32 %v2537, 0.0
      %v2546 = vmax.f32 %v2538, 0.0
      %v2547 = vmax.f32 %v2539, 0.0
      %v2548 = vmax.f32 %v2540, 0.0
      %v2549 = vmax.f32 %v2128, %v2541
      %v2550 = vmax.f32 %v2129, %v2542
      %v2551 = vmax.f32 %v2130, %v2543
      %v2552 = vmax.f32 %v2131, %v2544
      %v2553 = vmax.f32 %v2132, %v2545
      %v2554 = vmax.f32 %v2133, %v2546
      %v2555 = vmax.f32 %v2134, %v2547
      %v2556 = vmax.f32 %v2135, %v2548
      %v2557 = vpack.c.bf16 %v2549, %v2549
      %v2558 = vpack.c.bf16 %v2550, %v2550
      %v2559 = vpack.c.bf16 %v2551, %v2551
      %v2560 = vpack.c.bf16 %v2552, %v2552
      %v2561 = vpack.c.bf16 %v2553, %v2553
      %v2562 = vpack.c.bf16 %v2554, %v2554
      %v2563 = vpack.c.bf16 %v2555, %v2555
      %v2564 = vpack.c.bf16 %v2556, %v2556
      %2565 = vst [vmem:[%s170] sm:$0xf] %v2557
      %2566 = vst [vmem:[%s170 + $0x4] sm:$0xf] %v2558
      %2567 = vst [vmem:[%s170 + $0x8] sm:$0xf] %v2559
      %2568 = vst [vmem:[%s170 + $0xc] sm:$0xf] %v2560
      %2569 = vst [vmem:[%s170 + $0x10] sm:$0xf] %v2561
      %2570 = vst [vmem:[%s170 + $0x14] sm:$0xf] %v2562
      %2571 = vst [vmem:[%s170 + $0x18] sm:$0xf] %v2563
      %2572 = vst [vmem:[%s170 + $0x1c] sm:$0xf] %v2564
      %p2573 = scmp.lt.s32.totalorder %s14, 1
      %s2574 = scalar_select %p2573, %s14, 1
      %s2575 = smul.addr %s2574, 8
      %s2576 = smul.addr %s2575, 4
      %s2577 = scalar_lea.vmem %s3, %s2576
      // Predicated region
      $region33: #{simple_cnn_forward.4} parent=31 // pred_check
        %p2578 = pneg %p100
      $region34: #{simple_cnn_forward.4} parent=31 // pred_check_branch
        %2580 = sbr.rel (%p2578) target = $region36
      $region35: #{simple_cnn_forward.4} parent=31 // pred_region
        _
      $region36: #{simple_cnn_forward.4} parent=31 // pred_fallthru
        _
    $region32: #{simple_cnn_forward.4} parent=5 // pred_fallthru
      _
    %p2581 = scmp.le.s32.totalorder 2, %s9
    // Predicated region
    $region37: #{simple_cnn_forward.4} parent=5 // pred_check
      %p2582 = pneg %p2581
    $region38: #{simple_cnn_forward.4} parent=5 // pred_check_branch
      %2584 = sbr.rel (%p2582) target = $region40
    $region39: #{simple_cnn_forward.4} parent=5 // pred_region
      %s2585 = ssub.s32 %s9, 2
      // Predicated region
      $region41: #{simple_cnn_forward.4} parent=39 // pred_check
        %p2586 = pneg %p106
      $region42: #{simple_cnn_forward.4} parent=39 // pred_check_branch
        %2588 = sbr.rel (%p2586) target = $region44
      $region43: #{simple_cnn_forward.4} parent=39 // pred_region
        %p2589 = scmp.lt.s32.totalorder %s15, 1
        %s2590 = scalar_select %p2589, %s15, 1
        %s2591 = smul.addr %s2590, 8
        %s2592 = smul.addr %s2591, 4
        %s2593 = scalar_lea.vmem %s3, %s2592
      $region44: #{simple_cnn_forward.4} parent=39 // pred_fallthru
        _
    $region40: #{simple_cnn_forward.4} parent=5 // pred_fallthru
      _
  $region6: #{simple_cnn_forward.4} parent=0 // loop_footer
    %s13 = sadd.s32 1, %s9
  $region7: #{simple_cnn_forward.4} parent=0 // loop_footer_branch
    %8 = sbr.rel target = $region3
  $region8: #{simple_cnn_forward.4} parent=0 // loop_exit
    _

// kernel: simple_cnn_forward.5
$region0: #{simple_cnn_forward.5}
  #allocation0 [shape = 'u32[]', space=smem, size = 0x4, offset = 0x4, fixed_abs, tag = 'smem constant byte address 0x4 - core index']
  #allocation1 [shape = 'u32[72,128]{1,0:T(1,128)}', space=vmem, size = 0x9000, scoped, tag = 'internal scratch']
  %s0 = inlined_call_operand.vmem [shape: bf16[8,8192], index: 0, kind: input, shape index: {}]
  %s1 = inlined_call_operand.vmem [shape: bf16[8192,128], index: 1, kind: input, shape index: {}]
  %s2 = inlined_call_operand.vmem [shape: f32[1,128], index: 2, kind: input, shape index: {}]
  %s3 = inlined_call_operand.vmem [shape: bf16[128,128], index: 3, kind: input, shape index: {}]
  %s4 = inlined_call_operand.vmem [shape: f32[1,128], index: 4, kind: input, shape index: {}]
  %s5 = inlined_call_operand.vmem [shape: f32[8,128], index: 5, kind: output, shape index: {}]
  %s6 = sld [smem:[#allocation0]]
  $region30: #{simple_cnn_forward.5} parent=0
    _
  %s8 = ssub.s32 1, %s6
  %s9 = scalar_select 0, %s8, %s6
  // Predicated region
  $region2: #{simple_cnn_forward.5} parent=0 // pred_check
    _
  $region3: #{simple_cnn_forward.5} parent=0 // pred_check_branch
    %11 = sbr.rel (0) target = $region5
  $region4: #{simple_cnn_forward.5} parent=0 // pred_region
    _
  $region5: #{simple_cnn_forward.5} parent=0 // pred_fallthru
    _
  // Predicated region
  $region6: #{simple_cnn_forward.5} parent=0 // pred_check
    _
  $region7: #{simple_cnn_forward.5} parent=0 // pred_check_branch
    %13 = sbr.rel (0) target = $region9
  $region8: #{simple_cnn_forward.5} parent=0 // pred_region
    _
  $region9: #{simple_cnn_forward.5} parent=0 // pred_fallthru
    _
  // Predicated region
  $region10: #{simple_cnn_forward.5} parent=0 // pred_check
    _
  $region11: #{simple_cnn_forward.5} parent=0 // pred_check_branch
    %15 = sbr.rel (0) target = $region13
  $region12: #{simple_cnn_forward.5} parent=0 // pred_region
    _
  $region13: #{simple_cnn_forward.5} parent=0 // pred_fallthru
    _
  // Predicated region
  $region14: #{simple_cnn_forward.5} parent=0 // pred_check
    _
  $region15: #{simple_cnn_forward.5} parent=0 // pred_check_branch
    %17 = sbr.rel (0) target = $region17
  $region16: #{simple_cnn_forward.5} parent=0 // pred_region
    _
  $region17: #{simple_cnn_forward.5} parent=0 // pred_fallthru
    _
  // Predicated region
  $region18: #{simple_cnn_forward.5} parent=0 // pred_check
    _
  $region19: #{simple_cnn_forward.5} parent=0 // pred_check_branch
    %19 = sbr.rel (0) target = $region21
  $region20: #{simple_cnn_forward.5} parent=0 // pred_region
    _
  $region21: #{simple_cnn_forward.5} parent=0 // pred_fallthru
    _
  %v20 = vld [vmem:[%s0] sm:$0xff]
  %v21 = vld [vmem:[%s0 + $0x8] sm:$0xff]
  %v22 = vld [vmem:[%s0 + $0x10] sm:$0xff]
  %v23 = vld [vmem:[%s0 + $0x18] sm:$0xff]
  %v24 = vld [vmem:[%s0 + $0x20] sm:$0xff]
  %v25 = vld [vmem:[%s0 + $0x28] sm:$0xff]
  %v26 = vld [vmem:[%s0 + $0x30] sm:$0xff]
  %v27 = vld [vmem:[%s0 + $0x38] sm:$0xff]
  %v28 = vld [vmem:[%s0 + $0x40] sm:$0xff]
  %v29 = vld [vmem:[%s0 + $0x48] sm:$0xff]
  %v30 = vld [vmem:[%s0 + $0x50] sm:$0xff]
  %v31 = vld [vmem:[%s0 + $0x58] sm:$0xff]
  %v32 = vld [vmem:[%s0 + $0x60] sm:$0xff]
  %v33 = vld [vmem:[%s0 + $0x68] sm:$0xff]
  %v34 = vld [vmem:[%s0 + $0x70] sm:$0xff]
  %v35 = vld [vmem:[%s0 + $0x78] sm:$0xff]
  %v36 = vld [vmem:[%s0 + $0x80] sm:$0xff]
  %v37 = vld [vmem:[%s0 + $0x88] sm:$0xff]
  %v38 = vld [vmem:[%s0 + $0x90] sm:$0xff]
  %v39 = vld [vmem:[%s0 + $0x98] sm:$0xff]
  %v40 = vld [vmem:[%s0 + $0xa0] sm:$0xff]
  %v41 = vld [vmem:[%s0 + $0xa8] sm:$0xff]
  %v42 = vld [vmem:[%s0 + $0xb0] sm:$0xff]
  %v43 = vld [vmem:[%s0 + $0xb8] sm:$0xff]
  %v44 = vld [vmem:[%s0 + $0xc0] sm:$0xff]
  %v45 = vld [vmem:[%s0 + $0xc8] sm:$0xff]
  %v46 = vld [vmem:[%s0 + $0xd0] sm:$0xff]
  %v47 = vld [vmem:[%s0 + $0xd8] sm:$0xff]
  %v48 = vld [vmem:[%s0 + $0xe0] sm:$0xff]
  %v49 = vld [vmem:[%s0 + $0xe8] sm:$0xff]
  %v50 = vld [vmem:[%s0 + $0xf0] sm:$0xff]
  %v51 = vld [vmem:[%s0 + $0xf8] sm:$0xff]
  %v52 = vld [vmem:[%s1] sm:$0xf]
  %v53 = vld [vmem:[%s1 + $0x4] sm:$0xf]
  %v54 = vld [vmem:[%s1 + $0x8] sm:$0xf]
  %v55 = vld [vmem:[%s1 + $0xc] sm:$0xf]
  %v56 = vld [vmem:[%s1 + $0x10] sm:$0xf]
  %v57 = vld [vmem:[%s1 + $0x14] sm:$0xf]
  %v58 = vld [vmem:[%s1 + $0x18] sm:$0xf]
  %v59 = vld [vmem:[%s1 + $0x1c] sm:$0xf]
  %v60 = vld [vmem:[%s1 + $0x20] sm:$0xf]
  %v61 = vld [vmem:[%s1 + $0x24] sm:$0xf]
  %v62 = vld [vmem:[%s1 + $0x28] sm:$0xf]
  %v63 = vld [vmem:[%s1 + $0x2c] sm:$0xf]
  %v64 = vld [vmem:[%s1 + $0x30] sm:$0xf]
  %v65 = vld [vmem:[%s1 + $0x34] sm:$0xf]
  %v66 = vld [vmem:[%s1 + $0x38] sm:$0xf]
  %v67 = vld [vmem:[%s1 + $0x3c] sm:$0xf]
  %v68 = vld [vmem:[%s1 + $0x40] sm:$0xf]
  %v69 = vld [vmem:[%s1 + $0x44] sm:$0xf]
  %v70 = vld [vmem:[%s1 + $0x48] sm:$0xf]
  %v71 = vld [vmem:[%s1 + $0x4c] sm:$0xf]
  %v72 = vld [vmem:[%s1 + $0x50] sm:$0xf]
  %v73 = vld [vmem:[%s1 + $0x54] sm:$0xf]
  %v74 = vld [vmem:[%s1 + $0x58] sm:$0xf]
  %v75 = vld [vmem:[%s1 + $0x5c] sm:$0xf]
  %v76 = vld [vmem:[%s1 + $0x60] sm:$0xf]
  %v77 = vld [vmem:[%s1 + $0x64] sm:$0xf]
  %v78 = vld [vmem:[%s1 + $0x68] sm:$0xf]
  %v79 = vld [vmem:[%s1 + $0x6c] sm:$0xf]
  %v80 = vld [vmem:[%s1 + $0x70] sm:$0xf]
  %v81 = vld [vmem:[%s1 + $0x74] sm:$0xf]
  %v82 = vld [vmem:[%s1 + $0x78] sm:$0xf]
  %v83 = vld [vmem:[%s1 + $0x7c] sm:$0xf]
  %v84 = vld [vmem:[%s1 + $0x80] sm:$0xf]
  %v85 = vld [vmem:[%s1 + $0x84] sm:$0xf]
  %v86 = vld [vmem:[%s1 + $0x88] sm:$0xf]
  %v87 = vld [vmem:[%s1 + $0x8c] sm:$0xf]
  %v88 = vld [vmem:[%s1 + $0x90] sm:$0xf]
  %v89 = vld [vmem:[%s1 + $0x94] sm:$0xf]
  %v90 = vld [vmem:[%s1 + $0x98] sm:$0xf]
  %v91 = vld [vmem:[%s1 + $0x9c] sm:$0xf]
  %v92 = vld [vmem:[%s1 + $0xa0] sm:$0xf]
  %v93 = vld [vmem:[%s1 + $0xa4] sm:$0xf]
  %v94 = vld [vmem:[%s1 + $0xa8] sm:$0xf]
  %v95 = vld [vmem:[%s1 + $0xac] sm:$0xf]
  %v96 = vld [vmem:[%s1 + $0xb0] sm:$0xf]
  %v97 = vld [vmem:[%s1 + $0xb4] sm:$0xf]
  %v98 = vld [vmem:[%s1 + $0xb8] sm:$0xf]
  %v99 = vld [vmem:[%s1 + $0xbc] sm:$0xf]
  %v100 = vld [vmem:[%s1 + $0xc0] sm:$0xf]
  %v101 = vld [vmem:[%s1 + $0xc4] sm:$0xf]
  %v102 = vld [vmem:[%s1 + $0xc8] sm:$0xf]
  %v103 = vld [vmem:[%s1 + $0xcc] sm:$0xf]
  %v104 = vld [vmem:[%s1 + $0xd0] sm:$0xf]
  %v105 = vld [vmem:[%s1 + $0xd4] sm:$0xf]
  %v106 = vld [vmem:[%s1 + $0xd8] sm:$0xf]
  %v107 = vld [vmem:[%s1 + $0xdc] sm:$0xf]
  %v108 = vld [vmem:[%s1 + $0xe0] sm:$0xf]
  %v109 = vld [vmem:[%s1 + $0xe4] sm:$0xf]
  %v110 = vld [vmem:[%s1 + $0xe8] sm:$0xf]
  %v111 = vld [vmem:[%s1 + $0xec] sm:$0xf]
  %v112 = vld [vmem:[%s1 + $0xf0] sm:$0xf]
  %v113 = vld [vmem:[%s1 + $0xf4] sm:$0xf]
  %v114 = vld [vmem:[%s1 + $0xf8] sm:$0xf]
  %v115 = vld [vmem:[%s1 + $0xfc] sm:$0xf]
  %v116 = vld [vmem:[%s1 + $0x100] sm:$0xf]
  %v117 = vld [vmem:[%s1 + $0x104] sm:$0xf]
  %v118 = vld [vmem:[%s1 + $0x108] sm:$0xf]
  %v119 = vld [vmem:[%s1 + $0x10c] sm:$0xf]
  %v120 = vld [vmem:[%s1 + $0x110] sm:$0xf]
  %v121 = vld [vmem:[%s1 + $0x114] sm:$0xf]
  %v122 = vld [vmem:[%s1 + $0x118] sm:$0xf]
  %v123 = vld [vmem:[%s1 + $0x11c] sm:$0xf]
  %v124 = vld [vmem:[%s1 + $0x120] sm:$0xf]
  %v125 = vld [vmem:[%s1 + $0x124] sm:$0xf]
  %v126 = vld [vmem:[%s1 + $0x128] sm:$0xf]
  %v127 = vld [vmem:[%s1 + $0x12c] sm:$0xf]
  %v128 = vld [vmem:[%s1 + $0x130] sm:$0xf]
  %v129 = vld [vmem:[%s1 + $0x134] sm:$0xf]
  %v130 = vld [vmem:[%s1 + $0x138] sm:$0xf]
  %v131 = vld [vmem:[%s1 + $0x13c] sm:$0xf]
  %v132 = vld [vmem:[%s1 + $0x140] sm:$0xf]
  %v133 = vld [vmem:[%s1 + $0x144] sm:$0xf]
  %v134 = vld [vmem:[%s1 + $0x148] sm:$0xf]
  %v135 = vld [vmem:[%s1 + $0x14c] sm:$0xf]
  %v136 = vld [vmem:[%s1 + $0x150] sm:$0xf]
  %v137 = vld [vmem:[%s1 + $0x154] sm:$0xf]
  %v138 = vld [vmem:[%s1 + $0x158] sm:$0xf]
  %v139 = vld [vmem:[%s1 + $0x15c] sm:$0xf]
  %v140 = vld [vmem:[%s1 + $0x160] sm:$0xf]
  %v141 = vld [vmem:[%s1 + $0x164] sm:$0xf]
  %v142 = vld [vmem:[%s1 + $0x168] sm:$0xf]
  %v143 = vld [vmem:[%s1 + $0x16c] sm:$0xf]
  %v144 = vld [vmem:[%s1 + $0x170] sm:$0xf]
  %v145 = vld [vmem:[%s1 + $0x174] sm:$0xf]
  %v146 = vld [vmem:[%s1 + $0x178] sm:$0xf]
  %v147 = vld [vmem:[%s1 + $0x17c] sm:$0xf]
  %v148 = vld [vmem:[%s1 + $0x180] sm:$0xf]
  %v149 = vld [vmem:[%s1 + $0x184] sm:$0xf]
  %v150 = vld [vmem:[%s1 + $0x188] sm:$0xf]
  %v151 = vld [vmem:[%s1 + $0x18c] sm:$0xf]
  %v152 = vld [vmem:[%s1 + $0x190] sm:$0xf]
  %v153 = vld [vmem:[%s1 + $0x194] sm:$0xf]
  %v154 = vld [vmem:[%s1 + $0x198] sm:$0xf]
  %v155 = vld [vmem:[%s1 + $0x19c] sm:$0xf]
  %v156 = vld [vmem:[%s1 + $0x1a0] sm:$0xf]
  %v157 = vld [vmem:[%s1 + $0x1a4] sm:$0xf]
  %v158 = vld [vmem:[%s1 + $0x1a8] sm:$0xf]
  %v159 = vld [vmem:[%s1 + $0x1ac] sm:$0xf]
  %v160 = vld [vmem:[%s1 + $0x1b0] sm:$0xf]
  %v161 = vld [vmem:[%s1 + $0x1b4] sm:$0xf]
  %v162 = vld [vmem:[%s1 + $0x1b8] sm:$0xf]
  %v163 = vld [vmem:[%s1 + $0x1bc] sm:$0xf]
  %v164 = vld [vmem:[%s1 + $0x1c0] sm:$0xf]
  %v165 = vld [vmem:[%s1 + $0x1c4] sm:$0xf]
  %v166 = vld [vmem:[%s1 + $0x1c8] sm:$0xf]
  %v167 = vld [vmem:[%s1 + $0x1cc] sm:$0xf]
  %v168 = vld [vmem:[%s1 + $0x1d0] sm:$0xf]
  %v169 = vld [vmem:[%s1 + $0x1d4] sm:$0xf]
  %v170 = vld [vmem:[%s1 + $0x1d8] sm:$0xf]
  %v171 = vld [vmem:[%s1 + $0x1dc] sm:$0xf]
  %v172 = vld [vmem:[%s1 + $0x1e0] sm:$0xf]
  %v173 = vld [vmem:[%s1 + $0x1e4] sm:$0xf]
  %v174 = vld [vmem:[%s1 + $0x1e8] sm:$0xf]
  %v175 = vld [vmem:[%s1 + $0x1ec] sm:$0xf]
  %v176 = vld [vmem:[%s1 + $0x1f0] sm:$0xf]
  %v177 = vld [vmem:[%s1 + $0x1f4] sm:$0xf]
  %v178 = vld [vmem:[%s1 + $0x1f8] sm:$0xf]
  %v179 = vld [vmem:[%s1 + $0x1fc] sm:$0xf]
  %v180 = vld [vmem:[%s1 + $0x200] sm:$0xf]
  %v181 = vld [vmem:[%s1 + $0x204] sm:$0xf]
  %v182 = vld [vmem:[%s1 + $0x208] sm:$0xf]
  %v183 = vld [vmem:[%s1 + $0x20c] sm:$0xf]
  %v184 = vld [vmem:[%s1 + $0x210] sm:$0xf]
  %v185 = vld [vmem:[%s1 + $0x214] sm:$0xf]
  %v186 = vld [vmem:[%s1 + $0x218] sm:$0xf]
  %v187 = vld [vmem:[%s1 + $0x21c] sm:$0xf]
  %v188 = vld [vmem:[%s1 + $0x220] sm:$0xf]
  %v189 = vld [vmem:[%s1 + $0x224] sm:$0xf]
  %v190 = vld [vmem:[%s1 + $0x228] sm:$0xf]
  %v191 = vld [vmem:[%s1 + $0x22c] sm:$0xf]
  %v192 = vld [vmem:[%s1 + $0x230] sm:$0xf]
  %v193 = vld [vmem:[%s1 + $0x234] sm:$0xf]
  %v194 = vld [vmem:[%s1 + $0x238] sm:$0xf]
  %v195 = vld [vmem:[%s1 + $0x23c] sm:$0xf]
  %v196 = vld [vmem:[%s1 + $0x240] sm:$0xf]
  %v197 = vld [vmem:[%s1 + $0x244] sm:$0xf]
  %v198 = vld [vmem:[%s1 + $0x248] sm:$0xf]
  %v199 = vld [vmem:[%s1 + $0x24c] sm:$0xf]
  %v200 = vld [vmem:[%s1 + $0x250] sm:$0xf]
  %v201 = vld [vmem:[%s1 + $0x254] sm:$0xf]
  %v202 = vld [vmem:[%s1 + $0x258] sm:$0xf]
  %v203 = vld [vmem:[%s1 + $0x25c] sm:$0xf]
  %v204 = vld [vmem:[%s1 + $0x260] sm:$0xf]
  %v205 = vld [vmem:[%s1 + $0x264] sm:$0xf]
  %v206 = vld [vmem:[%s1 + $0x268] sm:$0xf]
  %v207 = vld [vmem:[%s1 + $0x26c] sm:$0xf]
  %v208 = vld [vmem:[%s1 + $0x270] sm:$0xf]
  %v209 = vld [vmem:[%s1 + $0x274] sm:$0xf]
  %v210 = vld [vmem:[%s1 + $0x278] sm:$0xf]
  %v211 = vld [vmem:[%s1 + $0x27c] sm:$0xf]
  %v212 = vld [vmem:[%s1 + $0x280] sm:$0xf]
  %v213 = vld [vmem:[%s1 + $0x284] sm:$0xf]
  %v214 = vld [vmem:[%s1 + $0x288] sm:$0xf]
  %v215 = vld [vmem:[%s1 + $0x28c] sm:$0xf]
  %v216 = vld [vmem:[%s1 + $0x290] sm:$0xf]
  %v217 = vld [vmem:[%s1 + $0x294] sm:$0xf]
  %v218 = vld [vmem:[%s1 + $0x298] sm:$0xf]
  %v219 = vld [vmem:[%s1 + $0x29c] sm:$0xf]
  %v220 = vld [vmem:[%s1 + $0x2a0] sm:$0xf]
  %v221 = vld [vmem:[%s1 + $0x2a4] sm:$0xf]
  %v222 = vld [vmem:[%s1 + $0x2a8] sm:$0xf]
  %v223 = vld [vmem:[%s1 + $0x2ac] sm:$0xf]
  %v224 = vld [vmem:[%s1 + $0x2b0] sm:$0xf]
  %v225 = vld [vmem:[%s1 + $0x2b4] sm:$0xf]
  %v226 = vld [vmem:[%s1 + $0x2b8] sm:$0xf]
  %v227 = vld [vmem:[%s1 + $0x2bc] sm:$0xf]
  %v228 = vld [vmem:[%s1 + $0x2c0] sm:$0xf]
  %v229 = vld [vmem:[%s1 + $0x2c4] sm:$0xf]
  %v230 = vld [vmem:[%s1 + $0x2c8] sm:$0xf]
  %v231 = vld [vmem:[%s1 + $0x2cc] sm:$0xf]
  %v232 = vld [vmem:[%s1 + $0x2d0] sm:$0xf]
  %v233 = vld [vmem:[%s1 + $0x2d4] sm:$0xf]
  %v234 = vld [vmem:[%s1 + $0x2d8] sm:$0xf]
  %v235 = vld [vmem:[%s1 + $0x2dc] sm:$0xf]
  %v236 = vld [vmem:[%s1 + $0x2e0] sm:$0xf]
  %v237 = vld [vmem:[%s1 + $0x2e4] sm:$0xf]
  %v238 = vld [vmem:[%s1 + $0x2e8] sm:$0xf]
  %v239 = vld [vmem:[%s1 + $0x2ec] sm:$0xf]
  %v240 = vld [vmem:[%s1 + $0x2f0] sm:$0xf]
  %v241 = vld [vmem:[%s1 + $0x2f4] sm:$0xf]
  %v242 = vld [vmem:[%s1 + $0x2f8] sm:$0xf]
  %v243 = vld [vmem:[%s1 + $0x2fc] sm:$0xf]
  %v244 = vld [vmem:[%s1 + $0x300] sm:$0xf]
  %v245 = vld [vmem:[%s1 + $0x304] sm:$0xf]
  %v246 = vld [vmem:[%s1 + $0x308] sm:$0xf]
  %v247 = vld [vmem:[%s1 + $0x30c] sm:$0xf]
  %v248 = vld [vmem:[%s1 + $0x310] sm:$0xf]
  %v249 = vld [vmem:[%s1 + $0x314] sm:$0xf]
  %v250 = vld [vmem:[%s1 + $0x318] sm:$0xf]
  %v251 = vld [vmem:[%s1 + $0x31c] sm:$0xf]
  %v252 = vld [vmem:[%s1 + $0x320] sm:$0xf]
  %v253 = vld [vmem:[%s1 + $0x324] sm:$0xf]
  %v254 = vld [vmem:[%s1 + $0x328] sm:$0xf]
  %v255 = vld [vmem:[%s1 + $0x32c] sm:$0xf]
  %v256 = vld [vmem:[%s1 + $0x330] sm:$0xf]
  %v257 = vld [vmem:[%s1 + $0x334] sm:$0xf]
  %v258 = vld [vmem:[%s1 + $0x338] sm:$0xf]
  %v259 = vld [vmem:[%s1 + $0x33c] sm:$0xf]
  %v260 = vld [vmem:[%s1 + $0x340] sm:$0xf]
  %v261 = vld [vmem:[%s1 + $0x344] sm:$0xf]
  %v262 = vld [vmem:[%s1 + $0x348] sm:$0xf]
  %v263 = vld [vmem:[%s1 + $0x34c] sm:$0xf]
  %v264 = vld [vmem:[%s1 + $0x350] sm:$0xf]
  %v265 = vld [vmem:[%s1 + $0x354] sm:$0xf]
  %v266 = vld [vmem:[%s1 + $0x358] sm:$0xf]
  %v267 = vld [vmem:[%s1 + $0x35c] sm:$0xf]
  %v268 = vld [vmem:[%s1 + $0x360] sm:$0xf]
  %v269 = vld [vmem:[%s1 + $0x364] sm:$0xf]
  %v270 = vld [vmem:[%s1 + $0x368] sm:$0xf]
  %v271 = vld [vmem:[%s1 + $0x36c] sm:$0xf]
  %v272 = vld [vmem:[%s1 + $0x370] sm:$0xf]
  %v273 = vld [vmem:[%s1 + $0x374] sm:$0xf]
  %v274 = vld [vmem:[%s1 + $0x378] sm:$0xf]
  %v275 = vld [vmem:[%s1 + $0x37c] sm:$0xf]
  %v276 = vld [vmem:[%s1 + $0x380] sm:$0xf]
  %v277 = vld [vmem:[%s1 + $0x384] sm:$0xf]
  %v278 = vld [vmem:[%s1 + $0x388] sm:$0xf]
  %v279 = vld [vmem:[%s1 + $0x38c] sm:$0xf]
  %v280 = vld [vmem:[%s1 + $0x390] sm:$0xf]
  %v281 = vld [vmem:[%s1 + $0x394] sm:$0xf]
  %v282 = vld [vmem:[%s1 + $0x398] sm:$0xf]
  %v283 = vld [vmem:[%s1 + $0x39c] sm:$0xf]
  %v284 = vld [vmem:[%s1 + $0x3a0] sm:$0xf]
  %v285 = vld [vmem:[%s1 + $0x3a4] sm:$0xf]
  %v286 = vld [vmem:[%s1 + $0x3a8] sm:$0xf]
  %v287 = vld [vmem:[%s1 + $0x3ac] sm:$0xf]
  %v288 = vld [vmem:[%s1 + $0x3b0] sm:$0xf]
  %v289 = vld [vmem:[%s1 + $0x3b4] sm:$0xf]
  %v290 = vld [vmem:[%s1 + $0x3b8] sm:$0xf]
  %v291 = vld [vmem:[%s1 + $0x3bc] sm:$0xf]
  %v292 = vld [vmem:[%s1 + $0x3c0] sm:$0xf]
  %v293 = vld [vmem:[%s1 + $0x3c4] sm:$0xf]
  %v294 = vld [vmem:[%s1 + $0x3c8] sm:$0xf]
  %v295 = vld [vmem:[%s1 + $0x3cc] sm:$0xf]
  %v296 = vld [vmem:[%s1 + $0x3d0] sm:$0xf]
  %v297 = vld [vmem:[%s1 + $0x3d4] sm:$0xf]
  %v298 = vld [vmem:[%s1 + $0x3d8] sm:$0xf]
  %v299 = vld [vmem:[%s1 + $0x3dc] sm:$0xf]
  %v300 = vld [vmem:[%s1 + $0x3e0] sm:$0xf]
  %v301 = vld [vmem:[%s1 + $0x3e4] sm:$0xf]
  %v302 = vld [vmem:[%s1 + $0x3e8] sm:$0xf]
  %v303 = vld [vmem:[%s1 + $0x3ec] sm:$0xf]
  %v304 = vld [vmem:[%s1 + $0x3f0] sm:$0xf]
  %v305 = vld [vmem:[%s1 + $0x3f4] sm:$0xf]
  %v306 = vld [vmem:[%s1 + $0x3f8] sm:$0xf]
  %v307 = vld [vmem:[%s1 + $0x3fc] sm:$0xf]
  %v308 = vld [vmem:[%s1 + $0x400] sm:$0xf]
  %v309 = vld [vmem:[%s1 + $0x404] sm:$0xf]
  %v310 = vld [vmem:[%s1 + $0x408] sm:$0xf]
  %v311 = vld [vmem:[%s1 + $0x40c] sm:$0xf]
  %v312 = vld [vmem:[%s1 + $0x410] sm:$0xf]
  %v313 = vld [vmem:[%s1 + $0x414] sm:$0xf]
  %v314 = vld [vmem:[%s1 + $0x418] sm:$0xf]
  %v315 = vld [vmem:[%s1 + $0x41c] sm:$0xf]
  %v316 = vld [vmem:[%s1 + $0x420] sm:$0xf]
  %v317 = vld [vmem:[%s1 + $0x424] sm:$0xf]
  %v318 = vld [vmem:[%s1 + $0x428] sm:$0xf]
  %v319 = vld [vmem:[%s1 + $0x42c] sm:$0xf]
  %v320 = vld [vmem:[%s1 + $0x430] sm:$0xf]
  %v321 = vld [vmem:[%s1 + $0x434] sm:$0xf]
  %v322 = vld [vmem:[%s1 + $0x438] sm:$0xf]
  %v323 = vld [vmem:[%s1 + $0x43c] sm:$0xf]
  %v324 = vld [vmem:[%s1 + $0x440] sm:$0xf]
  %v325 = vld [vmem:[%s1 + $0x444] sm:$0xf]
  %v326 = vld [vmem:[%s1 + $0x448] sm:$0xf]
  %v327 = vld [vmem:[%s1 + $0x44c] sm:$0xf]
  %v328 = vld [vmem:[%s1 + $0x450] sm:$0xf]
  %v329 = vld [vmem:[%s1 + $0x454] sm:$0xf]
  %v330 = vld [vmem:[%s1 + $0x458] sm:$0xf]
  %v331 = vld [vmem:[%s1 + $0x45c] sm:$0xf]
  %v332 = vld [vmem:[%s1 + $0x460] sm:$0xf]
  %v333 = vld [vmem:[%s1 + $0x464] sm:$0xf]
  %v334 = vld [vmem:[%s1 + $0x468] sm:$0xf]
  %v335 = vld [vmem:[%s1 + $0x46c] sm:$0xf]
  %v336 = vld [vmem:[%s1 + $0x470] sm:$0xf]
  %v337 = vld [vmem:[%s1 + $0x474] sm:$0xf]
  %v338 = vld [vmem:[%s1 + $0x478] sm:$0xf]
  %v339 = vld [vmem:[%s1 + $0x47c] sm:$0xf]
  %v340 = vld [vmem:[%s1 + $0x480] sm:$0xf]
  %v341 = vld [vmem:[%s1 + $0x484] sm:$0xf]
  %v342 = vld [vmem:[%s1 + $0x488] sm:$0xf]
  %v343 = vld [vmem:[%s1 + $0x48c] sm:$0xf]
  %v344 = vld [vmem:[%s1 + $0x490] sm:$0xf]
  %v345 = vld [vmem:[%s1 + $0x494] sm:$0xf]
  %v346 = vld [vmem:[%s1 + $0x498] sm:$0xf]
  %v347 = vld [vmem:[%s1 + $0x49c] sm:$0xf]
  %v348 = vld [vmem:[%s1 + $0x4a0] sm:$0xf]
  %v349 = vld [vmem:[%s1 + $0x4a4] sm:$0xf]
  %v350 = vld [vmem:[%s1 + $0x4a8] sm:$0xf]
  %v351 = vld [vmem:[%s1 + $0x4ac] sm:$0xf]
  %v352 = vld [vmem:[%s1 + $0x4b0] sm:$0xf]
  %v353 = vld [vmem:[%s1 + $0x4b4] sm:$0xf]
  %v354 = vld [vmem:[%s1 + $0x4b8] sm:$0xf]
  %v355 = vld [vmem:[%s1 + $0x4bc] sm:$0xf]
  %v356 = vld [vmem:[%s1 + $0x4c0] sm:$0xf]
  %v357 = vld [vmem:[%s1 + $0x4c4] sm:$0xf]
  %v358 = vld [vmem:[%s1 + $0x4c8] sm:$0xf]
  %v359 = vld [vmem:[%s1 + $0x4cc] sm:$0xf]
  %v360 = vld [vmem:[%s1 + $0x4d0] sm:$0xf]
  %v361 = vld [vmem:[%s1 + $0x4d4] sm:$0xf]
  %v362 = vld [vmem:[%s1 + $0x4d8] sm:$0xf]
  %v363 = vld [vmem:[%s1 + $0x4dc] sm:$0xf]
  %v364 = vld [vmem:[%s1 + $0x4e0] sm:$0xf]
  %v365 = vld [vmem:[%s1 + $0x4e4] sm:$0xf]
  %v366 = vld [vmem:[%s1 + $0x4e8] sm:$0xf]
  %v367 = vld [vmem:[%s1 + $0x4ec] sm:$0xf]
  %v368 = vld [vmem:[%s1 + $0x4f0] sm:$0xf]
  %v369 = vld [vmem:[%s1 + $0x4f4] sm:$0xf]
  %v370 = vld [vmem:[%s1 + $0x4f8] sm:$0xf]
  %v371 = vld [vmem:[%s1 + $0x4fc] sm:$0xf]
  %v372 = vld [vmem:[%s1 + $0x500] sm:$0xf]
  %v373 = vld [vmem:[%s1 + $0x504] sm:$0xf]
  %v374 = vld [vmem:[%s1 + $0x508] sm:$0xf]
  %v375 = vld [vmem:[%s1 + $0x50c] sm:$0xf]
  %v376 = vld [vmem:[%s1 + $0x510] sm:$0xf]
  %v377 = vld [vmem:[%s1 + $0x514] sm:$0xf]
  %v378 = vld [vmem:[%s1 + $0x518] sm:$0xf]
  %v379 = vld [vmem:[%s1 + $0x51c] sm:$0xf]
  %v380 = vld [vmem:[%s1 + $0x520] sm:$0xf]
  %v381 = vld [vmem:[%s1 + $0x524] sm:$0xf]
  %v382 = vld [vmem:[%s1 + $0x528] sm:$0xf]
  %v383 = vld [vmem:[%s1 + $0x52c] sm:$0xf]
  %v384 = vld [vmem:[%s1 + $0x530] sm:$0xf]
  %v385 = vld [vmem:[%s1 + $0x534] sm:$0xf]
  %v386 = vld [vmem:[%s1 + $0x538] sm:$0xf]
  %v387 = vld [vmem:[%s1 + $0x53c] sm:$0xf]
  %v388 = vld [vmem:[%s1 + $0x540] sm:$0xf]
  %v389 = vld [vmem:[%s1 + $0x544] sm:$0xf]
  %v390 = vld [vmem:[%s1 + $0x548] sm:$0xf]
  %v391 = vld [vmem:[%s1 + $0x54c] sm:$0xf]
  %v392 = vld [vmem:[%s1 + $0x550] sm:$0xf]
  %v393 = vld [vmem:[%s1 + $0x554] sm:$0xf]
  %v394 = vld [vmem:[%s1 + $0x558] sm:$0xf]
  %v395 = vld [vmem:[%s1 + $0x55c] sm:$0xf]
  %v396 = vld [vmem:[%s1 + $0x560] sm:$0xf]
  %v397 = vld [vmem:[%s1 + $0x564] sm:$0xf]
  %v398 = vld [vmem:[%s1 + $0x568] sm:$0xf]
  %v399 = vld [vmem:[%s1 + $0x56c] sm:$0xf]
  %v400 = vld [vmem:[%s1 + $0x570] sm:$0xf]
  %v401 = vld [vmem:[%s1 + $0x574] sm:$0xf]
  %v402 = vld [vmem:[%s1 + $0x578] sm:$0xf]
  %v403 = vld [vmem:[%s1 + $0x57c] sm:$0xf]
  %v404 = vld [vmem:[%s1 + $0x580] sm:$0xf]
  %v405 = vld [vmem:[%s1 + $0x584] sm:$0xf]
  %v406 = vld [vmem:[%s1 + $0x588] sm:$0xf]
  %v407 = vld [vmem:[%s1 + $0x58c] sm:$0xf]
  %v408 = vld [vmem:[%s1 + $0x590] sm:$0xf]
  %v409 = vld [vmem:[%s1 + $0x594] sm:$0xf]
  %v410 = vld [vmem:[%s1 + $0x598] sm:$0xf]
  %v411 = vld [vmem:[%s1 + $0x59c] sm:$0xf]
  %v412 = vld [vmem:[%s1 + $0x5a0] sm:$0xf]
  %v413 = vld [vmem:[%s1 + $0x5a4] sm:$0xf]
  %v414 = vld [vmem:[%s1 + $0x5a8] sm:$0xf]
  %v415 = vld [vmem:[%s1 + $0x5ac] sm:$0xf]
  %v416 = vld [vmem:[%s1 + $0x5b0] sm:$0xf]
  %v417 = vld [vmem:[%s1 + $0x5b4] sm:$0xf]
  %v418 = vld [vmem:[%s1 + $0x5b8] sm:$0xf]
  %v419 = vld [vmem:[%s1 + $0x5bc] sm:$0xf]
  %v420 = vld [vmem:[%s1 + $0x5c0] sm:$0xf]
  %v421 = vld [vmem:[%s1 + $0x5c4] sm:$0xf]
  %v422 = vld [vmem:[%s1 + $0x5c8] sm:$0xf]
  %v423 = vld [vmem:[%s1 + $0x5cc] sm:$0xf]
  %v424 = vld [vmem:[%s1 + $0x5d0] sm:$0xf]
  %v425 = vld [vmem:[%s1 + $0x5d4] sm:$0xf]
  %v426 = vld [vmem:[%s1 + $0x5d8] sm:$0xf]
  %v427 = vld [vmem:[%s1 + $0x5dc] sm:$0xf]
  %v428 = vld [vmem:[%s1 + $0x5e0] sm:$0xf]
  %v429 = vld [vmem:[%s1 + $0x5e4] sm:$0xf]
  %v430 = vld [vmem:[%s1 + $0x5e8] sm:$0xf]
  %v431 = vld [vmem:[%s1 + $0x5ec] sm:$0xf]
  %v432 = vld [vmem:[%s1 + $0x5f0] sm:$0xf]
  %v433 = vld [vmem:[%s1 + $0x5f4] sm:$0xf]
  %v434 = vld [vmem:[%s1 + $0x5f8] sm:$0xf]
  %v435 = vld [vmem:[%s1 + $0x5fc] sm:$0xf]
  %v436 = vld [vmem:[%s1 + $0x600] sm:$0xf]
  %v437 = vld [vmem:[%s1 + $0x604] sm:$0xf]
  %v438 = vld [vmem:[%s1 + $0x608] sm:$0xf]
  %v439 = vld [vmem:[%s1 + $0x60c] sm:$0xf]
  %v440 = vld [vmem:[%s1 + $0x610] sm:$0xf]
  %v441 = vld [vmem:[%s1 + $0x614] sm:$0xf]
  %v442 = vld [vmem:[%s1 + $0x618] sm:$0xf]
  %v443 = vld [vmem:[%s1 + $0x61c] sm:$0xf]
  %v444 = vld [vmem:[%s1 + $0x620] sm:$0xf]
  %v445 = vld [vmem:[%s1 + $0x624] sm:$0xf]
  %v446 = vld [vmem:[%s1 + $0x628] sm:$0xf]
  %v447 = vld [vmem:[%s1 + $0x62c] sm:$0xf]
  %v448 = vld [vmem:[%s1 + $0x630] sm:$0xf]
  %v449 = vld [vmem:[%s1 + $0x634] sm:$0xf]
  %v450 = vld [vmem:[%s1 + $0x638] sm:$0xf]
  %v451 = vld [vmem:[%s1 + $0x63c] sm:$0xf]
  %v452 = vld [vmem:[%s1 + $0x640] sm:$0xf]
  %v453 = vld [vmem:[%s1 + $0x644] sm:$0xf]
  %v454 = vld [vmem:[%s1 + $0x648] sm:$0xf]
  %v455 = vld [vmem:[%s1 + $0x64c] sm:$0xf]
  %v456 = vld [vmem:[%s1 + $0x650] sm:$0xf]
  %v457 = vld [vmem:[%s1 + $0x654] sm:$0xf]
  %v458 = vld [vmem:[%s1 + $0x658] sm:$0xf]
  %v459 = vld [vmem:[%s1 + $0x65c] sm:$0xf]
  %v460 = vld [vmem:[%s1 + $0x660] sm:$0xf]
  %v461 = vld [vmem:[%s1 + $0x664] sm:$0xf]
  %v462 = vld [vmem:[%s1 + $0x668] sm:$0xf]
  %v463 = vld [vmem:[%s1 + $0x66c] sm:$0xf]
  %v464 = vld [vmem:[%s1 + $0x670] sm:$0xf]
  %v465 = vld [vmem:[%s1 + $0x674] sm:$0xf]
  %v466 = vld [vmem:[%s1 + $0x678] sm:$0xf]
  %v467 = vld [vmem:[%s1 + $0x67c] sm:$0xf]
  %v468 = vld [vmem:[%s1 + $0x680] sm:$0xf]
  %v469 = vld [vmem:[%s1 + $0x684] sm:$0xf]
  %v470 = vld [vmem:[%s1 + $0x688] sm:$0xf]
  %v471 = vld [vmem:[%s1 + $0x68c] sm:$0xf]
  %v472 = vld [vmem:[%s1 + $0x690] sm:$0xf]
  %v473 = vld [vmem:[%s1 + $0x694] sm:$0xf]
  %v474 = vld [vmem:[%s1 + $0x698] sm:$0xf]
  %v475 = vld [vmem:[%s1 + $0x69c] sm:$0xf]
  %v476 = vld [vmem:[%s1 + $0x6a0] sm:$0xf]
  %v477 = vld [vmem:[%s1 + $0x6a4] sm:$0xf]
  %v478 = vld [vmem:[%s1 + $0x6a8] sm:$0xf]
  %v479 = vld [vmem:[%s1 + $0x6ac] sm:$0xf]
  %v480 = vld [vmem:[%s1 + $0x6b0] sm:$0xf]
  %v481 = vld [vmem:[%s1 + $0x6b4] sm:$0xf]
  %v482 = vld [vmem:[%s1 + $0x6b8] sm:$0xf]
  %v483 = vld [vmem:[%s1 + $0x6bc] sm:$0xf]
  %v484 = vld [vmem:[%s1 + $0x6c0] sm:$0xf]
  %v485 = vld [vmem:[%s1 + $0x6c4] sm:$0xf]
  %v486 = vld [vmem:[%s1 + $0x6c8] sm:$0xf]
  %v487 = vld [vmem:[%s1 + $0x6cc] sm:$0xf]
  %v488 = vld [vmem:[%s1 + $0x6d0] sm:$0xf]
  %v489 = vld [vmem:[%s1 + $0x6d4] sm:$0xf]
  %v490 = vld [vmem:[%s1 + $0x6d8] sm:$0xf]
  %v491 = vld [vmem:[%s1 + $0x6dc] sm:$0xf]
  %v492 = vld [vmem:[%s1 + $0x6e0] sm:$0xf]
  %v493 = vld [vmem:[%s1 + $0x6e4] sm:$0xf]
  %v494 = vld [vmem:[%s1 + $0x6e8] sm:$0xf]
  %v495 = vld [vmem:[%s1 + $0x6ec] sm:$0xf]
  %v496 = vld [vmem:[%s1 + $0x6f0] sm:$0xf]
  %v497 = vld [vmem:[%s1 + $0x6f4] sm:$0xf]
  %v498 = vld [vmem:[%s1 + $0x6f8] sm:$0xf]
  %v499 = vld [vmem:[%s1 + $0x6fc] sm:$0xf]
  %v500 = vld [vmem:[%s1 + $0x700] sm:$0xf]
  %v501 = vld [vmem:[%s1 + $0x704] sm:$0xf]
  %v502 = vld [vmem:[%s1 + $0x708] sm:$0xf]
  %v503 = vld [vmem:[%s1 + $0x70c] sm:$0xf]
  %v504 = vld [vmem:[%s1 + $0x710] sm:$0xf]
  %v505 = vld [vmem:[%s1 + $0x714] sm:$0xf]
  %v506 = vld [vmem:[%s1 + $0x718] sm:$0xf]
  %v507 = vld [vmem:[%s1 + $0x71c] sm:$0xf]
  %v508 = vld [vmem:[%s1 + $0x720] sm:$0xf]
  %v509 = vld [vmem:[%s1 + $0x724] sm:$0xf]
  %v510 = vld [vmem:[%s1 + $0x728] sm:$0xf]
  %v511 = vld [vmem:[%s1 + $0x72c] sm:$0xf]
  %v512 = vld [vmem:[%s1 + $0x730] sm:$0xf]
  %v513 = vld [vmem:[%s1 + $0x734] sm:$0xf]
  %v514 = vld [vmem:[%s1 + $0x738] sm:$0xf]
  %v515 = vld [vmem:[%s1 + $0x73c] sm:$0xf]
  %v516 = vld [vmem:[%s1 + $0x740] sm:$0xf]
  %v517 = vld [vmem:[%s1 + $0x744] sm:$0xf]
  %v518 = vld [vmem:[%s1 + $0x748] sm:$0xf]
  %v519 = vld [vmem:[%s1 + $0x74c] sm:$0xf]
  %v520 = vld [vmem:[%s1 + $0x750] sm:$0xf]
  %v521 = vld [vmem:[%s1 + $0x754] sm:$0xf]
  %v522 = vld [vmem:[%s1 + $0x758] sm:$0xf]
  %v523 = vld [vmem:[%s1 + $0x75c] sm:$0xf]
  %v524 = vld [vmem:[%s1 + $0x760] sm:$0xf]
  %v525 = vld [vmem:[%s1 + $0x764] sm:$0xf]
  %v526 = vld [vmem:[%s1 + $0x768] sm:$0xf]
  %v527 = vld [vmem:[%s1 + $0x76c] sm:$0xf]
  %v528 = vld [vmem:[%s1 + $0x770] sm:$0xf]
  %v529 = vld [vmem:[%s1 + $0x774] sm:$0xf]
  %v530 = vld [vmem:[%s1 + $0x778] sm:$0xf]
  %v531 = vld [vmem:[%s1 + $0x77c] sm:$0xf]
  %v532 = vld [vmem:[%s1 + $0x780] sm:$0xf]
  %v533 = vld [vmem:[%s1 + $0x784] sm:$0xf]
  %v534 = vld [vmem:[%s1 + $0x788] sm:$0xf]
  %v535 = vld [vmem:[%s1 + $0x78c] sm:$0xf]
  %v536 = vld [vmem:[%s1 + $0x790] sm:$0xf]
  %v537 = vld [vmem:[%s1 + $0x794] sm:$0xf]
  %v538 = vld [vmem:[%s1 + $0x798] sm:$0xf]
  %v539 = vld [vmem:[%s1 + $0x79c] sm:$0xf]
  %v540 = vld [vmem:[%s1 + $0x7a0] sm:$0xf]
  %v541 = vld [vmem:[%s1 + $0x7a4] sm:$0xf]
  %v542 = vld [vmem:[%s1 + $0x7a8] sm:$0xf]
  %v543 = vld [vmem:[%s1 + $0x7ac] sm:$0xf]
  %v544 = vld [vmem:[%s1 + $0x7b0] sm:$0xf]
  %v545 = vld [vmem:[%s1 + $0x7b4] sm:$0xf]
  %v546 = vld [vmem:[%s1 + $0x7b8] sm:$0xf]
  %v547 = vld [vmem:[%s1 + $0x7bc] sm:$0xf]
  %v548 = vld [vmem:[%s1 + $0x7c0] sm:$0xf]
  %v549 = vld [vmem:[%s1 + $0x7c4] sm:$0xf]
  %v550 = vld [vmem:[%s1 + $0x7c8] sm:$0xf]
  %v551 = vld [vmem:[%s1 + $0x7cc] sm:$0xf]
  %v552 = vld [vmem:[%s1 + $0x7d0] sm:$0xf]
  %v553 = vld [vmem:[%s1 + $0x7d4] sm:$0xf]
  %v554 = vld [vmem:[%s1 + $0x7d8] sm:$0xf]
  %v555 = vld [vmem:[%s1 + $0x7dc] sm:$0xf]
  %v556 = vld [vmem:[%s1 + $0x7e0] sm:$0xf]
  %v557 = vld [vmem:[%s1 + $0x7e4] sm:$0xf]
  %v558 = vld [vmem:[%s1 + $0x7e8] sm:$0xf]
  %v559 = vld [vmem:[%s1 + $0x7ec] sm:$0xf]
  %v560 = vld [vmem:[%s1 + $0x7f0] sm:$0xf]
  %v561 = vld [vmem:[%s1 + $0x7f4] sm:$0xf]
  %v562 = vld [vmem:[%s1 + $0x7f8] sm:$0xf]
  %v563 = vld [vmem:[%s1 + $0x7fc] sm:$0xf]
  %v564 = vld [vmem:[%s1 + $0x800] sm:$0xf]
  %v565 = vld [vmem:[%s1 + $0x804] sm:$0xf]
  %v566 = vld [vmem:[%s1 + $0x808] sm:$0xf]
  %v567 = vld [vmem:[%s1 + $0x80c] sm:$0xf]
  %v568 = vld [vmem:[%s1 + $0x810] sm:$0xf]
  %v569 = vld [vmem:[%s1 + $0x814] sm:$0xf]
  %v570 = vld [vmem:[%s1 + $0x818] sm:$0xf]
  %v571 = vld [vmem:[%s1 + $0x81c] sm:$0xf]
  %v572 = vld [vmem:[%s1 + $0x820] sm:$0xf]
  %v573 = vld [vmem:[%s1 + $0x824] sm:$0xf]
  %v574 = vld [vmem:[%s1 + $0x828] sm:$0xf]
  %v575 = vld [vmem:[%s1 + $0x82c] sm:$0xf]
  %v576 = vld [vmem:[%s1 + $0x830] sm:$0xf]
  %v577 = vld [vmem:[%s1 + $0x834] sm:$0xf]
  %v578 = vld [vmem:[%s1 + $0x838] sm:$0xf]
  %v579 = vld [vmem:[%s1 + $0x83c] sm:$0xf]
  %v580 = vld [vmem:[%s1 + $0x840] sm:$0xf]
  %v581 = vld [vmem:[%s1 + $0x844] sm:$0xf]
  %v582 = vld [vmem:[%s1 + $0x848] sm:$0xf]
  %v583 = vld [vmem:[%s1 + $0x84c] sm:$0xf]
  %v584 = vld [vmem:[%s1 + $0x850] sm:$0xf]
  %v585 = vld [vmem:[%s1 + $0x854] sm:$0xf]
  %v586 = vld [vmem:[%s1 + $0x858] sm:$0xf]
  %v587 = vld [vmem:[%s1 + $0x85c] sm:$0xf]
  %v588 = vld [vmem:[%s1 + $0x860] sm:$0xf]
  %v589 = vld [vmem:[%s1 + $0x864] sm:$0xf]
  %v590 = vld [vmem:[%s1 + $0x868] sm:$0xf]
  %v591 = vld [vmem:[%s1 + $0x86c] sm:$0xf]
  %v592 = vld [vmem:[%s1 + $0x870] sm:$0xf]
  %v593 = vld [vmem:[%s1 + $0x874] sm:$0xf]
  %v594 = vld [vmem:[%s1 + $0x878] sm:$0xf]
  %v595 = vld [vmem:[%s1 + $0x87c] sm:$0xf]
  %v596 = vld [vmem:[%s1 + $0x880] sm:$0xf]
  %v597 = vld [vmem:[%s1 + $0x884] sm:$0xf]
  %v598 = vld [vmem:[%s1 + $0x888] sm:$0xf]
  %v599 = vld [vmem:[%s1 + $0x88c] sm:$0xf]
  %v600 = vld [vmem:[%s1 + $0x890] sm:$0xf]
  %v601 = vld [vmem:[%s1 + $0x894] sm:$0xf]
  %v602 = vld [vmem:[%s1 + $0x898] sm:$0xf]
  %v603 = vld [vmem:[%s1 + $0x89c] sm:$0xf]
  %v604 = vld [vmem:[%s1 + $0x8a0] sm:$0xf]
  %v605 = vld [vmem:[%s1 + $0x8a4] sm:$0xf]
  %v606 = vld [vmem:[%s1 + $0x8a8] sm:$0xf]
  %v607 = vld [vmem:[%s1 + $0x8ac] sm:$0xf]
  %v608 = vld [vmem:[%s1 + $0x8b0] sm:$0xf]
  %v609 = vld [vmem:[%s1 + $0x8b4] sm:$0xf]
  %v610 = vld [vmem:[%s1 + $0x8b8] sm:$0xf]
  %v611 = vld [vmem:[%s1 + $0x8bc] sm:$0xf]
  %v612 = vld [vmem:[%s1 + $0x8c0] sm:$0xf]
  %v613 = vld [vmem:[%s1 + $0x8c4] sm:$0xf]
  %v614 = vld [vmem:[%s1 + $0x8c8] sm:$0xf]
  %v615 = vld [vmem:[%s1 + $0x8cc] sm:$0xf]
  %v616 = vld [vmem:[%s1 + $0x8d0] sm:$0xf]
  %v617 = vld [vmem:[%s1 + $0x8d4] sm:$0xf]
  %v618 = vld [vmem:[%s1 + $0x8d8] sm:$0xf]
  %v619 = vld [vmem:[%s1 + $0x8dc] sm:$0xf]
  %v620 = vld [vmem:[%s1 + $0x8e0] sm:$0xf]
  %v621 = vld [vmem:[%s1 + $0x8e4] sm:$0xf]
  %v622 = vld [vmem:[%s1 + $0x8e8] sm:$0xf]
  %v623 = vld [vmem:[%s1 + $0x8ec] sm:$0xf]
  %v624 = vld [vmem:[%s1 + $0x8f0] sm:$0xf]
  %v625 = vld [vmem:[%s1 + $0x8f4] sm:$0xf]
  %v626 = vld [vmem:[%s1 + $0x8f8] sm:$0xf]
  %v627 = vld [vmem:[%s1 + $0x8fc] sm:$0xf]
  %v628 = vld [vmem:[%s1 + $0x900] sm:$0xf]
  %v629 = vld [vmem:[%s1 + $0x904] sm:$0xf]
  %v630 = vld [vmem:[%s1 + $0x908] sm:$0xf]
  %v631 = vld [vmem:[%s1 + $0x90c] sm:$0xf]
  %v632 = vld [vmem:[%s1 + $0x910] sm:$0xf]
  %v633 = vld [vmem:[%s1 + $0x914] sm:$0xf]
  %v634 = vld [vmem:[%s1 + $0x918] sm:$0xf]
  %v635 = vld [vmem:[%s1 + $0x91c] sm:$0xf]
  %v636 = vld [vmem:[%s1 + $0x920] sm:$0xf]
  %v637 = vld [vmem:[%s1 + $0x924] sm:$0xf]
  %v638 = vld [vmem:[%s1 + $0x928] sm:$0xf]
  %v639 = vld [vmem:[%s1 + $0x92c] sm:$0xf]
  %v640 = vld [vmem:[%s1 + $0x930] sm:$0xf]
  %v641 = vld [vmem:[%s1 + $0x934] sm:$0xf]
  %v642 = vld [vmem:[%s1 + $0x938] sm:$0xf]
  %v643 = vld [vmem:[%s1 + $0x93c] sm:$0xf]
  %v644 = vld [vmem:[%s1 + $0x940] sm:$0xf]
  %v645 = vld [vmem:[%s1 + $0x944] sm:$0xf]
  %v646 = vld [vmem:[%s1 + $0x948] sm:$0xf]
  %v647 = vld [vmem:[%s1 + $0x94c] sm:$0xf]
  %v648 = vld [vmem:[%s1 + $0x950] sm:$0xf]
  %v649 = vld [vmem:[%s1 + $0x954] sm:$0xf]
  %v650 = vld [vmem:[%s1 + $0x958] sm:$0xf]
  %v651 = vld [vmem:[%s1 + $0x95c] sm:$0xf]
  %v652 = vld [vmem:[%s1 + $0x960] sm:$0xf]
  %v653 = vld [vmem:[%s1 + $0x964] sm:$0xf]
  %v654 = vld [vmem:[%s1 + $0x968] sm:$0xf]
  %v655 = vld [vmem:[%s1 + $0x96c] sm:$0xf]
  %v656 = vld [vmem:[%s1 + $0x970] sm:$0xf]
  %v657 = vld [vmem:[%s1 + $0x974] sm:$0xf]
  %v658 = vld [vmem:[%s1 + $0x978] sm:$0xf]
  %v659 = vld [vmem:[%s1 + $0x97c] sm:$0xf]
  %v660 = vld [vmem:[%s1 + $0x980] sm:$0xf]
  %v661 = vld [vmem:[%s1 + $0x984] sm:$0xf]
  %v662 = vld [vmem:[%s1 + $0x988] sm:$0xf]
  %v663 = vld [vmem:[%s1 + $0x98c] sm:$0xf]
  %v664 = vld [vmem:[%s1 + $0x990] sm:$0xf]
  %v665 = vld [vmem:[%s1 + $0x994] sm:$0xf]
  %v666 = vld [vmem:[%s1 + $0x998] sm:$0xf]
  %v667 = vld [vmem:[%s1 + $0x99c] sm:$0xf]
  %v668 = vld [vmem:[%s1 + $0x9a0] sm:$0xf]
  %v669 = vld [vmem:[%s1 + $0x9a4] sm:$0xf]
  %v670 = vld [vmem:[%s1 + $0x9a8] sm:$0xf]
  %v671 = vld [vmem:[%s1 + $0x9ac] sm:$0xf]
  %v672 = vld [vmem:[%s1 + $0x9b0] sm:$0xf]
  %v673 = vld [vmem:[%s1 + $0x9b4] sm:$0xf]
  %v674 = vld [vmem:[%s1 + $0x9b8] sm:$0xf]
  %v675 = vld [vmem:[%s1 + $0x9bc] sm:$0xf]
  %v676 = vld [vmem:[%s1 + $0x9c0] sm:$0xf]
  %v677 = vld [vmem:[%s1 + $0x9c4] sm:$0xf]
  %v678 = vld [vmem:[%s1 + $0x9c8] sm:$0xf]
  %v679 = vld [vmem:[%s1 + $0x9cc] sm:$0xf]
  %v680 = vld [vmem:[%s1 + $0x9d0] sm:$0xf]
  %v681 = vld [vmem:[%s1 + $0x9d4] sm:$0xf]
  %v682 = vld [vmem:[%s1 + $0x9d8] sm:$0xf]
  %v683 = vld [vmem:[%s1 + $0x9dc] sm:$0xf]
  %v684 = vld [vmem:[%s1 + $0x9e0] sm:$0xf]
  %v685 = vld [vmem:[%s1 + $0x9e4] sm:$0xf]
  %v686 = vld [vmem:[%s1 + $0x9e8] sm:$0xf]
  %v687 = vld [vmem:[%s1 + $0x9ec] sm:$0xf]
  %v688 = vld [vmem:[%s1 + $0x9f0] sm:$0xf]
  %v689 = vld [vmem:[%s1 + $0x9f4] sm:$0xf]
  %v690 = vld [vmem:[%s1 + $0x9f8] sm:$0xf]
  %v691 = vld [vmem:[%s1 + $0x9fc] sm:$0xf]
  %v692 = vld [vmem:[%s1 + $0xa00] sm:$0xf]
  %v693 = vld [vmem:[%s1 + $0xa04] sm:$0xf]
  %v694 = vld [vmem:[%s1 + $0xa08] sm:$0xf]
  %v695 = vld [vmem:[%s1 + $0xa0c] sm:$0xf]
  %v696 = vld [vmem:[%s1 + $0xa10] sm:$0xf]
  %v697 = vld [vmem:[%s1 + $0xa14] sm:$0xf]
  %v698 = vld [vmem:[%s1 + $0xa18] sm:$0xf]
  %v699 = vld [vmem:[%s1 + $0xa1c] sm:$0xf]
  %v700 = vld [vmem:[%s1 + $0xa20] sm:$0xf]
  %v701 = vld [vmem:[%s1 + $0xa24] sm:$0xf]
  %v702 = vld [vmem:[%s1 + $0xa28] sm:$0xf]
  %v703 = vld [vmem:[%s1 + $0xa2c] sm:$0xf]
  %v704 = vld [vmem:[%s1 + $0xa30] sm:$0xf]
  %v705 = vld [vmem:[%s1 + $0xa34] sm:$0xf]
  %v706 = vld [vmem:[%s1 + $0xa38] sm:$0xf]
  %v707 = vld [vmem:[%s1 + $0xa3c] sm:$0xf]
  %v708 = vld [vmem:[%s1 + $0xa40] sm:$0xf]
  %v709 = vld [vmem:[%s1 + $0xa44] sm:$0xf]
  %v710 = vld [vmem:[%s1 + $0xa48] sm:$0xf]
  %v711 = vld [vmem:[%s1 + $0xa4c] sm:$0xf]
  %v712 = vld [vmem:[%s1 + $0xa50] sm:$0xf]
  %v713 = vld [vmem:[%s1 + $0xa54] sm:$0xf]
  %v714 = vld [vmem:[%s1 + $0xa58] sm:$0xf]
  %v715 = vld [vmem:[%s1 + $0xa5c] sm:$0xf]
  %v716 = vld [vmem:[%s1 + $0xa60] sm:$0xf]
  %v717 = vld [vmem:[%s1 + $0xa64] sm:$0xf]
  %v718 = vld [vmem:[%s1 + $0xa68] sm:$0xf]
  %v719 = vld [vmem:[%s1 + $0xa6c] sm:$0xf]
  %v720 = vld [vmem:[%s1 + $0xa70] sm:$0xf]
  %v721 = vld [vmem:[%s1 + $0xa74] sm:$0xf]
  %v722 = vld [vmem:[%s1 + $0xa78] sm:$0xf]
  %v723 = vld [vmem:[%s1 + $0xa7c] sm:$0xf]
  %v724 = vld [vmem:[%s1 + $0xa80] sm:$0xf]
  %v725 = vld [vmem:[%s1 + $0xa84] sm:$0xf]
  %v726 = vld [vmem:[%s1 + $0xa88] sm:$0xf]
  %v727 = vld [vmem:[%s1 + $0xa8c] sm:$0xf]
  %v728 = vld [vmem:[%s1 + $0xa90] sm:$0xf]
  %v729 = vld [vmem:[%s1 + $0xa94] sm:$0xf]
  %v730 = vld [vmem:[%s1 + $0xa98] sm:$0xf]
  %v731 = vld [vmem:[%s1 + $0xa9c] sm:$0xf]
  %v732 = vld [vmem:[%s1 + $0xaa0] sm:$0xf]
  %v733 = vld [vmem:[%s1 + $0xaa4] sm:$0xf]
  %v734 = vld [vmem:[%s1 + $0xaa8] sm:$0xf]
  %v735 = vld [vmem:[%s1 + $0xaac] sm:$0xf]
  %v736 = vld [vmem:[%s1 + $0xab0] sm:$0xf]
  %v737 = vld [vmem:[%s1 + $0xab4] sm:$0xf]
  %v738 = vld [vmem:[%s1 + $0xab8] sm:$0xf]
  %v739 = vld [vmem:[%s1 + $0xabc] sm:$0xf]
  %v740 = vld [vmem:[%s1 + $0xac0] sm:$0xf]
  %v741 = vld [vmem:[%s1 + $0xac4] sm:$0xf]
  %v742 = vld [vmem:[%s1 + $0xac8] sm:$0xf]
  %v743 = vld [vmem:[%s1 + $0xacc] sm:$0xf]
  %v744 = vld [vmem:[%s1 + $0xad0] sm:$0xf]
  %v745 = vld [vmem:[%s1 + $0xad4] sm:$0xf]
  %v746 = vld [vmem:[%s1 + $0xad8] sm:$0xf]
  %v747 = vld [vmem:[%s1 + $0xadc] sm:$0xf]
  %v748 = vld [vmem:[%s1 + $0xae0] sm:$0xf]
  %v749 = vld [vmem:[%s1 + $0xae4] sm:$0xf]
  %v750 = vld [vmem:[%s1 + $0xae8] sm:$0xf]
  %v751 = vld [vmem:[%s1 + $0xaec] sm:$0xf]
  %v752 = vld [vmem:[%s1 + $0xaf0] sm:$0xf]
  %v753 = vld [vmem:[%s1 + $0xaf4] sm:$0xf]
  %v754 = vld [vmem:[%s1 + $0xaf8] sm:$0xf]
  %v755 = vld [vmem:[%s1 + $0xafc] sm:$0xf]
  %v756 = vld [vmem:[%s1 + $0xb00] sm:$0xf]
  %v757 = vld [vmem:[%s1 + $0xb04] sm:$0xf]
  %v758 = vld [vmem:[%s1 + $0xb08] sm:$0xf]
  %v759 = vld [vmem:[%s1 + $0xb0c] sm:$0xf]
  %v760 = vld [vmem:[%s1 + $0xb10] sm:$0xf]
  %v761 = vld [vmem:[%s1 + $0xb14] sm:$0xf]
  %v762 = vld [vmem:[%s1 + $0xb18] sm:$0xf]
  %v763 = vld [vmem:[%s1 + $0xb1c] sm:$0xf]
  %v764 = vld [vmem:[%s1 + $0xb20] sm:$0xf]
  %v765 = vld [vmem:[%s1 + $0xb24] sm:$0xf]
  %v766 = vld [vmem:[%s1 + $0xb28] sm:$0xf]
  %v767 = vld [vmem:[%s1 + $0xb2c] sm:$0xf]
  %v768 = vld [vmem:[%s1 + $0xb30] sm:$0xf]
  %v769 = vld [vmem:[%s1 + $0xb34] sm:$0xf]
  %v770 = vld [vmem:[%s1 + $0xb38] sm:$0xf]
  %v771 = vld [vmem:[%s1 + $0xb3c] sm:$0xf]
  %v772 = vld [vmem:[%s1 + $0xb40] sm:$0xf]
  %v773 = vld [vmem:[%s1 + $0xb44] sm:$0xf]
  %v774 = vld [vmem:[%s1 + $0xb48] sm:$0xf]
  %v775 = vld [vmem:[%s1 + $0xb4c] sm:$0xf]
  %v776 = vld [vmem:[%s1 + $0xb50] sm:$0xf]
  %v777 = vld [vmem:[%s1 + $0xb54] sm:$0xf]
  %v778 = vld [vmem:[%s1 + $0xb58] sm:$0xf]
  %v779 = vld [vmem:[%s1 + $0xb5c] sm:$0xf]
  %v780 = vld [vmem:[%s1 + $0xb60] sm:$0xf]
  %v781 = vld [vmem:[%s1 + $0xb64] sm:$0xf]
  %v782 = vld [vmem:[%s1 + $0xb68] sm:$0xf]
  %v783 = vld [vmem:[%s1 + $0xb6c] sm:$0xf]
  %v784 = vld [vmem:[%s1 + $0xb70] sm:$0xf]
  %v785 = vld [vmem:[%s1 + $0xb74] sm:$0xf]
  %v786 = vld [vmem:[%s1 + $0xb78] sm:$0xf]
  %v787 = vld [vmem:[%s1 + $0xb7c] sm:$0xf]
  %v788 = vld [vmem:[%s1 + $0xb80] sm:$0xf]
  %v789 = vld [vmem:[%s1 + $0xb84] sm:$0xf]
  %v790 = vld [vmem:[%s1 + $0xb88] sm:$0xf]
  %v791 = vld [vmem:[%s1 + $0xb8c] sm:$0xf]
  %v792 = vld [vmem:[%s1 + $0xb90] sm:$0xf]
  %v793 = vld [vmem:[%s1 + $0xb94] sm:$0xf]
  %v794 = vld [vmem:[%s1 + $0xb98] sm:$0xf]
  %v795 = vld [vmem:[%s1 + $0xb9c] sm:$0xf]
  %v796 = vld [vmem:[%s1 + $0xba0] sm:$0xf]
  %v797 = vld [vmem:[%s1 + $0xba4] sm:$0xf]
  %v798 = vld [vmem:[%s1 + $0xba8] sm:$0xf]
  %v799 = vld [vmem:[%s1 + $0xbac] sm:$0xf]
  %v800 = vld [vmem:[%s1 + $0xbb0] sm:$0xf]
  %v801 = vld [vmem:[%s1 + $0xbb4] sm:$0xf]
  %v802 = vld [vmem:[%s1 + $0xbb8] sm:$0xf]
  %v803 = vld [vmem:[%s1 + $0xbbc] sm:$0xf]
  %v804 = vld [vmem:[%s1 + $0xbc0] sm:$0xf]
  %v805 = vld [vmem:[%s1 + $0xbc4] sm:$0xf]
  %v806 = vld [vmem:[%s1 + $0xbc8] sm:$0xf]
  %v807 = vld [vmem:[%s1 + $0xbcc] sm:$0xf]
  %v808 = vld [vmem:[%s1 + $0xbd0] sm:$0xf]
  %v809 = vld [vmem:[%s1 + $0xbd4] sm:$0xf]
  %v810 = vld [vmem:[%s1 + $0xbd8] sm:$0xf]
  %v811 = vld [vmem:[%s1 + $0xbdc] sm:$0xf]
  %v812 = vld [vmem:[%s1 + $0xbe0] sm:$0xf]
  %v813 = vld [vmem:[%s1 + $0xbe4] sm:$0xf]
  %v814 = vld [vmem:[%s1 + $0xbe8] sm:$0xf]
  %v815 = vld [vmem:[%s1 + $0xbec] sm:$0xf]
  %v816 = vld [vmem:[%s1 + $0xbf0] sm:$0xf]
  %v817 = vld [vmem:[%s1 + $0xbf4] sm:$0xf]
  %v818 = vld [vmem:[%s1 + $0xbf8] sm:$0xf]
  %v819 = vld [vmem:[%s1 + $0xbfc] sm:$0xf]
  %v820 = vld [vmem:[%s1 + $0xc00] sm:$0xf]
  %v821 = vld [vmem:[%s1 + $0xc04] sm:$0xf]
  %v822 = vld [vmem:[%s1 + $0xc08] sm:$0xf]
  %v823 = vld [vmem:[%s1 + $0xc0c] sm:$0xf]
  %v824 = vld [vmem:[%s1 + $0xc10] sm:$0xf]
  %v825 = vld [vmem:[%s1 + $0xc14] sm:$0xf]
  %v826 = vld [vmem:[%s1 + $0xc18] sm:$0xf]
  %v827 = vld [vmem:[%s1 + $0xc1c] sm:$0xf]
  %v828 = vld [vmem:[%s1 + $0xc20] sm:$0xf]
  %v829 = vld [vmem:[%s1 + $0xc24] sm:$0xf]
  %v830 = vld [vmem:[%s1 + $0xc28] sm:$0xf]
  %v831 = vld [vmem:[%s1 + $0xc2c] sm:$0xf]
  %v832 = vld [vmem:[%s1 + $0xc30] sm:$0xf]
  %v833 = vld [vmem:[%s1 + $0xc34] sm:$0xf]
  %v834 = vld [vmem:[%s1 + $0xc38] sm:$0xf]
  %v835 = vld [vmem:[%s1 + $0xc3c] sm:$0xf]
  %v836 = vld [vmem:[%s1 + $0xc40] sm:$0xf]
  %v837 = vld [vmem:[%s1 + $0xc44] sm:$0xf]
  %v838 = vld [vmem:[%s1 + $0xc48] sm:$0xf]
  %v839 = vld [vmem:[%s1 + $0xc4c] sm:$0xf]
  %v840 = vld [vmem:[%s1 + $0xc50] sm:$0xf]
  %v841 = vld [vmem:[%s1 + $0xc54] sm:$0xf]
  %v842 = vld [vmem:[%s1 + $0xc58] sm:$0xf]
  %v843 = vld [vmem:[%s1 + $0xc5c] sm:$0xf]
  %v844 = vld [vmem:[%s1 + $0xc60] sm:$0xf]
  %v845 = vld [vmem:[%s1 + $0xc64] sm:$0xf]
  %v846 = vld [vmem:[%s1 + $0xc68] sm:$0xf]
  %v847 = vld [vmem:[%s1 + $0xc6c] sm:$0xf]
  %v848 = vld [vmem:[%s1 + $0xc70] sm:$0xf]
  %v849 = vld [vmem:[%s1 + $0xc74] sm:$0xf]
  %v850 = vld [vmem:[%s1 + $0xc78] sm:$0xf]
  %v851 = vld [vmem:[%s1 + $0xc7c] sm:$0xf]
  %v852 = vld [vmem:[%s1 + $0xc80] sm:$0xf]
  %v853 = vld [vmem:[%s1 + $0xc84] sm:$0xf]
  %v854 = vld [vmem:[%s1 + $0xc88] sm:$0xf]
  %v855 = vld [vmem:[%s1 + $0xc8c] sm:$0xf]
  %v856 = vld [vmem:[%s1 + $0xc90] sm:$0xf]
  %v857 = vld [vmem:[%s1 + $0xc94] sm:$0xf]
  %v858 = vld [vmem:[%s1 + $0xc98] sm:$0xf]
  %v859 = vld [vmem:[%s1 + $0xc9c] sm:$0xf]
  %v860 = vld [vmem:[%s1 + $0xca0] sm:$0xf]
  %v861 = vld [vmem:[%s1 + $0xca4] sm:$0xf]
  %v862 = vld [vmem:[%s1 + $0xca8] sm:$0xf]
  %v863 = vld [vmem:[%s1 + $0xcac] sm:$0xf]
  %v864 = vld [vmem:[%s1 + $0xcb0] sm:$0xf]
  %v865 = vld [vmem:[%s1 + $0xcb4] sm:$0xf]
  %v866 = vld [vmem:[%s1 + $0xcb8] sm:$0xf]
  %v867 = vld [vmem:[%s1 + $0xcbc] sm:$0xf]
  %v868 = vld [vmem:[%s1 + $0xcc0] sm:$0xf]
  %v869 = vld [vmem:[%s1 + $0xcc4] sm:$0xf]
  %v870 = vld [vmem:[%s1 + $0xcc8] sm:$0xf]
  %v871 = vld [vmem:[%s1 + $0xccc] sm:$0xf]
  %v872 = vld [vmem:[%s1 + $0xcd0] sm:$0xf]
  %v873 = vld [vmem:[%s1 + $0xcd4] sm:$0xf]
  %v874 = vld [vmem:[%s1 + $0xcd8] sm:$0xf]
  %v875 = vld [vmem:[%s1 + $0xcdc] sm:$0xf]
  %v876 = vld [vmem:[%s1 + $0xce0] sm:$0xf]
  %v877 = vld [vmem:[%s1 + $0xce4] sm:$0xf]
  %v878 = vld [vmem:[%s1 + $0xce8] sm:$0xf]
  %v879 = vld [vmem:[%s1 + $0xcec] sm:$0xf]
  %v880 = vld [vmem:[%s1 + $0xcf0] sm:$0xf]
  %v881 = vld [vmem:[%s1 + $0xcf4] sm:$0xf]
  %v882 = vld [vmem:[%s1 + $0xcf8] sm:$0xf]
  %v883 = vld [vmem:[%s1 + $0xcfc] sm:$0xf]
  %v884 = vld [vmem:[%s1 + $0xd00] sm:$0xf]
  %v885 = vld [vmem:[%s1 + $0xd04] sm:$0xf]
  %v886 = vld [vmem:[%s1 + $0xd08] sm:$0xf]
  %v887 = vld [vmem:[%s1 + $0xd0c] sm:$0xf]
  %v888 = vld [vmem:[%s1 + $0xd10] sm:$0xf]
  %v889 = vld [vmem:[%s1 + $0xd14] sm:$0xf]
  %v890 = vld [vmem:[%s1 + $0xd18] sm:$0xf]
  %v891 = vld [vmem:[%s1 + $0xd1c] sm:$0xf]
  %v892 = vld [vmem:[%s1 + $0xd20] sm:$0xf]
  %v893 = vld [vmem:[%s1 + $0xd24] sm:$0xf]
  %v894 = vld [vmem:[%s1 + $0xd28] sm:$0xf]
  %v895 = vld [vmem:[%s1 + $0xd2c] sm:$0xf]
  %v896 = vld [vmem:[%s1 + $0xd30] sm:$0xf]
  %v897 = vld [vmem:[%s1 + $0xd34] sm:$0xf]
  %v898 = vld [vmem:[%s1 + $0xd38] sm:$0xf]
  %v899 = vld [vmem:[%s1 + $0xd3c] sm:$0xf]
  %v900 = vld [vmem:[%s1 + $0xd40] sm:$0xf]
  %v901 = vld [vmem:[%s1 + $0xd44] sm:$0xf]
  %v902 = vld [vmem:[%s1 + $0xd48] sm:$0xf]
  %v903 = vld [vmem:[%s1 + $0xd4c] sm:$0xf]
  %v904 = vld [vmem:[%s1 + $0xd50] sm:$0xf]
  %v905 = vld [vmem:[%s1 + $0xd54] sm:$0xf]
  %v906 = vld [vmem:[%s1 + $0xd58] sm:$0xf]
  %v907 = vld [vmem:[%s1 + $0xd5c] sm:$0xf]
  %v908 = vld [vmem:[%s1 + $0xd60] sm:$0xf]
  %v909 = vld [vmem:[%s1 + $0xd64] sm:$0xf]
  %v910 = vld [vmem:[%s1 + $0xd68] sm:$0xf]
  %v911 = vld [vmem:[%s1 + $0xd6c] sm:$0xf]
  %v912 = vld [vmem:[%s1 + $0xd70] sm:$0xf]
  %v913 = vld [vmem:[%s1 + $0xd74] sm:$0xf]
  %v914 = vld [vmem:[%s1 + $0xd78] sm:$0xf]
  %v915 = vld [vmem:[%s1 + $0xd7c] sm:$0xf]
  %v916 = vld [vmem:[%s1 + $0xd80] sm:$0xf]
  %v917 = vld [vmem:[%s1 + $0xd84] sm:$0xf]
  %v918 = vld [vmem:[%s1 + $0xd88] sm:$0xf]
  %v919 = vld [vmem:[%s1 + $0xd8c] sm:$0xf]
  %v920 = vld [vmem:[%s1 + $0xd90] sm:$0xf]
  %v921 = vld [vmem:[%s1 + $0xd94] sm:$0xf]
  %v922 = vld [vmem:[%s1 + $0xd98] sm:$0xf]
  %v923 = vld [vmem:[%s1 + $0xd9c] sm:$0xf]
  %v924 = vld [vmem:[%s1 + $0xda0] sm:$0xf]
  %v925 = vld [vmem:[%s1 + $0xda4] sm:$0xf]
  %v926 = vld [vmem:[%s1 + $0xda8] sm:$0xf]
  %v927 = vld [vmem:[%s1 + $0xdac] sm:$0xf]
  %v928 = vld [vmem:[%s1 + $0xdb0] sm:$0xf]
  %v929 = vld [vmem:[%s1 + $0xdb4] sm:$0xf]
  %v930 = vld [vmem:[%s1 + $0xdb8] sm:$0xf]
  %v931 = vld [vmem:[%s1 + $0xdbc] sm:$0xf]
  %v932 = vld [vmem:[%s1 + $0xdc0] sm:$0xf]
  %v933 = vld [vmem:[%s1 + $0xdc4] sm:$0xf]
  %v934 = vld [vmem:[%s1 + $0xdc8] sm:$0xf]
  %v935 = vld [vmem:[%s1 + $0xdcc] sm:$0xf]
  %v936 = vld [vmem:[%s1 + $0xdd0] sm:$0xf]
  %v937 = vld [vmem:[%s1 + $0xdd4] sm:$0xf]
  %v938 = vld [vmem:[%s1 + $0xdd8] sm:$0xf]
  %v939 = vld [vmem:[%s1 + $0xddc] sm:$0xf]
  %v940 = vld [vmem:[%s1 + $0xde0] sm:$0xf]
  %v941 = vld [vmem:[%s1 + $0xde4] sm:$0xf]
  %v942 = vld [vmem:[%s1 + $0xde8] sm:$0xf]
  %v943 = vld [vmem:[%s1 + $0xdec] sm:$0xf]
  %v944 = vld [vmem:[%s1 + $0xdf0] sm:$0xf]
  %v945 = vld [vmem:[%s1 + $0xdf4] sm:$0xf]
  %v946 = vld [vmem:[%s1 + $0xdf8] sm:$0xf]
  %v947 = vld [vmem:[%s1 + $0xdfc] sm:$0xf]
  %v948 = vld [vmem:[%s1 + $0xe00] sm:$0xf]
  %v949 = vld [vmem:[%s1 + $0xe04] sm:$0xf]
  %v950 = vld [vmem:[%s1 + $0xe08] sm:$0xf]
  %v951 = vld [vmem:[%s1 + $0xe0c] sm:$0xf]
  %v952 = vld [vmem:[%s1 + $0xe10] sm:$0xf]
  %v953 = vld [vmem:[%s1 + $0xe14] sm:$0xf]
  %v954 = vld [vmem:[%s1 + $0xe18] sm:$0xf]
  %v955 = vld [vmem:[%s1 + $0xe1c] sm:$0xf]
  %v956 = vld [vmem:[%s1 + $0xe20] sm:$0xf]
  %v957 = vld [vmem:[%s1 + $0xe24] sm:$0xf]
  %v958 = vld [vmem:[%s1 + $0xe28] sm:$0xf]
  %v959 = vld [vmem:[%s1 + $0xe2c] sm:$0xf]
  %v960 = vld [vmem:[%s1 + $0xe30] sm:$0xf]
  %v961 = vld [vmem:[%s1 + $0xe34] sm:$0xf]
  %v962 = vld [vmem:[%s1 + $0xe38] sm:$0xf]
  %v963 = vld [vmem:[%s1 + $0xe3c] sm:$0xf]
  %v964 = vld [vmem:[%s1 + $0xe40] sm:$0xf]
  %v965 = vld [vmem:[%s1 + $0xe44] sm:$0xf]
  %v966 = vld [vmem:[%s1 + $0xe48] sm:$0xf]
  %v967 = vld [vmem:[%s1 + $0xe4c] sm:$0xf]
  %v968 = vld [vmem:[%s1 + $0xe50] sm:$0xf]
  %v969 = vld [vmem:[%s1 + $0xe54] sm:$0xf]
  %v970 = vld [vmem:[%s1 + $0xe58] sm:$0xf]
  %v971 = vld [vmem:[%s1 + $0xe5c] sm:$0xf]
  %v972 = vld [vmem:[%s1 + $0xe60] sm:$0xf]
  %v973 = vld [vmem:[%s1 + $0xe64] sm:$0xf]
  %v974 = vld [vmem:[%s1 + $0xe68] sm:$0xf]
  %v975 = vld [vmem:[%s1 + $0xe6c] sm:$0xf]
  %v976 = vld [vmem:[%s1 + $0xe70] sm:$0xf]
  %v977 = vld [vmem:[%s1 + $0xe74] sm:$0xf]
  %v978 = vld [vmem:[%s1 + $0xe78] sm:$0xf]
  %v979 = vld [vmem:[%s1 + $0xe7c] sm:$0xf]
  %v980 = vld [vmem:[%s1 + $0xe80] sm:$0xf]
  %v981 = vld [vmem:[%s1 + $0xe84] sm:$0xf]
  %v982 = vld [vmem:[%s1 + $0xe88] sm:$0xf]
  %v983 = vld [vmem:[%s1 + $0xe8c] sm:$0xf]
  %v984 = vld [vmem:[%s1 + $0xe90] sm:$0xf]
  %v985 = vld [vmem:[%s1 + $0xe94] sm:$0xf]
  %v986 = vld [vmem:[%s1 + $0xe98] sm:$0xf]
  %v987 = vld [vmem:[%s1 + $0xe9c] sm:$0xf]
  %v988 = vld [vmem:[%s1 + $0xea0] sm:$0xf]
  %v989 = vld [vmem:[%s1 + $0xea4] sm:$0xf]
  %v990 = vld [vmem:[%s1 + $0xea8] sm:$0xf]
  %v991 = vld [vmem:[%s1 + $0xeac] sm:$0xf]
  %v992 = vld [vmem:[%s1 + $0xeb0] sm:$0xf]
  %v993 = vld [vmem:[%s1 + $0xeb4] sm:$0xf]
  %v994 = vld [vmem:[%s1 + $0xeb8] sm:$0xf]
  %v995 = vld [vmem:[%s1 + $0xebc] sm:$0xf]
  %v996 = vld [vmem:[%s1 + $0xec0] sm:$0xf]
  %v997 = vld [vmem:[%s1 + $0xec4] sm:$0xf]
  %v998 = vld [vmem:[%s1 + $0xec8] sm:$0xf]
  %v999 = vld [vmem:[%s1 + $0xecc] sm:$0xf]
  %v1000 = vld [vmem:[%s1 + $0xed0] sm:$0xf]
  %v1001 = vld [vmem:[%s1 + $0xed4] sm:$0xf]
  %v1002 = vld [vmem:[%s1 + $0xed8] sm:$0xf]
  %v1003 = vld [vmem:[%s1 + $0xedc] sm:$0xf]
  %v1004 = vld [vmem:[%s1 + $0xee0] sm:$0xf]
  %v1005 = vld [vmem:[%s1 + $0xee4] sm:$0xf]
  %v1006 = vld [vmem:[%s1 + $0xee8] sm:$0xf]
  %v1007 = vld [vmem:[%s1 + $0xeec] sm:$0xf]
  %v1008 = vld [vmem:[%s1 + $0xef0] sm:$0xf]
  %v1009 = vld [vmem:[%s1 + $0xef4] sm:$0xf]
  %v1010 = vld [vmem:[%s1 + $0xef8] sm:$0xf]
  %v1011 = vld [vmem:[%s1 + $0xefc] sm:$0xf]
  %v1012 = vld [vmem:[%s1 + $0xf00] sm:$0xf]
  %v1013 = vld [vmem:[%s1 + $0xf04] sm:$0xf]
  %v1014 = vld [vmem:[%s1 + $0xf08] sm:$0xf]
  %v1015 = vld [vmem:[%s1 + $0xf0c] sm:$0xf]
  %v1016 = vld [vmem:[%s1 + $0xf10] sm:$0xf]
  %v1017 = vld [vmem:[%s1 + $0xf14] sm:$0xf]
  %v1018 = vld [vmem:[%s1 + $0xf18] sm:$0xf]
  %v1019 = vld [vmem:[%s1 + $0xf1c] sm:$0xf]
  %v1020 = vld [vmem:[%s1 + $0xf20] sm:$0xf]
  %v1021 = vld [vmem:[%s1 + $0xf24] sm:$0xf]
  %v1022 = vld [vmem:[%s1 + $0xf28] sm:$0xf]
  %v1023 = vld [vmem:[%s1 + $0xf2c] sm:$0xf]
  %v1024 = vld [vmem:[%s1 + $0xf30] sm:$0xf]
  %v1025 = vld [vmem:[%s1 + $0xf34] sm:$0xf]
  %v1026 = vld [vmem:[%s1 + $0xf38] sm:$0xf]
  %v1027 = vld [vmem:[%s1 + $0xf3c] sm:$0xf]
  %v1028 = vld [vmem:[%s1 + $0xf40] sm:$0xf]
  %v1029 = vld [vmem:[%s1 + $0xf44] sm:$0xf]
  %v1030 = vld [vmem:[%s1 + $0xf48] sm:$0xf]
  %v1031 = vld [vmem:[%s1 + $0xf4c] sm:$0xf]
  %v1032 = vld [vmem:[%s1 + $0xf50] sm:$0xf]
  %v1033 = vld [vmem:[%s1 + $0xf54] sm:$0xf]
  %v1034 = vld [vmem:[%s1 + $0xf58] sm:$0xf]
  %v1035 = vld [vmem:[%s1 + $0xf5c] sm:$0xf]
  %v1036 = vld [vmem:[%s1 + $0xf60] sm:$0xf]
  %v1037 = vld [vmem:[%s1 + $0xf64] sm:$0xf]
  %v1038 = vld [vmem:[%s1 + $0xf68] sm:$0xf]
  %v1039 = vld [vmem:[%s1 + $0xf6c] sm:$0xf]
  %v1040 = vld [vmem:[%s1 + $0xf70] sm:$0xf]
  %v1041 = vld [vmem:[%s1 + $0xf74] sm:$0xf]
  %v1042 = vld [vmem:[%s1 + $0xf78] sm:$0xf]
  %v1043 = vld [vmem:[%s1 + $0xf7c] sm:$0xf]
  %v1044 = vld [vmem:[%s1 + $0xf80] sm:$0xf]
  %v1045 = vld [vmem:[%s1 + $0xf84] sm:$0xf]
  %v1046 = vld [vmem:[%s1 + $0xf88] sm:$0xf]
  %v1047 = vld [vmem:[%s1 + $0xf8c] sm:$0xf]
  %v1048 = vld [vmem:[%s1 + $0xf90] sm:$0xf]
  %v1049 = vld [vmem:[%s1 + $0xf94] sm:$0xf]
  %v1050 = vld [vmem:[%s1 + $0xf98] sm:$0xf]
  %v1051 = vld [vmem:[%s1 + $0xf9c] sm:$0xf]
  %v1052 = vld [vmem:[%s1 + $0xfa0] sm:$0xf]
  %v1053 = vld [vmem:[%s1 + $0xfa4] sm:$0xf]
  %v1054 = vld [vmem:[%s1 + $0xfa8] sm:$0xf]
  %v1055 = vld [vmem:[%s1 + $0xfac] sm:$0xf]
  %v1056 = vld [vmem:[%s1 + $0xfb0] sm:$0xf]
  %v1057 = vld [vmem:[%s1 + $0xfb4] sm:$0xf]
  %v1058 = vld [vmem:[%s1 + $0xfb8] sm:$0xf]
  %v1059 = vld [vmem:[%s1 + $0xfbc] sm:$0xf]
  %v1060 = vld [vmem:[%s1 + $0xfc0] sm:$0xf]
  %v1061 = vld [vmem:[%s1 + $0xfc4] sm:$0xf]
  %v1062 = vld [vmem:[%s1 + $0xfc8] sm:$0xf]
  %v1063 = vld [vmem:[%s1 + $0xfcc] sm:$0xf]
  %v1064 = vld [vmem:[%s1 + $0xfd0] sm:$0xf]
  %v1065 = vld [vmem:[%s1 + $0xfd4] sm:$0xf]
  %v1066 = vld [vmem:[%s1 + $0xfd8] sm:$0xf]
  %v1067 = vld [vmem:[%s1 + $0xfdc] sm:$0xf]
  %v1068 = vld [vmem:[%s1 + $0xfe0] sm:$0xf]
  %v1069 = vld [vmem:[%s1 + $0xfe4] sm:$0xf]
  %v1070 = vld [vmem:[%s1 + $0xfe8] sm:$0xf]
  %v1071 = vld [vmem:[%s1 + $0xfec] sm:$0xf]
  %v1072 = vld [vmem:[%s1 + $0xff0] sm:$0xf]
  %v1073 = vld [vmem:[%s1 + $0xff4] sm:$0xf]
  %v1074 = vld [vmem:[%s1 + $0xff8] sm:$0xf]
  %v1075 = vld [vmem:[%s1 + $0xffc] sm:$0xf]
  %v1076 = vld [vmem:[%s2] sm:$0x1]
  %v1078 = vperm.slane %v1076, 0
  %v1112 = vunpack.c.l.b16 %v20
  %v1113 = vunpack.c.h.b16 %v20
  %v1114 = vunpack.c.l.b16 %v21
  %v1115 = vunpack.c.h.b16 %v21
  %v1116 = vunpack.c.l.b16 %v22
  %v1117 = vunpack.c.h.b16 %v22
  %v1118 = vunpack.c.l.b16 %v23
  %v1119 = vunpack.c.h.b16 %v23
  %v1120 = vunpack.c.l.b16 %v24
  %v1121 = vunpack.c.h.b16 %v24
  %v1122 = vunpack.c.l.b16 %v25
  %v1123 = vunpack.c.h.b16 %v25
  %v1124 = vunpack.c.l.b16 %v26
  %v1125 = vunpack.c.h.b16 %v26
  %v1126 = vunpack.c.l.b16 %v27
  %v1127 = vunpack.c.h.b16 %v27
  %v1128 = vunpack.c.l.b16 %v28
  %v1129 = vunpack.c.h.b16 %v28
  %v1130 = vunpack.c.l.b16 %v29
  %v1131 = vunpack.c.h.b16 %v29
  %v1132 = vunpack.c.l.b16 %v30
  %v1133 = vunpack.c.h.b16 %v30
  %v1134 = vunpack.c.l.b16 %v31
  %v1135 = vunpack.c.h.b16 %v31
  %v1136 = vunpack.c.l.b16 %v32
  %v1137 = vunpack.c.h.b16 %v32
  %v1138 = vunpack.c.l.b16 %v33
  %v1139 = vunpack.c.h.b16 %v33
  %v1140 = vunpack.c.l.b16 %v34
  %v1141 = vunpack.c.h.b16 %v34
  %v1142 = vunpack.c.l.b16 %v35
  %v1143 = vunpack.c.h.b16 %v35
  %v1144 = vunpack.c.l.b16 %v36
  %v1145 = vunpack.c.h.b16 %v36
  %v1146 = vunpack.c.l.b16 %v37
  %v1147 = vunpack.c.h.b16 %v37
  %v1148 = vunpack.c.l.b16 %v38
  %v1149 = vunpack.c.h.b16 %v38
  %v1150 = vunpack.c.l.b16 %v39
  %v1151 = vunpack.c.h.b16 %v39
  %v1152 = vunpack.c.l.b16 %v40
  %v1153 = vunpack.c.h.b16 %v40
  %v1154 = vunpack.c.l.b16 %v41
  %v1155 = vunpack.c.h.b16 %v41
  %v1156 = vunpack.c.l.b16 %v42
  %v1157 = vunpack.c.h.b16 %v42
  %v1158 = vunpack.c.l.b16 %v43
  %v1159 = vunpack.c.h.b16 %v43
  %v1160 = vunpack.c.l.b16 %v44
  %v1161 = vunpack.c.h.b16 %v44
  %v1162 = vunpack.c.l.b16 %v45
  %v1163 = vunpack.c.h.b16 %v45
  %v1164 = vunpack.c.l.b16 %v46
  %v1165 = vunpack.c.h.b16 %v46
  %v1166 = vunpack.c.l.b16 %v47
  %v1167 = vunpack.c.h.b16 %v47
  %v1168 = vunpack.c.l.b16 %v48
  %v1169 = vunpack.c.h.b16 %v48
  %v1170 = vunpack.c.l.b16 %v49
  %v1171 = vunpack.c.h.b16 %v49
  %v1172 = vunpack.c.l.b16 %v50
  %v1173 = vunpack.c.h.b16 %v50
  %v1174 = vunpack.c.l.b16 %v51
  %v1175 = vunpack.c.h.b16 %v51
  %v1176 = vpack.c.b16 %v1112, %v1112
  %v1177 = vpack.c.b16 %v1113, %v1113
  %v1178 = vpack.c.b16 %v1114, %v1114
  %v1179 = vpack.c.b16 %v1115, %v1115
  %v1180 = vpack.c.b16 %v1116, %v1116
  %v1181 = vpack.c.b16 %v1117, %v1117
  %v1182 = vpack.c.b16 %v1118, %v1118
  %v1183 = vpack.c.b16 %v1119, %v1119
  %v1184 = vpack.c.b16 %v1120, %v1120
  %v1185 = vpack.c.b16 %v1121, %v1121
  %v1186 = vpack.c.b16 %v1122, %v1122
  %v1187 = vpack.c.b16 %v1123, %v1123
  %v1188 = vpack.c.b16 %v1124, %v1124
  %v1189 = vpack.c.b16 %v1125, %v1125
  %v1190 = vpack.c.b16 %v1126, %v1126
  %v1191 = vpack.c.b16 %v1127, %v1127
  %v1192 = vpack.c.b16 %v1128, %v1128
  %v1193 = vpack.c.b16 %v1129, %v1129
  %v1194 = vpack.c.b16 %v1130, %v1130
  %v1195 = vpack.c.b16 %v1131, %v1131
  %v1196 = vpack.c.b16 %v1132, %v1132
  %v1197 = vpack.c.b16 %v1133, %v1133
  %v1198 = vpack.c.b16 %v1134, %v1134
  %v1199 = vpack.c.b16 %v1135, %v1135
  %v1200 = vpack.c.b16 %v1136, %v1136
  %v1201 = vpack.c.b16 %v1137, %v1137
  %v1202 = vpack.c.b16 %v1138, %v1138
  %v1203 = vpack.c.b16 %v1139, %v1139
  %v1204 = vpack.c.b16 %v1140, %v1140
  %v1205 = vpack.c.b16 %v1141, %v1141
  %v1206 = vpack.c.b16 %v1142, %v1142
  %v1207 = vpack.c.b16 %v1143, %v1143
  %v1208 = vpack.c.b16 %v1144, %v1144
  %v1209 = vpack.c.b16 %v1145, %v1145
  %v1210 = vpack.c.b16 %v1146, %v1146
  %v1211 = vpack.c.b16 %v1147, %v1147
  %v1212 = vpack.c.b16 %v1148, %v1148
  %v1213 = vpack.c.b16 %v1149, %v1149
  %v1214 = vpack.c.b16 %v1150, %v1150
  %v1215 = vpack.c.b16 %v1151, %v1151
  %v1216 = vpack.c.b16 %v1152, %v1152
  %v1217 = vpack.c.b16 %v1153, %v1153
  %v1218 = vpack.c.b16 %v1154, %v1154
  %v1219 = vpack.c.b16 %v1155, %v1155
  %v1220 = vpack.c.b16 %v1156, %v1156
  %v1221 = vpack.c.b16 %v1157, %v1157
  %v1222 = vpack.c.b16 %v1158, %v1158
  %v1223 = vpack.c.b16 %v1159, %v1159
  %v1224 = vpack.c.b16 %v1160, %v1160
  %v1225 = vpack.c.b16 %v1161, %v1161
  %v1226 = vpack.c.b16 %v1162, %v1162
  %v1227 = vpack.c.b16 %v1163, %v1163
  %v1228 = vpack.c.b16 %v1164, %v1164
  %v1229 = vpack.c.b16 %v1165, %v1165
  %v1230 = vpack.c.b16 %v1166, %v1166
  %v1231 = vpack.c.b16 %v1167, %v1167
  %v1232 = vpack.c.b16 %v1168, %v1168
  %v1233 = vpack.c.b16 %v1169, %v1169
  %v1234 = vpack.c.b16 %v1170, %v1170
  %v1235 = vpack.c.b16 %v1171, %v1171
  %v1236 = vpack.c.b16 %v1172, %v1172
  %v1237 = vpack.c.b16 %v1173, %v1173
  %v1238 = vpack.c.b16 %v1174, %v1174
  %v1239 = vpack.c.b16 %v1175, %v1175
  %v2328 = vunpack.c.l.b16 %v52
  %v2329 = vunpack.c.l.b16 %v53
  %v2330 = vunpack.c.l.b16 %v54
  %v2331 = vunpack.c.l.b16 %v55
  %v2332 = vunpack.c.l.b16 %v56
  %v2333 = vunpack.c.l.b16 %v57
  %v2334 = vunpack.c.l.b16 %v58
  %v2335 = vunpack.c.l.b16 %v59
  %v2336 = vunpack.c.l.b16 %v60
  %v2337 = vunpack.c.l.b16 %v61
  %v2338 = vunpack.c.l.b16 %v62
  %v2339 = vunpack.c.l.b16 %v63
  %v2340 = vunpack.c.l.b16 %v64
  %v2341 = vunpack.c.l.b16 %v65
  %v2342 = vunpack.c.l.b16 %v66
  %v2343 = vunpack.c.l.b16 %v67
  %v2344 = vunpack.c.l.b16 %v68
  %v2345 = vunpack.c.l.b16 %v69
  %v2346 = vunpack.c.l.b16 %v70
  %v2347 = vunpack.c.l.b16 %v71
  %v2348 = vunpack.c.l.b16 %v72
  %v2349 = vunpack.c.l.b16 %v73
  %v2350 = vunpack.c.l.b16 %v74
  %v2351 = vunpack.c.l.b16 %v75
  %v2352 = vunpack.c.l.b16 %v76
  %v2353 = vunpack.c.l.b16 %v77
  %v2354 = vunpack.c.l.b16 %v78
  %v2355 = vunpack.c.l.b16 %v79
  %v2356 = vunpack.c.l.b16 %v80
  %v2357 = vunpack.c.l.b16 %v81
  %v2358 = vunpack.c.l.b16 %v82
  %v2359 = vunpack.c.l.b16 %v83
  %v2360 = vunpack.c.l.b16 %v84
  %v2361 = vunpack.c.l.b16 %v85
  %v2362 = vunpack.c.l.b16 %v86
  %v2363 = vunpack.c.l.b16 %v87
  %v2364 = vunpack.c.l.b16 %v88
  %v2365 = vunpack.c.l.b16 %v89
  %v2366 = vunpack.c.l.b16 %v90
  %v2367 = vunpack.c.l.b16 %v91
  %v2368 = vunpack.c.l.b16 %v92
  %v2369 = vunpack.c.l.b16 %v93
  %v2370 = vunpack.c.l.b16 %v94
  %v2371 = vunpack.c.l.b16 %v95
  %v2372 = vunpack.c.l.b16 %v96
  %v2373 = vunpack.c.l.b16 %v97
  %v2374 = vunpack.c.l.b16 %v98
  %v2375 = vunpack.c.l.b16 %v99
  %v2376 = vunpack.c.l.b16 %v100
  %v2377 = vunpack.c.l.b16 %v101
  %v2378 = vunpack.c.l.b16 %v102
  %v2379 = vunpack.c.l.b16 %v103
  %v2380 = vunpack.c.l.b16 %v104
  %v2381 = vunpack.c.l.b16 %v105
  %v2382 = vunpack.c.l.b16 %v106
  %v2383 = vunpack.c.l.b16 %v107
  %v2384 = vunpack.c.l.b16 %v108
  %v2385 = vunpack.c.l.b16 %v109
  %v2386 = vunpack.c.l.b16 %v110
  %v2387 = vunpack.c.l.b16 %v111
  %v2388 = vunpack.c.l.b16 %v112
  %v2389 = vunpack.c.l.b16 %v113
  %v2390 = vunpack.c.l.b16 %v114
  %v2391 = vunpack.c.l.b16 %v115
  %v2392 = vunpack.c.l.b16 %v116
  %v2393 = vunpack.c.l.b16 %v117
  %v2394 = vunpack.c.l.b16 %v118
  %v2395 = vunpack.c.l.b16 %v119
  %v2396 = vunpack.c.l.b16 %v120
  %v2397 = vunpack.c.l.b16 %v121
  %v2398 = vunpack.c.l.b16 %v122
  %v2399 = vunpack.c.l.b16 %v123
  %v2400 = vunpack.c.l.b16 %v124
  %v2401 = vunpack.c.l.b16 %v125
  %v2402 = vunpack.c.l.b16 %v126
  %v2403 = vunpack.c.l.b16 %v127
  %v2404 = vunpack.c.l.b16 %v128
  %v2405 = vunpack.c.l.b16 %v129
  %v2406 = vunpack.c.l.b16 %v130
  %v2407 = vunpack.c.l.b16 %v131
  %v2408 = vunpack.c.l.b16 %v132
  %v2409 = vunpack.c.l.b16 %v133
  %v2410 = vunpack.c.l.b16 %v134
  %v2411 = vunpack.c.l.b16 %v135
  %v2412 = vunpack.c.l.b16 %v136
  %v2413 = vunpack.c.l.b16 %v137
  %v2414 = vunpack.c.l.b16 %v138
  %v2415 = vunpack.c.l.b16 %v139
  %v2416 = vunpack.c.l.b16 %v140
  %v2417 = vunpack.c.l.b16 %v141
  %v2418 = vunpack.c.l.b16 %v142
  %v2419 = vunpack.c.l.b16 %v143
  %v2420 = vunpack.c.l.b16 %v144
  %v2421 = vunpack.c.l.b16 %v145
  %v2422 = vunpack.c.l.b16 %v146
  %v2423 = vunpack.c.l.b16 %v147
  %v2424 = vunpack.c.l.b16 %v148
  %v2425 = vunpack.c.l.b16 %v149
  %v2426 = vunpack.c.l.b16 %v150
  %v2427 = vunpack.c.l.b16 %v151
  %v2428 = vunpack.c.l.b16 %v152
  %v2429 = vunpack.c.l.b16 %v153
  %v2430 = vunpack.c.l.b16 %v154
  %v2431 = vunpack.c.l.b16 %v155
  %v2432 = vunpack.c.l.b16 %v156
  %v2433 = vunpack.c.l.b16 %v157
  %v2434 = vunpack.c.l.b16 %v158
  %v2435 = vunpack.c.l.b16 %v159
  %v2436 = vunpack.c.l.b16 %v160
  %v2437 = vunpack.c.l.b16 %v161
  %v2438 = vunpack.c.l.b16 %v162
  %v2439 = vunpack.c.l.b16 %v163
  %v2440 = vunpack.c.l.b16 %v164
  %v2441 = vunpack.c.l.b16 %v165
  %v2442 = vunpack.c.l.b16 %v166
  %v2443 = vunpack.c.l.b16 %v167
  %v2444 = vunpack.c.l.b16 %v168
  %v2445 = vunpack.c.l.b16 %v169
  %v2446 = vunpack.c.l.b16 %v170
  %v2447 = vunpack.c.l.b16 %v171
  %v2448 = vunpack.c.l.b16 %v172
  %v2449 = vunpack.c.l.b16 %v173
  %v2450 = vunpack.c.l.b16 %v174
  %v2451 = vunpack.c.l.b16 %v175
  %v2452 = vunpack.c.l.b16 %v176
  %v2453 = vunpack.c.l.b16 %v177
  %v2454 = vunpack.c.l.b16 %v178
  %v2455 = vunpack.c.l.b16 %v179
  %v2456 = vunpack.c.l.b16 %v180
  %v2457 = vunpack.c.l.b16 %v181
  %v2458 = vunpack.c.l.b16 %v182
  %v2459 = vunpack.c.l.b16 %v183
  %v2460 = vunpack.c.l.b16 %v184
  %v2461 = vunpack.c.l.b16 %v185
  %v2462 = vunpack.c.l.b16 %v186
  %v2463 = vunpack.c.l.b16 %v187
  %v2464 = vunpack.c.l.b16 %v188
  %v2465 = vunpack.c.l.b16 %v189
  %v2466 = vunpack.c.l.b16 %v190
  %v2467 = vunpack.c.l.b16 %v191
  %v2468 = vunpack.c.l.b16 %v192
  %v2469 = vunpack.c.l.b16 %v193
  %v2470 = vunpack.c.l.b16 %v194
  %v2471 = vunpack.c.l.b16 %v195
  %v2472 = vunpack.c.l.b16 %v196
  %v2473 = vunpack.c.l.b16 %v197
  %v2474 = vunpack.c.l.b16 %v198
  %v2475 = vunpack.c.l.b16 %v199
  %v2476 = vunpack.c.l.b16 %v200
  %v2477 = vunpack.c.l.b16 %v201
  %v2478 = vunpack.c.l.b16 %v202
  %v2479 = vunpack.c.l.b16 %v203
  %v2480 = vunpack.c.l.b16 %v204
  %v2481 = vunpack.c.l.b16 %v205
  %v2482 = vunpack.c.l.b16 %v206
  %v2483 = vunpack.c.l.b16 %v207
  %v2484 = vunpack.c.l.b16 %v208
  %v2485 = vunpack.c.l.b16 %v209
  %v2486 = vunpack.c.l.b16 %v210
  %v2487 = vunpack.c.l.b16 %v211
  %v2488 = vunpack.c.l.b16 %v212
  %v2489 = vunpack.c.l.b16 %v213
  %v2490 = vunpack.c.l.b16 %v214
  %v2491 = vunpack.c.l.b16 %v215
  %v2492 = vunpack.c.l.b16 %v216
  %v2493 = vunpack.c.l.b16 %v217
  %v2494 = vunpack.c.l.b16 %v218
  %v2495 = vunpack.c.l.b16 %v219
  %v2496 = vunpack.c.l.b16 %v220
  %v2497 = vunpack.c.l.b16 %v221
  %v2498 = vunpack.c.l.b16 %v222
  %v2499 = vunpack.c.l.b16 %v223
  %v2500 = vunpack.c.l.b16 %v224
  %v2501 = vunpack.c.l.b16 %v225
  %v2502 = vunpack.c.l.b16 %v226
  %v2503 = vunpack.c.l.b16 %v227
  %v2504 = vunpack.c.l.b16 %v228
  %v2505 = vunpack.c.l.b16 %v229
  %v2506 = vunpack.c.l.b16 %v230
  %v2507 = vunpack.c.l.b16 %v231
  %v2508 = vunpack.c.l.b16 %v232
  %v2509 = vunpack.c.l.b16 %v233
  %v2510 = vunpack.c.l.b16 %v234
  %v2511 = vunpack.c.l.b16 %v235
  %v2512 = vunpack.c.l.b16 %v236
  %v2513 = vunpack.c.l.b16 %v237
  %v2514 = vunpack.c.l.b16 %v238
  %v2515 = vunpack.c.l.b16 %v239
  %v2516 = vunpack.c.l.b16 %v240
  %v2517 = vunpack.c.l.b16 %v241
  %v2518 = vunpack.c.l.b16 %v242
  %v2519 = vunpack.c.l.b16 %v243
  %v2520 = vunpack.c.l.b16 %v244
  %v2521 = vunpack.c.l.b16 %v245
  %v2522 = vunpack.c.l.b16 %v246
  %v2523 = vunpack.c.l.b16 %v247
  %v2524 = vunpack.c.l.b16 %v248
  %v2525 = vunpack.c.l.b16 %v249
  %v2526 = vunpack.c.l.b16 %v250
  %v2527 = vunpack.c.l.b16 %v251
  %v2528 = vunpack.c.l.b16 %v252
  %v2529 = vunpack.c.l.b16 %v253
  %v2530 = vunpack.c.l.b16 %v254
  %v2531 = vunpack.c.l.b16 %v255
  %v2532 = vunpack.c.l.b16 %v256
  %v2533 = vunpack.c.l.b16 %v257
  %v2534 = vunpack.c.l.b16 %v258
  %v2535 = vunpack.c.l.b16 %v259
  %v2536 = vunpack.c.l.b16 %v260
  %v2537 = vunpack.c.l.b16 %v261
  %v2538 = vunpack.c.l.b16 %v262
  %v2539 = vunpack.c.l.b16 %v263
  %v2540 = vunpack.c.l.b16 %v264
  %v2541 = vunpack.c.l.b16 %v265
  %v2542 = vunpack.c.l.b16 %v266
  %v2543 = vunpack.c.l.b16 %v267
  %v2544 = vunpack.c.l.b16 %v268
  %v2545 = vunpack.c.l.b16 %v269
  %v2546 = vunpack.c.l.b16 %v270
  %v2547 = vunpack.c.l.b16 %v271
  %v2548 = vunpack.c.l.b16 %v272
  %v2549 = vunpack.c.l.b16 %v273
  %v2550 = vunpack.c.l.b16 %v274
  %v2551 = vunpack.c.l.b16 %v275
  %v2552 = vunpack.c.l.b16 %v276
  %v2553 = vunpack.c.l.b16 %v277
  %v2554 = vunpack.c.l.b16 %v278
  %v2555 = vunpack.c.l.b16 %v279
  %v2556 = vunpack.c.l.b16 %v280
  %v2557 = vunpack.c.l.b16 %v281
  %v2558 = vunpack.c.l.b16 %v282
  %v2559 = vunpack.c.l.b16 %v283
  %v2560 = vunpack.c.l.b16 %v284
  %v2561 = vunpack.c.l.b16 %v285
  %v2562 = vunpack.c.l.b16 %v286
  %v2563 = vunpack.c.l.b16 %v287
  %v2564 = vunpack.c.l.b16 %v288
  %v2565 = vunpack.c.l.b16 %v289
  %v2566 = vunpack.c.l.b16 %v290
  %v2567 = vunpack.c.l.b16 %v291
  %v2568 = vunpack.c.l.b16 %v292
  %v2569 = vunpack.c.l.b16 %v293
  %v2570 = vunpack.c.l.b16 %v294
  %v2571 = vunpack.c.l.b16 %v295
  %v2572 = vunpack.c.l.b16 %v296
  %v2573 = vunpack.c.l.b16 %v297
  %v2574 = vunpack.c.l.b16 %v298
  %v2575 = vunpack.c.l.b16 %v299
  %v2576 = vunpack.c.l.b16 %v300
  %v2577 = vunpack.c.l.b16 %v301
  %v2578 = vunpack.c.l.b16 %v302
  %v2579 = vunpack.c.l.b16 %v303
  %v2580 = vunpack.c.l.b16 %v304
  %v2581 = vunpack.c.l.b16 %v305
  %v2582 = vunpack.c.l.b16 %v306
  %v2583 = vunpack.c.l.b16 %v307
  %v2584 = vunpack.c.l.b16 %v308
  %v2585 = vunpack.c.l.b16 %v309
  %v2586 = vunpack.c.l.b16 %v310
  %v2587 = vunpack.c.l.b16 %v311
  %v2588 = vunpack.c.l.b16 %v312
  %v2589 = vunpack.c.l.b16 %v313
  %v2590 = vunpack.c.l.b16 %v314
  %v2591 = vunpack.c.l.b16 %v315
  %v2592 = vunpack.c.l.b16 %v316
  %v2593 = vunpack.c.l.b16 %v317
  %v2594 = vunpack.c.l.b16 %v318
  %v2595 = vunpack.c.l.b16 %v319
  %v2596 = vunpack.c.l.b16 %v320
  %v2597 = vunpack.c.l.b16 %v321
  %v2598 = vunpack.c.l.b16 %v322
  %v2599 = vunpack.c.l.b16 %v323
  %v2600 = vunpack.c.l.b16 %v324
  %v2601 = vunpack.c.l.b16 %v325
  %v2602 = vunpack.c.l.b16 %v326
  %v2603 = vunpack.c.l.b16 %v327
  %v2604 = vunpack.c.l.b16 %v328
  %v2605 = vunpack.c.l.b16 %v329
  %v2606 = vunpack.c.l.b16 %v330
  %v2607 = vunpack.c.l.b16 %v331
  %v2608 = vunpack.c.l.b16 %v332
  %v2609 = vunpack.c.l.b16 %v333
  %v2610 = vunpack.c.l.b16 %v334
  %v2611 = vunpack.c.l.b16 %v335
  %v2612 = vunpack.c.l.b16 %v336
  %v2613 = vunpack.c.l.b16 %v337
  %v2614 = vunpack.c.l.b16 %v338
  %v2615 = vunpack.c.l.b16 %v339
  %v2616 = vunpack.c.l.b16 %v340
  %v2617 = vunpack.c.l.b16 %v341
  %v2618 = vunpack.c.l.b16 %v342
  %v2619 = vunpack.c.l.b16 %v343
  %v2620 = vunpack.c.l.b16 %v344
  %v2621 = vunpack.c.l.b16 %v345
  %v2622 = vunpack.c.l.b16 %v346
  %v2623 = vunpack.c.l.b16 %v347
  %v2624 = vunpack.c.l.b16 %v348
  %v2625 = vunpack.c.l.b16 %v349
  %v2626 = vunpack.c.l.b16 %v350
  %v2627 = vunpack.c.l.b16 %v351
  %v2628 = vunpack.c.l.b16 %v352
  %v2629 = vunpack.c.l.b16 %v353
  %v2630 = vunpack.c.l.b16 %v354
  %v2631 = vunpack.c.l.b16 %v355
  %v2632 = vunpack.c.l.b16 %v356
  %v2633 = vunpack.c.l.b16 %v357
  %v2634 = vunpack.c.l.b16 %v358
  %v2635 = vunpack.c.l.b16 %v359
  %v2636 = vunpack.c.l.b16 %v360
  %v2637 = vunpack.c.l.b16 %v361
  %v2638 = vunpack.c.l.b16 %v362
  %v2639 = vunpack.c.l.b16 %v363
  %v2640 = vunpack.c.l.b16 %v364
  %v2641 = vunpack.c.l.b16 %v365
  %v2642 = vunpack.c.l.b16 %v366
  %v2643 = vunpack.c.l.b16 %v367
  %v2644 = vunpack.c.l.b16 %v368
  %v2645 = vunpack.c.l.b16 %v369
  %v2646 = vunpack.c.l.b16 %v370
  %v2647 = vunpack.c.l.b16 %v371
  %v2648 = vunpack.c.l.b16 %v372
  %v2649 = vunpack.c.l.b16 %v373
  %v2650 = vunpack.c.l.b16 %v374
  %v2651 = vunpack.c.l.b16 %v375
  %v2652 = vunpack.c.l.b16 %v376
  %v2653 = vunpack.c.l.b16 %v377
  %v2654 = vunpack.c.l.b16 %v378
  %v2655 = vunpack.c.l.b16 %v379
  %v2656 = vunpack.c.l.b16 %v380
  %v2657 = vunpack.c.l.b16 %v381
  %v2658 = vunpack.c.l.b16 %v382
  %v2659 = vunpack.c.l.b16 %v383
  %v2660 = vunpack.c.l.b16 %v384
  %v2661 = vunpack.c.l.b16 %v385
  %v2662 = vunpack.c.l.b16 %v386
  %v2663 = vunpack.c.l.b16 %v387
  %v2664 = vunpack.c.l.b16 %v388
  %v2665 = vunpack.c.l.b16 %v389
  %v2666 = vunpack.c.l.b16 %v390
  %v2667 = vunpack.c.l.b16 %v391
  %v2668 = vunpack.c.l.b16 %v392
  %v2669 = vunpack.c.l.b16 %v393
  %v2670 = vunpack.c.l.b16 %v394
  %v2671 = vunpack.c.l.b16 %v395
  %v2672 = vunpack.c.l.b16 %v396
  %v2673 = vunpack.c.l.b16 %v397
  %v2674 = vunpack.c.l.b16 %v398
  %v2675 = vunpack.c.l.b16 %v399
  %v2676 = vunpack.c.l.b16 %v400
  %v2677 = vunpack.c.l.b16 %v401
  %v2678 = vunpack.c.l.b16 %v402
  %v2679 = vunpack.c.l.b16 %v403
  %v2680 = vunpack.c.l.b16 %v404
  %v2681 = vunpack.c.l.b16 %v405
  %v2682 = vunpack.c.l.b16 %v406
  %v2683 = vunpack.c.l.b16 %v407
  %v2684 = vunpack.c.l.b16 %v408
  %v2685 = vunpack.c.l.b16 %v409
  %v2686 = vunpack.c.l.b16 %v410
  %v2687 = vunpack.c.l.b16 %v411
  %v2688 = vunpack.c.l.b16 %v412
  %v2689 = vunpack.c.l.b16 %v413
  %v2690 = vunpack.c.l.b16 %v414
  %v2691 = vunpack.c.l.b16 %v415
  %v2692 = vunpack.c.l.b16 %v416
  %v2693 = vunpack.c.l.b16 %v417
  %v2694 = vunpack.c.l.b16 %v418
  %v2695 = vunpack.c.l.b16 %v419
  %v2696 = vunpack.c.l.b16 %v420
  %v2697 = vunpack.c.l.b16 %v421
  %v2698 = vunpack.c.l.b16 %v422
  %v2699 = vunpack.c.l.b16 %v423
  %v2700 = vunpack.c.l.b16 %v424
  %v2701 = vunpack.c.l.b16 %v425
  %v2702 = vunpack.c.l.b16 %v426
  %v2703 = vunpack.c.l.b16 %v427
  %v2704 = vunpack.c.l.b16 %v428
  %v2705 = vunpack.c.l.b16 %v429
  %v2706 = vunpack.c.l.b16 %v430
  %v2707 = vunpack.c.l.b16 %v431
  %v2708 = vunpack.c.l.b16 %v432
  %v2709 = vunpack.c.l.b16 %v433
  %v2710 = vunpack.c.l.b16 %v434
  %v2711 = vunpack.c.l.b16 %v435
  %v2712 = vunpack.c.l.b16 %v436
  %v2713 = vunpack.c.l.b16 %v437
  %v2714 = vunpack.c.l.b16 %v438
  %v2715 = vunpack.c.l.b16 %v439
  %v2716 = vunpack.c.l.b16 %v440
  %v2717 = vunpack.c.l.b16 %v441
  %v2718 = vunpack.c.l.b16 %v442
  %v2719 = vunpack.c.l.b16 %v443
  %v2720 = vunpack.c.l.b16 %v444
  %v2721 = vunpack.c.l.b16 %v445
  %v2722 = vunpack.c.l.b16 %v446
  %v2723 = vunpack.c.l.b16 %v447
  %v2724 = vunpack.c.l.b16 %v448
  %v2725 = vunpack.c.l.b16 %v449
  %v2726 = vunpack.c.l.b16 %v450
  %v2727 = vunpack.c.l.b16 %v451
  %v2728 = vunpack.c.l.b16 %v452
  %v2729 = vunpack.c.l.b16 %v453
  %v2730 = vunpack.c.l.b16 %v454
  %v2731 = vunpack.c.l.b16 %v455
  %v2732 = vunpack.c.l.b16 %v456
  %v2733 = vunpack.c.l.b16 %v457
  %v2734 = vunpack.c.l.b16 %v458
  %v2735 = vunpack.c.l.b16 %v459
  %v2736 = vunpack.c.l.b16 %v460
  %v2737 = vunpack.c.l.b16 %v461
  %v2738 = vunpack.c.l.b16 %v462
  %v2739 = vunpack.c.l.b16 %v463
  %v2740 = vunpack.c.l.b16 %v464
  %v2741 = vunpack.c.l.b16 %v465
  %v2742 = vunpack.c.l.b16 %v466
  %v2743 = vunpack.c.l.b16 %v467
  %v2744 = vunpack.c.l.b16 %v468
  %v2745 = vunpack.c.l.b16 %v469
  %v2746 = vunpack.c.l.b16 %v470
  %v2747 = vunpack.c.l.b16 %v471
  %v2748 = vunpack.c.l.b16 %v472
  %v2749 = vunpack.c.l.b16 %v473
  %v2750 = vunpack.c.l.b16 %v474
  %v2751 = vunpack.c.l.b16 %v475
  %v2752 = vunpack.c.l.b16 %v476
  %v2753 = vunpack.c.l.b16 %v477
  %v2754 = vunpack.c.l.b16 %v478
  %v2755 = vunpack.c.l.b16 %v479
  %v2756 = vunpack.c.l.b16 %v480
  %v2757 = vunpack.c.l.b16 %v481
  %v2758 = vunpack.c.l.b16 %v482
  %v2759 = vunpack.c.l.b16 %v483
  %v2760 = vunpack.c.l.b16 %v484
  %v2761 = vunpack.c.l.b16 %v485
  %v2762 = vunpack.c.l.b16 %v486
  %v2763 = vunpack.c.l.b16 %v487
  %v2764 = vunpack.c.l.b16 %v488
  %v2765 = vunpack.c.l.b16 %v489
  %v2766 = vunpack.c.l.b16 %v490
  %v2767 = vunpack.c.l.b16 %v491
  %v2768 = vunpack.c.l.b16 %v492
  %v2769 = vunpack.c.l.b16 %v493
  %v2770 = vunpack.c.l.b16 %v494
  %v2771 = vunpack.c.l.b16 %v495
  %v2772 = vunpack.c.l.b16 %v496
  %v2773 = vunpack.c.l.b16 %v497
  %v2774 = vunpack.c.l.b16 %v498
  %v2775 = vunpack.c.l.b16 %v499
  %v2776 = vunpack.c.l.b16 %v500
  %v2777 = vunpack.c.l.b16 %v501
  %v2778 = vunpack.c.l.b16 %v502
  %v2779 = vunpack.c.l.b16 %v503
  %v2780 = vunpack.c.l.b16 %v504
  %v2781 = vunpack.c.l.b16 %v505
  %v2782 = vunpack.c.l.b16 %v506
  %v2783 = vunpack.c.l.b16 %v507
  %v2784 = vunpack.c.l.b16 %v508
  %v2785 = vunpack.c.l.b16 %v509
  %v2786 = vunpack.c.l.b16 %v510
  %v2787 = vunpack.c.l.b16 %v511
  %v2788 = vunpack.c.l.b16 %v512
  %v2789 = vunpack.c.l.b16 %v513
  %v2790 = vunpack.c.l.b16 %v514
  %v2791 = vunpack.c.l.b16 %v515
  %v2792 = vunpack.c.l.b16 %v516
  %v2793 = vunpack.c.l.b16 %v517
  %v2794 = vunpack.c.l.b16 %v518
  %v2795 = vunpack.c.l.b16 %v519
  %v2796 = vunpack.c.l.b16 %v520
  %v2797 = vunpack.c.l.b16 %v521
  %v2798 = vunpack.c.l.b16 %v522
  %v2799 = vunpack.c.l.b16 %v523
  %v2800 = vunpack.c.l.b16 %v524
  %v2801 = vunpack.c.l.b16 %v525
  %v2802 = vunpack.c.l.b16 %v526
  %v2803 = vunpack.c.l.b16 %v527
  %v2804 = vunpack.c.l.b16 %v528
  %v2805 = vunpack.c.l.b16 %v529
  %v2806 = vunpack.c.l.b16 %v530
  %v2807 = vunpack.c.l.b16 %v531
  %v2808 = vunpack.c.l.b16 %v532
  %v2809 = vunpack.c.l.b16 %v533
  %v2810 = vunpack.c.l.b16 %v534
  %v2811 = vunpack.c.l.b16 %v535
  %v2812 = vunpack.c.l.b16 %v536
  %v2813 = vunpack.c.l.b16 %v537
  %v2814 = vunpack.c.l.b16 %v538
  %v2815 = vunpack.c.l.b16 %v539
  %v2816 = vunpack.c.l.b16 %v540
  %v2817 = vunpack.c.l.b16 %v541
  %v2818 = vunpack.c.l.b16 %v542
  %v2819 = vunpack.c.l.b16 %v543
  %v2820 = vunpack.c.l.b16 %v544
  %v2821 = vunpack.c.l.b16 %v545
  %v2822 = vunpack.c.l.b16 %v546
  %v2823 = vunpack.c.l.b16 %v547
  %v2824 = vunpack.c.l.b16 %v548
  %v2825 = vunpack.c.l.b16 %v549
  %v2826 = vunpack.c.l.b16 %v550
  %v2827 = vunpack.c.l.b16 %v551
  %v2828 = vunpack.c.l.b16 %v552
  %v2829 = vunpack.c.l.b16 %v553
  %v2830 = vunpack.c.l.b16 %v554
  %v2831 = vunpack.c.l.b16 %v555
  %v2832 = vunpack.c.l.b16 %v556
  %v2833 = vunpack.c.l.b16 %v557
  %v2834 = vunpack.c.l.b16 %v558
  %v2835 = vunpack.c.l.b16 %v559
  %v2836 = vunpack.c.l.b16 %v560
  %v2837 = vunpack.c.l.b16 %v561
  %v2838 = vunpack.c.l.b16 %v562
  %v2839 = vunpack.c.l.b16 %v563
  %v2840 = vunpack.c.l.b16 %v564
  %v2841 = vunpack.c.l.b16 %v565
  %v2842 = vunpack.c.l.b16 %v566
  %v2843 = vunpack.c.l.b16 %v567
  %v2844 = vunpack.c.l.b16 %v568
  %v2845 = vunpack.c.l.b16 %v569
  %v2846 = vunpack.c.l.b16 %v570
  %v2847 = vunpack.c.l.b16 %v571
  %v2848 = vunpack.c.l.b16 %v572
  %v2849 = vunpack.c.l.b16 %v573
  %v2850 = vunpack.c.l.b16 %v574
  %v2851 = vunpack.c.l.b16 %v575
  %v2852 = vunpack.c.l.b16 %v576
  %v2853 = vunpack.c.l.b16 %v577
  %v2854 = vunpack.c.l.b16 %v578
  %v2855 = vunpack.c.l.b16 %v579
  %v2856 = vunpack.c.l.b16 %v580
  %v2857 = vunpack.c.l.b16 %v581
  %v2858 = vunpack.c.l.b16 %v582
  %v2859 = vunpack.c.l.b16 %v583
  %v2860 = vunpack.c.l.b16 %v584
  %v2861 = vunpack.c.l.b16 %v585
  %v2862 = vunpack.c.l.b16 %v586
  %v2863 = vunpack.c.l.b16 %v587
  %v2864 = vunpack.c.l.b16 %v588
  %v2865 = vunpack.c.l.b16 %v589
  %v2866 = vunpack.c.l.b16 %v590
  %v2867 = vunpack.c.l.b16 %v591
  %v2868 = vunpack.c.l.b16 %v592
  %v2869 = vunpack.c.l.b16 %v593
  %v2870 = vunpack.c.l.b16 %v594
  %v2871 = vunpack.c.l.b16 %v595
  %v2872 = vunpack.c.l.b16 %v596
  %v2873 = vunpack.c.l.b16 %v597
  %v2874 = vunpack.c.l.b16 %v598
  %v2875 = vunpack.c.l.b16 %v599
  %v2876 = vunpack.c.l.b16 %v600
  %v2877 = vunpack.c.l.b16 %v601
  %v2878 = vunpack.c.l.b16 %v602
  %v2879 = vunpack.c.l.b16 %v603
  %v2880 = vunpack.c.l.b16 %v604
  %v2881 = vunpack.c.l.b16 %v605
  %v2882 = vunpack.c.l.b16 %v606
  %v2883 = vunpack.c.l.b16 %v607
  %v2884 = vunpack.c.l.b16 %v608
  %v2885 = vunpack.c.l.b16 %v609
  %v2886 = vunpack.c.l.b16 %v610
  %v2887 = vunpack.c.l.b16 %v611
  %v2888 = vunpack.c.l.b16 %v612
  %v2889 = vunpack.c.l.b16 %v613
  %v2890 = vunpack.c.l.b16 %v614
  %v2891 = vunpack.c.l.b16 %v615
  %v2892 = vunpack.c.l.b16 %v616
  %v2893 = vunpack.c.l.b16 %v617
  %v2894 = vunpack.c.l.b16 %v618
  %v2895 = vunpack.c.l.b16 %v619
  %v2896 = vunpack.c.l.b16 %v620
  %v2897 = vunpack.c.l.b16 %v621
  %v2898 = vunpack.c.l.b16 %v622
  %v2899 = vunpack.c.l.b16 %v623
  %v2900 = vunpack.c.l.b16 %v624
  %v2901 = vunpack.c.l.b16 %v625
  %v2902 = vunpack.c.l.b16 %v626
  %v2903 = vunpack.c.l.b16 %v627
  %v2904 = vunpack.c.l.b16 %v628
  %v2905 = vunpack.c.l.b16 %v629
  %v2906 = vunpack.c.l.b16 %v630
  %v2907 = vunpack.c.l.b16 %v631
  %v2908 = vunpack.c.l.b16 %v632
  %v2909 = vunpack.c.l.b16 %v633
  %v2910 = vunpack.c.l.b16 %v634
  %v2911 = vunpack.c.l.b16 %v635
  %v2912 = vunpack.c.l.b16 %v636
  %v2913 = vunpack.c.l.b16 %v637
  %v2914 = vunpack.c.l.b16 %v638
  %v2915 = vunpack.c.l.b16 %v639
  %v2916 = vunpack.c.l.b16 %v640
  %v2917 = vunpack.c.l.b16 %v641
  %v2918 = vunpack.c.l.b16 %v642
  %v2919 = vunpack.c.l.b16 %v643
  %v2920 = vunpack.c.l.b16 %v644
  %v2921 = vunpack.c.l.b16 %v645
  %v2922 = vunpack.c.l.b16 %v646
  %v2923 = vunpack.c.l.b16 %v647
  %v2924 = vunpack.c.l.b16 %v648
  %v2925 = vunpack.c.l.b16 %v649
  %v2926 = vunpack.c.l.b16 %v650
  %v2927 = vunpack.c.l.b16 %v651
  %v2928 = vunpack.c.l.b16 %v652
  %v2929 = vunpack.c.l.b16 %v653
  %v2930 = vunpack.c.l.b16 %v654
  %v2931 = vunpack.c.l.b16 %v655
  %v2932 = vunpack.c.l.b16 %v656
  %v2933 = vunpack.c.l.b16 %v657
  %v2934 = vunpack.c.l.b16 %v658
  %v2935 = vunpack.c.l.b16 %v659
  %v2936 = vunpack.c.l.b16 %v660
  %v2937 = vunpack.c.l.b16 %v661
  %v2938 = vunpack.c.l.b16 %v662
  %v2939 = vunpack.c.l.b16 %v663
  %v2940 = vunpack.c.l.b16 %v664
  %v2941 = vunpack.c.l.b16 %v665
  %v2942 = vunpack.c.l.b16 %v666
  %v2943 = vunpack.c.l.b16 %v667
  %v2944 = vunpack.c.l.b16 %v668
  %v2945 = vunpack.c.l.b16 %v669
  %v2946 = vunpack.c.l.b16 %v670
  %v2947 = vunpack.c.l.b16 %v671
  %v2948 = vunpack.c.l.b16 %v672
  %v2949 = vunpack.c.l.b16 %v673
  %v2950 = vunpack.c.l.b16 %v674
  %v2951 = vunpack.c.l.b16 %v675
  %v2952 = vunpack.c.l.b16 %v676
  %v2953 = vunpack.c.l.b16 %v677
  %v2954 = vunpack.c.l.b16 %v678
  %v2955 = vunpack.c.l.b16 %v679
  %v2956 = vunpack.c.l.b16 %v680
  %v2957 = vunpack.c.l.b16 %v681
  %v2958 = vunpack.c.l.b16 %v682
  %v2959 = vunpack.c.l.b16 %v683
  %v2960 = vunpack.c.l.b16 %v684
  %v2961 = vunpack.c.l.b16 %v685
  %v2962 = vunpack.c.l.b16 %v686
  %v2963 = vunpack.c.l.b16 %v687
  %v2964 = vunpack.c.l.b16 %v688
  %v2965 = vunpack.c.l.b16 %v689
  %v2966 = vunpack.c.l.b16 %v690
  %v2967 = vunpack.c.l.b16 %v691
  %v2968 = vunpack.c.l.b16 %v692
  %v2969 = vunpack.c.l.b16 %v693
  %v2970 = vunpack.c.l.b16 %v694
  %v2971 = vunpack.c.l.b16 %v695
  %v2972 = vunpack.c.l.b16 %v696
  %v2973 = vunpack.c.l.b16 %v697
  %v2974 = vunpack.c.l.b16 %v698
  %v2975 = vunpack.c.l.b16 %v699
  %v2976 = vunpack.c.l.b16 %v700
  %v2977 = vunpack.c.l.b16 %v701
  %v2978 = vunpack.c.l.b16 %v702
  %v2979 = vunpack.c.l.b16 %v703
  %v2980 = vunpack.c.l.b16 %v704
  %v2981 = vunpack.c.l.b16 %v705
  %v2982 = vunpack.c.l.b16 %v706
  %v2983 = vunpack.c.l.b16 %v707
  %v2984 = vunpack.c.l.b16 %v708
  %v2985 = vunpack.c.l.b16 %v709
  %v2986 = vunpack.c.l.b16 %v710
  %v2987 = vunpack.c.l.b16 %v711
  %v2988 = vunpack.c.l.b16 %v712
  %v2989 = vunpack.c.l.b16 %v713
  %v2990 = vunpack.c.l.b16 %v714
  %v2991 = vunpack.c.l.b16 %v715
  %v2992 = vunpack.c.l.b16 %v716
  %v2993 = vunpack.c.l.b16 %v717
  %v2994 = vunpack.c.l.b16 %v718
  %v2995 = vunpack.c.l.b16 %v719
  %v2996 = vunpack.c.l.b16 %v720
  %v2997 = vunpack.c.l.b16 %v721
  %v2998 = vunpack.c.l.b16 %v722
  %v2999 = vunpack.c.l.b16 %v723
  %v3000 = vunpack.c.l.b16 %v724
  %v3001 = vunpack.c.l.b16 %v725
  %v3002 = vunpack.c.l.b16 %v726
  %v3003 = vunpack.c.l.b16 %v727
  %v3004 = vunpack.c.l.b16 %v728
  %v3005 = vunpack.c.l.b16 %v729
  %v3006 = vunpack.c.l.b16 %v730
  %v3007 = vunpack.c.l.b16 %v731
  %v3008 = vunpack.c.l.b16 %v732
  %v3009 = vunpack.c.l.b16 %v733
  %v3010 = vunpack.c.l.b16 %v734
  %v3011 = vunpack.c.l.b16 %v735
  %v3012 = vunpack.c.l.b16 %v736
  %v3013 = vunpack.c.l.b16 %v737
  %v3014 = vunpack.c.l.b16 %v738
  %v3015 = vunpack.c.l.b16 %v739
  %v3016 = vunpack.c.l.b16 %v740
  %v3017 = vunpack.c.l.b16 %v741
  %v3018 = vunpack.c.l.b16 %v742
  %v3019 = vunpack.c.l.b16 %v743
  %v3020 = vunpack.c.l.b16 %v744
  %v3021 = vunpack.c.l.b16 %v745
  %v3022 = vunpack.c.l.b16 %v746
  %v3023 = vunpack.c.l.b16 %v747
  %v3024 = vunpack.c.l.b16 %v748
  %v3025 = vunpack.c.l.b16 %v749
  %v3026 = vunpack.c.l.b16 %v750
  %v3027 = vunpack.c.l.b16 %v751
  %v3028 = vunpack.c.l.b16 %v752
  %v3029 = vunpack.c.l.b16 %v753
  %v3030 = vunpack.c.l.b16 %v754
  %v3031 = vunpack.c.l.b16 %v755
  %v3032 = vunpack.c.l.b16 %v756
  %v3033 = vunpack.c.l.b16 %v757
  %v3034 = vunpack.c.l.b16 %v758
  %v3035 = vunpack.c.l.b16 %v759
  %v3036 = vunpack.c.l.b16 %v760
  %v3037 = vunpack.c.l.b16 %v761
  %v3038 = vunpack.c.l.b16 %v762
  %v3039 = vunpack.c.l.b16 %v763
  %v3040 = vunpack.c.l.b16 %v764
  %v3041 = vunpack.c.l.b16 %v765
  %v3042 = vunpack.c.l.b16 %v766
  %v3043 = vunpack.c.l.b16 %v767
  %v3044 = vunpack.c.l.b16 %v768
  %v3045 = vunpack.c.l.b16 %v769
  %v3046 = vunpack.c.l.b16 %v770
  %v3047 = vunpack.c.l.b16 %v771
  %v3048 = vunpack.c.l.b16 %v772
  %v3049 = vunpack.c.l.b16 %v773
  %v3050 = vunpack.c.l.b16 %v774
  %v3051 = vunpack.c.l.b16 %v775
  %v3052 = vunpack.c.l.b16 %v776
  %v3053 = vunpack.c.l.b16 %v777
  %v3054 = vunpack.c.l.b16 %v778
  %v3055 = vunpack.c.l.b16 %v779
  %v3056 = vunpack.c.l.b16 %v780
  %v3057 = vunpack.c.l.b16 %v781
  %v3058 = vunpack.c.l.b16 %v782
  %v3059 = vunpack.c.l.b16 %v783
  %v3060 = vunpack.c.l.b16 %v784
  %v3061 = vunpack.c.l.b16 %v785
  %v3062 = vunpack.c.l.b16 %v786
  %v3063 = vunpack.c.l.b16 %v787
  %v3064 = vunpack.c.l.b16 %v788
  %v3065 = vunpack.c.l.b16 %v789
  %v3066 = vunpack.c.l.b16 %v790
  %v3067 = vunpack.c.l.b16 %v791
  %v3068 = vunpack.c.l.b16 %v792
  %v3069 = vunpack.c.l.b16 %v793
  %v3070 = vunpack.c.l.b16 %v794
  %v3071 = vunpack.c.l.b16 %v795
  %v3072 = vunpack.c.l.b16 %v796
  %v3073 = vunpack.c.l.b16 %v797
  %v3074 = vunpack.c.l.b16 %v798
  %v3075 = vunpack.c.l.b16 %v799
  %v3076 = vunpack.c.l.b16 %v800
  %v3077 = vunpack.c.l.b16 %v801
  %v3078 = vunpack.c.l.b16 %v802
  %v3079 = vunpack.c.l.b16 %v803
  %v3080 = vunpack.c.l.b16 %v804
  %v3081 = vunpack.c.l.b16 %v805
  %v3082 = vunpack.c.l.b16 %v806
  %v3083 = vunpack.c.l.b16 %v807
  %v3084 = vunpack.c.l.b16 %v808
  %v3085 = vunpack.c.l.b16 %v809
  %v3086 = vunpack.c.l.b16 %v810
  %v3087 = vunpack.c.l.b16 %v811
  %v3088 = vunpack.c.l.b16 %v812
  %v3089 = vunpack.c.l.b16 %v813
  %v3090 = vunpack.c.l.b16 %v814
  %v3091 = vunpack.c.l.b16 %v815
  %v3092 = vunpack.c.l.b16 %v816
  %v3093 = vunpack.c.l.b16 %v817
  %v3094 = vunpack.c.l.b16 %v818
  %v3095 = vunpack.c.l.b16 %v819
  %v3096 = vunpack.c.l.b16 %v820
  %v3097 = vunpack.c.l.b16 %v821
  %v3098 = vunpack.c.l.b16 %v822
  %v3099 = vunpack.c.l.b16 %v823
  %v3100 = vunpack.c.l.b16 %v824
  %v3101 = vunpack.c.l.b16 %v825
  %v3102 = vunpack.c.l.b16 %v826
  %v3103 = vunpack.c.l.b16 %v827
  %v3104 = vunpack.c.l.b16 %v828
  %v3105 = vunpack.c.l.b16 %v829
  %v3106 = vunpack.c.l.b16 %v830
  %v3107 = vunpack.c.l.b16 %v831
  %v3108 = vunpack.c.l.b16 %v832
  %v3109 = vunpack.c.l.b16 %v833
  %v3110 = vunpack.c.l.b16 %v834
  %v3111 = vunpack.c.l.b16 %v835
  %v3112 = vunpack.c.l.b16 %v836
  %v3113 = vunpack.c.l.b16 %v837
  %v3114 = vunpack.c.l.b16 %v838
  %v3115 = vunpack.c.l.b16 %v839
  %v3116 = vunpack.c.l.b16 %v840
  %v3117 = vunpack.c.l.b16 %v841
  %v3118 = vunpack.c.l.b16 %v842
  %v3119 = vunpack.c.l.b16 %v843
  %v3120 = vunpack.c.l.b16 %v844
  %v3121 = vunpack.c.l.b16 %v845
  %v3122 = vunpack.c.l.b16 %v846
  %v3123 = vunpack.c.l.b16 %v847
  %v3124 = vunpack.c.l.b16 %v848
  %v3125 = vunpack.c.l.b16 %v849
  %v3126 = vunpack.c.l.b16 %v850
  %v3127 = vunpack.c.l.b16 %v851
  %v3128 = vunpack.c.l.b16 %v852
  %v3129 = vunpack.c.l.b16 %v853
  %v3130 = vunpack.c.l.b16 %v854
  %v3131 = vunpack.c.l.b16 %v855
  %v3132 = vunpack.c.l.b16 %v856
  %v3133 = vunpack.c.l.b16 %v857
  %v3134 = vunpack.c.l.b16 %v858
  %v3135 = vunpack.c.l.b16 %v859
  %v3136 = vunpack.c.l.b16 %v860
  %v3137 = vunpack.c.l.b16 %v861
  %v3138 = vunpack.c.l.b16 %v862
  %v3139 = vunpack.c.l.b16 %v863
  %v3140 = vunpack.c.l.b16 %v864
  %v3141 = vunpack.c.l.b16 %v865
  %v3142 = vunpack.c.l.b16 %v866
  %v3143 = vunpack.c.l.b16 %v867
  %v3144 = vunpack.c.l.b16 %v868
  %v3145 = vunpack.c.l.b16 %v869
  %v3146 = vunpack.c.l.b16 %v870
  %v3147 = vunpack.c.l.b16 %v871
  %v3148 = vunpack.c.l.b16 %v872
  %v3149 = vunpack.c.l.b16 %v873
  %v3150 = vunpack.c.l.b16 %v874
  %v3151 = vunpack.c.l.b16 %v875
  %v3152 = vunpack.c.l.b16 %v876
  %v3153 = vunpack.c.l.b16 %v877
  %v3154 = vunpack.c.l.b16 %v878
  %v3155 = vunpack.c.l.b16 %v879
  %v3156 = vunpack.c.l.b16 %v880
  %v3157 = vunpack.c.l.b16 %v881
  %v3158 = vunpack.c.l.b16 %v882
  %v3159 = vunpack.c.l.b16 %v883
  %v3160 = vunpack.c.l.b16 %v884
  %v3161 = vunpack.c.l.b16 %v885
  %v3162 = vunpack.c.l.b16 %v886
  %v3163 = vunpack.c.l.b16 %v887
  %v3164 = vunpack.c.l.b16 %v888
  %v3165 = vunpack.c.l.b16 %v889
  %v3166 = vunpack.c.l.b16 %v890
  %v3167 = vunpack.c.l.b16 %v891
  %v3168 = vunpack.c.l.b16 %v892
  %v3169 = vunpack.c.l.b16 %v893
  %v3170 = vunpack.c.l.b16 %v894
  %v3171 = vunpack.c.l.b16 %v895
  %v3172 = vunpack.c.l.b16 %v896
  %v3173 = vunpack.c.l.b16 %v897
  %v3174 = vunpack.c.l.b16 %v898
  %v3175 = vunpack.c.l.b16 %v899
  %v3176 = vunpack.c.l.b16 %v900
  %v3177 = vunpack.c.l.b16 %v901
  %v3178 = vunpack.c.l.b16 %v902
  %v3179 = vunpack.c.l.b16 %v903
  %v3180 = vunpack.c.l.b16 %v904
  %v3181 = vunpack.c.l.b16 %v905
  %v3182 = vunpack.c.l.b16 %v906
  %v3183 = vunpack.c.l.b16 %v907
  %v3184 = vunpack.c.l.b16 %v908
  %v3185 = vunpack.c.l.b16 %v909
  %v3186 = vunpack.c.l.b16 %v910
  %v3187 = vunpack.c.l.b16 %v911
  %v3188 = vunpack.c.l.b16 %v912
  %v3189 = vunpack.c.l.b16 %v913
  %v3190 = vunpack.c.l.b16 %v914
  %v3191 = vunpack.c.l.b16 %v915
  %v3192 = vunpack.c.l.b16 %v916
  %v3193 = vunpack.c.l.b16 %v917
  %v3194 = vunpack.c.l.b16 %v918
  %v3195 = vunpack.c.l.b16 %v919
  %v3196 = vunpack.c.l.b16 %v920
  %v3197 = vunpack.c.l.b16 %v921
  %v3198 = vunpack.c.l.b16 %v922
  %v3199 = vunpack.c.l.b16 %v923
  %v3200 = vunpack.c.l.b16 %v924
  %v3201 = vunpack.c.l.b16 %v925
  %v3202 = vunpack.c.l.b16 %v926
  %v3203 = vunpack.c.l.b16 %v927
  %v3204 = vunpack.c.l.b16 %v928
  %v3205 = vunpack.c.l.b16 %v929
  %v3206 = vunpack.c.l.b16 %v930
  %v3207 = vunpack.c.l.b16 %v931
  %v3208 = vunpack.c.l.b16 %v932
  %v3209 = vunpack.c.l.b16 %v933
  %v3210 = vunpack.c.l.b16 %v934
  %v3211 = vunpack.c.l.b16 %v935
  %v3212 = vunpack.c.l.b16 %v936
  %v3213 = vunpack.c.l.b16 %v937
  %v3214 = vunpack.c.l.b16 %v938
  %v3215 = vunpack.c.l.b16 %v939
  %v3216 = vunpack.c.l.b16 %v940
  %v3217 = vunpack.c.l.b16 %v941
  %v3218 = vunpack.c.l.b16 %v942
  %v3219 = vunpack.c.l.b16 %v943
  %v3220 = vunpack.c.l.b16 %v944
  %v3221 = vunpack.c.l.b16 %v945
  %v3222 = vunpack.c.l.b16 %v946
  %v3223 = vunpack.c.l.b16 %v947
  %v3224 = vunpack.c.l.b16 %v948
  %v3225 = vunpack.c.l.b16 %v949
  %v3226 = vunpack.c.l.b16 %v950
  %v3227 = vunpack.c.l.b16 %v951
  %v3228 = vunpack.c.l.b16 %v952
  %v3229 = vunpack.c.l.b16 %v953
  %v3230 = vunpack.c.l.b16 %v954
  %v3231 = vunpack.c.l.b16 %v955
  %v3232 = vunpack.c.l.b16 %v956
  %v3233 = vunpack.c.l.b16 %v957
  %v3234 = vunpack.c.l.b16 %v958
  %v3235 = vunpack.c.l.b16 %v959
  %v3236 = vunpack.c.l.b16 %v960
  %v3237 = vunpack.c.l.b16 %v961
  %v3238 = vunpack.c.l.b16 %v962
  %v3239 = vunpack.c.l.b16 %v963
  %v3240 = vunpack.c.l.b16 %v964
  %v3241 = vunpack.c.l.b16 %v965
  %v3242 = vunpack.c.l.b16 %v966
  %v3243 = vunpack.c.l.b16 %v967
  %v3244 = vunpack.c.l.b16 %v968
  %v3245 = vunpack.c.l.b16 %v969
  %v3246 = vunpack.c.l.b16 %v970
  %v3247 = vunpack.c.l.b16 %v971
  %v3248 = vunpack.c.l.b16 %v972
  %v3249 = vunpack.c.l.b16 %v973
  %v3250 = vunpack.c.l.b16 %v974
  %v3251 = vunpack.c.l.b16 %v975
  %v3252 = vunpack.c.l.b16 %v976
  %v3253 = vunpack.c.l.b16 %v977
  %v3254 = vunpack.c.l.b16 %v978
  %v3255 = vunpack.c.l.b16 %v979
  %v3256 = vunpack.c.l.b16 %v980
  %v3257 = vunpack.c.l.b16 %v981
  %v3258 = vunpack.c.l.b16 %v982
  %v3259 = vunpack.c.l.b16 %v983
  %v3260 = vunpack.c.l.b16 %v984
  %v3261 = vunpack.c.l.b16 %v985
  %v3262 = vunpack.c.l.b16 %v986
  %v3263 = vunpack.c.l.b16 %v987
  %v3264 = vunpack.c.l.b16 %v988
  %v3265 = vunpack.c.l.b16 %v989
  %v3266 = vunpack.c.l.b16 %v990
  %v3267 = vunpack.c.l.b16 %v991
  %v3268 = vunpack.c.l.b16 %v992
  %v3269 = vunpack.c.l.b16 %v993
  %v3270 = vunpack.c.l.b16 %v994
  %v3271 = vunpack.c.l.b16 %v995
  %v3272 = vunpack.c.l.b16 %v996
  %v3273 = vunpack.c.l.b16 %v997
  %v3274 = vunpack.c.l.b16 %v998
  %v3275 = vunpack.c.l.b16 %v999
  %v3276 = vunpack.c.l.b16 %v1000
  %v3277 = vunpack.c.l.b16 %v1001
  %v3278 = vunpack.c.l.b16 %v1002
  %v3279 = vunpack.c.l.b16 %v1003
  %v3280 = vunpack.c.l.b16 %v1004
  %v3281 = vunpack.c.l.b16 %v1005
  %v3282 = vunpack.c.l.b16 %v1006
  %v3283 = vunpack.c.l.b16 %v1007
  %v3284 = vunpack.c.l.b16 %v1008
  %v3285 = vunpack.c.l.b16 %v1009
  %v3286 = vunpack.c.l.b16 %v1010
  %v3287 = vunpack.c.l.b16 %v1011
  %v3288 = vunpack.c.l.b16 %v1012
  %v3289 = vunpack.c.l.b16 %v1013
  %v3290 = vunpack.c.l.b16 %v1014
  %v3291 = vunpack.c.l.b16 %v1015
  %v3292 = vunpack.c.l.b16 %v1016
  %v3293 = vunpack.c.l.b16 %v1017
  %v3294 = vunpack.c.l.b16 %v1018
  %v3295 = vunpack.c.l.b16 %v1019
  %v3296 = vunpack.c.l.b16 %v1020
  %v3297 = vunpack.c.l.b16 %v1021
  %v3298 = vunpack.c.l.b16 %v1022
  %v3299 = vunpack.c.l.b16 %v1023
  %v3300 = vunpack.c.l.b16 %v1024
  %v3301 = vunpack.c.l.b16 %v1025
  %v3302 = vunpack.c.l.b16 %v1026
  %v3303 = vunpack.c.l.b16 %v1027
  %v3304 = vunpack.c.l.b16 %v1028
  %v3305 = vunpack.c.l.b16 %v1029
  %v3306 = vunpack.c.l.b16 %v1030
  %v3307 = vunpack.c.l.b16 %v1031
  %v3308 = vunpack.c.l.b16 %v1032
  %v3309 = vunpack.c.l.b16 %v1033
  %v3310 = vunpack.c.l.b16 %v1034
  %v3311 = vunpack.c.l.b16 %v1035
  %v3312 = vunpack.c.l.b16 %v1036
  %v3313 = vunpack.c.l.b16 %v1037
  %v3314 = vunpack.c.l.b16 %v1038
  %v3315 = vunpack.c.l.b16 %v1039
  %v3316 = vunpack.c.l.b16 %v1040
  %v3317 = vunpack.c.l.b16 %v1041
  %v3318 = vunpack.c.l.b16 %v1042
  %v3319 = vunpack.c.l.b16 %v1043
  %v3320 = vunpack.c.l.b16 %v1044
  %v3321 = vunpack.c.l.b16 %v1045
  %v3322 = vunpack.c.l.b16 %v1046
  %v3323 = vunpack.c.l.b16 %v1047
  %v3324 = vunpack.c.l.b16 %v1048
  %v3325 = vunpack.c.l.b16 %v1049
  %v3326 = vunpack.c.l.b16 %v1050
  %v3327 = vunpack.c.l.b16 %v1051
  %v3328 = vunpack.c.l.b16 %v1052
  %v3329 = vunpack.c.l.b16 %v1053
  %v3330 = vunpack.c.l.b16 %v1054
  %v3331 = vunpack.c.l.b16 %v1055
  %v3332 = vunpack.c.l.b16 %v1056
  %v3333 = vunpack.c.l.b16 %v1057
  %v3334 = vunpack.c.l.b16 %v1058
  %v3335 = vunpack.c.l.b16 %v1059
  %v3336 = vunpack.c.l.b16 %v1060
  %v3337 = vunpack.c.l.b16 %v1061
  %v3338 = vunpack.c.l.b16 %v1062
  %v3339 = vunpack.c.l.b16 %v1063
  %v3340 = vunpack.c.l.b16 %v1064
  %v3341 = vunpack.c.l.b16 %v1065
  %v3342 = vunpack.c.l.b16 %v1066
  %v3343 = vunpack.c.l.b16 %v1067
  %v3344 = vunpack.c.l.b16 %v1068
  %v3345 = vunpack.c.l.b16 %v1069
  %v3346 = vunpack.c.l.b16 %v1070
  %v3347 = vunpack.c.l.b16 %v1071
  %v3348 = vunpack.c.l.b16 %v1072
  %v3349 = vunpack.c.l.b16 %v1073
  %v3350 = vunpack.c.l.b16 %v1074
  %v3351 = vunpack.c.l.b16 %v1075
  %v3352 = vpack.c.b16 %v2329, %v2328
  %v3353 = vpack.c.b16 %v2331, %v2330
  %v3354 = vpack.c.b16 %v2333, %v2332
  %v3355 = vpack.c.b16 %v2335, %v2334
  %v3356 = vpack.c.b16 %v2337, %v2336
  %v3357 = vpack.c.b16 %v2339, %v2338
  %v3358 = vpack.c.b16 %v2341, %v2340
  %v3359 = vpack.c.b16 %v2343, %v2342
  %v3360 = vpack.c.b16 %v2345, %v2344
  %v3361 = vpack.c.b16 %v2347, %v2346
  %v3362 = vpack.c.b16 %v2349, %v2348
  %v3363 = vpack.c.b16 %v2351, %v2350
  %v3364 = vpack.c.b16 %v2353, %v2352
  %v3365 = vpack.c.b16 %v2355, %v2354
  %v3366 = vpack.c.b16 %v2357, %v2356
  %v3367 = vpack.c.b16 %v2359, %v2358
  %v3368 = vpack.c.b16 %v2361, %v2360
  %v3369 = vpack.c.b16 %v2363, %v2362
  %v3370 = vpack.c.b16 %v2365, %v2364
  %v3371 = vpack.c.b16 %v2367, %v2366
  %v3372 = vpack.c.b16 %v2369, %v2368
  %v3373 = vpack.c.b16 %v2371, %v2370
  %v3374 = vpack.c.b16 %v2373, %v2372
  %v3375 = vpack.c.b16 %v2375, %v2374
  %v3376 = vpack.c.b16 %v2377, %v2376
  %v3377 = vpack.c.b16 %v2379, %v2378
  %v3378 = vpack.c.b16 %v2381, %v2380
  %v3379 = vpack.c.b16 %v2383, %v2382
  %v3380 = vpack.c.b16 %v2385, %v2384
  %v3381 = vpack.c.b16 %v2387, %v2386
  %v3382 = vpack.c.b16 %v2389, %v2388
  %v3383 = vpack.c.b16 %v2391, %v2390
  %v3384 = vpack.c.b16 %v2393, %v2392
  %v3385 = vpack.c.b16 %v2395, %v2394
  %v3386 = vpack.c.b16 %v2397, %v2396
  %v3387 = vpack.c.b16 %v2399, %v2398
  %v3388 = vpack.c.b16 %v2401, %v2400
  %v3389 = vpack.c.b16 %v2403, %v2402
  %v3390 = vpack.c.b16 %v2405, %v2404
  %v3391 = vpack.c.b16 %v2407, %v2406
  %v3392 = vpack.c.b16 %v2409, %v2408
  %v3393 = vpack.c.b16 %v2411, %v2410
  %v3394 = vpack.c.b16 %v2413, %v2412
  %v3395 = vpack.c.b16 %v2415, %v2414
  %v3396 = vpack.c.b16 %v2417, %v2416
  %v3397 = vpack.c.b16 %v2419, %v2418
  %v3398 = vpack.c.b16 %v2421, %v2420
  %v3399 = vpack.c.b16 %v2423, %v2422
  %v3400 = vpack.c.b16 %v2425, %v2424
  %v3401 = vpack.c.b16 %v2427, %v2426
  %v3402 = vpack.c.b16 %v2429, %v2428
  %v3403 = vpack.c.b16 %v2431, %v2430
  %v3404 = vpack.c.b16 %v2433, %v2432
  %v3405 = vpack.c.b16 %v2435, %v2434
  %v3406 = vpack.c.b16 %v2437, %v2436
  %v3407 = vpack.c.b16 %v2439, %v2438
  %v3408 = vpack.c.b16 %v2441, %v2440
  %v3409 = vpack.c.b16 %v2443, %v2442
  %v3410 = vpack.c.b16 %v2445, %v2444
  %v3411 = vpack.c.b16 %v2447, %v2446
  %v3412 = vpack.c.b16 %v2449, %v2448
  %v3413 = vpack.c.b16 %v2451, %v2450
  %v3414 = vpack.c.b16 %v2453, %v2452
  %v3415 = vpack.c.b16 %v2455, %v2454
  %v3416 = vpack.c.b16 %v2457, %v2456
  %v3417 = vpack.c.b16 %v2459, %v2458
  %v3418 = vpack.c.b16 %v2461, %v2460
  %v3419 = vpack.c.b16 %v2463, %v2462
  %v3420 = vpack.c.b16 %v2465, %v2464
  %v3421 = vpack.c.b16 %v2467, %v2466
  %v3422 = vpack.c.b16 %v2469, %v2468
  %v3423 = vpack.c.b16 %v2471, %v2470
  %v3424 = vpack.c.b16 %v2473, %v2472
  %v3425 = vpack.c.b16 %v2475, %v2474
  %v3426 = vpack.c.b16 %v2477, %v2476
  %v3427 = vpack.c.b16 %v2479, %v2478
  %v3428 = vpack.c.b16 %v2481, %v2480
  %v3429 = vpack.c.b16 %v2483, %v2482
  %v3430 = vpack.c.b16 %v2485, %v2484
  %v3431 = vpack.c.b16 %v2487, %v2486
  %v3432 = vpack.c.b16 %v2489, %v2488
  %v3433 = vpack.c.b16 %v2491, %v2490
  %v3434 = vpack.c.b16 %v2493, %v2492
  %v3435 = vpack.c.b16 %v2495, %v2494
  %v3436 = vpack.c.b16 %v2497, %v2496
  %v3437 = vpack.c.b16 %v2499, %v2498
  %v3438 = vpack.c.b16 %v2501, %v2500
  %v3439 = vpack.c.b16 %v2503, %v2502
  %v3440 = vpack.c.b16 %v2505, %v2504
  %v3441 = vpack.c.b16 %v2507, %v2506
  %v3442 = vpack.c.b16 %v2509, %v2508
  %v3443 = vpack.c.b16 %v2511, %v2510
  %v3444 = vpack.c.b16 %v2513, %v2512
  %v3445 = vpack.c.b16 %v2515, %v2514
  %v3446 = vpack.c.b16 %v2517, %v2516
  %v3447 = vpack.c.b16 %v2519, %v2518
  %v3448 = vpack.c.b16 %v2521, %v2520
  %v3449 = vpack.c.b16 %v2523, %v2522
  %v3450 = vpack.c.b16 %v2525, %v2524
  %v3451 = vpack.c.b16 %v2527, %v2526
  %v3452 = vpack.c.b16 %v2529, %v2528
  %v3453 = vpack.c.b16 %v2531, %v2530
  %v3454 = vpack.c.b16 %v2533, %v2532
  %v3455 = vpack.c.b16 %v2535, %v2534
  %v3456 = vpack.c.b16 %v2537, %v2536
  %v3457 = vpack.c.b16 %v2539, %v2538
  %v3458 = vpack.c.b16 %v2541, %v2540
  %v3459 = vpack.c.b16 %v2543, %v2542
  %v3460 = vpack.c.b16 %v2545, %v2544
  %v3461 = vpack.c.b16 %v2547, %v2546
  %v3462 = vpack.c.b16 %v2549, %v2548
  %v3463 = vpack.c.b16 %v2551, %v2550
  %v3464 = vpack.c.b16 %v2553, %v2552
  %v3465 = vpack.c.b16 %v2555, %v2554
  %v3466 = vpack.c.b16 %v2557, %v2556
  %v3467 = vpack.c.b16 %v2559, %v2558
  %v3468 = vpack.c.b16 %v2561, %v2560
  %v3469 = vpack.c.b16 %v2563, %v2562
  %v3470 = vpack.c.b16 %v2565, %v2564
  %v3471 = vpack.c.b16 %v2567, %v2566
  %v3472 = vpack.c.b16 %v2569, %v2568
  %v3473 = vpack.c.b16 %v2571, %v2570
  %v3474 = vpack.c.b16 %v2573, %v2572
  %v3475 = vpack.c.b16 %v2575, %v2574
  %v3476 = vpack.c.b16 %v2577, %v2576
  %v3477 = vpack.c.b16 %v2579, %v2578
  %v3478 = vpack.c.b16 %v2581, %v2580
  %v3479 = vpack.c.b16 %v2583, %v2582
  %v3480 = vpack.c.b16 %v2585, %v2584
  %v3481 = vpack.c.b16 %v2587, %v2586
  %v3482 = vpack.c.b16 %v2589, %v2588
  %v3483 = vpack.c.b16 %v2591, %v2590
  %v3484 = vpack.c.b16 %v2593, %v2592
  %v3485 = vpack.c.b16 %v2595, %v2594
  %v3486 = vpack.c.b16 %v2597, %v2596
  %v3487 = vpack.c.b16 %v2599, %v2598
  %v3488 = vpack.c.b16 %v2601, %v2600
  %v3489 = vpack.c.b16 %v2603, %v2602
  %v3490 = vpack.c.b16 %v2605, %v2604
  %v3491 = vpack.c.b16 %v2607, %v2606
  %v3492 = vpack.c.b16 %v2609, %v2608
  %v3493 = vpack.c.b16 %v2611, %v2610
  %v3494 = vpack.c.b16 %v2613, %v2612
  %v3495 = vpack.c.b16 %v2615, %v2614
  %v3496 = vpack.c.b16 %v2617, %v2616
  %v3497 = vpack.c.b16 %v2619, %v2618
  %v3498 = vpack.c.b16 %v2621, %v2620
  %v3499 = vpack.c.b16 %v2623, %v2622
  %v3500 = vpack.c.b16 %v2625, %v2624
  %v3501 = vpack.c.b16 %v2627, %v2626
  %v3502 = vpack.c.b16 %v2629, %v2628
  %v3503 = vpack.c.b16 %v2631, %v2630
  %v3504 = vpack.c.b16 %v2633, %v2632
  %v3505 = vpack.c.b16 %v2635, %v2634
  %v3506 = vpack.c.b16 %v2637, %v2636
  %v3507 = vpack.c.b16 %v2639, %v2638
  %v3508 = vpack.c.b16 %v2641, %v2640
  %v3509 = vpack.c.b16 %v2643, %v2642
  %v3510 = vpack.c.b16 %v2645, %v2644
  %v3511 = vpack.c.b16 %v2647, %v2646
  %v3512 = vpack.c.b16 %v2649, %v2648
  %v3513 = vpack.c.b16 %v2651, %v2650
  %v3514 = vpack.c.b16 %v2653, %v2652
  %v3515 = vpack.c.b16 %v2655, %v2654
  %v3516 = vpack.c.b16 %v2657, %v2656
  %v3517 = vpack.c.b16 %v2659, %v2658
  %v3518 = vpack.c.b16 %v2661, %v2660
  %v3519 = vpack.c.b16 %v2663, %v2662
  %v3520 = vpack.c.b16 %v2665, %v2664
  %v3521 = vpack.c.b16 %v2667, %v2666
  %v3522 = vpack.c.b16 %v2669, %v2668
  %v3523 = vpack.c.b16 %v2671, %v2670
  %v3524 = vpack.c.b16 %v2673, %v2672
  %v3525 = vpack.c.b16 %v2675, %v2674
  %v3526 = vpack.c.b16 %v2677, %v2676
  %v3527 = vpack.c.b16 %v2679, %v2678
  %v3528 = vpack.c.b16 %v2681, %v2680
  %v3529 = vpack.c.b16 %v2683, %v2682
  %v3530 = vpack.c.b16 %v2685, %v2684
  %v3531 = vpack.c.b16 %v2687, %v2686
  %v3532 = vpack.c.b16 %v2689, %v2688
  %v3533 = vpack.c.b16 %v2691, %v2690
  %v3534 = vpack.c.b16 %v2693, %v2692
  %v3535 = vpack.c.b16 %v2695, %v2694
  %v3536 = vpack.c.b16 %v2697, %v2696
  %v3537 = vpack.c.b16 %v2699, %v2698
  %v3538 = vpack.c.b16 %v2701, %v2700
  %v3539 = vpack.c.b16 %v2703, %v2702
  %v3540 = vpack.c.b16 %v2705, %v2704
  %v3541 = vpack.c.b16 %v2707, %v2706
  %v3542 = vpack.c.b16 %v2709, %v2708
  %v3543 = vpack.c.b16 %v2711, %v2710
  %v3544 = vpack.c.b16 %v2713, %v2712
  %v3545 = vpack.c.b16 %v2715, %v2714
  %v3546 = vpack.c.b16 %v2717, %v2716
  %v3547 = vpack.c.b16 %v2719, %v2718
  %v3548 = vpack.c.b16 %v2721, %v2720
  %v3549 = vpack.c.b16 %v2723, %v2722
  %v3550 = vpack.c.b16 %v2725, %v2724
  %v3551 = vpack.c.b16 %v2727, %v2726
  %v3552 = vpack.c.b16 %v2729, %v2728
  %v3553 = vpack.c.b16 %v2731, %v2730
  %v3554 = vpack.c.b16 %v2733, %v2732
  %v3555 = vpack.c.b16 %v2735, %v2734
  %v3556 = vpack.c.b16 %v2737, %v2736
  %v3557 = vpack.c.b16 %v2739, %v2738
  %v3558 = vpack.c.b16 %v2741, %v2740
  %v3559 = vpack.c.b16 %v2743, %v2742
  %v3560 = vpack.c.b16 %v2745, %v2744
  %v3561 = vpack.c.b16 %v2747, %v2746
  %v3562 = vpack.c.b16 %v2749, %v2748
  %v3563 = vpack.c.b16 %v2751, %v2750
  %v3564 = vpack.c.b16 %v2753, %v2752
  %v3565 = vpack.c.b16 %v2755, %v2754
  %v3566 = vpack.c.b16 %v2757, %v2756
  %v3567 = vpack.c.b16 %v2759, %v2758
  %v3568 = vpack.c.b16 %v2761, %v2760
  %v3569 = vpack.c.b16 %v2763, %v2762
  %v3570 = vpack.c.b16 %v2765, %v2764
  %v3571 = vpack.c.b16 %v2767, %v2766
  %v3572 = vpack.c.b16 %v2769, %v2768
  %v3573 = vpack.c.b16 %v2771, %v2770
  %v3574 = vpack.c.b16 %v2773, %v2772
  %v3575 = vpack.c.b16 %v2775, %v2774
  %v3576 = vpack.c.b16 %v2777, %v2776
  %v3577 = vpack.c.b16 %v2779, %v2778
  %v3578 = vpack.c.b16 %v2781, %v2780
  %v3579 = vpack.c.b16 %v2783, %v2782
  %v3580 = vpack.c.b16 %v2785, %v2784
  %v3581 = vpack.c.b16 %v2787, %v2786
  %v3582 = vpack.c.b16 %v2789, %v2788
  %v3583 = vpack.c.b16 %v2791, %v2790
  %v3584 = vpack.c.b16 %v2793, %v2792
  %v3585 = vpack.c.b16 %v2795, %v2794
  %v3586 = vpack.c.b16 %v2797, %v2796
  %v3587 = vpack.c.b16 %v2799, %v2798
  %v3588 = vpack.c.b16 %v2801, %v2800
  %v3589 = vpack.c.b16 %v2803, %v2802
  %v3590 = vpack.c.b16 %v2805, %v2804
  %v3591 = vpack.c.b16 %v2807, %v2806
  %v3592 = vpack.c.b16 %v2809, %v2808
  %v3593 = vpack.c.b16 %v2811, %v2810
  %v3594 = vpack.c.b16 %v2813, %v2812
  %v3595 = vpack.c.b16 %v2815, %v2814
  %v3596 = vpack.c.b16 %v2817, %v2816
  %v3597 = vpack.c.b16 %v2819, %v2818
  %v3598 = vpack.c.b16 %v2821, %v2820
  %v3599 = vpack.c.b16 %v2823, %v2822
  %v3600 = vpack.c.b16 %v2825, %v2824
  %v3601 = vpack.c.b16 %v2827, %v2826
  %v3602 = vpack.c.b16 %v2829, %v2828
  %v3603 = vpack.c.b16 %v2831, %v2830
  %v3604 = vpack.c.b16 %v2833, %v2832
  %v3605 = vpack.c.b16 %v2835, %v2834
  %v3606 = vpack.c.b16 %v2837, %v2836
  %v3607 = vpack.c.b16 %v2839, %v2838
  %v3608 = vpack.c.b16 %v2841, %v2840
  %v3609 = vpack.c.b16 %v2843, %v2842
  %v3610 = vpack.c.b16 %v2845, %v2844
  %v3611 = vpack.c.b16 %v2847, %v2846
  %v3612 = vpack.c.b16 %v2849, %v2848
  %v3613 = vpack.c.b16 %v2851, %v2850
  %v3614 = vpack.c.b16 %v2853, %v2852
  %v3615 = vpack.c.b16 %v2855, %v2854
  %v3616 = vpack.c.b16 %v2857, %v2856
  %v3617 = vpack.c.b16 %v2859, %v2858
  %v3618 = vpack.c.b16 %v2861, %v2860
  %v3619 = vpack.c.b16 %v2863, %v2862
  %v3620 = vpack.c.b16 %v2865, %v2864
  %v3621 = vpack.c.b16 %v2867, %v2866
  %v3622 = vpack.c.b16 %v2869, %v2868
  %v3623 = vpack.c.b16 %v2871, %v2870
  %v3624 = vpack.c.b16 %v2873, %v2872
  %v3625 = vpack.c.b16 %v2875, %v2874
  %v3626 = vpack.c.b16 %v2877, %v2876
  %v3627 = vpack.c.b16 %v2879, %v2878
  %v3628 = vpack.c.b16 %v2881, %v2880
  %v3629 = vpack.c.b16 %v2883, %v2882
  %v3630 = vpack.c.b16 %v2885, %v2884
  %v3631 = vpack.c.b16 %v2887, %v2886
  %v3632 = vpack.c.b16 %v2889, %v2888
  %v3633 = vpack.c.b16 %v2891, %v2890
  %v3634 = vpack.c.b16 %v2893, %v2892
  %v3635 = vpack.c.b16 %v2895, %v2894
  %v3636 = vpack.c.b16 %v2897, %v2896
  %v3637 = vpack.c.b16 %v2899, %v2898
  %v3638 = vpack.c.b16 %v2901, %v2900
  %v3639 = vpack.c.b16 %v2903, %v2902
  %v3640 = vpack.c.b16 %v2905, %v2904
  %v3641 = vpack.c.b16 %v2907, %v2906
  %v3642 = vpack.c.b16 %v2909, %v2908
  %v3643 = vpack.c.b16 %v2911, %v2910
  %v3644 = vpack.c.b16 %v2913, %v2912
  %v3645 = vpack.c.b16 %v2915, %v2914
  %v3646 = vpack.c.b16 %v2917, %v2916
  %v3647 = vpack.c.b16 %v2919, %v2918
  %v3648 = vpack.c.b16 %v2921, %v2920
  %v3649 = vpack.c.b16 %v2923, %v2922
  %v3650 = vpack.c.b16 %v2925, %v2924
  %v3651 = vpack.c.b16 %v2927, %v2926
  %v3652 = vpack.c.b16 %v2929, %v2928
  %v3653 = vpack.c.b16 %v2931, %v2930
  %v3654 = vpack.c.b16 %v2933, %v2932
  %v3655 = vpack.c.b16 %v2935, %v2934
  %v3656 = vpack.c.b16 %v2937, %v2936
  %v3657 = vpack.c.b16 %v2939, %v2938
  %v3658 = vpack.c.b16 %v2941, %v2940
  %v3659 = vpack.c.b16 %v2943, %v2942
  %v3660 = vpack.c.b16 %v2945, %v2944
  %v3661 = vpack.c.b16 %v2947, %v2946
  %v3662 = vpack.c.b16 %v2949, %v2948
  %v3663 = vpack.c.b16 %v2951, %v2950
  %v3664 = vpack.c.b16 %v2953, %v2952
  %v3665 = vpack.c.b16 %v2955, %v2954
  %v3666 = vpack.c.b16 %v2957, %v2956
  %v3667 = vpack.c.b16 %v2959, %v2958
  %v3668 = vpack.c.b16 %v2961, %v2960
  %v3669 = vpack.c.b16 %v2963, %v2962
  %v3670 = vpack.c.b16 %v2965, %v2964
  %v3671 = vpack.c.b16 %v2967, %v2966
  %v3672 = vpack.c.b16 %v2969, %v2968
  %v3673 = vpack.c.b16 %v2971, %v2970
  %v3674 = vpack.c.b16 %v2973, %v2972
  %v3675 = vpack.c.b16 %v2975, %v2974
  %v3676 = vpack.c.b16 %v2977, %v2976
  %v3677 = vpack.c.b16 %v2979, %v2978
  %v3678 = vpack.c.b16 %v2981, %v2980
  %v3679 = vpack.c.b16 %v2983, %v2982
  %v3680 = vpack.c.b16 %v2985, %v2984
  %v3681 = vpack.c.b16 %v2987, %v2986
  %v3682 = vpack.c.b16 %v2989, %v2988
  %v3683 = vpack.c.b16 %v2991, %v2990
  %v3684 = vpack.c.b16 %v2993, %v2992
  %v3685 = vpack.c.b16 %v2995, %v2994
  %v3686 = vpack.c.b16 %v2997, %v2996
  %v3687 = vpack.c.b16 %v2999, %v2998
  %v3688 = vpack.c.b16 %v3001, %v3000
  %v3689 = vpack.c.b16 %v3003, %v3002
  %v3690 = vpack.c.b16 %v3005, %v3004
  %v3691 = vpack.c.b16 %v3007, %v3006
  %v3692 = vpack.c.b16 %v3009, %v3008
  %v3693 = vpack.c.b16 %v3011, %v3010
  %v3694 = vpack.c.b16 %v3013, %v3012
  %v3695 = vpack.c.b16 %v3015, %v3014
  %v3696 = vpack.c.b16 %v3017, %v3016
  %v3697 = vpack.c.b16 %v3019, %v3018
  %v3698 = vpack.c.b16 %v3021, %v3020
  %v3699 = vpack.c.b16 %v3023, %v3022
  %v3700 = vpack.c.b16 %v3025, %v3024
  %v3701 = vpack.c.b16 %v3027, %v3026
  %v3702 = vpack.c.b16 %v3029, %v3028
  %v3703 = vpack.c.b16 %v3031, %v3030
  %v3704 = vpack.c.b16 %v3033, %v3032
  %v3705 = vpack.c.b16 %v3035, %v3034
  %v3706 = vpack.c.b16 %v3037, %v3036
  %v3707 = vpack.c.b16 %v3039, %v3038
  %v3708 = vpack.c.b16 %v3041, %v3040
  %v3709 = vpack.c.b16 %v3043, %v3042
  %v3710 = vpack.c.b16 %v3045, %v3044
  %v3711 = vpack.c.b16 %v3047, %v3046
  %v3712 = vpack.c.b16 %v3049, %v3048
  %v3713 = vpack.c.b16 %v3051, %v3050
  %v3714 = vpack.c.b16 %v3053, %v3052
  %v3715 = vpack.c.b16 %v3055, %v3054
  %v3716 = vpack.c.b16 %v3057, %v3056
  %v3717 = vpack.c.b16 %v3059, %v3058
  %v3718 = vpack.c.b16 %v3061, %v3060
  %v3719 = vpack.c.b16 %v3063, %v3062
  %v3720 = vpack.c.b16 %v3065, %v3064
  %v3721 = vpack.c.b16 %v3067, %v3066
  %v3722 = vpack.c.b16 %v3069, %v3068
  %v3723 = vpack.c.b16 %v3071, %v3070
  %v3724 = vpack.c.b16 %v3073, %v3072
  %v3725 = vpack.c.b16 %v3075, %v3074
  %v3726 = vpack.c.b16 %v3077, %v3076
  %v3727 = vpack.c.b16 %v3079, %v3078
  %v3728 = vpack.c.b16 %v3081, %v3080
  %v3729 = vpack.c.b16 %v3083, %v3082
  %v3730 = vpack.c.b16 %v3085, %v3084
  %v3731 = vpack.c.b16 %v3087, %v3086
  %v3732 = vpack.c.b16 %v3089, %v3088
  %v3733 = vpack.c.b16 %v3091, %v3090
  %v3734 = vpack.c.b16 %v3093, %v3092
  %v3735 = vpack.c.b16 %v3095, %v3094
  %v3736 = vpack.c.b16 %v3097, %v3096
  %v3737 = vpack.c.b16 %v3099, %v3098
  %v3738 = vpack.c.b16 %v3101, %v3100
  %v3739 = vpack.c.b16 %v3103, %v3102
  %v3740 = vpack.c.b16 %v3105, %v3104
  %v3741 = vpack.c.b16 %v3107, %v3106
  %v3742 = vpack.c.b16 %v3109, %v3108
  %v3743 = vpack.c.b16 %v3111, %v3110
  %v3744 = vpack.c.b16 %v3113, %v3112
  %v3745 = vpack.c.b16 %v3115, %v3114
  %v3746 = vpack.c.b16 %v3117, %v3116
  %v3747 = vpack.c.b16 %v3119, %v3118
  %v3748 = vpack.c.b16 %v3121, %v3120
  %v3749 = vpack.c.b16 %v3123, %v3122
  %v3750 = vpack.c.b16 %v3125, %v3124
  %v3751 = vpack.c.b16 %v3127, %v3126
  %v3752 = vpack.c.b16 %v3129, %v3128
  %v3753 = vpack.c.b16 %v3131, %v3130
  %v3754 = vpack.c.b16 %v3133, %v3132
  %v3755 = vpack.c.b16 %v3135, %v3134
  %v3756 = vpack.c.b16 %v3137, %v3136
  %v3757 = vpack.c.b16 %v3139, %v3138
  %v3758 = vpack.c.b16 %v3141, %v3140
  %v3759 = vpack.c.b16 %v3143, %v3142
  %v3760 = vpack.c.b16 %v3145, %v3144
  %v3761 = vpack.c.b16 %v3147, %v3146
  %v3762 = vpack.c.b16 %v3149, %v3148
  %v3763 = vpack.c.b16 %v3151, %v3150
  %v3764 = vpack.c.b16 %v3153, %v3152
  %v3765 = vpack.c.b16 %v3155, %v3154
  %v3766 = vpack.c.b16 %v3157, %v3156
  %v3767 = vpack.c.b16 %v3159, %v3158
  %v3768 = vpack.c.b16 %v3161, %v3160
  %v3769 = vpack.c.b16 %v3163, %v3162
  %v3770 = vpack.c.b16 %v3165, %v3164
  %v3771 = vpack.c.b16 %v3167, %v3166
  %v3772 = vpack.c.b16 %v3169, %v3168
  %v3773 = vpack.c.b16 %v3171, %v3170
  %v3774 = vpack.c.b16 %v3173, %v3172
  %v3775 = vpack.c.b16 %v3175, %v3174
  %v3776 = vpack.c.b16 %v3177, %v3176
  %v3777 = vpack.c.b16 %v3179, %v3178
  %v3778 = vpack.c.b16 %v3181, %v3180
  %v3779 = vpack.c.b16 %v3183, %v3182
  %v3780 = vpack.c.b16 %v3185, %v3184
  %v3781 = vpack.c.b16 %v3187, %v3186
  %v3782 = vpack.c.b16 %v3189, %v3188
  %v3783 = vpack.c.b16 %v3191, %v3190
  %v3784 = vpack.c.b16 %v3193, %v3192
  %v3785 = vpack.c.b16 %v3195, %v3194
  %v3786 = vpack.c.b16 %v3197, %v3196
  %v3787 = vpack.c.b16 %v3199, %v3198
  %v3788 = vpack.c.b16 %v3201, %v3200
  %v3789 = vpack.c.b16 %v3203, %v3202
  %v3790 = vpack.c.b16 %v3205, %v3204
  %v3791 = vpack.c.b16 %v3207, %v3206
  %v3792 = vpack.c.b16 %v3209, %v3208
  %v3793 = vpack.c.b16 %v3211, %v3210
  %v3794 = vpack.c.b16 %v3213, %v3212
  %v3795 = vpack.c.b16 %v3215, %v3214
  %v3796 = vpack.c.b16 %v3217, %v3216
  %v3797 = vpack.c.b16 %v3219, %v3218
  %v3798 = vpack.c.b16 %v3221, %v3220
  %v3799 = vpack.c.b16 %v3223, %v3222
  %v3800 = vpack.c.b16 %v3225, %v3224
  %v3801 = vpack.c.b16 %v3227, %v3226
  %v3802 = vpack.c.b16 %v3229, %v3228
  %v3803 = vpack.c.b16 %v3231, %v3230
  %v3804 = vpack.c.b16 %v3233, %v3232
  %v3805 = vpack.c.b16 %v3235, %v3234
  %v3806 = vpack.c.b16 %v3237, %v3236
  %v3807 = vpack.c.b16 %v3239, %v3238
  %v3808 = vpack.c.b16 %v3241, %v3240
  %v3809 = vpack.c.b16 %v3243, %v3242
  %v3810 = vpack.c.b16 %v3245, %v3244
  %v3811 = vpack.c.b16 %v3247, %v3246
  %v3812 = vpack.c.b16 %v3249, %v3248
  %v3813 = vpack.c.b16 %v3251, %v3250
  %v3814 = vpack.c.b16 %v3253, %v3252
  %v3815 = vpack.c.b16 %v3255, %v3254
  %v3816 = vpack.c.b16 %v3257, %v3256
  %v3817 = vpack.c.b16 %v3259, %v3258
  %v3818 = vpack.c.b16 %v3261, %v3260
  %v3819 = vpack.c.b16 %v3263, %v3262
  %v3820 = vpack.c.b16 %v3265, %v3264
  %v3821 = vpack.c.b16 %v3267, %v3266
  %v3822 = vpack.c.b16 %v3269, %v3268
  %v3823 = vpack.c.b16 %v3271, %v3270
  %v3824 = vpack.c.b16 %v3273, %v3272
  %v3825 = vpack.c.b16 %v3275, %v3274
  %v3826 = vpack.c.b16 %v3277, %v3276
  %v3827 = vpack.c.b16 %v3279, %v3278
  %v3828 = vpack.c.b16 %v3281, %v3280
  %v3829 = vpack.c.b16 %v3283, %v3282
  %v3830 = vpack.c.b16 %v3285, %v3284
  %v3831 = vpack.c.b16 %v3287, %v3286
  %v3832 = vpack.c.b16 %v3289, %v3288
  %v3833 = vpack.c.b16 %v3291, %v3290
  %v3834 = vpack.c.b16 %v3293, %v3292
  %v3835 = vpack.c.b16 %v3295, %v3294
  %v3836 = vpack.c.b16 %v3297, %v3296
  %v3837 = vpack.c.b16 %v3299, %v3298
  %v3838 = vpack.c.b16 %v3301, %v3300
  %v3839 = vpack.c.b16 %v3303, %v3302
  %v3840 = vpack.c.b16 %v3305, %v3304
  %v3841 = vpack.c.b16 %v3307, %v3306
  %v3842 = vpack.c.b16 %v3309, %v3308
  %v3843 = vpack.c.b16 %v3311, %v3310
  %v3844 = vpack.c.b16 %v3313, %v3312
  %v3845 = vpack.c.b16 %v3315, %v3314
  %v3846 = vpack.c.b16 %v3317, %v3316
  %v3847 = vpack.c.b16 %v3319, %v3318
  %v3848 = vpack.c.b16 %v3321, %v3320
  %v3849 = vpack.c.b16 %v3323, %v3322
  %v3850 = vpack.c.b16 %v3325, %v3324
  %v3851 = vpack.c.b16 %v3327, %v3326
  %v3852 = vpack.c.b16 %v3329, %v3328
  %v3853 = vpack.c.b16 %v3331, %v3330
  %v3854 = vpack.c.b16 %v3333, %v3332
  %v3855 = vpack.c.b16 %v3335, %v3334
  %v3856 = vpack.c.b16 %v3337, %v3336
  %v3857 = vpack.c.b16 %v3339, %v3338
  %v3858 = vpack.c.b16 %v3341, %v3340
  %v3859 = vpack.c.b16 %v3343, %v3342
  %v3860 = vpack.c.b16 %v3345, %v3344
  %v3861 = vpack.c.b16 %v3347, %v3346
  %v3862 = vpack.c.b16 %v3349, %v3348
  %v3863 = vpack.c.b16 %v3351, %v3350
  %4376 = vmatpush.bf16.msra.mxu0 %v3359
  %4377 = vmatpush.bf16.msra.mxu0 %v3358
  %4378 = vmatpush.bf16.msra.mxu0 %v3357
  %4379 = vmatpush.bf16.msra.mxu0 %v3356
  %4380 = vmatpush.bf16.msra.mxu0 %v3355
  %4381 = vmatpush.bf16.msra.mxu0 %v3354
  %4382 = vmatpush.bf16.msra.mxu0 %v3353
  %4383 = vmatpush.bf16.msra.mxu0 %v3352
  %4384 = vmatmul.bf16.gmra.mxu0 %v1176
  %v4385 = vpop.f32.mrf.mxu0
  %v4386 = vadd.f32 %v1078, %v4385
  %v4387 = vpop.f32.mrf.mxu0
  %4388 = vdwg.mxu0
  %4389 = vmatpush.bf16.msra.mxu0 %v3367
  %4390 = vmatpush.bf16.msra.mxu0 %v3366
  %4391 = vmatpush.bf16.msra.mxu0 %v3365
  %4392 = vmatpush.bf16.msra.mxu0 %v3364
  %4393 = vmatpush.bf16.msra.mxu0 %v3363
  %4394 = vmatpush.bf16.msra.mxu0 %v3362
  %4395 = vmatpush.bf16.msra.mxu0 %v3361
  %4396 = vmatpush.bf16.msra.mxu0 %v3360
  %4397 = vmatmul.bf16.gmra.mxu0 %v1177
  %v4398 = vpop.f32.mrf.mxu0
  %v4399 = vadd.f32 %v4386, %v4398
  %v4400 = vpop.f32.mrf.mxu0
  %4401 = vdwg.mxu0
  %4402 = vmatpush.bf16.msra.mxu0 %v3375
  %4403 = vmatpush.bf16.msra.mxu0 %v3374
  %4404 = vmatpush.bf16.msra.mxu0 %v3373
  %4405 = vmatpush.bf16.msra.mxu0 %v3372
  %4406 = vmatpush.bf16.msra.mxu0 %v3371
  %4407 = vmatpush.bf16.msra.mxu0 %v3370
  %4408 = vmatpush.bf16.msra.mxu0 %v3369
  %4409 = vmatpush.bf16.msra.mxu0 %v3368
  %4410 = vmatmul.bf16.gmra.mxu0 %v1178
  %v4411 = vpop.f32.mrf.mxu0
  %v4412 = vadd.f32 %v4399, %v4411
  %v4413 = vpop.f32.mrf.mxu0
  %4414 = vdwg.mxu0
  %4415 = vmatpush.bf16.msra.mxu0 %v3383
  %4416 = vmatpush.bf16.msra.mxu0 %v3382
  %4417 = vmatpush.bf16.msra.mxu0 %v3381
  %4418 = vmatpush.bf16.msra.mxu0 %v3380
  %4419 = vmatpush.bf16.msra.mxu0 %v3379
  %4420 = vmatpush.bf16.msra.mxu0 %v3378
  %4421 = vmatpush.bf16.msra.mxu0 %v3377
  %4422 = vmatpush.bf16.msra.mxu0 %v3376
  %4423 = vmatmul.bf16.gmra.mxu0 %v1179
  %v4424 = vpop.f32.mrf.mxu0
  %v4425 = vadd.f32 %v4412, %v4424
  %v4426 = vpop.f32.mrf.mxu0
  %4427 = vdwg.mxu0
  %4428 = vmatpush.bf16.msra.mxu0 %v3391
  %4429 = vmatpush.bf16.msra.mxu0 %v3390
  %4430 = vmatpush.bf16.msra.mxu0 %v3389
  %4431 = vmatpush.bf16.msra.mxu0 %v3388
  %4432 = vmatpush.bf16.msra.mxu0 %v3387
  %4433 = vmatpush.bf16.msra.mxu0 %v3386
  %4434 = vmatpush.bf16.msra.mxu0 %v3385
  %4435 = vmatpush.bf16.msra.mxu0 %v3384
  %4436 = vmatmul.bf16.gmra.mxu0 %v1180
  %v4437 = vpop.f32.mrf.mxu0
  %v4438 = vadd.f32 %v4425, %v4437
  %v4439 = vpop.f32.mrf.mxu0
  %4440 = vdwg.mxu0
  %4441 = vmatpush.bf16.msra.mxu0 %v3399
  %4442 = vmatpush.bf16.msra.mxu0 %v3398
  %4443 = vmatpush.bf16.msra.mxu0 %v3397
  %4444 = vmatpush.bf16.msra.mxu0 %v3396
  %4445 = vmatpush.bf16.msra.mxu0 %v3395
  %4446 = vmatpush.bf16.msra.mxu0 %v3394
  %4447 = vmatpush.bf16.msra.mxu0 %v3393
  %4448 = vmatpush.bf16.msra.mxu0 %v3392
  %4449 = vmatmul.bf16.gmra.mxu0 %v1181
  %v4450 = vpop.f32.mrf.mxu0
  %v4451 = vadd.f32 %v4438, %v4450
  %v4452 = vpop.f32.mrf.mxu0
  %4453 = vdwg.mxu0
  %4454 = vmatpush.bf16.msra.mxu0 %v3407
  %4455 = vmatpush.bf16.msra.mxu0 %v3406
  %4456 = vmatpush.bf16.msra.mxu0 %v3405
  %4457 = vmatpush.bf16.msra.mxu0 %v3404
  %4458 = vmatpush.bf16.msra.mxu0 %v3403
  %4459 = vmatpush.bf16.msra.mxu0 %v3402
  %4460 = vmatpush.bf16.msra.mxu0 %v3401
  %4461 = vmatpush.bf16.msra.mxu0 %v3400
  %4462 = vmatmul.bf16.gmra.mxu0 %v1182
  %v4463 = vpop.f32.mrf.mxu0
  %v4464 = vadd.f32 %v4451, %v4463
  %v4465 = vpop.f32.mrf.mxu0
  %4466 = vdwg.mxu0
  %4467 = vmatpush.bf16.msra.mxu0 %v3415
  %4468 = vmatpush.bf16.msra.mxu0 %v3414
  %4469 = vmatpush.bf16.msra.mxu0 %v3413
  %4470 = vmatpush.bf16.msra.mxu0 %v3412
  %4471 = vmatpush.bf16.msra.mxu0 %v3411
  %4472 = vmatpush.bf16.msra.mxu0 %v3410
  %4473 = vmatpush.bf16.msra.mxu0 %v3409
  %4474 = vmatpush.bf16.msra.mxu0 %v3408
  %4475 = vmatmul.bf16.gmra.mxu0 %v1183
  %v4476 = vpop.f32.mrf.mxu0
  %v4477 = vadd.f32 %v4464, %v4476
  %v4478 = vpop.f32.mrf.mxu0
  %4479 = vdwg.mxu0
  %4480 = vmatpush.bf16.msra.mxu0 %v3423
  %4481 = vmatpush.bf16.msra.mxu0 %v3422
  %4482 = vmatpush.bf16.msra.mxu0 %v3421
  %4483 = vmatpush.bf16.msra.mxu0 %v3420
  %4484 = vmatpush.bf16.msra.mxu0 %v3419
  %4485 = vmatpush.bf16.msra.mxu0 %v3418
  %4486 = vmatpush.bf16.msra.mxu0 %v3417
  %4487 = vmatpush.bf16.msra.mxu0 %v3416
  %4488 = vmatmul.bf16.gmra.mxu0 %v1184
  %v4489 = vpop.f32.mrf.mxu0
  %v4490 = vadd.f32 %v4477, %v4489
  %v4491 = vpop.f32.mrf.mxu0
  %4492 = vdwg.mxu0
  %4493 = vmatpush.bf16.msra.mxu0 %v3431
  %4494 = vmatpush.bf16.msra.mxu0 %v3430
  %4495 = vmatpush.bf16.msra.mxu0 %v3429
  %4496 = vmatpush.bf16.msra.mxu0 %v3428
  %4497 = vmatpush.bf16.msra.mxu0 %v3427
  %4498 = vmatpush.bf16.msra.mxu0 %v3426
  %4499 = vmatpush.bf16.msra.mxu0 %v3425
  %4500 = vmatpush.bf16.msra.mxu0 %v3424
  %4501 = vmatmul.bf16.gmra.mxu0 %v1185
  %v4502 = vpop.f32.mrf.mxu0
  %v4503 = vadd.f32 %v4490, %v4502
  %v4504 = vpop.f32.mrf.mxu0
  %4505 = vdwg.mxu0
  %4506 = vmatpush.bf16.msra.mxu0 %v3439
  %4507 = vmatpush.bf16.msra.mxu0 %v3438
  %4508 = vmatpush.bf16.msra.mxu0 %v3437
  %4509 = vmatpush.bf16.msra.mxu0 %v3436
  %4510 = vmatpush.bf16.msra.mxu0 %v3435
  %4511 = vmatpush.bf16.msra.mxu0 %v3434
  %4512 = vmatpush.bf16.msra.mxu0 %v3433
  %4513 = vmatpush.bf16.msra.mxu0 %v3432
  %4514 = vmatmul.bf16.gmra.mxu0 %v1186
  %v4515 = vpop.f32.mrf.mxu0
  %v4516 = vadd.f32 %v4503, %v4515
  %v4517 = vpop.f32.mrf.mxu0
  %4518 = vdwg.mxu0
  %4519 = vmatpush.bf16.msra.mxu0 %v3447
  %4520 = vmatpush.bf16.msra.mxu0 %v3446
  %4521 = vmatpush.bf16.msra.mxu0 %v3445
  %4522 = vmatpush.bf16.msra.mxu0 %v3444
  %4523 = vmatpush.bf16.msra.mxu0 %v3443
  %4524 = vmatpush.bf16.msra.mxu0 %v3442
  %4525 = vmatpush.bf16.msra.mxu0 %v3441
  %4526 = vmatpush.bf16.msra.mxu0 %v3440
  %4527 = vmatmul.bf16.gmra.mxu0 %v1187
  %v4528 = vpop.f32.mrf.mxu0
  %v4529 = vadd.f32 %v4516, %v4528
  %v4530 = vpop.f32.mrf.mxu0
  %4531 = vdwg.mxu0
  %4532 = vmatpush.bf16.msra.mxu0 %v3455
  %4533 = vmatpush.bf16.msra.mxu0 %v3454
  %4534 = vmatpush.bf16.msra.mxu0 %v3453
  %4535 = vmatpush.bf16.msra.mxu0 %v3452
  %4536 = vmatpush.bf16.msra.mxu0 %v3451
  %4537 = vmatpush.bf16.msra.mxu0 %v3450
  %4538 = vmatpush.bf16.msra.mxu0 %v3449
  %4539 = vmatpush.bf16.msra.mxu0 %v3448
  %4540 = vmatmul.bf16.gmra.mxu0 %v1188
  %v4541 = vpop.f32.mrf.mxu0
  %v4542 = vadd.f32 %v4529, %v4541
  %v4543 = vpop.f32.mrf.mxu0
  %4544 = vdwg.mxu0
  %4545 = vmatpush.bf16.msra.mxu0 %v3463
  %4546 = vmatpush.bf16.msra.mxu0 %v3462
  %4547 = vmatpush.bf16.msra.mxu0 %v3461
  %4548 = vmatpush.bf16.msra.mxu0 %v3460
  %4549 = vmatpush.bf16.msra.mxu0 %v3459
  %4550 = vmatpush.bf16.msra.mxu0 %v3458
  %4551 = vmatpush.bf16.msra.mxu0 %v3457
  %4552 = vmatpush.bf16.msra.mxu0 %v3456
  %4553 = vmatmul.bf16.gmra.mxu0 %v1189
  %v4554 = vpop.f32.mrf.mxu0
  %v4555 = vadd.f32 %v4542, %v4554
  %v4556 = vpop.f32.mrf.mxu0
  %4557 = vdwg.mxu0
  %4558 = vmatpush.bf16.msra.mxu0 %v3471
  %4559 = vmatpush.bf16.msra.mxu0 %v3470
  %4560 = vmatpush.bf16.msra.mxu0 %v3469
  %4561 = vmatpush.bf16.msra.mxu0 %v3468
  %4562 = vmatpush.bf16.msra.mxu0 %v3467
  %4563 = vmatpush.bf16.msra.mxu0 %v3466
  %4564 = vmatpush.bf16.msra.mxu0 %v3465
  %4565 = vmatpush.bf16.msra.mxu0 %v3464
  %4566 = vmatmul.bf16.gmra.mxu0 %v1190
  %v4567 = vpop.f32.mrf.mxu0
  %v4568 = vadd.f32 %v4555, %v4567
  %v4569 = vpop.f32.mrf.mxu0
  %4570 = vdwg.mxu0
  %4571 = vmatpush.bf16.msra.mxu0 %v3479
  %4572 = vmatpush.bf16.msra.mxu0 %v3478
  %4573 = vmatpush.bf16.msra.mxu0 %v3477
  %4574 = vmatpush.bf16.msra.mxu0 %v3476
  %4575 = vmatpush.bf16.msra.mxu0 %v3475
  %4576 = vmatpush.bf16.msra.mxu0 %v3474
  %4577 = vmatpush.bf16.msra.mxu0 %v3473
  %4578 = vmatpush.bf16.msra.mxu0 %v3472
  %4579 = vmatmul.bf16.gmra.mxu0 %v1191
  %v4580 = vpop.f32.mrf.mxu0
  %v4581 = vadd.f32 %v4568, %v4580
  %v4582 = vpop.f32.mrf.mxu0
  %4583 = vdwg.mxu0
  %4584 = vmatpush.bf16.msra.mxu0 %v3487
  %4585 = vmatpush.bf16.msra.mxu0 %v3486
  %4586 = vmatpush.bf16.msra.mxu0 %v3485
  %4587 = vmatpush.bf16.msra.mxu0 %v3484
  %4588 = vmatpush.bf16.msra.mxu0 %v3483
  %4589 = vmatpush.bf16.msra.mxu0 %v3482
  %4590 = vmatpush.bf16.msra.mxu0 %v3481
  %4591 = vmatpush.bf16.msra.mxu0 %v3480
  %4592 = vmatmul.bf16.gmra.mxu0 %v1192
  %v4593 = vpop.f32.mrf.mxu0
  %v4594 = vadd.f32 %v4581, %v4593
  %v4595 = vpop.f32.mrf.mxu0
  %4596 = vdwg.mxu0
  %4597 = vmatpush.bf16.msra.mxu0 %v3495
  %4598 = vmatpush.bf16.msra.mxu0 %v3494
  %4599 = vmatpush.bf16.msra.mxu0 %v3493
  %4600 = vmatpush.bf16.msra.mxu0 %v3492
  %4601 = vmatpush.bf16.msra.mxu0 %v3491
  %4602 = vmatpush.bf16.msra.mxu0 %v3490
  %4603 = vmatpush.bf16.msra.mxu0 %v3489
  %4604 = vmatpush.bf16.msra.mxu0 %v3488
  %4605 = vmatmul.bf16.gmra.mxu0 %v1193
  %v4606 = vpop.f32.mrf.mxu0
  %v4607 = vadd.f32 %v4594, %v4606
  %v4608 = vpop.f32.mrf.mxu0
  %4609 = vdwg.mxu0
  %4610 = vmatpush.bf16.msra.mxu0 %v3503
  %4611 = vmatpush.bf16.msra.mxu0 %v3502
  %4612 = vmatpush.bf16.msra.mxu0 %v3501
  %4613 = vmatpush.bf16.msra.mxu0 %v3500
  %4614 = vmatpush.bf16.msra.mxu0 %v3499
  %4615 = vmatpush.bf16.msra.mxu0 %v3498
  %4616 = vmatpush.bf16.msra.mxu0 %v3497
  %4617 = vmatpush.bf16.msra.mxu0 %v3496
  %4618 = vmatmul.bf16.gmra.mxu0 %v1194
  %v4619 = vpop.f32.mrf.mxu0
  %v4620 = vadd.f32 %v4607, %v4619
  %v4621 = vpop.f32.mrf.mxu0
  %4622 = vdwg.mxu0
  %4623 = vmatpush.bf16.msra.mxu0 %v3511
  %4624 = vmatpush.bf16.msra.mxu0 %v3510
  %4625 = vmatpush.bf16.msra.mxu0 %v3509
  %4626 = vmatpush.bf16.msra.mxu0 %v3508
  %4627 = vmatpush.bf16.msra.mxu0 %v3507
  %4628 = vmatpush.bf16.msra.mxu0 %v3506
  %4629 = vmatpush.bf16.msra.mxu0 %v3505
  %4630 = vmatpush.bf16.msra.mxu0 %v3504
  %4631 = vmatmul.bf16.gmra.mxu0 %v1195
  %v4632 = vpop.f32.mrf.mxu0
  %v4633 = vadd.f32 %v4620, %v4632
  %v4634 = vpop.f32.mrf.mxu0
  %4635 = vdwg.mxu0
  %4636 = vmatpush.bf16.msra.mxu0 %v3519
  %4637 = vmatpush.bf16.msra.mxu0 %v3518
  %4638 = vmatpush.bf16.msra.mxu0 %v3517
  %4639 = vmatpush.bf16.msra.mxu0 %v3516
  %4640 = vmatpush.bf16.msra.mxu0 %v3515
  %4641 = vmatpush.bf16.msra.mxu0 %v3514
  %4642 = vmatpush.bf16.msra.mxu0 %v3513
  %4643 = vmatpush.bf16.msra.mxu0 %v3512
  %4644 = vmatmul.bf16.gmra.mxu0 %v1196
  %v4645 = vpop.f32.mrf.mxu0
  %v4646 = vadd.f32 %v4633, %v4645
  %v4647 = vpop.f32.mrf.mxu0
  %4648 = vdwg.mxu0
  %4649 = vmatpush.bf16.msra.mxu0 %v3527
  %4650 = vmatpush.bf16.msra.mxu0 %v3526
  %4651 = vmatpush.bf16.msra.mxu0 %v3525
  %4652 = vmatpush.bf16.msra.mxu0 %v3524
  %4653 = vmatpush.bf16.msra.mxu0 %v3523
  %4654 = vmatpush.bf16.msra.mxu0 %v3522
  %4655 = vmatpush.bf16.msra.mxu0 %v3521
  %4656 = vmatpush.bf16.msra.mxu0 %v3520
  %4657 = vmatmul.bf16.gmra.mxu0 %v1197
  %v4658 = vpop.f32.mrf.mxu0
  %v4659 = vadd.f32 %v4646, %v4658
  %v4660 = vpop.f32.mrf.mxu0
  %4661 = vdwg.mxu0
  %4662 = vmatpush.bf16.msra.mxu0 %v3535
  %4663 = vmatpush.bf16.msra.mxu0 %v3534
  %4664 = vmatpush.bf16.msra.mxu0 %v3533
  %4665 = vmatpush.bf16.msra.mxu0 %v3532
  %4666 = vmatpush.bf16.msra.mxu0 %v3531
  %4667 = vmatpush.bf16.msra.mxu0 %v3530
  %4668 = vmatpush.bf16.msra.mxu0 %v3529
  %4669 = vmatpush.bf16.msra.mxu0 %v3528
  %4670 = vmatmul.bf16.gmra.mxu0 %v1198
  %v4671 = vpop.f32.mrf.mxu0
  %v4672 = vadd.f32 %v4659, %v4671
  %v4673 = vpop.f32.mrf.mxu0
  %4674 = vdwg.mxu0
  %4675 = vmatpush.bf16.msra.mxu0 %v3543
  %4676 = vmatpush.bf16.msra.mxu0 %v3542
  %4677 = vmatpush.bf16.msra.mxu0 %v3541
  %4678 = vmatpush.bf16.msra.mxu0 %v3540
  %4679 = vmatpush.bf16.msra.mxu0 %v3539
  %4680 = vmatpush.bf16.msra.mxu0 %v3538
  %4681 = vmatpush.bf16.msra.mxu0 %v3537
  %4682 = vmatpush.bf16.msra.mxu0 %v3536
  %4683 = vmatmul.bf16.gmra.mxu0 %v1199
  %v4684 = vpop.f32.mrf.mxu0
  %v4685 = vadd.f32 %v4672, %v4684
  %v4686 = vpop.f32.mrf.mxu0
  %4687 = vdwg.mxu0
  %4688 = vmatpush.bf16.msra.mxu0 %v3551
  %4689 = vmatpush.bf16.msra.mxu0 %v3550
  %4690 = vmatpush.bf16.msra.mxu0 %v3549
  %4691 = vmatpush.bf16.msra.mxu0 %v3548
  %4692 = vmatpush.bf16.msra.mxu0 %v3547
  %4693 = vmatpush.bf16.msra.mxu0 %v3546
  %4694 = vmatpush.bf16.msra.mxu0 %v3545
  %4695 = vmatpush.bf16.msra.mxu0 %v3544
  %4696 = vmatmul.bf16.gmra.mxu0 %v1200
  %v4697 = vpop.f32.mrf.mxu0
  %v4698 = vadd.f32 %v4685, %v4697
  %v4699 = vpop.f32.mrf.mxu0
  %4700 = vdwg.mxu0
  %4701 = vmatpush.bf16.msra.mxu0 %v3559
  %4702 = vmatpush.bf16.msra.mxu0 %v3558
  %4703 = vmatpush.bf16.msra.mxu0 %v3557
  %4704 = vmatpush.bf16.msra.mxu0 %v3556
  %4705 = vmatpush.bf16.msra.mxu0 %v3555
  %4706 = vmatpush.bf16.msra.mxu0 %v3554
  %4707 = vmatpush.bf16.msra.mxu0 %v3553
  %4708 = vmatpush.bf16.msra.mxu0 %v3552
  %4709 = vmatmul.bf16.gmra.mxu0 %v1201
  %v4710 = vpop.f32.mrf.mxu0
  %v4711 = vadd.f32 %v4698, %v4710
  %v4712 = vpop.f32.mrf.mxu0
  %4713 = vdwg.mxu0
  %4714 = vmatpush.bf16.msra.mxu0 %v3567
  %4715 = vmatpush.bf16.msra.mxu0 %v3566
  %4716 = vmatpush.bf16.msra.mxu0 %v3565
  %4717 = vmatpush.bf16.msra.mxu0 %v3564
  %4718 = vmatpush.bf16.msra.mxu0 %v3563
  %4719 = vmatpush.bf16.msra.mxu0 %v3562
  %4720 = vmatpush.bf16.msra.mxu0 %v3561
  %4721 = vmatpush.bf16.msra.mxu0 %v3560
  %4722 = vmatmul.bf16.gmra.mxu0 %v1202
  %v4723 = vpop.f32.mrf.mxu0
  %v4724 = vadd.f32 %v4711, %v4723
  %v4725 = vpop.f32.mrf.mxu0
  %4726 = vdwg.mxu0
  %4727 = vmatpush.bf16.msra.mxu0 %v3575
  %4728 = vmatpush.bf16.msra.mxu0 %v3574
  %4729 = vmatpush.bf16.msra.mxu0 %v3573
  %4730 = vmatpush.bf16.msra.mxu0 %v3572
  %4731 = vmatpush.bf16.msra.mxu0 %v3571
  %4732 = vmatpush.bf16.msra.mxu0 %v3570
  %4733 = vmatpush.bf16.msra.mxu0 %v3569
  %4734 = vmatpush.bf16.msra.mxu0 %v3568
  %4735 = vmatmul.bf16.gmra.mxu0 %v1203
  %v4736 = vpop.f32.mrf.mxu0
  %v4737 = vadd.f32 %v4724, %v4736
  %v4738 = vpop.f32.mrf.mxu0
  %4739 = vdwg.mxu0
  %4740 = vmatpush.bf16.msra.mxu0 %v3583
  %4741 = vmatpush.bf16.msra.mxu0 %v3582
  %4742 = vmatpush.bf16.msra.mxu0 %v3581
  %4743 = vmatpush.bf16.msra.mxu0 %v3580
  %4744 = vmatpush.bf16.msra.mxu0 %v3579
  %4745 = vmatpush.bf16.msra.mxu0 %v3578
  %4746 = vmatpush.bf16.msra.mxu0 %v3577
  %4747 = vmatpush.bf16.msra.mxu0 %v3576
  %4748 = vmatmul.bf16.gmra.mxu0 %v1204
  %v4749 = vpop.f32.mrf.mxu0
  %v4750 = vadd.f32 %v4737, %v4749
  %v4751 = vpop.f32.mrf.mxu0
  %4752 = vdwg.mxu0
  %4753 = vmatpush.bf16.msra.mxu0 %v3591
  %4754 = vmatpush.bf16.msra.mxu0 %v3590
  %4755 = vmatpush.bf16.msra.mxu0 %v3589
  %4756 = vmatpush.bf16.msra.mxu0 %v3588
  %4757 = vmatpush.bf16.msra.mxu0 %v3587
  %4758 = vmatpush.bf16.msra.mxu0 %v3586
  %4759 = vmatpush.bf16.msra.mxu0 %v3585
  %4760 = vmatpush.bf16.msra.mxu0 %v3584
  %4761 = vmatmul.bf16.gmra.mxu0 %v1205
  %v4762 = vpop.f32.mrf.mxu0
  %v4763 = vadd.f32 %v4750, %v4762
  %v4764 = vpop.f32.mrf.mxu0
  %4765 = vdwg.mxu0
  %4766 = vmatpush.bf16.msra.mxu0 %v3599
  %4767 = vmatpush.bf16.msra.mxu0 %v3598
  %4768 = vmatpush.bf16.msra.mxu0 %v3597
  %4769 = vmatpush.bf16.msra.mxu0 %v3596
  %4770 = vmatpush.bf16.msra.mxu0 %v3595
  %4771 = vmatpush.bf16.msra.mxu0 %v3594
  %4772 = vmatpush.bf16.msra.mxu0 %v3593
  %4773 = vmatpush.bf16.msra.mxu0 %v3592
  %4774 = vmatmul.bf16.gmra.mxu0 %v1206
  %v4775 = vpop.f32.mrf.mxu0
  %v4776 = vadd.f32 %v4763, %v4775
  %v4777 = vpop.f32.mrf.mxu0
  %4778 = vdwg.mxu0
  %4779 = vmatpush.bf16.msra.mxu0 %v3607
  %4780 = vmatpush.bf16.msra.mxu0 %v3606
  %4781 = vmatpush.bf16.msra.mxu0 %v3605
  %4782 = vmatpush.bf16.msra.mxu0 %v3604
  %4783 = vmatpush.bf16.msra.mxu0 %v3603
  %4784 = vmatpush.bf16.msra.mxu0 %v3602
  %4785 = vmatpush.bf16.msra.mxu0 %v3601
  %4786 = vmatpush.bf16.msra.mxu0 %v3600
  %4787 = vmatmul.bf16.gmra.mxu0 %v1207
  %v4788 = vpop.f32.mrf.mxu0
  %v4789 = vadd.f32 %v4776, %v4788
  %v4790 = vpop.f32.mrf.mxu0
  %4791 = vdwg.mxu0
  %4792 = vmatpush.bf16.msra.mxu0 %v3615
  %4793 = vmatpush.bf16.msra.mxu0 %v3614
  %4794 = vmatpush.bf16.msra.mxu0 %v3613
  %4795 = vmatpush.bf16.msra.mxu0 %v3612
  %4796 = vmatpush.bf16.msra.mxu0 %v3611
  %4797 = vmatpush.bf16.msra.mxu0 %v3610
  %4798 = vmatpush.bf16.msra.mxu0 %v3609
  %4799 = vmatpush.bf16.msra.mxu0 %v3608
  %4800 = vmatmul.bf16.gmra.mxu0 %v1208
  %v4801 = vpop.f32.mrf.mxu0
  %v4802 = vadd.f32 %v4789, %v4801
  %v4803 = vpop.f32.mrf.mxu0
  %4804 = vdwg.mxu0
  %4805 = vmatpush.bf16.msra.mxu0 %v3623
  %4806 = vmatpush.bf16.msra.mxu0 %v3622
  %4807 = vmatpush.bf16.msra.mxu0 %v3621
  %4808 = vmatpush.bf16.msra.mxu0 %v3620
  %4809 = vmatpush.bf16.msra.mxu0 %v3619
  %4810 = vmatpush.bf16.msra.mxu0 %v3618
  %4811 = vmatpush.bf16.msra.mxu0 %v3617
  %4812 = vmatpush.bf16.msra.mxu0 %v3616
  %4813 = vmatmul.bf16.gmra.mxu0 %v1209
  %v4814 = vpop.f32.mrf.mxu0
  %v4815 = vadd.f32 %v4802, %v4814
  %v4816 = vpop.f32.mrf.mxu0
  %4817 = vdwg.mxu0
  %4818 = vmatpush.bf16.msra.mxu0 %v3631
  %4819 = vmatpush.bf16.msra.mxu0 %v3630
  %4820 = vmatpush.bf16.msra.mxu0 %v3629
  %4821 = vmatpush.bf16.msra.mxu0 %v3628
  %4822 = vmatpush.bf16.msra.mxu0 %v3627
  %4823 = vmatpush.bf16.msra.mxu0 %v3626
  %4824 = vmatpush.bf16.msra.mxu0 %v3625
  %4825 = vmatpush.bf16.msra.mxu0 %v3624
  %4826 = vmatmul.bf16.gmra.mxu0 %v1210
  %v4827 = vpop.f32.mrf.mxu0
  %v4828 = vadd.f32 %v4815, %v4827
  %v4829 = vpop.f32.mrf.mxu0
  %4830 = vdwg.mxu0
  %4831 = vmatpush.bf16.msra.mxu0 %v3639
  %4832 = vmatpush.bf16.msra.mxu0 %v3638
  %4833 = vmatpush.bf16.msra.mxu0 %v3637
  %4834 = vmatpush.bf16.msra.mxu0 %v3636
  %4835 = vmatpush.bf16.msra.mxu0 %v3635
  %4836 = vmatpush.bf16.msra.mxu0 %v3634
  %4837 = vmatpush.bf16.msra.mxu0 %v3633
  %4838 = vmatpush.bf16.msra.mxu0 %v3632
  %4839 = vmatmul.bf16.gmra.mxu0 %v1211
  %v4840 = vpop.f32.mrf.mxu0
  %v4841 = vadd.f32 %v4828, %v4840
  %v4842 = vpop.f32.mrf.mxu0
  %4843 = vdwg.mxu0
  %4844 = vmatpush.bf16.msra.mxu0 %v3647
  %4845 = vmatpush.bf16.msra.mxu0 %v3646
  %4846 = vmatpush.bf16.msra.mxu0 %v3645
  %4847 = vmatpush.bf16.msra.mxu0 %v3644
  %4848 = vmatpush.bf16.msra.mxu0 %v3643
  %4849 = vmatpush.bf16.msra.mxu0 %v3642
  %4850 = vmatpush.bf16.msra.mxu0 %v3641
  %4851 = vmatpush.bf16.msra.mxu0 %v3640
  %4852 = vmatmul.bf16.gmra.mxu0 %v1212
  %v4853 = vpop.f32.mrf.mxu0
  %v4854 = vadd.f32 %v4841, %v4853
  %v4855 = vpop.f32.mrf.mxu0
  %4856 = vdwg.mxu0
  %4857 = vmatpush.bf16.msra.mxu0 %v3655
  %4858 = vmatpush.bf16.msra.mxu0 %v3654
  %4859 = vmatpush.bf16.msra.mxu0 %v3653
  %4860 = vmatpush.bf16.msra.mxu0 %v3652
  %4861 = vmatpush.bf16.msra.mxu0 %v3651
  %4862 = vmatpush.bf16.msra.mxu0 %v3650
  %4863 = vmatpush.bf16.msra.mxu0 %v3649
  %4864 = vmatpush.bf16.msra.mxu0 %v3648
  %4865 = vmatmul.bf16.gmra.mxu0 %v1213
  %v4866 = vpop.f32.mrf.mxu0
  %v4867 = vadd.f32 %v4854, %v4866
  %v4868 = vpop.f32.mrf.mxu0
  %4869 = vdwg.mxu0
  %4870 = vmatpush.bf16.msra.mxu0 %v3663
  %4871 = vmatpush.bf16.msra.mxu0 %v3662
  %4872 = vmatpush.bf16.msra.mxu0 %v3661
  %4873 = vmatpush.bf16.msra.mxu0 %v3660
  %4874 = vmatpush.bf16.msra.mxu0 %v3659
  %4875 = vmatpush.bf16.msra.mxu0 %v3658
  %4876 = vmatpush.bf16.msra.mxu0 %v3657
  %4877 = vmatpush.bf16.msra.mxu0 %v3656
  %4878 = vmatmul.bf16.gmra.mxu0 %v1214
  %v4879 = vpop.f32.mrf.mxu0
  %v4880 = vadd.f32 %v4867, %v4879
  %v4881 = vpop.f32.mrf.mxu0
  %4882 = vdwg.mxu0
  %4883 = vmatpush.bf16.msra.mxu0 %v3671
  %4884 = vmatpush.bf16.msra.mxu0 %v3670
  %4885 = vmatpush.bf16.msra.mxu0 %v3669
  %4886 = vmatpush.bf16.msra.mxu0 %v3668
  %4887 = vmatpush.bf16.msra.mxu0 %v3667
  %4888 = vmatpush.bf16.msra.mxu0 %v3666
  %4889 = vmatpush.bf16.msra.mxu0 %v3665
  %4890 = vmatpush.bf16.msra.mxu0 %v3664
  %4891 = vmatmul.bf16.gmra.mxu0 %v1215
  %v4892 = vpop.f32.mrf.mxu0
  %v4893 = vadd.f32 %v4880, %v4892
  %v4894 = vpop.f32.mrf.mxu0
  %4895 = vdwg.mxu0
  %4896 = vmatpush.bf16.msra.mxu0 %v3679
  %4897 = vmatpush.bf16.msra.mxu0 %v3678
  %4898 = vmatpush.bf16.msra.mxu0 %v3677
  %4899 = vmatpush.bf16.msra.mxu0 %v3676
  %4900 = vmatpush.bf16.msra.mxu0 %v3675
  %4901 = vmatpush.bf16.msra.mxu0 %v3674
  %4902 = vmatpush.bf16.msra.mxu0 %v3673
  %4903 = vmatpush.bf16.msra.mxu0 %v3672
  %4904 = vmatmul.bf16.gmra.mxu0 %v1216
  %v4905 = vpop.f32.mrf.mxu0
  %v4906 = vadd.f32 %v4893, %v4905
  %v4907 = vpop.f32.mrf.mxu0
  %4908 = vdwg.mxu0
  %4909 = vmatpush.bf16.msra.mxu0 %v3687
  %4910 = vmatpush.bf16.msra.mxu0 %v3686
  %4911 = vmatpush.bf16.msra.mxu0 %v3685
  %4912 = vmatpush.bf16.msra.mxu0 %v3684
  %4913 = vmatpush.bf16.msra.mxu0 %v3683
  %4914 = vmatpush.bf16.msra.mxu0 %v3682
  %4915 = vmatpush.bf16.msra.mxu0 %v3681
  %4916 = vmatpush.bf16.msra.mxu0 %v3680
  %4917 = vmatmul.bf16.gmra.mxu0 %v1217
  %v4918 = vpop.f32.mrf.mxu0
  %v4919 = vadd.f32 %v4906, %v4918
  %v4920 = vpop.f32.mrf.mxu0
  %4921 = vdwg.mxu0
  %4922 = vmatpush.bf16.msra.mxu0 %v3695
  %4923 = vmatpush.bf16.msra.mxu0 %v3694
  %4924 = vmatpush.bf16.msra.mxu0 %v3693
  %4925 = vmatpush.bf16.msra.mxu0 %v3692
  %4926 = vmatpush.bf16.msra.mxu0 %v3691
  %4927 = vmatpush.bf16.msra.mxu0 %v3690
  %4928 = vmatpush.bf16.msra.mxu0 %v3689
  %4929 = vmatpush.bf16.msra.mxu0 %v3688
  %4930 = vmatmul.bf16.gmra.mxu0 %v1218
  %v4931 = vpop.f32.mrf.mxu0
  %v4932 = vadd.f32 %v4919, %v4931
  %v4933 = vpop.f32.mrf.mxu0
  %4934 = vdwg.mxu0
  %4935 = vmatpush.bf16.msra.mxu0 %v3703
  %4936 = vmatpush.bf16.msra.mxu0 %v3702
  %4937 = vmatpush.bf16.msra.mxu0 %v3701
  %4938 = vmatpush.bf16.msra.mxu0 %v3700
  %4939 = vmatpush.bf16.msra.mxu0 %v3699
  %4940 = vmatpush.bf16.msra.mxu0 %v3698
  %4941 = vmatpush.bf16.msra.mxu0 %v3697
  %4942 = vmatpush.bf16.msra.mxu0 %v3696
  %4943 = vmatmul.bf16.gmra.mxu0 %v1219
  %v4944 = vpop.f32.mrf.mxu0
  %v4945 = vadd.f32 %v4932, %v4944
  %v4946 = vpop.f32.mrf.mxu0
  %4947 = vdwg.mxu0
  %4948 = vmatpush.bf16.msra.mxu0 %v3711
  %4949 = vmatpush.bf16.msra.mxu0 %v3710
  %4950 = vmatpush.bf16.msra.mxu0 %v3709
  %4951 = vmatpush.bf16.msra.mxu0 %v3708
  %4952 = vmatpush.bf16.msra.mxu0 %v3707
  %4953 = vmatpush.bf16.msra.mxu0 %v3706
  %4954 = vmatpush.bf16.msra.mxu0 %v3705
  %4955 = vmatpush.bf16.msra.mxu0 %v3704
  %4956 = vmatmul.bf16.gmra.mxu0 %v1220
  %v4957 = vpop.f32.mrf.mxu0
  %v4958 = vadd.f32 %v4945, %v4957
  %v4959 = vpop.f32.mrf.mxu0
  %4960 = vdwg.mxu0
  %4961 = vmatpush.bf16.msra.mxu0 %v3719
  %4962 = vmatpush.bf16.msra.mxu0 %v3718
  %4963 = vmatpush.bf16.msra.mxu0 %v3717
  %4964 = vmatpush.bf16.msra.mxu0 %v3716
  %4965 = vmatpush.bf16.msra.mxu0 %v3715
  %4966 = vmatpush.bf16.msra.mxu0 %v3714
  %4967 = vmatpush.bf16.msra.mxu0 %v3713
  %4968 = vmatpush.bf16.msra.mxu0 %v3712
  %4969 = vmatmul.bf16.gmra.mxu0 %v1221
  %v4970 = vpop.f32.mrf.mxu0
  %v4971 = vadd.f32 %v4958, %v4970
  %v4972 = vpop.f32.mrf.mxu0
  %4973 = vdwg.mxu0
  %4974 = vmatpush.bf16.msra.mxu0 %v3727
  %4975 = vmatpush.bf16.msra.mxu0 %v3726
  %4976 = vmatpush.bf16.msra.mxu0 %v3725
  %4977 = vmatpush.bf16.msra.mxu0 %v3724
  %4978 = vmatpush.bf16.msra.mxu0 %v3723
  %4979 = vmatpush.bf16.msra.mxu0 %v3722
  %4980 = vmatpush.bf16.msra.mxu0 %v3721
  %4981 = vmatpush.bf16.msra.mxu0 %v3720
  %4982 = vmatmul.bf16.gmra.mxu0 %v1222
  %v4983 = vpop.f32.mrf.mxu0
  %v4984 = vadd.f32 %v4971, %v4983
  %v4985 = vpop.f32.mrf.mxu0
  %4986 = vdwg.mxu0
  %4987 = vmatpush.bf16.msra.mxu0 %v3735
  %4988 = vmatpush.bf16.msra.mxu0 %v3734
  %4989 = vmatpush.bf16.msra.mxu0 %v3733
  %4990 = vmatpush.bf16.msra.mxu0 %v3732
  %4991 = vmatpush.bf16.msra.mxu0 %v3731
  %4992 = vmatpush.bf16.msra.mxu0 %v3730
  %4993 = vmatpush.bf16.msra.mxu0 %v3729
  %4994 = vmatpush.bf16.msra.mxu0 %v3728
  %4995 = vmatmul.bf16.gmra.mxu0 %v1223
  %v4996 = vpop.f32.mrf.mxu0
  %v4997 = vadd.f32 %v4984, %v4996
  %v4998 = vpop.f32.mrf.mxu0
  %4999 = vdwg.mxu0
  %5000 = vmatpush.bf16.msra.mxu0 %v3743
  %5001 = vmatpush.bf16.msra.mxu0 %v3742
  %5002 = vmatpush.bf16.msra.mxu0 %v3741
  %5003 = vmatpush.bf16.msra.mxu0 %v3740
  %5004 = vmatpush.bf16.msra.mxu0 %v3739
  %5005 = vmatpush.bf16.msra.mxu0 %v3738
  %5006 = vmatpush.bf16.msra.mxu0 %v3737
  %5007 = vmatpush.bf16.msra.mxu0 %v3736
  %5008 = vmatmul.bf16.gmra.mxu0 %v1224
  %v5009 = vpop.f32.mrf.mxu0
  %v5010 = vadd.f32 %v4997, %v5009
  %v5011 = vpop.f32.mrf.mxu0
  %5012 = vdwg.mxu0
  %5013 = vmatpush.bf16.msra.mxu0 %v3751
  %5014 = vmatpush.bf16.msra.mxu0 %v3750
  %5015 = vmatpush.bf16.msra.mxu0 %v3749
  %5016 = vmatpush.bf16.msra.mxu0 %v3748
  %5017 = vmatpush.bf16.msra.mxu0 %v3747
  %5018 = vmatpush.bf16.msra.mxu0 %v3746
  %5019 = vmatpush.bf16.msra.mxu0 %v3745
  %5020 = vmatpush.bf16.msra.mxu0 %v3744
  %5021 = vmatmul.bf16.gmra.mxu0 %v1225
  %v5022 = vpop.f32.mrf.mxu0
  %v5023 = vadd.f32 %v5010, %v5022
  %v5024 = vpop.f32.mrf.mxu0
  %5025 = vdwg.mxu0
  %5026 = vmatpush.bf16.msra.mxu0 %v3759
  %5027 = vmatpush.bf16.msra.mxu0 %v3758
  %5028 = vmatpush.bf16.msra.mxu0 %v3757
  %5029 = vmatpush.bf16.msra.mxu0 %v3756
  %5030 = vmatpush.bf16.msra.mxu0 %v3755
  %5031 = vmatpush.bf16.msra.mxu0 %v3754
  %5032 = vmatpush.bf16.msra.mxu0 %v3753
  %5033 = vmatpush.bf16.msra.mxu0 %v3752
  %5034 = vmatmul.bf16.gmra.mxu0 %v1226
  %v5035 = vpop.f32.mrf.mxu0
  %v5036 = vadd.f32 %v5023, %v5035
  %v5037 = vpop.f32.mrf.mxu0
  %5038 = vdwg.mxu0
  %5039 = vmatpush.bf16.msra.mxu0 %v3767
  %5040 = vmatpush.bf16.msra.mxu0 %v3766
  %5041 = vmatpush.bf16.msra.mxu0 %v3765
  %5042 = vmatpush.bf16.msra.mxu0 %v3764
  %5043 = vmatpush.bf16.msra.mxu0 %v3763
  %5044 = vmatpush.bf16.msra.mxu0 %v3762
  %5045 = vmatpush.bf16.msra.mxu0 %v3761
  %5046 = vmatpush.bf16.msra.mxu0 %v3760
  %5047 = vmatmul.bf16.gmra.mxu0 %v1227
  %v5048 = vpop.f32.mrf.mxu0
  %v5049 = vadd.f32 %v5036, %v5048
  %v5050 = vpop.f32.mrf.mxu0
  %5051 = vdwg.mxu0
  %5052 = vmatpush.bf16.msra.mxu0 %v3775
  %5053 = vmatpush.bf16.msra.mxu0 %v3774
  %5054 = vmatpush.bf16.msra.mxu0 %v3773
  %5055 = vmatpush.bf16.msra.mxu0 %v3772
  %5056 = vmatpush.bf16.msra.mxu0 %v3771
  %5057 = vmatpush.bf16.msra.mxu0 %v3770
  %5058 = vmatpush.bf16.msra.mxu0 %v3769
  %5059 = vmatpush.bf16.msra.mxu0 %v3768
  %5060 = vmatmul.bf16.gmra.mxu0 %v1228
  %v5061 = vpop.f32.mrf.mxu0
  %v5062 = vadd.f32 %v5049, %v5061
  %v5063 = vpop.f32.mrf.mxu0
  %5064 = vdwg.mxu0
  %5065 = vmatpush.bf16.msra.mxu0 %v3783
  %5066 = vmatpush.bf16.msra.mxu0 %v3782
  %5067 = vmatpush.bf16.msra.mxu0 %v3781
  %5068 = vmatpush.bf16.msra.mxu0 %v3780
  %5069 = vmatpush.bf16.msra.mxu0 %v3779
  %5070 = vmatpush.bf16.msra.mxu0 %v3778
  %5071 = vmatpush.bf16.msra.mxu0 %v3777
  %5072 = vmatpush.bf16.msra.mxu0 %v3776
  %5073 = vmatmul.bf16.gmra.mxu0 %v1229
  %v5074 = vpop.f32.mrf.mxu0
  %v5075 = vadd.f32 %v5062, %v5074
  %v5076 = vpop.f32.mrf.mxu0
  %5077 = vdwg.mxu0
  %5078 = vmatpush.bf16.msra.mxu0 %v3791
  %5079 = vmatpush.bf16.msra.mxu0 %v3790
  %5080 = vmatpush.bf16.msra.mxu0 %v3789
  %5081 = vmatpush.bf16.msra.mxu0 %v3788
  %5082 = vmatpush.bf16.msra.mxu0 %v3787
  %5083 = vmatpush.bf16.msra.mxu0 %v3786
  %5084 = vmatpush.bf16.msra.mxu0 %v3785
  %5085 = vmatpush.bf16.msra.mxu0 %v3784
  %5086 = vmatmul.bf16.gmra.mxu0 %v1230
  %v5087 = vpop.f32.mrf.mxu0
  %v5088 = vadd.f32 %v5075, %v5087
  %v5089 = vpop.f32.mrf.mxu0
  %5090 = vdwg.mxu0
  %5091 = vmatpush.bf16.msra.mxu0 %v3799
  %5092 = vmatpush.bf16.msra.mxu0 %v3798
  %5093 = vmatpush.bf16.msra.mxu0 %v3797
  %5094 = vmatpush.bf16.msra.mxu0 %v3796
  %5095 = vmatpush.bf16.msra.mxu0 %v3795
  %5096 = vmatpush.bf16.msra.mxu0 %v3794
  %5097 = vmatpush.bf16.msra.mxu0 %v3793
  %5098 = vmatpush.bf16.msra.mxu0 %v3792
  %5099 = vmatmul.bf16.gmra.mxu0 %v1231
  %v5100 = vpop.f32.mrf.mxu0
  %v5101 = vadd.f32 %v5088, %v5100
  %v5102 = vpop.f32.mrf.mxu0
  %5103 = vdwg.mxu0
  %5104 = vmatpush.bf16.msra.mxu0 %v3807
  %5105 = vmatpush.bf16.msra.mxu0 %v3806
  %5106 = vmatpush.bf16.msra.mxu0 %v3805
  %5107 = vmatpush.bf16.msra.mxu0 %v3804
  %5108 = vmatpush.bf16.msra.mxu0 %v3803
  %5109 = vmatpush.bf16.msra.mxu0 %v3802
  %5110 = vmatpush.bf16.msra.mxu0 %v3801
  %5111 = vmatpush.bf16.msra.mxu0 %v3800
  %5112 = vmatmul.bf16.gmra.mxu0 %v1232
  %v5113 = vpop.f32.mrf.mxu0
  %v5114 = vadd.f32 %v5101, %v5113
  %v5115 = vpop.f32.mrf.mxu0
  %5116 = vdwg.mxu0
  %5117 = vmatpush.bf16.msra.mxu0 %v3815
  %5118 = vmatpush.bf16.msra.mxu0 %v3814
  %5119 = vmatpush.bf16.msra.mxu0 %v3813
  %5120 = vmatpush.bf16.msra.mxu0 %v3812
  %5121 = vmatpush.bf16.msra.mxu0 %v3811
  %5122 = vmatpush.bf16.msra.mxu0 %v3810
  %5123 = vmatpush.bf16.msra.mxu0 %v3809
  %5124 = vmatpush.bf16.msra.mxu0 %v3808
  %5125 = vmatmul.bf16.gmra.mxu0 %v1233
  %v5126 = vpop.f32.mrf.mxu0
  %v5127 = vadd.f32 %v5114, %v5126
  %v5128 = vpop.f32.mrf.mxu0
  %5129 = vdwg.mxu0
  %5130 = vmatpush.bf16.msra.mxu0 %v3823
  %5131 = vmatpush.bf16.msra.mxu0 %v3822
  %5132 = vmatpush.bf16.msra.mxu0 %v3821
  %5133 = vmatpush.bf16.msra.mxu0 %v3820
  %5134 = vmatpush.bf16.msra.mxu0 %v3819
  %5135 = vmatpush.bf16.msra.mxu0 %v3818
  %5136 = vmatpush.bf16.msra.mxu0 %v3817
  %5137 = vmatpush.bf16.msra.mxu0 %v3816
  %5138 = vmatmul.bf16.gmra.mxu0 %v1234
  %v5139 = vpop.f32.mrf.mxu0
  %v5140 = vadd.f32 %v5127, %v5139
  %v5141 = vpop.f32.mrf.mxu0
  %5142 = vdwg.mxu0
  %5143 = vmatpush.bf16.msra.mxu0 %v3831
  %5144 = vmatpush.bf16.msra.mxu0 %v3830
  %5145 = vmatpush.bf16.msra.mxu0 %v3829
  %5146 = vmatpush.bf16.msra.mxu0 %v3828
  %5147 = vmatpush.bf16.msra.mxu0 %v3827
  %5148 = vmatpush.bf16.msra.mxu0 %v3826
  %5149 = vmatpush.bf16.msra.mxu0 %v3825
  %5150 = vmatpush.bf16.msra.mxu0 %v3824
  %5151 = vmatmul.bf16.gmra.mxu0 %v1235
  %v5152 = vpop.f32.mrf.mxu0
  %v5153 = vadd.f32 %v5140, %v5152
  %v5154 = vpop.f32.mrf.mxu0
  %5155 = vdwg.mxu0
  %5156 = vmatpush.bf16.msra.mxu0 %v3839
  %5157 = vmatpush.bf16.msra.mxu0 %v3838
  %5158 = vmatpush.bf16.msra.mxu0 %v3837
  %5159 = vmatpush.bf16.msra.mxu0 %v3836
  %5160 = vmatpush.bf16.msra.mxu0 %v3835
  %5161 = vmatpush.bf16.msra.mxu0 %v3834
  %5162 = vmatpush.bf16.msra.mxu0 %v3833
  %5163 = vmatpush.bf16.msra.mxu0 %v3832
  %5164 = vmatmul.bf16.gmra.mxu0 %v1236
  %v5165 = vpop.f32.mrf.mxu0
  %v5166 = vadd.f32 %v5153, %v5165
  %v5167 = vpop.f32.mrf.mxu0
  %5168 = vdwg.mxu0
  %5169 = vmatpush.bf16.msra.mxu0 %v3847
  %5170 = vmatpush.bf16.msra.mxu0 %v3846
  %5171 = vmatpush.bf16.msra.mxu0 %v3845
  %5172 = vmatpush.bf16.msra.mxu0 %v3844
  %5173 = vmatpush.bf16.msra.mxu0 %v3843
  %5174 = vmatpush.bf16.msra.mxu0 %v3842
  %5175 = vmatpush.bf16.msra.mxu0 %v3841
  %5176 = vmatpush.bf16.msra.mxu0 %v3840
  %5177 = vmatmul.bf16.gmra.mxu0 %v1237
  %v5178 = vpop.f32.mrf.mxu0
  %v5179 = vadd.f32 %v5166, %v5178
  %v5180 = vpop.f32.mrf.mxu0
  %5181 = vdwg.mxu0
  %5182 = vmatpush.bf16.msra.mxu0 %v3855
  %5183 = vmatpush.bf16.msra.mxu0 %v3854
  %5184 = vmatpush.bf16.msra.mxu0 %v3853
  %5185 = vmatpush.bf16.msra.mxu0 %v3852
  %5186 = vmatpush.bf16.msra.mxu0 %v3851
  %5187 = vmatpush.bf16.msra.mxu0 %v3850
  %5188 = vmatpush.bf16.msra.mxu0 %v3849
  %5189 = vmatpush.bf16.msra.mxu0 %v3848
  %5190 = vmatmul.bf16.gmra.mxu0 %v1238
  %v5191 = vpop.f32.mrf.mxu0
  %v5192 = vadd.f32 %v5179, %v5191
  %v5193 = vpop.f32.mrf.mxu0
  %5194 = vdwg.mxu0
  %5195 = vmatpush.bf16.msra.mxu0 %v3863
  %5196 = vmatpush.bf16.msra.mxu0 %v3862
  %5197 = vmatpush.bf16.msra.mxu0 %v3861
  %5198 = vmatpush.bf16.msra.mxu0 %v3860
  %5199 = vmatpush.bf16.msra.mxu0 %v3859
  %5200 = vmatpush.bf16.msra.mxu0 %v3858
  %5201 = vmatpush.bf16.msra.mxu0 %v3857
  %5202 = vmatpush.bf16.msra.mxu0 %v3856
  %5203 = vmatmul.bf16.gmra.mxu0 %v1239
  %v5204 = vpop.f32.mrf.mxu0
  %v5205 = vadd.f32 %v5192, %v5204
  %v5206 = vpop.f32.mrf.mxu0
  %5207 = vdwg.mxu0
  %v5208 = vmax.f32 %v5205, 0.0
  %v5209 = vpack.c.bf16 %v5208, %v5208
  %v5210 = vld [vmem:[%s3] sm:$0xf]
  %v5211 = vld [vmem:[%s3 + $0x4] sm:$0xf]
  %v5212 = vld [vmem:[%s3 + $0x8] sm:$0xf]
  %v5213 = vld [vmem:[%s3 + $0xc] sm:$0xf]
  %v5214 = vld [vmem:[%s3 + $0x10] sm:$0xf]
  %v5215 = vld [vmem:[%s3 + $0x14] sm:$0xf]
  %v5216 = vld [vmem:[%s3 + $0x18] sm:$0xf]
  %v5217 = vld [vmem:[%s3 + $0x1c] sm:$0xf]
  %v5218 = vld [vmem:[%s3 + $0x20] sm:$0xf]
  %v5219 = vld [vmem:[%s3 + $0x24] sm:$0xf]
  %v5220 = vld [vmem:[%s3 + $0x28] sm:$0xf]
  %v5221 = vld [vmem:[%s3 + $0x2c] sm:$0xf]
  %v5222 = vld [vmem:[%s3 + $0x30] sm:$0xf]
  %v5223 = vld [vmem:[%s3 + $0x34] sm:$0xf]
  %v5224 = vld [vmem:[%s3 + $0x38] sm:$0xf]
  %v5225 = vld [vmem:[%s3 + $0x3c] sm:$0xf]
  %v5226 = vld [vmem:[%s4] sm:$0x1]
  %v5228 = vperm.slane %v5226, 0
  %v5246 = vunpack.c.l.b16 %v5210
  %v5247 = vunpack.c.l.b16 %v5211
  %v5248 = vunpack.c.l.b16 %v5212
  %v5249 = vunpack.c.l.b16 %v5213
  %v5250 = vunpack.c.l.b16 %v5214
  %v5251 = vunpack.c.l.b16 %v5215
  %v5252 = vunpack.c.l.b16 %v5216
  %v5253 = vunpack.c.l.b16 %v5217
  %v5254 = vunpack.c.l.b16 %v5218
  %v5255 = vunpack.c.l.b16 %v5219
  %v5256 = vunpack.c.l.b16 %v5220
  %v5257 = vunpack.c.l.b16 %v5221
  %v5258 = vunpack.c.l.b16 %v5222
  %v5259 = vunpack.c.l.b16 %v5223
  %v5260 = vunpack.c.l.b16 %v5224
  %v5261 = vunpack.c.l.b16 %v5225
  %v5262 = vpack.c.b16 %v5247, %v5246
  %v5263 = vpack.c.b16 %v5249, %v5248
  %v5264 = vpack.c.b16 %v5251, %v5250
  %v5265 = vpack.c.b16 %v5253, %v5252
  %v5266 = vpack.c.b16 %v5255, %v5254
  %v5267 = vpack.c.b16 %v5257, %v5256
  %v5268 = vpack.c.b16 %v5259, %v5258
  %v5269 = vpack.c.b16 %v5261, %v5260
  %5278 = vmatpush.bf16.msra.mxu0 %v5269
  %5279 = vmatpush.bf16.msra.mxu0 %v5268
  %5280 = vmatpush.bf16.msra.mxu0 %v5267
  %5281 = vmatpush.bf16.msra.mxu0 %v5266
  %5282 = vmatpush.bf16.msra.mxu0 %v5265
  %5283 = vmatpush.bf16.msra.mxu0 %v5264
  %5284 = vmatpush.bf16.msra.mxu0 %v5263
  %5285 = vmatpush.bf16.msra.mxu0 %v5262
  %5286 = vmatmul.bf16.gmra.mxu0 %v5209
  %v5287 = vpop.f32.mrf.mxu0
  %v5288 = vadd.f32 %v5228, %v5287
  %v5289 = vpop.f32.mrf.mxu0
  %5290 = vdwg.mxu0
  %5291 = vst [vmem:[%s5] sm:$0xff] %v5288
  // Predicated region
  $region22: #{simple_cnn_forward.5} parent=0 // pred_check
    _
  $region23: #{simple_cnn_forward.5} parent=0 // pred_check_branch
    %5293 = sbr.rel (0) target = $region25
  $region24: #{simple_cnn_forward.5} parent=0 // pred_region
    _
  $region25: #{simple_cnn_forward.5} parent=0 // pred_fallthru
    _
  // Predicated region
  $region26: #{simple_cnn_forward.5} parent=0 // pred_check
    _
  $region27: #{simple_cnn_forward.5} parent=0 // pred_check_branch
    %5295 = sbr.rel (0) target = $region29
  $region28: #{simple_cnn_forward.5} parent=0 // pred_region
    _
  $region29: #{simple_cnn_forward.5} parent=0 // pred_fallthru
    _

</llo_original>
